<compile_context>
chip_gen: v6e
topology: v6e:2x2x1
jax: 0.10.0
libtpu: 0.0.40
codegen_flags: <defaults>
</compile_context>

<pallas_src>
import functools
import math

import numpy as np
import jax
import jax.numpy as jnp
from jax.experimental import pallas as pl
from jax.experimental.pallas import tpu as pltpu

F32 = jnp.float32
LANES = 128                                  # all channel axes are zero-padded to 128 lanes

# ---- static toy geometry (input 32x32, ResNet-50-like topology with scaled-down channels) ----
IN_HW = 32
STEM_HW = 16                                 # after 7x7 / stride-2
STEM_HP = STEM_HW + 2                        # stem map padded by 1 for the 3x3 maxpool
STEM_K = 256                                 # 7*7*3 taps + bias column, padded to 256 lanes
POOL_M1 = (STEM_HW - 1) * STEM_HP + STEM_HW  # rows of the stride-1 shifted-slice pool output
L1_HW, L2_HW, L3_HW = 8, 4, 2                # spatial sizes of layer1/2/3 outputs


# ---------------------------------------------------------------------------
# The fused backbone kernel (one program per image)
# ---------------------------------------------------------------------------
def _backbone_kernel(stem_lhs_ref, w_stem_ref, s_pool_ref, s_l1_ref, s_l2_ref, s_l3_ref,
                     w1x1_ref, wconv2_ref, b1sp_ref, bias_ref,
                     wt_ref, bt_ref, w_gru_ref, b_gru_ref, w_fc_ref, b_fc_ref,
                     feat_ref, scale_ref,
                     stem_scr, x0_scr, h1_scr, x1_scr, x2_scr):
    dot = functools.partial(jnp.dot, preferred_element_type=F32)

    # ---- stem: 7x7/s2 conv (+folded BN, bias as an extra im2col column) + ReLU ----------------
    # stem_lhs rows are the padded 18x18 output grid; border rows (incl. the bias column) are
    # zero, so the stored map has an exact zero border -> valid zero padding for the maxpool
    # because everything is post-ReLU (>= 0).
    stem_scr[...] = jnp.maximum(dot(stem_lhs_ref[...], w_stem_ref[...]), 0.0)

    # ---- 3x3/s2/p1 maxpool: stride-1 max over shifted flat slices, then 0/1 row selection -----
    pooled = stem_scr[pl.ds(0, POOL_M1), :]
    for i in range(3):
        for j in range(3):
            if i == 0 and j == 0:
                continue
            pooled = jnp.maximum(pooled, stem_scr[pl.ds(i * STEM_HP + j, POOL_M1), :])
    x0_scr[...] = dot(s_pool_ref[...], pooled)          # (100,128): padded 10x10, zero border

    # ---- bottleneck block (frozen BN folded, ReLU / residual / downsample fused) --------------
    def bottleneck(x_ref, sel_ref, li, hp, wp, h, w):
        mp = hp * wp                                     # rows of the padded input layout
        m1 = (h - 1) * wp + w                            # rows of the stride-1 "full" layout
        w1, w3, wd = w1x1_ref[3 * li], w1x1_ref[3 * li + 1], w1x1_ref[3 * li + 2]
        b2 = bias_ref[3 * li + 0:3 * li + 1, :]
        b3 = bias_ref[3 * li + 1:3 * li + 2, :]
        bd = bias_ref[3 * li + 2:3 * li + 3, :]
        # conv1 (1x1) + ReLU.  The bias is pre-masked to the spatial interior (b1sp), so the
        # zero-padding border stays exactly zero for conv2's taps.
        h1 = jnp.maximum(dot(x_ref[pl.ds(0, mp), :], w1) + b1sp_ref[li, pl.ds(0, mp), :], 0.0)
        h1_scr[pl.ds(0, mp), :] = h1
        # conv2 (3x3, stride folded into the selection below): K-packed im2col built from 9
        # lane-dense tap slices -> one MXU matmul with K = 9*128.
        taps = [h1_scr[pl.ds(i * wp + j, m1), :] for i in range(3) for j in range(3)]
        c2 = jnp.maximum(dot(jnp.concatenate(taps, axis=1), wconv2_ref[li]) + b2, 0.0)
        # conv3 (1x1) + downsample (1x1) + residual add + ReLU, all in registers, stored once.
        res = x_ref[pl.ds(wp + 1, m1), :]
        o_full = jnp.maximum(dot(c2, w3) + b3 + dot(res, wd) + bd, 0.0)
        # Stride-s subsample + re-embed into the next padded layout via a 0/1 selection matmul
        # (rows of `sel` for border positions are all-zero -> next layer's zero padding is free).
        return dot(sel_ref[...], o_full)

    def gap_trans(xval, n_valid, k):
        # GAP commutes with the (linear, bias-only) 1x1 trans conv; border rows are zero.
        g = jnp.sum(xval, axis=0, keepdims=True) * (1.0 / n_valid)
        return dot(g, wt_ref[k]) + bt_ref[k:k + 1, :]

    x1 = bottleneck(x0_scr, s_l1_ref, 0, 10, 10, 8, 8)   # (100,128) padded 10x10
    x1_scr[...] = x1
    g1 = gap_trans(x1, 64.0, 0)

    x2 = bottleneck(x1_scr, s_l2_ref, 1, 10, 10, 8, 8)   # (36,128) padded 6x6
    x2_scr[...] = x2
    g2 = gap_trans(x2, 16.0, 1)

    x3 = bottleneck(x2_scr, s_l3_ref, 2, 6, 6, 4, 4)     # (4,128) compact 2x2
    feat_ref[...] = x3
    g3 = gap_trans(x3, 4.0, 2)

    # ---- bidirectional GRU over T=3 + FC + sigmoid --------------------------------------------
    def gru_cell(x, h, d):
        gi = dot(x, w_gru_ref[2 * d + 0]) + b_gru_ref[2 * d + 0:2 * d + 1, :]
        gh = dot(h, w_gru_ref[2 * d + 1]) + b_gru_ref[2 * d + 1:2 * d + 2, :]
        r = jax.nn.sigmoid(gi[:, 0:LANES] + gh[:, 0:LANES])
        z = jax.nn.sigmoid(gi[:, LANES:2 * LANES] + gh[:, LANES:2 * LANES])
        n = jnp.tanh(gi[:, 2 * LANES:3 * LANES] + r * gh[:, 2 * LANES:3 * LANES])
        return (1.0 - z) * n + z * h

    # The reference consumes rnn_out[:, -1, :]: forward direction = hidden after all 3 steps,
    # backward direction = its output AT the last time index, i.e. exactly one step on g3.
    h_f = jnp.zeros_like(g1)
    for g in (g1, g2, g3):
        h_f = gru_cell(g, h_f, 0)
    h_b = gru_cell(g3, jnp.zeros_like(g3), 1)

    y = dot(h_f, w_fc_ref[0]) + dot(h_b, w_fc_ref[1]) + b_fc_ref[...]
    scale_ref[...] = jax.nn.sigmoid(y)


# ---------------------------------------------------------------------------
# XLA-side glue: K-packed im2col of the stem conv on the raw input (runs once)
# ---------------------------------------------------------------------------
def _stem_im2col(x_nchw):
    b = x_nchw.shape[0]
    x = jnp.transpose(x_nchw, (0, 2, 3, 1))                              # NHWC
    xp = jnp.pad(x, ((0, 0), (3, 3), (3, 3), (0, 0)))
    patches = [xp[:, di:di + 2 * STEM_HW:2, dj:dj + 2 * STEM_HW:2, :]
               for di in range(7) for dj in range(7)]
    col = jnp.concatenate(patches, axis=-1)                              # (B,16,16,147)
    ones = jnp.ones(col.shape[:3] + (1,), col.dtype)                     # bias column
    col = jnp.concatenate([col, ones], axis=-1)                          # (B,16,16,148)
    col = jnp.pad(col, ((0, 0), (0, 0), (0, 0), (0, STEM_K - col.shape[-1])))
    col = jnp.pad(col, ((0, 0), (1, 1), (1, 1), (0, 0)))                 # zero border rows (18x18)
    return col.reshape(b, STEM_HP * STEM_HP, STEM_K)


def _full_spec(a):
    nd = a.ndim
    return pl.BlockSpec(a.shape, lambda b, _n=nd: (0,) * _n)


def rcnn_backbone_forward(x, prep, *, out_channels, channels):
    batch = x.shape[0]
    stem_lhs = _stem_im2col(x)
    operands = [stem_lhs, prep["w_stem"], prep["s_pool"], prep["s_l1"], prep["s_l2"],
                prep["s_l3"], prep["w1x1"], prep["wconv2"], prep["b1sp"], prep["bias"],
                prep["wt"], prep["bt"], prep["w_gru"], prep["b_gru"], prep["w_fc"], prep["b_fc"]]
    in_specs = ([pl.BlockSpec((None, STEM_HP * STEM_HP, STEM_K), lambda b: (b, 0, 0))]
                + [_full_spec(a) for a in operands[1:]])
    feat, scale = pl.pallas_call(
        _backbone_kernel,
        out_shape=(jax.ShapeDtypeStruct((batch, 4, LANES), F32),
                   jax.ShapeDtypeStruct((batch, 1, LANES), F32)),
        grid=(batch,),
        in_specs=in_specs,
        out_specs=(pl.BlockSpec((None, 4, LANES), lambda b: (b, 0, 0)),
                   pl.BlockSpec((None, 1, LANES), lambda b: (b, 0, 0))),
        scratch_shapes=[pltpu.VMEM((STEM_HP * STEM_HP, LANES), F32),   # padded stem map
                        pltpu.VMEM((100, LANES), F32),                 # x0 (padded 10x10)
                        pltpu.VMEM((100, LANES), F32),                 # h1 (reused per block)
                        pltpu.VMEM((100, LANES), F32),                 # x1 (padded 10x10)
                        pltpu.VMEM((36, LANES), F32)],                 # x2 (padded 6x6)
        compiler_params=pltpu.CompilerParams(dimension_semantics=("parallel",)),
    )(*operands)
    out = jnp.transpose(feat[:, :, :out_channels].reshape(batch, L3_HW, L3_HW, out_channels),
                        (0, 3, 1, 2))
    return out, scale.reshape(batch, LANES)[:, :channels]


# ---------------------------------------------------------------------------
# Parameter construction (PyTorch layouts, deterministic)
# ---------------------------------------------------------------------------
class PInit:
    def __init__(self, key):
        self.key = key

    def next(self):
        self.key, k = jax.random.split(self.key)
        return k

    def conv(self, cout, cin, kh, kw):
        fan_in = cin * kh * kw
        return jax.random.normal(self.next(), (cout, cin, kh, kw), F32) / math.sqrt(fan_in)

    def bn(self, c):
        return {"gamma": jax.random.uniform(self.next(), (c,), minval=0.5, maxval=1.5),
                "beta": 0.1 * jax.random.normal(self.next(), (c,)),
                "mean": 0.1 * jax.random.normal(self.next(), (c,)),
                "var": jax.random.uniform(self.next(), (c,), minval=0.5, maxval=1.5)}

    def linear(self, cin, cout):
        lim = 1.0 / math.sqrt(cin)
        return {"w": jax.random.uniform(self.next(), (cout, cin), minval=-lim, maxval=lim),
                "b": jax.random.uniform(self.next(), (cout,), minval=-lim, maxval=lim)}

    def gru_dir(self, input_size, hidden):
        lim = 1.0 / math.sqrt(hidden)
        return {"wih": jax.random.uniform(self.next(), (3 * hidden, input_size), minval=-lim, maxval=lim),
                "whh": jax.random.uniform(self.next(), (3 * hidden, hidden), minval=-lim, maxval=lim),
                "bih": jax.random.uniform(self.next(), (3 * hidden,), minval=-lim, maxval=lim),
                "bhh": jax.random.uniform(self.next(), (3 * hidden,), minval=-lim, maxval=lim)}


def _bottleneck_params(pi, cin, planes):
    out = planes * 4
    return {"conv1_w": pi.conv(planes, cin, 1, 1), "bn1": pi.bn(planes),
            "conv2_w": pi.conv(planes, planes, 3, 3), "bn2": pi.bn(planes),
            "conv3_w": pi.conv(out, planes, 1, 1), "bn3": pi.bn(out),
            "down_w": pi.conv(out, cin, 1, 1), "down_bn": pi.bn(out)}


def build_params(key, channels=64, reduction=16):
    pi = PInit(key)
    hidden = channels // reduction
    params = {
        # small stand-in for the ResNet-50 backbone (channel counts scaled down)
        "stem": {"conv_w": pi.conv(4, 3, 7, 7), "bn": pi.bn(4)},
        "layer1": _bottleneck_params(pi, 4, 2),       # out 8,  stride 1
        "layer2": _bottleneck_params(pi, 8, 4),       # out 16, stride 2
        "layer3": _bottleneck_params(pi, 16, 8),      # out 32, stride 2
        "trans1": {"w": pi.conv(channels, 8, 1, 1), "b": 0.01 * jax.random.normal(pi.next(), (channels,))},
        "trans2": {"w": pi.conv(channels, 16, 1, 1), "b": 0.01 * jax.random.normal(pi.next(), (channels,))},
        "trans3": {"w": pi.conv(channels, 32, 1, 1), "b": 0.01 * jax.random.normal(pi.next(), (channels,))},
        "gru": {"fwd": pi.gru_dir(channels, hidden), "bwd": pi.gru_dir(channels, hidden)},
        "fc": pi.linear(2 * hidden, channels),
    }
    return params, hidden, channels


# ---------------------------------------------------------------------------
# Packing: BN folding, lane-dense layouts, K-packed taps, selection matrices
# ---------------------------------------------------------------------------
def _fold_bn(w, bn, eps=1e-5):
    scale = bn["gamma"] / jnp.sqrt(bn["var"] + eps)
    shift = bn["beta"] - bn["mean"] * scale
    return w * scale[:, None, None, None], shift


def _pad2(m, rows, cols):
    return jnp.pad(m, ((0, rows - m.shape[0]), (0, cols - m.shape[1]))).astype(F32)


def _pack_1x1(w):                                     # (cout,cin,1,1) -> (128,128)
    cout, cin = w.shape[:2]
    return _pad2(w.reshape(cout, cin).T, LANES, LANES)


def _pack_3x3_kpacked(w):                             # (cout,cin,3,3) -> (9*128,128)
    cout, cin = w.shape[:2]
    wt = jnp.transpose(w, (2, 3, 1, 0))
    wt = jnp.pad(wt, ((0, 0), (0, 0), (0, LANES - cin), (0, LANES - cout)))
    return wt.reshape(9 * LANES, LANES).astype(F32)


def _pack_stem(w, b):                                 # (cout,cin,7,7)+bias -> (STEM_K,128)
    cout, cin, kh, kw = w.shape
    wm = jnp.transpose(w, (2, 3, 1, 0)).reshape(kh * kw * cin, cout)
    wm = jnp.concatenate([wm, b.reshape(1, cout)], axis=0)       # bias row = im2col ones column
    return _pad2(wm, STEM_K, LANES)


def _pad_bias(b):
    return jnp.pad(b, (0, LANES - b.shape[0])).reshape(1, LANES).astype(F32)


def _interior_rows(hp, wp, rows_total):
    m = np.zeros((rows_total, 1), np.float32)
    for r in range(1, hp - 1):
        for c in range(1, wp - 1):
            m[r * wp + c, 0] = 1.0
    return m


def _embed_select(h_out, w_out, stride, wp_in, m_src, compact=False):
    """0/1 matrix mapping stride-1 'full' rows (pitch wp_in) -> next padded/compact layout."""
    wp_out = w_out + 2
    n_rows = h_out * w_out if compact else (h_out + 2) * (w_out + 2)
    s = np.zeros((n_rows, m_src), np.float32)
    for r in range(h_out):
        for c in range(w_out):
            src = stride * r * wp_in + stride * c
            dst = r * w_out + c if compact else (r + 1) * wp_out + (c + 1)
            s[dst, src] = 1.0
    return s


def _pack_gates_in(w, hidden):                        # (3*hidden,in) -> (128, 3*128) [r|z|n]
    in_dim = w.shape[1]
    blocks = []
    for g in range(3):
        wg = w[g * hidden:(g + 1) * hidden, :].T
        blocks.append(jnp.pad(wg, ((0, LANES - in_dim), (0, LANES - hidden))))
    return jnp.concatenate(blocks, axis=1).astype(F32)


def _pack_gate_bias(b, hidden):
    blocks = [jnp.pad(b[g * hidden:(g + 1) * hidden], (0, LANES - hidden)) for g in range(3)]
    return jnp.concatenate(blocks).reshape(1, 3 * LANES).astype(F32)


def _pack_fc(fc, channels, hidden):
    w = fc["w"]
    wf = jnp.pad(w[:, 0:hidden].T, ((0, LANES - hidden), (0, LANES - channels)))
    wb = jnp.pad(w[:, hidden:2 * hidden].T, ((0, LANES - hidden), (0, LANES - channels)))
    bp = jnp.pad(fc["b"], (0, LANES - channels)).reshape(1, LANES)
    return wf.astype(F32), wb.astype(F32), bp.astype(F32)


def prepare_params(params, channels, hidden):
    wf, bf = _fold_bn(params["stem"]["conv_w"], params["stem"]["bn"])
    prep = {"w_stem": _pack_stem(wf, bf)}

    w1x1, wconv2, bias_rows, b1sp_rows = [], [], [], []
    for name, (hp, wp) in zip(("layer1", "layer2", "layer3"), ((10, 10), (10, 10), (6, 6))):
        p = params[name]
        w1, b1 = _fold_bn(p["conv1_w"], p["bn1"])
        w2, b2 = _fold_bn(p["conv2_w"], p["bn2"])
        w3, b3 = _fold_bn(p["conv3_w"], p["bn3"])
        wd, bd = _fold_bn(p["down_w"], p["down_bn"])
        w1x1 += [_pack_1x1(w1), _pack_1x1(w3), _pack_1x1(wd)]
        wconv2.append(_pack_3x3_kpacked(w2))
        bias_rows += [_pad_bias(b2), _pad_bias(b3), _pad_bias(bd)]
        # conv1 bias pre-masked to the spatial interior -> zero padding border stays zero
        b1sp_rows.append(jnp.asarray(_interior_rows(hp, wp, 100)) * _pad_bias(b1))
    prep.update({
        "s_pool": jnp.asarray(_embed_select(L1_HW, L1_HW, 2, STEM_HP, POOL_M1)),
        "s_l1": jnp.asarray(_embed_select(L1_HW, L1_HW, 1, 10, 78)),
        "s_l2": jnp.asarray(_embed_select(L2_HW, L2_HW, 2, 10, 78)),
        "s_l3": jnp.asarray(_embed_select(L3_HW, L3_HW, 2, 6, 22, compact=True)),
        "w1x1": jnp.stack(w1x1),                       # (9,128,128)
        "wconv2": jnp.stack(wconv2),                   # (3,1152,128)
        "bias": jnp.concatenate(bias_rows, axis=0),    # (9,128)
        "b1sp": jnp.stack(b1sp_rows),                  # (3,100,128)
    })

    wt, bt = [], []
    for tname in ("trans1", "trans2", "trans3"):
        wt.append(_pack_1x1(params[tname]["w"]))
        bt.append(_pad_bias(params[tname]["b"]))
    prep["wt"] = jnp.stack(wt)                         # (3,128,128)
    prep["bt"] = jnp.concatenate(bt, axis=0)           # (3,128)

    wg, bg = [], []
    for dname in ("fwd", "bwd"):
        g = params["gru"][dname]
        wg += [_pack_gates_in(g["wih"], hidden), _pack_gates_in(g["whh"], hidden)]
        bg += [_pack_gate_bias(g["bih"], hidden), _pack_gate_bias(g["bhh"], hidden)]
    prep["w_gru"] = jnp.stack(wg)                      # (4,128,384)
    prep["b_gru"] = jnp.concatenate(bg, axis=0)        # (4,384)

    wfc_f, wfc_b, bfc = _pack_fc(params["fc"], channels, hidden)
    prep["w_fc"] = jnp.stack([wfc_f, wfc_b])           # (2,128,128)
    prep["b_fc"] = bfc                                 # (1,128)

    out_channels = int(params["layer3"]["conv3_w"].shape[0])
    return prep, out_channels


# ---------------------------------------------------------------------------
if __name__ == "__main__":
    key = jax.random.PRNGKey(0)
    pkey, xkey = jax.random.split(key)
    params, hidden, channels = build_params(pkey, channels=64, reduction=16)
    prep, out_channels = prepare_params(params, channels=channels, hidden=hidden)

    x = jax.random.normal(xkey, (2, 3, IN_HW, IN_HW), F32)   # NCHW like PyTorch

    fwd = jax.jit(functools.partial(rcnn_backbone_forward,
                                    out_channels=out_channels, channels=channels))
    out, scale = fwd(x, prep)
    jax.block_until_ready((out, scale))

    assert out.shape == (2, 32, 2, 2), out.shape       # layer3 feature map (NCHW)
    assert scale.shape == (2, 64), scale.shape         # channel attention scale
    assert bool(jnp.all(jnp.isfinite(out)))
    assert bool(jnp.all((scale >= 0.0) & (scale <= 1.0)))
    print("KERNEL_OK")
</pallas_src>

<mosaic_0001>
module attributes {stable_mosaic.version = 11 : i64} {
  func.func @_backbone_kernel(%arg0: i32, %arg1: memref<1x324x256xf32, #tpu.memory_space<vmem>>, %arg2: memref<256x128xf32, #tpu.memory_space<vmem>>, %arg3: memref<100x286xf32, #tpu.memory_space<vmem>>, %arg4: memref<100x78xf32, #tpu.memory_space<vmem>>, %arg5: memref<36x78xf32, #tpu.memory_space<vmem>>, %arg6: memref<4x22xf32, #tpu.memory_space<vmem>>, %arg7: memref<9x128x128xf32, #tpu.memory_space<vmem>>, %arg8: memref<3x1152x128xf32, #tpu.memory_space<vmem>>, %arg9: memref<3x100x128xf32, #tpu.memory_space<vmem>>, %arg10: memref<9x128xf32, #tpu.memory_space<vmem>>, %arg11: memref<3x128x128xf32, #tpu.memory_space<vmem>>, %arg12: memref<3x128xf32, #tpu.memory_space<vmem>>, %arg13: memref<4x128x384xf32, #tpu.memory_space<vmem>>, %arg14: memref<4x384xf32, #tpu.memory_space<vmem>>, %arg15: memref<2x128x128xf32, #tpu.memory_space<vmem>>, %arg16: memref<1x128xf32, #tpu.memory_space<vmem>>, %arg17: memref<1x4x128xf32, #tpu.memory_space<vmem>>, %arg18: memref<1x1x128xf32, #tpu.memory_space<vmem>>, %arg19: memref<324x128xf32, #tpu.memory_space<vmem>>, %arg20: memref<100x128xf32, #tpu.memory_space<vmem>>, %arg21: memref<100x128xf32, #tpu.memory_space<vmem>>, %arg22: memref<100x128xf32, #tpu.memory_space<vmem>>, %arg23: memref<36x128xf32, #tpu.memory_space<vmem>>) attributes {dimension_semantics = [#tpu.dimension_semantics<parallel>], iteration_bounds = array<i64: 2>, scalar_prefetch = 0 : i64, scratch_operands = 5 : i64, tpu.core_type = #tpu.core_type<tc>, window_params = [{transform_indices = @transform_0, window_bounds = array<i64: 1, 324, 256>}, {pipeline_mode = #tpu.pipeline_mode<synchronous>, transform_indices = @transform_1, window_bounds = array<i64: 256, 128>}, {pipeline_mode = #tpu.pipeline_mode<synchronous>, transform_indices = @transform_2, window_bounds = array<i64: 100, 286>}, {pipeline_mode = #tpu.pipeline_mode<synchronous>, transform_indices = @transform_3, window_bounds = array<i64: 100, 78>}, {pipeline_mode = #tpu.pipeline_mode<synchronous>, transform_indices = @transform_4, window_bounds = array<i64: 36, 78>}, {pipeline_mode = #tpu.pipeline_mode<synchronous>, transform_indices = @transform_5, window_bounds = array<i64: 4, 22>}, {pipeline_mode = #tpu.pipeline_mode<synchronous>, transform_indices = @transform_6, window_bounds = array<i64: 9, 128, 128>}, {pipeline_mode = #tpu.pipeline_mode<synchronous>, transform_indices = @transform_7, window_bounds = array<i64: 3, 1152, 128>}, {pipeline_mode = #tpu.pipeline_mode<synchronous>, transform_indices = @transform_8, window_bounds = array<i64: 3, 100, 128>}, {pipeline_mode = #tpu.pipeline_mode<synchronous>, transform_indices = @transform_9, window_bounds = array<i64: 9, 128>}, {pipeline_mode = #tpu.pipeline_mode<synchronous>, transform_indices = @transform_10, window_bounds = array<i64: 3, 128, 128>}, {pipeline_mode = #tpu.pipeline_mode<synchronous>, transform_indices = @transform_11, window_bounds = array<i64: 3, 128>}, {pipeline_mode = #tpu.pipeline_mode<synchronous>, transform_indices = @transform_12, window_bounds = array<i64: 4, 128, 384>}, {pipeline_mode = #tpu.pipeline_mode<synchronous>, transform_indices = @transform_13, window_bounds = array<i64: 4, 384>}, {pipeline_mode = #tpu.pipeline_mode<synchronous>, transform_indices = @transform_14, window_bounds = array<i64: 2, 128, 128>}, {pipeline_mode = #tpu.pipeline_mode<synchronous>, transform_indices = @transform_15, window_bounds = array<i64: 1, 128>}, {transform_indices = @transform_16, window_bounds = array<i64: 1, 4, 128>}, {transform_indices = @transform_17, window_bounds = array<i64: 1, 1, 128>}]} {
    %c0 = arith.constant 0 : index
    %c0_0 = arith.constant 0 : index
    %c0_1 = arith.constant 0 : index
    %0 = vector.load %arg1[%c0, %c0_0, %c0_1] : memref<1x324x256xf32, #tpu.memory_space<vmem>>, vector<1x324x256xf32>
    %1 = vector.shape_cast %0 : vector<1x324x256xf32> to vector<324x256xf32>
    %c0_2 = arith.constant 0 : index
    %c0_3 = arith.constant 0 : index
    %2 = vector.load %arg2[%c0_2, %c0_3] : memref<256x128xf32, #tpu.memory_space<vmem>>, vector<256x128xf32>
    %cst = arith.constant dense<0.000000e+00> : vector<324x128xf32>
    %3 = tpu.matmul %1, %2, %cst {dimension_numbers = #tpu.dot_dimension_numbers<[1], [0], [0], [1], [0, 0, 1, 1], [], []>} : vector<324x256xf32>, vector<256x128xf32>, vector<324x128xf32> -> vector<324x128xf32>
    %cst_4 = arith.constant 0.000000e+00 : f32
    %4 = vector.broadcast %cst_4 : f32 to vector<324x128xf32>
    %5 = arith.maximumf %3, %4 : vector<324x128xf32>
    %c0_5 = arith.constant 0 : index
    %c0_6 = arith.constant 0 : index
    %6 = vector.load %arg19[%c0_5, %c0_6] : memref<324x128xf32, #tpu.memory_space<vmem>>, vector<324x128xf32>
    tpu.vector_store %arg19[%c0_5, %c0_6], %5 {strides = array<i32>} : memref<324x128xf32, #tpu.memory_space<vmem>>, vector<324x128xf32>,
    %c0_7 = arith.constant 0 : index
    %c0_8 = arith.constant 0 : index
    %7 = vector.load %arg19[%c0_7, %c0_8] : memref<324x128xf32, #tpu.memory_space<vmem>>, vector<286x128xf32>
    %c1 = arith.constant 1 : index
    %c0_9 = arith.constant 0 : index
    %8 = vector.load %arg19[%c1, %c0_9] : memref<324x128xf32, #tpu.memory_space<vmem>>, vector<286x128xf32>
    %9 = arith.maximumf %7, %8 : vector<286x128xf32>
    %c2 = arith.constant 2 : index
    %c0_10 = arith.constant 0 : index
    %10 = vector.load %arg19[%c2, %c0_10] : memref<324x128xf32, #tpu.memory_space<vmem>>, vector<286x128xf32>
    %11 = arith.maximumf %9, %10 : vector<286x128xf32>
    %c18 = arith.constant 18 : index
    %c0_11 = arith.constant 0 : index
    %12 = vector.load %arg19[%c18, %c0_11] : memref<324x128xf32, #tpu.memory_space<vmem>>, vector<286x128xf32>
    %13 = arith.maximumf %11, %12 : vector<286x128xf32>
    %c19 = arith.constant 19 : index
    %c0_12 = arith.constant 0 : index
    %14 = vector.load %arg19[%c19, %c0_12] : memref<324x128xf32, #tpu.memory_space<vmem>>, vector<286x128xf32>
    %15 = arith.maximumf %13, %14 : vector<286x128xf32>
    %c20 = arith.constant 20 : index
    %c0_13 = arith.constant 0 : index
    %16 = vector.load %arg19[%c20, %c0_13] : memref<324x128xf32, #tpu.memory_space<vmem>>, vector<286x128xf32>
    %17 = arith.maximumf %15, %16 : vector<286x128xf32>
    %c36 = arith.constant 36 : index
    %c0_14 = arith.constant 0 : index
    %18 = vector.load %arg19[%c36, %c0_14] : memref<324x128xf32, #tpu.memory_space<vmem>>, vector<286x128xf32>
    %19 = arith.maximumf %17, %18 : vector<286x128xf32>
    %c37 = arith.constant 37 : index
    %c0_15 = arith.constant 0 : index
    %20 = vector.load %arg19[%c37, %c0_15] : memref<324x128xf32, #tpu.memory_space<vmem>>, vector<286x128xf32>
    %21 = arith.maximumf %19, %20 : vector<286x128xf32>
    %c38 = arith.constant 38 : index
    %c0_16 = arith.constant 0 : index
    %22 = vector.load %arg19[%c38, %c0_16] : memref<324x128xf32, #tpu.memory_space<vmem>>, vector<286x128xf32>
    %23 = arith.maximumf %21, %22 : vector<286x128xf32>
    %c0_17 = arith.constant 0 : index
    %c0_18 = arith.constant 0 : index
    %24 = vector.load %arg3[%c0_17, %c0_18] : memref<100x286xf32, #tpu.memory_space<vmem>>, vector<100x286xf32>
    %cst_19 = arith.constant dense<0.000000e+00> : vector<100x128xf32>
    %25 = tpu.matmul %24, %23, %cst_19 {dimension_numbers = #tpu.dot_dimension_numbers<[1], [0], [0], [1], [0, 0, 1, 1], [], []>} : vector<100x286xf32>, vector<286x128xf32>, vector<100x128xf32> -> vector<100x128xf32>
    %c0_20 = arith.constant 0 : index
    %c0_21 = arith.constant 0 : index
    %26 = vector.load %arg20[%c0_20, %c0_21] : memref<100x128xf32, #tpu.memory_space<vmem>>, vector<100x128xf32>
    tpu.vector_store %arg20[%c0_20, %c0_21], %25 {strides = array<i32>} : memref<100x128xf32, #tpu.memory_space<vmem>>, vector<100x128xf32>,
    %c0_22 = arith.constant 0 : index
    %c0_23 = arith.constant 0 : index
    %c0_24 = arith.constant 0 : index
    %27 = vector.load %arg7[%c0_22, %c0_23, %c0_24] : memref<9x128x128xf32, #tpu.memory_space<vmem>>, vector<1x128x128xf32>
    %28 = vector.shape_cast %27 : vector<1x128x128xf32> to vector<128x128xf32>
    %c1_25 = arith.constant 1 : index
    %c0_26 = arith.constant 0 : index
    %c0_27 = arith.constant 0 : index
    %29 = vector.load %arg7[%c1_25, %c0_26, %c0_27] : memref<9x128x128xf32, #tpu.memory_space<vmem>>, vector<1x128x128xf32>
    %30 = vector.shape_cast %29 : vector<1x128x128xf32> to vector<128x128xf32>
    %c2_28 = arith.constant 2 : index
    %c0_29 = arith.constant 0 : index
    %c0_30 = arith.constant 0 : index
    %31 = vector.load %arg7[%c2_28, %c0_29, %c0_30] : memref<9x128x128xf32, #tpu.memory_space<vmem>>, vector<1x128x128xf32>
    %32 = vector.shape_cast %31 : vector<1x128x128xf32> to vector<128x128xf32>
    %c0_31 = arith.constant 0 : index
    %c0_32 = arith.constant 0 : index
    %33 = vector.load %arg10[%c0_31, %c0_32] : memref<9x128xf32, #tpu.memory_space<vmem>>, vector<1x128xf32>
    %c1_33 = arith.constant 1 : index
    %c0_34 = arith.constant 0 : index
    %34 = vector.load %arg10[%c1_33, %c0_34] : memref<9x128xf32, #tpu.memory_space<vmem>>, vector<1x128xf32>
    %c2_35 = arith.constant 2 : index
    %c0_36 = arith.constant 0 : index
    %35 = vector.load %arg10[%c2_35, %c0_36] : memref<9x128xf32, #tpu.memory_space<vmem>>, vector<1x128xf32>
    %c0_37 = arith.constant 0 : index
    %c0_38 = arith.constant 0 : index
    %36 = vector.load %arg20[%c0_37, %c0_38] : memref<100x128xf32, #tpu.memory_space<vmem>>, vector<100x128xf32>
    %cst_39 = arith.constant dense<0.000000e+00> : vector<100x128xf32>
    %37 = tpu.matmul %36, %28, %cst_39 {dimension_numbers = #tpu.dot_dimension_numbers<[1], [0], [0], [1], [0, 0, 1, 1], [], []>} : vector<100x128xf32>, vector<128x128xf32>, vector<100x128xf32> -> vector<100x128xf32>
    %c0_40 = arith.constant 0 : index
    %c0_41 = arith.constant 0 : index
    %c0_42 = arith.constant 0 : index
    %38 = vector.load %arg9[%c0_40, %c0_41, %c0_42] : memref<3x100x128xf32, #tpu.memory_space<vmem>>, vector<1x100x128xf32>
    %39 = vector.shape_cast %38 : vector<1x100x128xf32> to vector<100x128xf32>
    %40 = arith.addf %37, %39 : vector<100x128xf32>
    %cst_43 = arith.constant 0.000000e+00 : f32
    %41 = vector.broadcast %cst_43 : f32 to vector<100x128xf32>
    %42 = arith.maximumf %40, %41 : vector<100x128xf32>
    %c0_44 = arith.constant 0 : index
    %c0_45 = arith.constant 0 : index
    %43 = vector.load %arg21[%c0_44, %c0_45] : memref<100x128xf32, #tpu.memory_space<vmem>>, vector<100x128xf32>
    tpu.vector_store %arg21[%c0_44, %c0_45], %42 {strides = array<i32>} : memref<100x128xf32, #tpu.memory_space<vmem>>, vector<100x128xf32>,
    %c0_46 = arith.constant 0 : index
    %c0_47 = arith.constant 0 : index
    %44 = vector.load %arg21[%c0_46, %c0_47] : memref<100x128xf32, #tpu.memory_space<vmem>>, vector<78x128xf32>
    %c1_48 = arith.constant 1 : index
    %c0_49 = arith.constant 0 : index
    %45 = vector.load %arg21[%c1_48, %c0_49] : memref<100x128xf32, #tpu.memory_space<vmem>>, vector<78x128xf32>
    %c2_50 = arith.constant 2 : index
    %c0_51 = arith.constant 0 : index
    %46 = vector.load %arg21[%c2_50, %c0_51] : memref<100x128xf32, #tpu.memory_space<vmem>>, vector<78x128xf32>
    %c10 = arith.constant 10 : index
    %c0_52 = arith.constant 0 : index
    %47 = vector.load %arg21[%c10, %c0_52] : memref<100x128xf32, #tpu.memory_space<vmem>>, vector<78x128xf32>
    %c11 = arith.constant 11 : index
    %c0_53 = arith.constant 0 : index
    %48 = vector.load %arg21[%c11, %c0_53] : memref<100x128xf32, #tpu.memory_space<vmem>>, vector<78x128xf32>
    %c12 = arith.constant 12 : index
    %c0_54 = arith.constant 0 : index
    %49 = vector.load %arg21[%c12, %c0_54] : memref<100x128xf32, #tpu.memory_space<vmem>>, vector<78x128xf32>
    %c20_55 = arith.constant 20 : index
    %c0_56 = arith.constant 0 : index
    %50 = vector.load %arg21[%c20_55, %c0_56] : memref<100x128xf32, #tpu.memory_space<vmem>>, vector<78x128xf32>
    %c21 = arith.constant 21 : index
    %c0_57 = arith.constant 0 : index
    %51 = vector.load %arg21[%c21, %c0_57] : memref<100x128xf32, #tpu.memory_space<vmem>>, vector<78x128xf32>
    %c22 = arith.constant 22 : index
    %c0_58 = arith.constant 0 : index
    %52 = vector.load %arg21[%c22, %c0_58] : memref<100x128xf32, #tpu.memory_space<vmem>>, vector<78x128xf32>
    %53 = tpu.concatenate %44, %45, %46, %47, %48, %49, %50, %51, %52 in 1 : vector<78x128xf32>, vector<78x128xf32>, vector<78x128xf32>, vector<78x128xf32>, vector<78x128xf32>, vector<78x128xf32>, vector<78x128xf32>, vector<78x128xf32>, vector<78x128xf32> -> vector<78x1152xf32>
    %c0_59 = arith.constant 0 : index
    %c0_60 = arith.constant 0 : index
    %c0_61 = arith.constant 0 : index
    %54 = vector.load %arg8[%c0_59, %c0_60, %c0_61] : memref<3x1152x128xf32, #tpu.memory_space<vmem>>, vector<1x1152x128xf32>
    %55 = vector.shape_cast %54 : vector<1x1152x128xf32> to vector<1152x128xf32>
    %cst_62 = arith.constant dense<0.000000e+00> : vector<78x128xf32>
    %56 = tpu.matmul %53, %55, %cst_62 {dimension_numbers = #tpu.dot_dimension_numbers<[1], [0], [0], [1], [0, 0, 1, 1], [], []>} : vector<78x1152xf32>, vector<1152x128xf32>, vector<78x128xf32> -> vector<78x128xf32>
    %57 = vector.broadcast %33 : vector<1x128xf32> to vector<78x128xf32>
    %58 = arith.addf %56, %57 : vector<78x128xf32>
    %cst_63 = arith.constant 0.000000e+00 : f32
    %59 = vector.broadcast %cst_63 : f32 to vector<78x128xf32>
    %60 = arith.maximumf %58, %59 : vector<78x128xf32>
    %c11_64 = arith.constant 11 : index
    %c0_65 = arith.constant 0 : index
    %61 = vector.load %arg20[%c11_64, %c0_65] : memref<100x128xf32, #tpu.memory_space<vmem>>, vector<78x128xf32>
    %cst_66 = arith.constant dense<0.000000e+00> : vector<78x128xf32>
    %62 = tpu.matmul %60, %30, %cst_66 {dimension_numbers = #tpu.dot_dimension_numbers<[1], [0], [0], [1], [0, 0, 1, 1], [], []>} : vector<78x128xf32>, vector<128x128xf32>, vector<78x128xf32> -> vector<78x128xf32>
    %63 = vector.broadcast %34 : vector<1x128xf32> to vector<78x128xf32>
    %64 = arith.addf %62, %63 : vector<78x128xf32>
    %cst_67 = arith.constant dense<0.000000e+00> : vector<78x128xf32>
    %65 = tpu.matmul %61, %32, %cst_67 {dimension_numbers = #tpu.dot_dimension_numbers<[1], [0], [0], [1], [0, 0, 1, 1], [], []>} : vector<78x128xf32>, vector<128x128xf32>, vector<78x128xf32> -> vector<78x128xf32>
    %66 = arith.addf %64, %65 : vector<78x128xf32>
    %67 = vector.broadcast %35 : vector<1x128xf32> to vector<78x128xf32>
    %68 = arith.addf %66, %67 : vector<78x128xf32>
    %cst_68 = arith.constant 0.000000e+00 : f32
    %69 = vector.broadcast %cst_68 : f32 to vector<78x128xf32>
    %70 = arith.maximumf %68, %69 : vector<78x128xf32>
    %c0_69 = arith.constant 0 : index
    %c0_70 = arith.constant 0 : index
    %71 = vector.load %arg4[%c0_69, %c0_70] : memref<100x78xf32, #tpu.memory_space<vmem>>, vector<100x78xf32>
    %cst_71 = arith.constant dense<0.000000e+00> : vector<100x128xf32>
    %72 = tpu.matmul %71, %70, %cst_71 {dimension_numbers = #tpu.dot_dimension_numbers<[1], [0], [0], [1], [0, 0, 1, 1], [], []>} : vector<100x78xf32>, vector<78x128xf32>, vector<100x128xf32> -> vector<100x128xf32>
    %c0_72 = arith.constant 0 : index
    %c0_73 = arith.constant 0 : index
    %73 = vector.load %arg22[%c0_72, %c0_73] : memref<100x128xf32, #tpu.memory_space<vmem>>, vector<100x128xf32>
    tpu.vector_store %arg22[%c0_72, %c0_73], %72 {strides = array<i32>} : memref<100x128xf32, #tpu.memory_space<vmem>>, vector<100x128xf32>,
    %cst_74 = arith.constant dense<0.000000e+00> : vector<128xf32>
    %74 = vector.multi_reduction <add>, %72, %cst_74 [0] : vector<100x128xf32> to vector<128xf32>
    %75 = vector.shape_cast %74 : vector<128xf32> to vector<1x128xf32>
    %cst_75 = arith.constant 1.562500e-02 : f32
    %76 = vector.broadcast %cst_75 : f32 to vector<1x128xf32>
    %77 = arith.mulf %75, %76 : vector<1x128xf32>
    %c0_76 = arith.constant 0 : index
    %c0_77 = arith.constant 0 : index
    %c0_78 = arith.constant 0 : index
    %78 = vector.load %arg11[%c0_76, %c0_77, %c0_78] : memref<3x128x128xf32, #tpu.memory_space<vmem>>, vector<1x128x128xf32>
    %79 = vector.shape_cast %78 : vector<1x128x128xf32> to vector<128x128xf32>
    %cst_79 = arith.constant dense<0.000000e+00> : vector<1x128xf32>
    %80 = tpu.matmul %77, %79, %cst_79 {dimension_numbers = #tpu.dot_dimension_numbers<[1], [0], [0], [1], [0, 0, 1, 1], [], []>} : vector<1x128xf32>, vector<128x128xf32>, vector<1x128xf32> -> vector<1x128xf32>
    %c0_80 = arith.constant 0 : index
    %c0_81 = arith.constant 0 : index
    %81 = vector.load %arg12[%c0_80, %c0_81] : memref<3x128xf32, #tpu.memory_space<vmem>>, vector<1x128xf32>
    %82 = arith.addf %80, %81 : vector<1x128xf32>
    %c3 = arith.constant 3 : index
    %c0_82 = arith.constant 0 : index
    %c0_83 = arith.constant 0 : index
    %83 = vector.load %arg7[%c3, %c0_82, %c0_83] : memref<9x128x128xf32, #tpu.memory_space<vmem>>, vector<1x128x128xf32>
    %84 = vector.shape_cast %83 : vector<1x128x128xf32> to vector<128x128xf32>
    %c4 = arith.constant 4 : index
    %c0_84 = arith.constant 0 : index
    %c0_85 = arith.constant 0 : index
    %85 = vector.load %arg7[%c4, %c0_84, %c0_85] : memref<9x128x128xf32, #tpu.memory_space<vmem>>, vector<1x128x128xf32>
    %86 = vector.shape_cast %85 : vector<1x128x128xf32> to vector<128x128xf32>
    %c5 = arith.constant 5 : index
    %c0_86 = arith.constant 0 : index
    %c0_87 = arith.constant 0 : index
    %87 = vector.load %arg7[%c5, %c0_86, %c0_87] : memref<9x128x128xf32, #tpu.memory_space<vmem>>, vector<1x128x128xf32>
    %88 = vector.shape_cast %87 : vector<1x128x128xf32> to vector<128x128xf32>
    %c3_88 = arith.constant 3 : index
    %c0_89 = arith.constant 0 : index
    %89 = vector.load %arg10[%c3_88, %c0_89] : memref<9x128xf32, #tpu.memory_space<vmem>>, vector<1x128xf32>
    %c4_90 = arith.constant 4 : index
    %c0_91 = arith.constant 0 : index
    %90 = vector.load %arg10[%c4_90, %c0_91] : memref<9x128xf32, #tpu.memory_space<vmem>>, vector<1x128xf32>
    %c5_92 = arith.constant 5 : index
    %c0_93 = arith.constant 0 : index
    %91 = vector.load %arg10[%c5_92, %c0_93] : memref<9x128xf32, #tpu.memory_space<vmem>>, vector<1x128xf32>
    %c0_94 = arith.constant 0 : index
    %c0_95 = arith.constant 0 : index
    %92 = vector.load %arg22[%c0_94, %c0_95] : memref<100x128xf32, #tpu.memory_space<vmem>>, vector<100x128xf32>
    %cst_96 = arith.constant dense<0.000000e+00> : vector<100x128xf32>
    %93 = tpu.matmul %92, %84, %cst_96 {dimension_numbers = #tpu.dot_dimension_numbers<[1], [0], [0], [1], [0, 0, 1, 1], [], []>} : vector<100x128xf32>, vector<128x128xf32>, vector<100x128xf32> -> vector<100x128xf32>
    %c1_97 = arith.constant 1 : index
    %c0_98 = arith.constant 0 : index
    %c0_99 = arith.constant 0 : index
    %94 = vector.load %arg9[%c1_97, %c0_98, %c0_99] : memref<3x100x128xf32, #tpu.memory_space<vmem>>, vector<1x100x128xf32>
    %95 = vector.shape_cast %94 : vector<1x100x128xf32> to vector<100x128xf32>
    %96 = arith.addf %93, %95 : vector<100x128xf32>
    %cst_100 = arith.constant 0.000000e+00 : f32
    %97 = vector.broadcast %cst_100 : f32 to vector<100x128xf32>
    %98 = arith.maximumf %96, %97 : vector<100x128xf32>
    %c0_101 = arith.constant 0 : index
    %c0_102 = arith.constant 0 : index
    %99 = vector.load %arg21[%c0_101, %c0_102] : memref<100x128xf32, #tpu.memory_space<vmem>>, vector<100x128xf32>
    tpu.vector_store %arg21[%c0_101, %c0_102], %98 {strides = array<i32>} : memref<100x128xf32, #tpu.memory_space<vmem>>, vector<100x128xf32>,
    %c0_103 = arith.constant 0 : index
    %c0_104 = arith.constant 0 : index
    %100 = vector.load %arg21[%c0_103, %c0_104] : memref<100x128xf32, #tpu.memory_space<vmem>>, vector<78x128xf32>
    %c1_105 = arith.constant 1 : index
    %c0_106 = arith.constant 0 : index
    %101 = vector.load %arg21[%c1_105, %c0_106] : memref<100x128xf32, #tpu.memory_space<vmem>>, vector<78x128xf32>
    %c2_107 = arith.constant 2 : index
    %c0_108 = arith.constant 0 : index
    %102 = vector.load %arg21[%c2_107, %c0_108] : memref<100x128xf32, #tpu.memory_space<vmem>>, vector<78x128xf32>
    %c10_109 = arith.constant 10 : index
    %c0_110 = arith.constant 0 : index
    %103 = vector.load %arg21[%c10_109, %c0_110] : memref<100x128xf32, #tpu.memory_space<vmem>>, vector<78x128xf32>
    %c11_111 = arith.constant 11 : index
    %c0_112 = arith.constant 0 : index
    %104 = vector.load %arg21[%c11_111, %c0_112] : memref<100x128xf32, #tpu.memory_space<vmem>>, vector<78x128xf32>
    %c12_113 = arith.constant 12 : index
    %c0_114 = arith.constant 0 : index
    %105 = vector.load %arg21[%c12_113, %c0_114] : memref<100x128xf32, #tpu.memory_space<vmem>>, vector<78x128xf32>
    %c20_115 = arith.constant 20 : index
    %c0_116 = arith.constant 0 : index
    %106 = vector.load %arg21[%c20_115, %c0_116] : memref<100x128xf32, #tpu.memory_space<vmem>>, vector<78x128xf32>
    %c21_117 = arith.constant 21 : index
    %c0_118 = arith.constant 0 : index
    %107 = vector.load %arg21[%c21_117, %c0_118] : memref<100x128xf32, #tpu.memory_space<vmem>>, vector<78x128xf32>
    %c22_119 = arith.constant 22 : index
    %c0_120 = arith.constant 0 : index
    %108 = vector.load %arg21[%c22_119, %c0_120] : memref<100x128xf32, #tpu.memory_space<vmem>>, vector<78x128xf32>
    %109 = tpu.concatenate %100, %101, %102, %103, %104, %105, %106, %107, %108 in 1 : vector<78x128xf32>, vector<78x128xf32>, vector<78x128xf32>, vector<78x128xf32>, vector<78x128xf32>, vector<78x128xf32>, vector<78x128xf32>, vector<78x128xf32>, vector<78x128xf32> -> vector<78x1152xf32>
    %c1_121 = arith.constant 1 : index
    %c0_122 = arith.constant 0 : index
    %c0_123 = arith.constant 0 : index
    %110 = vector.load %arg8[%c1_121, %c0_122, %c0_123] : memref<3x1152x128xf32, #tpu.memory_space<vmem>>, vector<1x1152x128xf32>
    %111 = vector.shape_cast %110 : vector<1x1152x128xf32> to vector<1152x128xf32>
    %cst_124 = arith.constant dense<0.000000e+00> : vector<78x128xf32>
    %112 = tpu.matmul %109, %111, %cst_124 {dimension_numbers = #tpu.dot_dimension_numbers<[1], [0], [0], [1], [0, 0, 1, 1], [], []>} : vector<78x1152xf32>, vector<1152x128xf32>, vector<78x128xf32> -> vector<78x128xf32>
    %113 = vector.broadcast %89 : vector<1x128xf32> to vector<78x128xf32>
    %114 = arith.addf %112, %113 : vector<78x128xf32>
    %cst_125 = arith.constant 0.000000e+00 : f32
    %115 = vector.broadcast %cst_125 : f32 to vector<78x128xf32>
    %116 = arith.maximumf %114, %115 : vector<78x128xf32>
    %c11_126 = arith.constant 11 : index
    %c0_127 = arith.constant 0 : index
    %117 = vector.load %arg22[%c11_126, %c0_127] : memref<100x128xf32, #tpu.memory_space<vmem>>, vector<78x128xf32>
    %cst_128 = arith.constant dense<0.000000e+00> : vector<78x128xf32>
    %118 = tpu.matmul %116, %86, %cst_128 {dimension_numbers = #tpu.dot_dimension_numbers<[1], [0], [0], [1], [0, 0, 1, 1], [], []>} : vector<78x128xf32>, vector<128x128xf32>, vector<78x128xf32> -> vector<78x128xf32>
    %119 = vector.broadcast %90 : vector<1x128xf32> to vector<78x128xf32>
    %120 = arith.addf %118, %119 : vector<78x128xf32>
    %cst_129 = arith.constant dense<0.000000e+00> : vector<78x128xf32>
    %121 = tpu.matmul %117, %88, %cst_129 {dimension_numbers = #tpu.dot_dimension_numbers<[1], [0], [0], [1], [0, 0, 1, 1], [], []>} : vector<78x128xf32>, vector<128x128xf32>, vector<78x128xf32> -> vector<78x128xf32>
    %122 = arith.addf %120, %121 : vector<78x128xf32>
    %123 = vector.broadcast %91 : vector<1x128xf32> to vector<78x128xf32>
    %124 = arith.addf %122, %123 : vector<78x128xf32>
    %cst_130 = arith.constant 0.000000e+00 : f32
    %125 = vector.broadcast %cst_130 : f32 to vector<78x128xf32>
    %126 = arith.maximumf %124, %125 : vector<78x128xf32>
    %c0_131 = arith.constant 0 : index
    %c0_132 = arith.constant 0 : index
    %127 = vector.load %arg5[%c0_131, %c0_132] : memref<36x78xf32, #tpu.memory_space<vmem>>, vector<36x78xf32>
    %cst_133 = arith.constant dense<0.000000e+00> : vector<36x128xf32>
    %128 = tpu.matmul %127, %126, %cst_133 {dimension_numbers = #tpu.dot_dimension_numbers<[1], [0], [0], [1], [0, 0, 1, 1], [], []>} : vector<36x78xf32>, vector<78x128xf32>, vector<36x128xf32> -> vector<36x128xf32>
    %c0_134 = arith.constant 0 : index
    %c0_135 = arith.constant 0 : index
    %129 = vector.load %arg23[%c0_134, %c0_135] : memref<36x128xf32, #tpu.memory_space<vmem>>, vector<36x128xf32>
    tpu.vector_store %arg23[%c0_134, %c0_135], %128 {strides = array<i32>} : memref<36x128xf32, #tpu.memory_space<vmem>>, vector<36x128xf32>,
    %cst_136 = arith.constant dense<0.000000e+00> : vector<128xf32>
    %130 = vector.multi_reduction <add>, %128, %cst_136 [0] : vector<36x128xf32> to vector<128xf32>
    %131 = vector.shape_cast %130 : vector<128xf32> to vector<1x128xf32>
    %cst_137 = arith.constant 6.250000e-02 : f32
    %132 = vector.broadcast %cst_137 : f32 to vector<1x128xf32>
    %133 = arith.mulf %131, %132 : vector<1x128xf32>
    %c1_138 = arith.constant 1 : index
    %c0_139 = arith.constant 0 : index
    %c0_140 = arith.constant 0 : index
    %134 = vector.load %arg11[%c1_138, %c0_139, %c0_140] : memref<3x128x128xf32, #tpu.memory_space<vmem>>, vector<1x128x128xf32>
    %135 = vector.shape_cast %134 : vector<1x128x128xf32> to vector<128x128xf32>
    %cst_141 = arith.constant dense<0.000000e+00> : vector<1x128xf32>
    %136 = tpu.matmul %133, %135, %cst_141 {dimension_numbers = #tpu.dot_dimension_numbers<[1], [0], [0], [1], [0, 0, 1, 1], [], []>} : vector<1x128xf32>, vector<128x128xf32>, vector<1x128xf32> -> vector<1x128xf32>
    %c1_142 = arith.constant 1 : index
    %c0_143 = arith.constant 0 : index
    %137 = vector.load %arg12[%c1_142, %c0_143] : memref<3x128xf32, #tpu.memory_space<vmem>>, vector<1x128xf32>
    %138 = arith.addf %136, %137 : vector<1x128xf32>
    %c6 = arith.constant 6 : index
    %c0_144 = arith.constant 0 : index
    %c0_145 = arith.constant 0 : index
    %139 = vector.load %arg7[%c6, %c0_144, %c0_145] : memref<9x128x128xf32, #tpu.memory_space<vmem>>, vector<1x128x128xf32>
    %140 = vector.shape_cast %139 : vector<1x128x128xf32> to vector<128x128xf32>
    %c7 = arith.constant 7 : index
    %c0_146 = arith.constant 0 : index
    %c0_147 = arith.constant 0 : index
    %141 = vector.load %arg7[%c7, %c0_146, %c0_147] : memref<9x128x128xf32, #tpu.memory_space<vmem>>, vector<1x128x128xf32>
    %142 = vector.shape_cast %141 : vector<1x128x128xf32> to vector<128x128xf32>
    %c8 = arith.constant 8 : index
    %c0_148 = arith.constant 0 : index
    %c0_149 = arith.constant 0 : index
    %143 = vector.load %arg7[%c8, %c0_148, %c0_149] : memref<9x128x128xf32, #tpu.memory_space<vmem>>, vector<1x128x128xf32>
    %144 = vector.shape_cast %143 : vector<1x128x128xf32> to vector<128x128xf32>
    %c6_150 = arith.constant 6 : index
    %c0_151 = arith.constant 0 : index
    %145 = vector.load %arg10[%c6_150, %c0_151] : memref<9x128xf32, #tpu.memory_space<vmem>>, vector<1x128xf32>
    %c7_152 = arith.constant 7 : index
    %c0_153 = arith.constant 0 : index
    %146 = vector.load %arg10[%c7_152, %c0_153] : memref<9x128xf32, #tpu.memory_space<vmem>>, vector<1x128xf32>
    %c8_154 = arith.constant 8 : index
    %c0_155 = arith.constant 0 : index
    %147 = vector.load %arg10[%c8_154, %c0_155] : memref<9x128xf32, #tpu.memory_space<vmem>>, vector<1x128xf32>
    %c0_156 = arith.constant 0 : index
    %c0_157 = arith.constant 0 : index
    %148 = vector.load %arg23[%c0_156, %c0_157] : memref<36x128xf32, #tpu.memory_space<vmem>>, vector<36x128xf32>
    %cst_158 = arith.constant dense<0.000000e+00> : vector<36x128xf32>
    %149 = tpu.matmul %148, %140, %cst_158 {dimension_numbers = #tpu.dot_dimension_numbers<[1], [0], [0], [1], [0, 0, 1, 1], [], []>} : vector<36x128xf32>, vector<128x128xf32>, vector<36x128xf32> -> vector<36x128xf32>
    %c2_159 = arith.constant 2 : index
    %c0_160 = arith.constant 0 : index
    %c0_161 = arith.constant 0 : index
    %150 = vector.load %arg9[%c2_159, %c0_160, %c0_161] : memref<3x100x128xf32, #tpu.memory_space<vmem>>, vector<1x36x128xf32>
    %151 = vector.shape_cast %150 : vector<1x36x128xf32> to vector<36x128xf32>
    %152 = arith.addf %149, %151 : vector<36x128xf32>
    %cst_162 = arith.constant 0.000000e+00 : f32
    %153 = vector.broadcast %cst_162 : f32 to vector<36x128xf32>
    %154 = arith.maximumf %152, %153 : vector<36x128xf32>
    %c0_163 = arith.constant 0 : index
    %c0_164 = arith.constant 0 : index
    %155 = vector.load %arg21[%c0_163, %c0_164] : memref<100x128xf32, #tpu.memory_space<vmem>>, vector<36x128xf32>
    tpu.vector_store %arg21[%c0_163, %c0_164], %154 {strides = array<i32>} : memref<100x128xf32, #tpu.memory_space<vmem>>, vector<36x128xf32>,
    %c0_165 = arith.constant 0 : index
    %c0_166 = arith.constant 0 : index
    %156 = vector.load %arg21[%c0_165, %c0_166] : memref<100x128xf32, #tpu.memory_space<vmem>>, vector<22x128xf32>
    %c1_167 = arith.constant 1 : index
    %c0_168 = arith.constant 0 : index
    %157 = vector.load %arg21[%c1_167, %c0_168] : memref<100x128xf32, #tpu.memory_space<vmem>>, vector<22x128xf32>
    %c2_169 = arith.constant 2 : index
    %c0_170 = arith.constant 0 : index
    %158 = vector.load %arg21[%c2_169, %c0_170] : memref<100x128xf32, #tpu.memory_space<vmem>>, vector<22x128xf32>
    %c6_171 = arith.constant 6 : index
    %c0_172 = arith.constant 0 : index
    %159 = vector.load %arg21[%c6_171, %c0_172] : memref<100x128xf32, #tpu.memory_space<vmem>>, vector<22x128xf32>
    %c7_173 = arith.constant 7 : index
    %c0_174 = arith.constant 0 : index
    %160 = vector.load %arg21[%c7_173, %c0_174] : memref<100x128xf32, #tpu.memory_space<vmem>>, vector<22x128xf32>
    %c8_175 = arith.constant 8 : index
    %c0_176 = arith.constant 0 : index
    %161 = vector.load %arg21[%c8_175, %c0_176] : memref<100x128xf32, #tpu.memory_space<vmem>>, vector<22x128xf32>
    %c12_177 = arith.constant 12 : index
    %c0_178 = arith.constant 0 : index
    %162 = vector.load %arg21[%c12_177, %c0_178] : memref<100x128xf32, #tpu.memory_space<vmem>>, vector<22x128xf32>
    %c13 = arith.constant 13 : index
    %c0_179 = arith.constant 0 : index
    %163 = vector.load %arg21[%c13, %c0_179] : memref<100x128xf32, #tpu.memory_space<vmem>>, vector<22x128xf32>
    %c14 = arith.constant 14 : index
    %c0_180 = arith.constant 0 : index
    %164 = vector.load %arg21[%c14, %c0_180] : memref<100x128xf32, #tpu.memory_space<vmem>>, vector<22x128xf32>
    %165 = tpu.concatenate %156, %157, %158, %159, %160, %161, %162, %163, %164 in 1 : vector<22x128xf32>, vector<22x128xf32>, vector<22x128xf32>, vector<22x128xf32>, vector<22x128xf32>, vector<22x128xf32>, vector<22x128xf32>, vector<22x128xf32>, vector<22x128xf32> -> vector<22x1152xf32>
    %c2_181 = arith.constant 2 : index
    %c0_182 = arith.constant 0 : index
    %c0_183 = arith.constant 0 : index
    %166 = vector.load %arg8[%c2_181, %c0_182, %c0_183] : memref<3x1152x128xf32, #tpu.memory_space<vmem>>, vector<1x1152x128xf32>
    %167 = vector.shape_cast %166 : vector<1x1152x128xf32> to vector<1152x128xf32>
    %cst_184 = arith.constant dense<0.000000e+00> : vector<22x128xf32>
    %168 = tpu.matmul %165, %167, %cst_184 {dimension_numbers = #tpu.dot_dimension_numbers<[1], [0], [0], [1], [0, 0, 1, 1], [], []>} : vector<22x1152xf32>, vector<1152x128xf32>, vector<22x128xf32> -> vector<22x128xf32>
    %169 = vector.broadcast %145 : vector<1x128xf32> to vector<22x128xf32>
    %170 = arith.addf %168, %169 : vector<22x128xf32>
    %cst_185 = arith.constant 0.000000e+00 : f32
    %171 = vector.broadcast %cst_185 : f32 to vector<22x128xf32>
    %172 = arith.maximumf %170, %171 : vector<22x128xf32>
    %c7_186 = arith.constant 7 : index
    %c0_187 = arith.constant 0 : index
    %173 = vector.load %arg23[%c7_186, %c0_187] : memref<36x128xf32, #tpu.memory_space<vmem>>, vector<22x128xf32>
    %cst_188 = arith.constant dense<0.000000e+00> : vector<22x128xf32>
    %174 = tpu.matmul %172, %142, %cst_188 {dimension_numbers = #tpu.dot_dimension_numbers<[1], [0], [0], [1], [0, 0, 1, 1], [], []>} : vector<22x128xf32>, vector<128x128xf32>, vector<22x128xf32> -> vector<22x128xf32>
    %175 = vector.broadcast %146 : vector<1x128xf32> to vector<22x128xf32>
    %176 = arith.addf %174, %175 : vector<22x128xf32>
    %cst_189 = arith.constant dense<0.000000e+00> : vector<22x128xf32>
    %177 = tpu.matmul %173, %144, %cst_189 {dimension_numbers = #tpu.dot_dimension_numbers<[1], [0], [0], [1], [0, 0, 1, 1], [], []>} : vector<22x128xf32>, vector<128x128xf32>, vector<22x128xf32> -> vector<22x128xf32>
    %178 = arith.addf %176, %177 : vector<22x128xf32>
    %179 = vector.broadcast %147 : vector<1x128xf32> to vector<22x128xf32>
    %180 = arith.addf %178, %179 : vector<22x128xf32>
    %cst_190 = arith.constant 0.000000e+00 : f32
    %181 = vector.broadcast %cst_190 : f32 to vector<22x128xf32>
    %182 = arith.maximumf %180, %181 : vector<22x128xf32>
    %c0_191 = arith.constant 0 : index
    %c0_192 = arith.constant 0 : index
    %183 = vector.load %arg6[%c0_191, %c0_192] : memref<4x22xf32, #tpu.memory_space<vmem>>, vector<4x22xf32>
    %cst_193 = arith.constant dense<0.000000e+00> : vector<4x128xf32>
    %184 = tpu.matmul %183, %182, %cst_193 {dimension_numbers = #tpu.dot_dimension_numbers<[1], [0], [0], [1], [0, 0, 1, 1], [], []>} : vector<4x22xf32>, vector<22x128xf32>, vector<4x128xf32> -> vector<4x128xf32>
    %c0_194 = arith.constant 0 : index
    %c0_195 = arith.constant 0 : index
    %c0_196 = arith.constant 0 : index
    %185 = vector.load %arg17[%c0_194, %c0_195, %c0_196] : memref<1x4x128xf32, #tpu.memory_space<vmem>>, vector<1x4x128xf32>
    %186 = vector.shape_cast %185 : vector<1x4x128xf32> to vector<4x128xf32>
    %187 = vector.shape_cast %184 : vector<4x128xf32> to vector<1x4x128xf32>
    tpu.vector_store %arg17[%c0_194, %c0_195, %c0_196], %187 {strides = array<i32>} : memref<1x4x128xf32, #tpu.memory_space<vmem>>, vector<1x4x128xf32>,
    %cst_197 = arith.constant dense<0.000000e+00> : vector<128xf32>
    %188 = vector.multi_reduction <add>, %184, %cst_197 [0] : vector<4x128xf32> to vector<128xf32>
    %189 = vector.shape_cast %188 : vector<128xf32> to vector<1x128xf32>
    %cst_198 = arith.constant 2.500000e-01 : f32
    %190 = vector.broadcast %cst_198 : f32 to vector<1x128xf32>
    %191 = arith.mulf %189, %190 : vector<1x128xf32>
    %c2_199 = arith.constant 2 : index
    %c0_200 = arith.constant 0 : index
    %c0_201 = arith.constant 0 : index
    %192 = vector.load %arg11[%c2_199, %c0_200, %c0_201] : memref<3x128x128xf32, #tpu.memory_space<vmem>>, vector<1x128x128xf32>
    %193 = vector.shape_cast %192 : vector<1x128x128xf32> to vector<128x128xf32>
    %cst_202 = arith.constant dense<0.000000e+00> : vector<1x128xf32>
    %194 = tpu.matmul %191, %193, %cst_202 {dimension_numbers = #tpu.dot_dimension_numbers<[1], [0], [0], [1], [0, 0, 1, 1], [], []>} : vector<1x128xf32>, vector<128x128xf32>, vector<1x128xf32> -> vector<1x128xf32>
    %c2_203 = arith.constant 2 : index
    %c0_204 = arith.constant 0 : index
    %195 = vector.load %arg12[%c2_203, %c0_204] : memref<3x128xf32, #tpu.memory_space<vmem>>, vector<1x128xf32>
    %196 = arith.addf %194, %195 : vector<1x128xf32>
    %cst_205 = arith.constant 0.000000e+00 : f32
    %197 = vector.broadcast %cst_205 : f32 to vector<1x128xf32>
    %c0_206 = arith.constant 0 : index
    %c0_207 = arith.constant 0 : index
    %c0_208 = arith.constant 0 : index
    %198 = vector.load %arg13[%c0_206, %c0_207, %c0_208] : memref<4x128x384xf32, #tpu.memory_space<vmem>>, vector<1x128x384xf32>
    %199 = vector.shape_cast %198 : vector<1x128x384xf32> to vector<128x384xf32>
    %cst_209 = arith.constant dense<0.000000e+00> : vector<1x384xf32>
    %200 = tpu.matmul %82, %199, %cst_209 {dimension_numbers = #tpu.dot_dimension_numbers<[1], [0], [0], [1], [0, 0, 1, 1], [], []>} : vector<1x128xf32>, vector<128x384xf32>, vector<1x384xf32> -> vector<1x384xf32>
    %c0_210 = arith.constant 0 : index
    %c0_211 = arith.constant 0 : index
    %201 = vector.load %arg14[%c0_210, %c0_211] : memref<4x384xf32, #tpu.memory_space<vmem>>, vector<1x384xf32>
    %202 = arith.addf %200, %201 : vector<1x384xf32>
    %c1_212 = arith.constant 1 : index
    %c0_213 = arith.constant 0 : index
    %c0_214 = arith.constant 0 : index
    %203 = vector.load %arg13[%c1_212, %c0_213, %c0_214] : memref<4x128x384xf32, #tpu.memory_space<vmem>>, vector<1x128x384xf32>
    %204 = vector.shape_cast %203 : vector<1x128x384xf32> to vector<128x384xf32>
    %cst_215 = arith.constant dense<0.000000e+00> : vector<1x384xf32>
    %205 = tpu.matmul %197, %204, %cst_215 {dimension_numbers = #tpu.dot_dimension_numbers<[1], [0], [0], [1], [0, 0, 1, 1], [], []>} : vector<1x128xf32>, vector<128x384xf32>, vector<1x384xf32> -> vector<1x384xf32>
    %c1_216 = arith.constant 1 : index
    %c0_217 = arith.constant 0 : index
    %206 = vector.load %arg14[%c1_216, %c0_217] : memref<4x384xf32, #tpu.memory_space<vmem>>, vector<1x384xf32>
    %207 = arith.addf %205, %206 : vector<1x384xf32>
    %208 = vector.extract_strided_slice %202 {offsets = [0, 0], sizes = [1, 128], strides = [1, 1]} : vector<1x384xf32> to vector<1x128xf32>
    %209 = vector.extract_strided_slice %207 {offsets = [0, 0], sizes = [1, 128], strides = [1, 1]} : vector<1x384xf32> to vector<1x128xf32>
    %210 = arith.addf %208, %209 : vector<1x128xf32>
    %211 = arith.negf %210 : vector<1x128xf32>
    %212 = math.exp %211 : vector<1x128xf32>
    %cst_218 = arith.constant 1.000000e+00 : f32
    %213 = vector.broadcast %cst_218 : f32 to vector<1x128xf32>
    %214 = arith.addf %213, %212 : vector<1x128xf32>
    %215 = arith.divf %213, %214 : vector<1x128xf32>
    %216 = vector.extract_strided_slice %202 {offsets = [0, 128], sizes = [1, 128], strides = [1, 1]} : vector<1x384xf32> to vector<1x128xf32>
    %217 = vector.extract_strided_slice %207 {offsets = [0, 128], sizes = [1, 128], strides = [1, 1]} : vector<1x384xf32> to vector<1x128xf32>
    %218 = arith.addf %216, %217 : vector<1x128xf32>
    %219 = arith.negf %218 : vector<1x128xf32>
    %220 = math.exp %219 : vector<1x128xf32>
    %cst_219 = arith.constant 1.000000e+00 : f32
    %221 = vector.broadcast %cst_219 : f32 to vector<1x128xf32>
    %222 = arith.addf %221, %220 : vector<1x128xf32>
    %223 = arith.divf %221, %222 : vector<1x128xf32>
    %224 = vector.extract_strided_slice %202 {offsets = [0, 256], sizes = [1, 128], strides = [1, 1]} : vector<1x384xf32> to vector<1x128xf32>
    %225 = vector.extract_strided_slice %207 {offsets = [0, 256], sizes = [1, 128], strides = [1, 1]} : vector<1x384xf32> to vector<1x128xf32>
    %226 = arith.mulf %215, %225 : vector<1x128xf32>
    %227 = arith.addf %224, %226 : vector<1x128xf32>
    %228 = math.tanh %227 : vector<1x128xf32>
    %cst_220 = arith.constant 1.000000e+00 : f32
    %229 = vector.broadcast %cst_220 : f32 to vector<1x128xf32>
    %230 = arith.subf %229, %223 : vector<1x128xf32>
    %231 = arith.mulf %230, %228 : vector<1x128xf32>
    %232 = arith.mulf %223, %197 : vector<1x128xf32>
    %233 = arith.addf %231, %232 : vector<1x128xf32>
    %c0_221 = arith.constant 0 : index
    %c0_222 = arith.constant 0 : index
    %c0_223 = arith.constant 0 : index
    %234 = vector.load %arg13[%c0_221, %c0_222, %c0_223] : memref<4x128x384xf32, #tpu.memory_space<vmem>>, vector<1x128x384xf32>
    %235 = vector.shape_cast %234 : vector<1x128x384xf32> to vector<128x384xf32>
    %cst_224 = arith.constant dense<0.000000e+00> : vector<1x384xf32>
    %236 = tpu.matmul %138, %235, %cst_224 {dimension_numbers = #tpu.dot_dimension_numbers<[1], [0], [0], [1], [0, 0, 1, 1], [], []>} : vector<1x128xf32>, vector<128x384xf32>, vector<1x384xf32> -> vector<1x384xf32>
    %c0_225 = arith.constant 0 : index
    %c0_226 = arith.constant 0 : index
    %237 = vector.load %arg14[%c0_225, %c0_226] : memref<4x384xf32, #tpu.memory_space<vmem>>, vector<1x384xf32>
    %238 = arith.addf %236, %237 : vector<1x384xf32>
    %c1_227 = arith.constant 1 : index
    %c0_228 = arith.constant 0 : index
    %c0_229 = arith.constant 0 : index
    %239 = vector.load %arg13[%c1_227, %c0_228, %c0_229] : memref<4x128x384xf32, #tpu.memory_space<vmem>>, vector<1x128x384xf32>
    %240 = vector.shape_cast %239 : vector<1x128x384xf32> to vector<128x384xf32>
    %cst_230 = arith.constant dense<0.000000e+00> : vector<1x384xf32>
    %241 = tpu.matmul %233, %240, %cst_230 {dimension_numbers = #tpu.dot_dimension_numbers<[1], [0], [0], [1], [0, 0, 1, 1], [], []>} : vector<1x128xf32>, vector<128x384xf32>, vector<1x384xf32> -> vector<1x384xf32>
    %c1_231 = arith.constant 1 : index
    %c0_232 = arith.constant 0 : index
    %242 = vector.load %arg14[%c1_231, %c0_232] : memref<4x384xf32, #tpu.memory_space<vmem>>, vector<1x384xf32>
    %243 = arith.addf %241, %242 : vector<1x384xf32>
    %244 = vector.extract_strided_slice %238 {offsets = [0, 0], sizes = [1, 128], strides = [1, 1]} : vector<1x384xf32> to vector<1x128xf32>
    %245 = vector.extract_strided_slice %243 {offsets = [0, 0], sizes = [1, 128], strides = [1, 1]} : vector<1x384xf32> to vector<1x128xf32>
    %246 = arith.addf %244, %245 : vector<1x128xf32>
    %247 = arith.negf %246 : vector<1x128xf32>
    %248 = math.exp %247 : vector<1x128xf32>
    %cst_233 = arith.constant 1.000000e+00 : f32
    %249 = vector.broadcast %cst_233 : f32 to vector<1x128xf32>
    %250 = arith.addf %249, %248 : vector<1x128xf32>
    %251 = arith.divf %249, %250 : vector<1x128xf32>
    %252 = vector.extract_strided_slice %238 {offsets = [0, 128], sizes = [1, 128], strides = [1, 1]} : vector<1x384xf32> to vector<1x128xf32>
    %253 = vector.extract_strided_slice %243 {offsets = [0, 128], sizes = [1, 128], strides = [1, 1]} : vector<1x384xf32> to vector<1x128xf32>
    %254 = arith.addf %252, %253 : vector<1x128xf32>
    %255 = arith.negf %254 : vector<1x128xf32>
    %256 = math.exp %255 : vector<1x128xf32>
    %cst_234 = arith.constant 1.000000e+00 : f32
    %257 = vector.broadcast %cst_234 : f32 to vector<1x128xf32>
    %258 = arith.addf %257, %256 : vector<1x128xf32>
    %259 = arith.divf %257, %258 : vector<1x128xf32>
    %260 = vector.extract_strided_slice %238 {offsets = [0, 256], sizes = [1, 128], strides = [1, 1]} : vector<1x384xf32> to vector<1x128xf32>
    %261 = vector.extract_strided_slice %243 {offsets = [0, 256], sizes = [1, 128], strides = [1, 1]} : vector<1x384xf32> to vector<1x128xf32>
    %262 = arith.mulf %251, %261 : vector<1x128xf32>
    %263 = arith.addf %260, %262 : vector<1x128xf32>
    %264 = math.tanh %263 : vector<1x128xf32>
    %cst_235 = arith.constant 1.000000e+00 : f32
    %265 = vector.broadcast %cst_235 : f32 to vector<1x128xf32>
    %266 = arith.subf %265, %259 : vector<1x128xf32>
    %267 = arith.mulf %266, %264 : vector<1x128xf32>
    %268 = arith.mulf %259, %233 : vector<1x128xf32>
    %269 = arith.addf %267, %268 : vector<1x128xf32>
    %c0_236 = arith.constant 0 : index
    %c0_237 = arith.constant 0 : index
    %c0_238 = arith.constant 0 : index
    %270 = vector.load %arg13[%c0_236, %c0_237, %c0_238] : memref<4x128x384xf32, #tpu.memory_space<vmem>>, vector<1x128x384xf32>
    %271 = vector.shape_cast %270 : vector<1x128x384xf32> to vector<128x384xf32>
    %cst_239 = arith.constant dense<0.000000e+00> : vector<1x384xf32>
    %272 = tpu.matmul %196, %271, %cst_239 {dimension_numbers = #tpu.dot_dimension_numbers<[1], [0], [0], [1], [0, 0, 1, 1], [], []>} : vector<1x128xf32>, vector<128x384xf32>, vector<1x384xf32> -> vector<1x384xf32>
    %c0_240 = arith.constant 0 : index
    %c0_241 = arith.constant 0 : index
    %273 = vector.load %arg14[%c0_240, %c0_241] : memref<4x384xf32, #tpu.memory_space<vmem>>, vector<1x384xf32>
    %274 = arith.addf %272, %273 : vector<1x384xf32>
    %c1_242 = arith.constant 1 : index
    %c0_243 = arith.constant 0 : index
    %c0_244 = arith.constant 0 : index
    %275 = vector.load %arg13[%c1_242, %c0_243, %c0_244] : memref<4x128x384xf32, #tpu.memory_space<vmem>>, vector<1x128x384xf32>
    %276 = vector.shape_cast %275 : vector<1x128x384xf32> to vector<128x384xf32>
    %cst_245 = arith.constant dense<0.000000e+00> : vector<1x384xf32>
    %277 = tpu.matmul %269, %276, %cst_245 {dimension_numbers = #tpu.dot_dimension_numbers<[1], [0], [0], [1], [0, 0, 1, 1], [], []>} : vector<1x128xf32>, vector<128x384xf32>, vector<1x384xf32> -> vector<1x384xf32>
    %c1_246 = arith.constant 1 : index
    %c0_247 = arith.constant 0 : index
    %278 = vector.load %arg14[%c1_246, %c0_247] : memref<4x384xf32, #tpu.memory_space<vmem>>, vector<1x384xf32>
    %279 = arith.addf %277, %278 : vector<1x384xf32>
    %280 = vector.extract_strided_slice %274 {offsets = [0, 0], sizes = [1, 128], strides = [1, 1]} : vector<1x384xf32> to vector<1x128xf32>
    %281 = vector.extract_strided_slice %279 {offsets = [0, 0], sizes = [1, 128], strides = [1, 1]} : vector<1x384xf32> to vector<1x128xf32>
    %282 = arith.addf %280, %281 : vector<1x128xf32>
    %283 = arith.negf %282 : vector<1x128xf32>
    %284 = math.exp %283 : vector<1x128xf32>
    %cst_248 = arith.constant 1.000000e+00 : f32
    %285 = vector.broadcast %cst_248 : f32 to vector<1x128xf32>
    %286 = arith.addf %285, %284 : vector<1x128xf32>
    %287 = arith.divf %285, %286 : vector<1x128xf32>
    %288 = vector.extract_strided_slice %274 {offsets = [0, 128], sizes = [1, 128], strides = [1, 1]} : vector<1x384xf32> to vector<1x128xf32>
    %289 = vector.extract_strided_slice %279 {offsets = [0, 128], sizes = [1, 128], strides = [1, 1]} : vector<1x384xf32> to vector<1x128xf32>
    %290 = arith.addf %288, %289 : vector<1x128xf32>
    %291 = arith.negf %290 : vector<1x128xf32>
    %292 = math.exp %291 : vector<1x128xf32>
    %cst_249 = arith.constant 1.000000e+00 : f32
    %293 = vector.broadcast %cst_249 : f32 to vector<1x128xf32>
    %294 = arith.addf %293, %292 : vector<1x128xf32>
    %295 = arith.divf %293, %294 : vector<1x128xf32>
    %296 = vector.extract_strided_slice %274 {offsets = [0, 256], sizes = [1, 128], strides = [1, 1]} : vector<1x384xf32> to vector<1x128xf32>
    %297 = vector.extract_strided_slice %279 {offsets = [0, 256], sizes = [1, 128], strides = [1, 1]} : vector<1x384xf32> to vector<1x128xf32>
    %298 = arith.mulf %287, %297 : vector<1x128xf32>
    %299 = arith.addf %296, %298 : vector<1x128xf32>
    %300 = math.tanh %299 : vector<1x128xf32>
    %cst_250 = arith.constant 1.000000e+00 : f32
    %301 = vector.broadcast %cst_250 : f32 to vector<1x128xf32>
    %302 = arith.subf %301, %295 : vector<1x128xf32>
    %303 = arith.mulf %302, %300 : vector<1x128xf32>
    %304 = arith.mulf %295, %269 : vector<1x128xf32>
    %305 = arith.addf %303, %304 : vector<1x128xf32>
    %cst_251 = arith.constant 0.000000e+00 : f32
    %306 = vector.broadcast %cst_251 : f32 to vector<1x128xf32>
    %c2_252 = arith.constant 2 : index
    %c0_253 = arith.constant 0 : index
    %c0_254 = arith.constant 0 : index
    %307 = vector.load %arg13[%c2_252, %c0_253, %c0_254] : memref<4x128x384xf32, #tpu.memory_space<vmem>>, vector<1x128x384xf32>
    %308 = vector.shape_cast %307 : vector<1x128x384xf32> to vector<128x384xf32>
    %cst_255 = arith.constant dense<0.000000e+00> : vector<1x384xf32>
    %309 = tpu.matmul %196, %308, %cst_255 {dimension_numbers = #tpu.dot_dimension_numbers<[1], [0], [0], [1], [0, 0, 1, 1], [], []>} : vector<1x128xf32>, vector<128x384xf32>, vector<1x384xf32> -> vector<1x384xf32>
    %c2_256 = arith.constant 2 : index
    %c0_257 = arith.constant 0 : index
    %310 = vector.load %arg14[%c2_256, %c0_257] : memref<4x384xf32, #tpu.memory_space<vmem>>, vector<1x384xf32>
    %311 = arith.addf %309, %310 : vector<1x384xf32>
    %c3_258 = arith.constant 3 : index
    %c0_259 = arith.constant 0 : index
    %c0_260 = arith.constant 0 : index
    %312 = vector.load %arg13[%c3_258, %c0_259, %c0_260] : memref<4x128x384xf32, #tpu.memory_space<vmem>>, vector<1x128x384xf32>
    %313 = vector.shape_cast %312 : vector<1x128x384xf32> to vector<128x384xf32>
    %cst_261 = arith.constant dense<0.000000e+00> : vector<1x384xf32>
    %314 = tpu.matmul %306, %313, %cst_261 {dimension_numbers = #tpu.dot_dimension_numbers<[1], [0], [0], [1], [0, 0, 1, 1], [], []>} : vector<1x128xf32>, vector<128x384xf32>, vector<1x384xf32> -> vector<1x384xf32>
    %c3_262 = arith.constant 3 : index
    %c0_263 = arith.constant 0 : index
    %315 = vector.load %arg14[%c3_262, %c0_263] : memref<4x384xf32, #tpu.memory_space<vmem>>, vector<1x384xf32>
    %316 = arith.addf %314, %315 : vector<1x384xf32>
    %317 = vector.extract_strided_slice %311 {offsets = [0, 0], sizes = [1, 128], strides = [1, 1]} : vector<1x384xf32> to vector<1x128xf32>
    %318 = vector.extract_strided_slice %316 {offsets = [0, 0], sizes = [1, 128], strides = [1, 1]} : vector<1x384xf32> to vector<1x128xf32>
    %319 = arith.addf %317, %318 : vector<1x128xf32>
    %320 = arith.negf %319 : vector<1x128xf32>
    %321 = math.exp %320 : vector<1x128xf32>
    %cst_264 = arith.constant 1.000000e+00 : f32
    %322 = vector.broadcast %cst_264 : f32 to vector<1x128xf32>
    %323 = arith.addf %322, %321 : vector<1x128xf32>
    %324 = arith.divf %322, %323 : vector<1x128xf32>
    %325 = vector.extract_strided_slice %311 {offsets = [0, 128], sizes = [1, 128], strides = [1, 1]} : vector<1x384xf32> to vector<1x128xf32>
    %326 = vector.extract_strided_slice %316 {offsets = [0, 128], sizes = [1, 128], strides = [1, 1]} : vector<1x384xf32> to vector<1x128xf32>
    %327 = arith.addf %325, %326 : vector<1x128xf32>
    %328 = arith.negf %327 : vector<1x128xf32>
    %329 = math.exp %328 : vector<1x128xf32>
    %cst_265 = arith.constant 1.000000e+00 : f32
    %330 = vector.broadcast %cst_265 : f32 to vector<1x128xf32>
    %331 = arith.addf %330, %329 : vector<1x128xf32>
    %332 = arith.divf %330, %331 : vector<1x128xf32>
    %333 = vector.extract_strided_slice %311 {offsets = [0, 256], sizes = [1, 128], strides = [1, 1]} : vector<1x384xf32> to vector<1x128xf32>
    %334 = vector.extract_strided_slice %316 {offsets = [0, 256], sizes = [1, 128], strides = [1, 1]} : vector<1x384xf32> to vector<1x128xf32>
    %335 = arith.mulf %324, %334 : vector<1x128xf32>
    %336 = arith.addf %333, %335 : vector<1x128xf32>
    %337 = math.tanh %336 : vector<1x128xf32>
    %cst_266 = arith.constant 1.000000e+00 : f32
    %338 = vector.broadcast %cst_266 : f32 to vector<1x128xf32>
    %339 = arith.subf %338, %332 : vector<1x128xf32>
    %340 = arith.mulf %339, %337 : vector<1x128xf32>
    %341 = arith.mulf %332, %306 : vector<1x128xf32>
    %342 = arith.addf %340, %341 : vector<1x128xf32>
    %c0_267 = arith.constant 0 : index
    %c0_268 = arith.constant 0 : index
    %c0_269 = arith.constant 0 : index
    %343 = vector.load %arg15[%c0_267, %c0_268, %c0_269] : memref<2x128x128xf32, #tpu.memory_space<vmem>>, vector<1x128x128xf32>
    %344 = vector.shape_cast %343 : vector<1x128x128xf32> to vector<128x128xf32>
    %cst_270 = arith.constant dense<0.000000e+00> : vector<1x128xf32>
    %345 = tpu.matmul %305, %344, %cst_270 {dimension_numbers = #tpu.dot_dimension_numbers<[1], [0], [0], [1], [0, 0, 1, 1], [], []>} : vector<1x128xf32>, vector<128x128xf32>, vector<1x128xf32> -> vector<1x128xf32>
    %c1_271 = arith.constant 1 : index
    %c0_272 = arith.constant 0 : index
    %c0_273 = arith.constant 0 : index
    %346 = vector.load %arg15[%c1_271, %c0_272, %c0_273] : memref<2x128x128xf32, #tpu.memory_space<vmem>>, vector<1x128x128xf32>
    %347 = vector.shape_cast %346 : vector<1x128x128xf32> to vector<128x128xf32>
    %cst_274 = arith.constant dense<0.000000e+00> : vector<1x128xf32>
    %348 = tpu.matmul %342, %347, %cst_274 {dimension_numbers = #tpu.dot_dimension_numbers<[1], [0], [0], [1], [0, 0, 1, 1], [], []>} : vector<1x128xf32>, vector<128x128xf32>, vector<1x128xf32> -> vector<1x128xf32>
    %349 = arith.addf %345, %348 : vector<1x128xf32>
    %c0_275 = arith.constant 0 : index
    %c0_276 = arith.constant 0 : index
    %350 = vector.load %arg16[%c0_275, %c0_276] : memref<1x128xf32, #tpu.memory_space<vmem>>, vector<1x128xf32>
    %351 = arith.addf %349, %350 : vector<1x128xf32>
    %352 = arith.negf %351 : vector<1x128xf32>
    %353 = math.exp %352 : vector<1x128xf32>
    %cst_277 = arith.constant 1.000000e+00 : f32
    %354 = vector.broadcast %cst_277 : f32 to vector<1x128xf32>
    %355 = arith.addf %354, %353 : vector<1x128xf32>
    %356 = arith.divf %354, %355 : vector<1x128xf32>
    %c0_278 = arith.constant 0 : index
    %c0_279 = arith.constant 0 : index
    %c0_280 = arith.constant 0 : index
    %357 = vector.load %arg18[%c0_278, %c0_279, %c0_280] : memref<1x1x128xf32, #tpu.memory_space<vmem>>, vector<1x1x128xf32>
    %358 = vector.shape_cast %357 : vector<1x1x128xf32> to vector<1x128xf32>
    %359 = vector.shape_cast %356 : vector<1x128xf32> to vector<1x1x128xf32>
    tpu.vector_store %arg18[%c0_278, %c0_279, %c0_280], %359 {strides = array<i32>} : memref<1x1x128xf32, #tpu.memory_space<vmem>>, vector<1x1x128xf32>,
    return
  }
  func.func @transform_0(%arg0: i32) -> (i32, i32, i32) {
    %c0_i32 = arith.constant 0 : i32
    %c0_i32_0 = arith.constant 0 : i32
    %c0_i32_1 = arith.constant 0 : i32
    return %arg0, %c0_i32, %c0_i32_0 : i32, i32, i32
  }
  func.func @transform_1(%arg0: i32) -> (i32, i32) {
    %c0_i32 = arith.constant 0 : i32
    %c0_i32_0 = arith.constant 0 : i32
    %c0_i32_1 = arith.constant 0 : i32
    return %c0_i32, %c0_i32_0 : i32, i32
  }
  func.func @transform_2(%arg0: i32) -> (i32, i32) {
    %c0_i32 = arith.constant 0 : i32
    %c0_i32_0 = arith.constant 0 : i32
    %c0_i32_1 = arith.constant 0 : i32
    return %c0_i32, %c0_i32_0 : i32, i32
  }
  func.func @transform_3(%arg0: i32) -> (i32, i32) {
    %c0_i32 = arith.constant 0 : i32
    %c0_i32_0 = arith.constant 0 : i32
    %c0_i32_1 = arith.constant 0 : i32
    return %c0_i32, %c0_i32_0 : i32, i32
  }
  func.func @transform_4(%arg0: i32) -> (i32, i32) {
    %c0_i32 = arith.constant 0 : i32
    %c0_i32_0 = arith.constant 0 : i32
    %c0_i32_1 = arith.constant 0 : i32
    return %c0_i32, %c0_i32_0 : i32, i32
  }
  func.func @transform_5(%arg0: i32) -> (i32, i32) {
    %c0_i32 = arith.constant 0 : i32
    %c0_i32_0 = arith.constant 0 : i32
    %c0_i32_1 = arith.constant 0 : i32
    return %c0_i32, %c0_i32_0 : i32, i32
  }
  func.func @transform_6(%arg0: i32) -> (i32, i32, i32) {
    %c0_i32 = arith.constant 0 : i32
    %c0_i32_0 = arith.constant 0 : i32
    %c0_i32_1 = arith.constant 0 : i32
    %c0_i32_2 = arith.constant 0 : i32
    return %c0_i32, %c0_i32_0, %c0_i32_1 : i32, i32, i32
  }
  func.func @transform_7(%arg0: i32) -> (i32, i32, i32) {
    %c0_i32 = arith.constant 0 : i32
    %c0_i32_0 = arith.constant 0 : i32
    %c0_i32_1 = arith.constant 0 : i32
    %c0_i32_2 = arith.constant 0 : i32
    return %c0_i32, %c0_i32_0, %c0_i32_1 : i32, i32, i32
  }
  func.func @transform_8(%arg0: i32) -> (i32, i32, i32) {
    %c0_i32 = arith.constant 0 : i32
    %c0_i32_0 = arith.constant 0 : i32
    %c0_i32_1 = arith.constant 0 : i32
    %c0_i32_2 = arith.constant 0 : i32
    return %c0_i32, %c0_i32_0, %c0_i32_1 : i32, i32, i32
  }
  func.func @transform_9(%arg0: i32) -> (i32, i32) {
    %c0_i32 = arith.constant 0 : i32
    %c0_i32_0 = arith.constant 0 : i32
    %c0_i32_1 = arith.constant 0 : i32
    return %c0_i32, %c0_i32_0 : i32, i32
  }
  func.func @transform_10(%arg0: i32) -> (i32, i32, i32) {
    %c0_i32 = arith.constant 0 : i32
    %c0_i32_0 = arith.constant 0 : i32
    %c0_i32_1 = arith.constant 0 : i32
    %c0_i32_2 = arith.constant 0 : i32
    return %c0_i32, %c0_i32_0, %c0_i32_1 : i32, i32, i32
  }
  func.func @transform_11(%arg0: i32) -> (i32, i32) {
    %c0_i32 = arith.constant 0 : i32
    %c0_i32_0 = arith.constant 0 : i32
    %c0_i32_1 = arith.constant 0 : i32
    return %c0_i32, %c0_i32_0 : i32, i32
  }
  func.func @transform_12(%arg0: i32) -> (i32, i32, i32) {
    %c0_i32 = arith.constant 0 : i32
    %c0_i32_0 = arith.constant 0 : i32
    %c0_i32_1 = arith.constant 0 : i32
    %c0_i32_2 = arith.constant 0 : i32
    return %c0_i32, %c0_i32_0, %c0_i32_1 : i32, i32, i32
  }
  func.func @transform_13(%arg0: i32) -> (i32, i32) {
    %c0_i32 = arith.constant 0 : i32
    %c0_i32_0 = arith.constant 0 : i32
    %c0_i32_1 = arith.constant 0 : i32
    return %c0_i32, %c0_i32_0 : i32, i32
  }
  func.func @transform_14(%arg0: i32) -> (i32, i32, i32) {
    %c0_i32 = arith.constant 0 : i32
    %c0_i32_0 = arith.constant 0 : i32
    %c0_i32_1 = arith.constant 0 : i32
    %c0_i32_2 = arith.constant 0 : i32
    return %c0_i32, %c0_i32_0, %c0_i32_1 : i32, i32, i32
  }
  func.func @transform_15(%arg0: i32) -> (i32, i32) {
    %c0_i32 = arith.constant 0 : i32
    %c0_i32_0 = arith.constant 0 : i32
    %c0_i32_1 = arith.constant 0 : i32
    return %c0_i32, %c0_i32_0 : i32, i32
  }
  func.func @transform_16(%arg0: i32) -> (i32, i32, i32) {
    %c0_i32 = arith.constant 0 : i32
    %c0_i32_0 = arith.constant 0 : i32
    %c0_i32_1 = arith.constant 0 : i32
    return %arg0, %c0_i32, %c0_i32_0 : i32, i32, i32
  }
  func.func @transform_17(%arg0: i32) -> (i32, i32, i32) {
    %c0_i32 = arith.constant 0 : i32
    %c0_i32_0 = arith.constant 0 : i32
    %c0_i32_1 = arith.constant 0 : i32
    return %arg0, %c0_i32, %c0_i32_0 : i32, i32, i32
  }
}

</mosaic_0001>

<llo_original>
// kernel: rcnn_backbone_forward.1
$region0: #{rcnn_backbone_forward.1}
  #allocation0 [shape = 'u32[]', space=smem, size = 0x4, offset = 0x4, fixed_abs, tag = 'smem constant byte address 0x4 - core index']
  #allocation1 [shape = 'u32[144,128]{1,0:T(1,128)}', space=vmem, size = 0x12000, scoped, tag = 'internal scratch']
  #allocation2 [shape = 'f32[324,128]{1,0:T(8,128)}', space=vmem, size = 0x29000, scoped, tag = 'scratch operand']
  #allocation3 [shape = 'f32[100,128]{1,0:T(8,128)}', space=vmem, size = 0xd000, scoped, tag = 'scratch operand']
  #allocation4 [shape = 'f32[100,128]{1,0:T(8,128)}', space=vmem, size = 0xd000, scoped, tag = 'scratch operand']
  #allocation5 [shape = 'f32[100,128]{1,0:T(8,128)}', space=vmem, size = 0xd000, scoped, tag = 'scratch operand']
  #allocation6 [shape = 'f32[36,128]{1,0:T(8,128)}', space=vmem, size = 0x5000, scoped, tag = 'scratch operand']
  %s0 = inlined_call_operand.vmem [shape: f32[2,324,256], index: 0, kind: input, shape index: {}]
  %s1 = inlined_call_operand.vmem [shape: f32[256,128], index: 1, kind: input, shape index: {}]
  %s2 = inlined_call_operand.vmem [shape: f32[100,286], index: 2, kind: input, shape index: {}]
  %s3 = inlined_call_operand.vmem [shape: f32[100,78], index: 3, kind: input, shape index: {}]
  %s4 = inlined_call_operand.vmem [shape: f32[36,78], index: 4, kind: input, shape index: {}]
  %s5 = inlined_call_operand.vmem [shape: f32[4,22], index: 5, kind: input, shape index: {}]
  %s6 = inlined_call_operand.vmem [shape: f32[9,128,128], index: 6, kind: input, shape index: {}]
  %s7 = inlined_call_operand.vmem [shape: f32[3,1152,128], index: 7, kind: input, shape index: {}]
  %s8 = inlined_call_operand.vmem [shape: f32[3,100,128], index: 8, kind: input, shape index: {}]
  %s9 = inlined_call_operand.vmem [shape: f32[9,128], index: 9, kind: input, shape index: {}]
  %s10 = inlined_call_operand.vmem [shape: f32[3,128,128], index: 10, kind: input, shape index: {}]
  %s11 = inlined_call_operand.vmem [shape: f32[3,128], index: 11, kind: input, shape index: {}]
  %s12 = inlined_call_operand.vmem [shape: f32[4,128,384], index: 12, kind: input, shape index: {}]
  %s13 = inlined_call_operand.vmem [shape: f32[4,384], index: 13, kind: input, shape index: {}]
  %s14 = inlined_call_operand.vmem [shape: f32[2,128,128], index: 14, kind: input, shape index: {}]
  %s15 = inlined_call_operand.vmem [shape: f32[1,128], index: 15, kind: input, shape index: {}]
  %s16 = inlined_call_operand.hbm [shape: f32[2,4,128], index: 16, kind: output, shape index: {0}]
  %s17 = inlined_call_operand.hbm [shape: f32[2,1,128], index: 17, kind: output, shape index: {1}]
  %18 = xla_tuple %s16, %s17
  %s19 = sld [smem:[#allocation0]]
  $region105: #{rcnn_backbone_forward.1} parent=0
    _
  %s21 = ssub.s32 1, %s19
  %s22 = scalar_select 0, %s21, %s19
  $region1: #{rcnn_backbone_forward.1} parent=0
    #allocation7 [shape = 'u8[4096]{0}', space=vmem, size = 0x1000, scoped, tag = 'output window, operand 0']
    #allocation8 [shape = 's32[2]{0}', space=sflag, size = 0x8, scoped, tag = 'scoped memory for rcnn_backbone_forward.1']
    #allocation9 [shape = 'u8[1024]{0}', space=vmem, size = 0x400, scoped, tag = 'output window, operand 1']
    #allocation10 [shape = 's32[2]{0}', space=sflag, size = 0x8, scoped, tag = 'scoped memory for rcnn_backbone_forward.1']
    %23 = vsyncpa [#allocation8], 0
    %s24 = scalar_lea.sflag [#allocation8], 1
    %25 = vsyncpa %s24, 0
    %26 = vsyncpa [#allocation10], 0
    %s27 = scalar_lea.sflag [#allocation10], 1
    %28 = vsyncpa %s27, 0
    loop: start=0, step=1, limit=4
    $region2: #{rcnn_backbone_forward.1} parent=1 // loop_pre_header
      _
    $region3: #{rcnn_backbone_forward.1} parent=1 // loop_header
      %s30 = sphi 0, %s34
      %p31 = scmp.ge.s32.totalorder %s30, 4
      %s40 = sphi 0, %s42
      %s43 = sphi 0, %s40
      %s44 = sphi 0, %s43
      %s60 = sphi 0, %s44
      %s64 = sphi 0, %s64
      %s66 = sphi 0, %s64
      %s67 = sphi 0, %s66
      %s81 = sphi 0, %s67
      %s85 = sphi 0, %s85
      %s87 = sphi 0, %s85
      %s88 = sphi 0, %s87
      %s102 = sphi 0, %s88
      %s106 = sphi 0, %s106
      %s108 = sphi 0, %s106
      %s109 = sphi 0, %s108
      %s123 = sphi 0, %s109
      %s127 = sphi 0, %s127
      %s129 = sphi 0, %s127
      %s130 = sphi 0, %s129
      %s144 = sphi 0, %s130
      %s148 = sphi 0, %s148
      %s150 = sphi 0, %s148
      %s151 = sphi 0, %s150
      %s165 = sphi 0, %s151
      %s169 = sphi 0, %s169
      %s171 = sphi 0, %s169
      %s172 = sphi 0, %s171
      %s186 = sphi 0, %s172
      %s190 = sphi 0, %s190
      %s192 = sphi 0, %s190
      %s193 = sphi 0, %s192
      %s207 = sphi 0, %s193
      %s211 = sphi 0, %s211
      %s213 = sphi 0, %s211
      %s214 = sphi 0, %s213
      %s228 = sphi 0, %s214
      %s232 = sphi 0, %s232
      %s234 = sphi 0, %s232
      %s235 = sphi 0, %s234
      %s249 = sphi 0, %s235
      %s253 = sphi 0, %s253
      %s255 = sphi 0, %s253
      %s256 = sphi 0, %s255
      %s270 = sphi 0, %s256
      %s274 = sphi 0, %s274
      %s276 = sphi 0, %s274
      %s277 = sphi 0, %s276
      %s291 = sphi 0, %s277
      %s295 = sphi 0, %s295
      %s297 = sphi 0, %s295
      %s298 = sphi 0, %s297
      %s312 = sphi 0, %s298
      %s316 = sphi 0, %s316
      %s318 = sphi 0, %s316
      %s319 = sphi 0, %s318
      %s333 = sphi 0, %s319
      %s337 = sphi 0, %s337
      %s339 = sphi 0, %s337
      %s340 = sphi 0, %s339
      %s354 = sphi 0, %s340
      %s358 = sphi 0, %s358
      %s360 = sphi 0, %s358
      %s361 = sphi 0, %s360
      %s375 = sphi 0, %s361
      %s381 = sphi 0, %s383
      %s384 = sphi 0, %s381
      %s385 = sphi 0, %s384
      %s401 = sphi 0, %s385
      %s407 = sphi 0, %s409
      %s410 = sphi 0, %s407
      %s411 = sphi 0, %s410
      %s427 = sphi 0, %s411
    $region4: #{rcnn_backbone_forward.1} parent=1 // loop_header_branch
      %33 = sbr.rel (%p31) target = $region8
    $region5: #{rcnn_backbone_forward.1} parent=1 // loop_body
      %s35 = ssub.s32 %s30, 1
      %s36 = ssub.s32 %s30, 2
      %s37 = sadd.s32 %s30, 1
      %s38 = ssub.s32 %s30, %s37
      %p39 = scmp.eq.s32.totalorder %s38, 0
      %s41 = sadd.s32 %s40, 1
      %s42 = scalar_select %p39, %s40, %s41
      %p45 = pneg %p39
      %p46 = scmp.eq.s32.totalorder %s30, 1
      %p47 = por %p45, %p46
      %p48 = scmp.ne.s32.totalorder %s40, %s43
      %p49 = scmp.eq.s32.totalorder %s30, 0
      %p50 = por %p48, %p49
      %p51 = scmp.ne.s32.totalorder %s40, %s43
      %p52 = scmp.eq.s32.totalorder %s35, 1
      %p53 = por %p51, %p52
      %p54 = scmp.ne.s32.totalorder %s43, %s44
      %p55 = scmp.eq.s32.totalorder %s35, 0
      %p56 = por %p54, %p55
      %p57 = scmp.ne.s32.totalorder %s43, %s44
      %p58 = scmp.eq.s32.totalorder %s36, 1
      %p59 = por %p57, %p58
      %p61 = scmp.ne.s32.totalorder %s44, %s60
      %p62 = scmp.eq.s32.totalorder %s36, 0
      %p63 = por %p61, %p62
      %s65 = sadd.s32 %s64, 1
      %p68 = scmp.eq.s32.totalorder %s30, 1
      %p69 = scmp.ne.s32.totalorder %s64, %s66
      %p70 = scmp.eq.s32.totalorder %s30, 0
      %p71 = por %p69, %p70
      %p72 = scmp.ne.s32.totalorder %s64, %s66
      %p73 = scmp.eq.s32.totalorder %s35, 1
      %p74 = por %p72, %p73
      %p75 = scmp.ne.s32.totalorder %s66, %s67
      %p76 = scmp.eq.s32.totalorder %s35, 0
      %p77 = por %p75, %p76
      %p78 = scmp.ne.s32.totalorder %s66, %s67
      %p79 = scmp.eq.s32.totalorder %s36, 1
      %p80 = por %p78, %p79
      %p82 = scmp.ne.s32.totalorder %s67, %s81
      %p83 = scmp.eq.s32.totalorder %s36, 0
      %p84 = por %p82, %p83
      %s86 = sadd.s32 %s85, 1
      %p89 = scmp.eq.s32.totalorder %s30, 1
      %p90 = scmp.ne.s32.totalorder %s85, %s87
      %p91 = scmp.eq.s32.totalorder %s30, 0
      %p92 = por %p90, %p91
      %p93 = scmp.ne.s32.totalorder %s85, %s87
      %p94 = scmp.eq.s32.totalorder %s35, 1
      %p95 = por %p93, %p94
      %p96 = scmp.ne.s32.totalorder %s87, %s88
      %p97 = scmp.eq.s32.totalorder %s35, 0
      %p98 = por %p96, %p97
      %p99 = scmp.ne.s32.totalorder %s87, %s88
      %p100 = scmp.eq.s32.totalorder %s36, 1
      %p101 = por %p99, %p100
      %p103 = scmp.ne.s32.totalorder %s88, %s102
      %p104 = scmp.eq.s32.totalorder %s36, 0
      %p105 = por %p103, %p104
      %s107 = sadd.s32 %s106, 1
      %p110 = scmp.eq.s32.totalorder %s30, 1
      %p111 = scmp.ne.s32.totalorder %s106, %s108
      %p112 = scmp.eq.s32.totalorder %s30, 0
      %p113 = por %p111, %p112
      %p114 = scmp.ne.s32.totalorder %s106, %s108
      %p115 = scmp.eq.s32.totalorder %s35, 1
      %p116 = por %p114, %p115
      %p117 = scmp.ne.s32.totalorder %s108, %s109
      %p118 = scmp.eq.s32.totalorder %s35, 0
      %p119 = por %p117, %p118
      %p120 = scmp.ne.s32.totalorder %s108, %s109
      %p121 = scmp.eq.s32.totalorder %s36, 1
      %p122 = por %p120, %p121
      %p124 = scmp.ne.s32.totalorder %s109, %s123
      %p125 = scmp.eq.s32.totalorder %s36, 0
      %p126 = por %p124, %p125
      %s128 = sadd.s32 %s127, 1
      %p131 = scmp.eq.s32.totalorder %s30, 1
      %p132 = scmp.ne.s32.totalorder %s127, %s129
      %p133 = scmp.eq.s32.totalorder %s30, 0
      %p134 = por %p132, %p133
      %p135 = scmp.ne.s32.totalorder %s127, %s129
      %p136 = scmp.eq.s32.totalorder %s35, 1
      %p137 = por %p135, %p136
      %p138 = scmp.ne.s32.totalorder %s129, %s130
      %p139 = scmp.eq.s32.totalorder %s35, 0
      %p140 = por %p138, %p139
      %p141 = scmp.ne.s32.totalorder %s129, %s130
      %p142 = scmp.eq.s32.totalorder %s36, 1
      %p143 = por %p141, %p142
      %p145 = scmp.ne.s32.totalorder %s130, %s144
      %p146 = scmp.eq.s32.totalorder %s36, 0
      %p147 = por %p145, %p146
      %s149 = sadd.s32 %s148, 1
      %p152 = scmp.eq.s32.totalorder %s30, 1
      %p153 = scmp.ne.s32.totalorder %s148, %s150
      %p154 = scmp.eq.s32.totalorder %s30, 0
      %p155 = por %p153, %p154
      %p156 = scmp.ne.s32.totalorder %s148, %s150
      %p157 = scmp.eq.s32.totalorder %s35, 1
      %p158 = por %p156, %p157
      %p159 = scmp.ne.s32.totalorder %s150, %s151
      %p160 = scmp.eq.s32.totalorder %s35, 0
      %p161 = por %p159, %p160
      %p162 = scmp.ne.s32.totalorder %s150, %s151
      %p163 = scmp.eq.s32.totalorder %s36, 1
      %p164 = por %p162, %p163
      %p166 = scmp.ne.s32.totalorder %s151, %s165
      %p167 = scmp.eq.s32.totalorder %s36, 0
      %p168 = por %p166, %p167
      %s170 = sadd.s32 %s169, 1
      %p173 = scmp.eq.s32.totalorder %s30, 1
      %p174 = scmp.ne.s32.totalorder %s169, %s171
      %p175 = scmp.eq.s32.totalorder %s30, 0
      %p176 = por %p174, %p175
      %p177 = scmp.ne.s32.totalorder %s169, %s171
      %p178 = scmp.eq.s32.totalorder %s35, 1
      %p179 = por %p177, %p178
      %p180 = scmp.ne.s32.totalorder %s171, %s172
      %p181 = scmp.eq.s32.totalorder %s35, 0
      %p182 = por %p180, %p181
      %p183 = scmp.ne.s32.totalorder %s171, %s172
      %p184 = scmp.eq.s32.totalorder %s36, 1
      %p185 = por %p183, %p184
      %p187 = scmp.ne.s32.totalorder %s172, %s186
      %p188 = scmp.eq.s32.totalorder %s36, 0
      %p189 = por %p187, %p188
      %s191 = sadd.s32 %s190, 1
      %p194 = scmp.eq.s32.totalorder %s30, 1
      %p195 = scmp.ne.s32.totalorder %s190, %s192
      %p196 = scmp.eq.s32.totalorder %s30, 0
      %p197 = por %p195, %p196
      %p198 = scmp.ne.s32.totalorder %s190, %s192
      %p199 = scmp.eq.s32.totalorder %s35, 1
      %p200 = por %p198, %p199
      %p201 = scmp.ne.s32.totalorder %s192, %s193
      %p202 = scmp.eq.s32.totalorder %s35, 0
      %p203 = por %p201, %p202
      %p204 = scmp.ne.s32.totalorder %s192, %s193
      %p205 = scmp.eq.s32.totalorder %s36, 1
      %p206 = por %p204, %p205
      %p208 = scmp.ne.s32.totalorder %s193, %s207
      %p209 = scmp.eq.s32.totalorder %s36, 0
      %p210 = por %p208, %p209
      %s212 = sadd.s32 %s211, 1
      %p215 = scmp.eq.s32.totalorder %s30, 1
      %p216 = scmp.ne.s32.totalorder %s211, %s213
      %p217 = scmp.eq.s32.totalorder %s30, 0
      %p218 = por %p216, %p217
      %p219 = scmp.ne.s32.totalorder %s211, %s213
      %p220 = scmp.eq.s32.totalorder %s35, 1
      %p221 = por %p219, %p220
      %p222 = scmp.ne.s32.totalorder %s213, %s214
      %p223 = scmp.eq.s32.totalorder %s35, 0
      %p224 = por %p222, %p223
      %p225 = scmp.ne.s32.totalorder %s213, %s214
      %p226 = scmp.eq.s32.totalorder %s36, 1
      %p227 = por %p225, %p226
      %p229 = scmp.ne.s32.totalorder %s214, %s228
      %p230 = scmp.eq.s32.totalorder %s36, 0
      %p231 = por %p229, %p230
      %s233 = sadd.s32 %s232, 1
      %p236 = scmp.eq.s32.totalorder %s30, 1
      %p237 = scmp.ne.s32.totalorder %s232, %s234
      %p238 = scmp.eq.s32.totalorder %s30, 0
      %p239 = por %p237, %p238
      %p240 = scmp.ne.s32.totalorder %s232, %s234
      %p241 = scmp.eq.s32.totalorder %s35, 1
      %p242 = por %p240, %p241
      %p243 = scmp.ne.s32.totalorder %s234, %s235
      %p244 = scmp.eq.s32.totalorder %s35, 0
      %p245 = por %p243, %p244
      %p246 = scmp.ne.s32.totalorder %s234, %s235
      %p247 = scmp.eq.s32.totalorder %s36, 1
      %p248 = por %p246, %p247
      %p250 = scmp.ne.s32.totalorder %s235, %s249
      %p251 = scmp.eq.s32.totalorder %s36, 0
      %p252 = por %p250, %p251
      %s254 = sadd.s32 %s253, 1
      %p257 = scmp.eq.s32.totalorder %s30, 1
      %p258 = scmp.ne.s32.totalorder %s253, %s255
      %p259 = scmp.eq.s32.totalorder %s30, 0
      %p260 = por %p258, %p259
      %p261 = scmp.ne.s32.totalorder %s253, %s255
      %p262 = scmp.eq.s32.totalorder %s35, 1
      %p263 = por %p261, %p262
      %p264 = scmp.ne.s32.totalorder %s255, %s256
      %p265 = scmp.eq.s32.totalorder %s35, 0
      %p266 = por %p264, %p265
      %p267 = scmp.ne.s32.totalorder %s255, %s256
      %p268 = scmp.eq.s32.totalorder %s36, 1
      %p269 = por %p267, %p268
      %p271 = scmp.ne.s32.totalorder %s256, %s270
      %p272 = scmp.eq.s32.totalorder %s36, 0
      %p273 = por %p271, %p272
      %s275 = sadd.s32 %s274, 1
      %p278 = scmp.eq.s32.totalorder %s30, 1
      %p279 = scmp.ne.s32.totalorder %s274, %s276
      %p280 = scmp.eq.s32.totalorder %s30, 0
      %p281 = por %p279, %p280
      %p282 = scmp.ne.s32.totalorder %s274, %s276
      %p283 = scmp.eq.s32.totalorder %s35, 1
      %p284 = por %p282, %p283
      %p285 = scmp.ne.s32.totalorder %s276, %s277
      %p286 = scmp.eq.s32.totalorder %s35, 0
      %p287 = por %p285, %p286
      %p288 = scmp.ne.s32.totalorder %s276, %s277
      %p289 = scmp.eq.s32.totalorder %s36, 1
      %p290 = por %p288, %p289
      %p292 = scmp.ne.s32.totalorder %s277, %s291
      %p293 = scmp.eq.s32.totalorder %s36, 0
      %p294 = por %p292, %p293
      %s296 = sadd.s32 %s295, 1
      %p299 = scmp.eq.s32.totalorder %s30, 1
      %p300 = scmp.ne.s32.totalorder %s295, %s297
      %p301 = scmp.eq.s32.totalorder %s30, 0
      %p302 = por %p300, %p301
      %p303 = scmp.ne.s32.totalorder %s295, %s297
      %p304 = scmp.eq.s32.totalorder %s35, 1
      %p305 = por %p303, %p304
      %p306 = scmp.ne.s32.totalorder %s297, %s298
      %p307 = scmp.eq.s32.totalorder %s35, 0
      %p308 = por %p306, %p307
      %p309 = scmp.ne.s32.totalorder %s297, %s298
      %p310 = scmp.eq.s32.totalorder %s36, 1
      %p311 = por %p309, %p310
      %p313 = scmp.ne.s32.totalorder %s298, %s312
      %p314 = scmp.eq.s32.totalorder %s36, 0
      %p315 = por %p313, %p314
      %s317 = sadd.s32 %s316, 1
      %p320 = scmp.eq.s32.totalorder %s30, 1
      %p321 = scmp.ne.s32.totalorder %s316, %s318
      %p322 = scmp.eq.s32.totalorder %s30, 0
      %p323 = por %p321, %p322
      %p324 = scmp.ne.s32.totalorder %s316, %s318
      %p325 = scmp.eq.s32.totalorder %s35, 1
      %p326 = por %p324, %p325
      %p327 = scmp.ne.s32.totalorder %s318, %s319
      %p328 = scmp.eq.s32.totalorder %s35, 0
      %p329 = por %p327, %p328
      %p330 = scmp.ne.s32.totalorder %s318, %s319
      %p331 = scmp.eq.s32.totalorder %s36, 1
      %p332 = por %p330, %p331
      %p334 = scmp.ne.s32.totalorder %s319, %s333
      %p335 = scmp.eq.s32.totalorder %s36, 0
      %p336 = por %p334, %p335
      %s338 = sadd.s32 %s337, 1
      %p341 = scmp.eq.s32.totalorder %s30, 1
      %p342 = scmp.ne.s32.totalorder %s337, %s339
      %p343 = scmp.eq.s32.totalorder %s30, 0
      %p344 = por %p342, %p343
      %p345 = scmp.ne.s32.totalorder %s337, %s339
      %p346 = scmp.eq.s32.totalorder %s35, 1
      %p347 = por %p345, %p346
      %p348 = scmp.ne.s32.totalorder %s339, %s340
      %p349 = scmp.eq.s32.totalorder %s35, 0
      %p350 = por %p348, %p349
      %p351 = scmp.ne.s32.totalorder %s339, %s340
      %p352 = scmp.eq.s32.totalorder %s36, 1
      %p353 = por %p351, %p352
      %p355 = scmp.ne.s32.totalorder %s340, %s354
      %p356 = scmp.eq.s32.totalorder %s36, 0
      %p357 = por %p355, %p356
      %s359 = sadd.s32 %s358, 1
      %p362 = scmp.eq.s32.totalorder %s30, 1
      %p363 = scmp.ne.s32.totalorder %s358, %s360
      %p364 = scmp.eq.s32.totalorder %s30, 0
      %p365 = por %p363, %p364
      %p366 = scmp.ne.s32.totalorder %s358, %s360
      %p367 = scmp.eq.s32.totalorder %s35, 1
      %p368 = por %p366, %p367
      %p369 = scmp.ne.s32.totalorder %s360, %s361
      %p370 = scmp.eq.s32.totalorder %s35, 0
      %p371 = por %p369, %p370
      %p372 = scmp.ne.s32.totalorder %s360, %s361
      %p373 = scmp.eq.s32.totalorder %s36, 1
      %p374 = por %p372, %p373
      %p376 = scmp.ne.s32.totalorder %s361, %s375
      %p377 = scmp.eq.s32.totalorder %s36, 0
      %p378 = por %p376, %p377
      %s379 = ssub.s32 %s30, %s37
      %p380 = scmp.eq.s32.totalorder %s379, 0
      %s382 = sadd.s32 %s381, 1
      %s383 = scalar_select %p380, %s381, %s382
      %p386 = pneg %p380
      %p387 = scmp.eq.s32.totalorder %s30, 1
      %p388 = por %p386, %p387
      %p389 = scmp.ne.s32.totalorder %s381, %s384
      %p390 = scmp.eq.s32.totalorder %s30, 0
      %p391 = por %p389, %p390
      %p392 = scmp.ne.s32.totalorder %s381, %s384
      %p393 = scmp.eq.s32.totalorder %s35, 1
      %p394 = por %p392, %p393
      %p395 = scmp.ne.s32.totalorder %s384, %s385
      %p396 = scmp.eq.s32.totalorder %s35, 0
      %p397 = por %p395, %p396
      %p398 = scmp.ne.s32.totalorder %s384, %s385
      %p399 = scmp.eq.s32.totalorder %s36, 1
      %p400 = por %p398, %p399
      %p402 = scmp.ne.s32.totalorder %s385, %s401
      %p403 = scmp.eq.s32.totalorder %s36, 0
      %p404 = por %p402, %p403
      %s405 = ssub.s32 %s30, %s37
      %p406 = scmp.eq.s32.totalorder %s405, 0
      %s408 = sadd.s32 %s407, 1
      %s409 = scalar_select %p406, %s407, %s408
      %p412 = pneg %p406
      %p413 = scmp.eq.s32.totalorder %s30, 1
      %p414 = por %p412, %p413
      %p415 = scmp.ne.s32.totalorder %s407, %s410
      %p416 = scmp.eq.s32.totalorder %s30, 0
      %p417 = por %p415, %p416
      %p418 = scmp.ne.s32.totalorder %s407, %s410
      %p419 = scmp.eq.s32.totalorder %s35, 1
      %p420 = por %p418, %p419
      %p421 = scmp.ne.s32.totalorder %s410, %s411
      %p422 = scmp.eq.s32.totalorder %s35, 0
      %p423 = por %p421, %p422
      %p424 = scmp.ne.s32.totalorder %s410, %s411
      %p425 = scmp.eq.s32.totalorder %s36, 1
      %p426 = por %p424, %p425
      %p428 = scmp.ne.s32.totalorder %s411, %s427
      %p429 = scmp.eq.s32.totalorder %s36, 0
      %p430 = por %p428, %p429
      %p431 = scmp.le.s32.totalorder 1, %s30
      %p432 = scmp.lt.s32.totalorder %s30, 3
      %p433 = pnand %p431, %p432
      %p434 = pneg %p433
      // Predicated region
      $region9: #{rcnn_backbone_forward.1} parent=5 // pred_check
        _
      $region10: #{rcnn_backbone_forward.1} parent=5 // pred_check_branch
        %436 = sbr.rel (%p433) target = $region12
      $region11: #{rcnn_backbone_forward.1} parent=5 // pred_region
        %s437 = ssub.s32 %s30, 1
        // Predicated region
        $region13: #{rcnn_backbone_forward.1} parent=11 // pred_check
          %p438 = pneg %p77
        $region14: #{rcnn_backbone_forward.1} parent=11 // pred_check_branch
          %440 = sbr.rel (%p438) target = $region16
        $region15: #{rcnn_backbone_forward.1} parent=11 // pred_region
          _
        $region16: #{rcnn_backbone_forward.1} parent=11 // pred_fallthru
          _
        // Predicated region
        $region17: #{rcnn_backbone_forward.1} parent=11 // pred_check
          %p441 = pneg %p98
        $region18: #{rcnn_backbone_forward.1} parent=11 // pred_check_branch
          %443 = sbr.rel (%p441) target = $region20
        $region19: #{rcnn_backbone_forward.1} parent=11 // pred_region
          _
        $region20: #{rcnn_backbone_forward.1} parent=11 // pred_fallthru
          _
        // Predicated region
        $region21: #{rcnn_backbone_forward.1} parent=11 // pred_check
          %p444 = pneg %p119
        $region22: #{rcnn_backbone_forward.1} parent=11 // pred_check_branch
          %446 = sbr.rel (%p444) target = $region24
        $region23: #{rcnn_backbone_forward.1} parent=11 // pred_region
          _
        $region24: #{rcnn_backbone_forward.1} parent=11 // pred_fallthru
          _
        // Predicated region
        $region25: #{rcnn_backbone_forward.1} parent=11 // pred_check
          %p447 = pneg %p140
        $region26: #{rcnn_backbone_forward.1} parent=11 // pred_check_branch
          %449 = sbr.rel (%p447) target = $region28
        $region27: #{rcnn_backbone_forward.1} parent=11 // pred_region
          _
        $region28: #{rcnn_backbone_forward.1} parent=11 // pred_fallthru
          _
        // Predicated region
        $region29: #{rcnn_backbone_forward.1} parent=11 // pred_check
          %p450 = pneg %p161
        $region30: #{rcnn_backbone_forward.1} parent=11 // pred_check_branch
          %452 = sbr.rel (%p450) target = $region32
        $region31: #{rcnn_backbone_forward.1} parent=11 // pred_region
          _
        $region32: #{rcnn_backbone_forward.1} parent=11 // pred_fallthru
          _
        // Predicated region
        $region33: #{rcnn_backbone_forward.1} parent=11 // pred_check
          %p453 = pneg %p182
        $region34: #{rcnn_backbone_forward.1} parent=11 // pred_check_branch
          %455 = sbr.rel (%p453) target = $region36
        $region35: #{rcnn_backbone_forward.1} parent=11 // pred_region
          _
        $region36: #{rcnn_backbone_forward.1} parent=11 // pred_fallthru
          _
        // Predicated region
        $region37: #{rcnn_backbone_forward.1} parent=11 // pred_check
          %p456 = pneg %p203
        $region38: #{rcnn_backbone_forward.1} parent=11 // pred_check_branch
          %458 = sbr.rel (%p456) target = $region40
        $region39: #{rcnn_backbone_forward.1} parent=11 // pred_region
          _
        $region40: #{rcnn_backbone_forward.1} parent=11 // pred_fallthru
          _
        // Predicated region
        $region41: #{rcnn_backbone_forward.1} parent=11 // pred_check
          %p459 = pneg %p224
        $region42: #{rcnn_backbone_forward.1} parent=11 // pred_check_branch
          %461 = sbr.rel (%p459) target = $region44
        $region43: #{rcnn_backbone_forward.1} parent=11 // pred_region
          _
        $region44: #{rcnn_backbone_forward.1} parent=11 // pred_fallthru
          _
        // Predicated region
        $region45: #{rcnn_backbone_forward.1} parent=11 // pred_check
          %p462 = pneg %p245
        $region46: #{rcnn_backbone_forward.1} parent=11 // pred_check_branch
          %464 = sbr.rel (%p462) target = $region48
        $region47: #{rcnn_backbone_forward.1} parent=11 // pred_region
          _
        $region48: #{rcnn_backbone_forward.1} parent=11 // pred_fallthru
          _
        // Predicated region
        $region49: #{rcnn_backbone_forward.1} parent=11 // pred_check
          %p465 = pneg %p266
        $region50: #{rcnn_backbone_forward.1} parent=11 // pred_check_branch
          %467 = sbr.rel (%p465) target = $region52
        $region51: #{rcnn_backbone_forward.1} parent=11 // pred_region
          _
        $region52: #{rcnn_backbone_forward.1} parent=11 // pred_fallthru
          _
        // Predicated region
        $region53: #{rcnn_backbone_forward.1} parent=11 // pred_check
          %p468 = pneg %p287
        $region54: #{rcnn_backbone_forward.1} parent=11 // pred_check_branch
          %470 = sbr.rel (%p468) target = $region56
        $region55: #{rcnn_backbone_forward.1} parent=11 // pred_region
          _
        $region56: #{rcnn_backbone_forward.1} parent=11 // pred_fallthru
          _
        // Predicated region
        $region57: #{rcnn_backbone_forward.1} parent=11 // pred_check
          %p471 = pneg %p308
        $region58: #{rcnn_backbone_forward.1} parent=11 // pred_check_branch
          %473 = sbr.rel (%p471) target = $region60
        $region59: #{rcnn_backbone_forward.1} parent=11 // pred_region
          _
        $region60: #{rcnn_backbone_forward.1} parent=11 // pred_fallthru
          _
        // Predicated region
        $region61: #{rcnn_backbone_forward.1} parent=11 // pred_check
          %p474 = pneg %p329
        $region62: #{rcnn_backbone_forward.1} parent=11 // pred_check_branch
          %476 = sbr.rel (%p474) target = $region64
        $region63: #{rcnn_backbone_forward.1} parent=11 // pred_region
          _
        $region64: #{rcnn_backbone_forward.1} parent=11 // pred_fallthru
          _
        // Predicated region
        $region65: #{rcnn_backbone_forward.1} parent=11 // pred_check
          %p477 = pneg %p350
        $region66: #{rcnn_backbone_forward.1} parent=11 // pred_check_branch
          %479 = sbr.rel (%p477) target = $region68
        $region67: #{rcnn_backbone_forward.1} parent=11 // pred_region
          _
        $region68: #{rcnn_backbone_forward.1} parent=11 // pred_fallthru
          _
        // Predicated region
        $region69: #{rcnn_backbone_forward.1} parent=11 // pred_check
          %p480 = pneg %p371
        $region70: #{rcnn_backbone_forward.1} parent=11 // pred_check_branch
          %482 = sbr.rel (%p480) target = $region72
        $region71: #{rcnn_backbone_forward.1} parent=11 // pred_region
          _
        $region72: #{rcnn_backbone_forward.1} parent=11 // pred_fallthru
          _
      $region12: #{rcnn_backbone_forward.1} parent=5 // pred_fallthru
        _
      %p483 = scmp.lt.s32.totalorder %s30, 2
      // Predicated region
      $region73: #{rcnn_backbone_forward.1} parent=5 // pred_check
        %p484 = pneg %p483
      $region74: #{rcnn_backbone_forward.1} parent=5 // pred_check_branch
        %486 = sbr.rel (%p484) target = $region76
      $region75: #{rcnn_backbone_forward.1} parent=5 // pred_region
        // Predicated region
        $region77: #{rcnn_backbone_forward.1} parent=75 // pred_check
          %p487 = pneg %p50
        $region78: #{rcnn_backbone_forward.1} parent=75 // pred_check_branch
          %489 = sbr.rel (%p487) target = $region80
        $region79: #{rcnn_backbone_forward.1} parent=75 // pred_region
          %p490 = scmp.lt.s32.totalorder %s30, 1
          %s491 = scalar_select %p490, %s30, 1
          %s492 = smul.addr %s491, 82
          %s493 = smul.addr %s492, 8
          %s494 = scalar_lea.vmem %s0, %s493
        $region80: #{rcnn_backbone_forward.1} parent=75 // pred_fallthru
          _
      $region76: #{rcnn_backbone_forward.1} parent=5 // pred_fallthru
        _
      %p495 = scmp.le.s32.totalorder 1, %s30
      %p496 = scmp.lt.s32.totalorder %s30, 3
      %p497 = pnand %p495, %p496
      %p498 = pneg %p497
      // Predicated region
      $region81: #{rcnn_backbone_forward.1} parent=5 // pred_check
        _
      $region82: #{rcnn_backbone_forward.1} parent=5 // pred_check_branch
        %500 = sbr.rel (%p497) target = $region84
      $region83: #{rcnn_backbone_forward.1} parent=5 // pred_region
        %s501 = ssub.s32 %s30, 1
        %p502 = scmp.lt.s32.totalorder %s35, 1
        %s503 = scalar_select %p502, %s35, 1
        %s504 = smul.addr %s503, 82
        %s505 = smul.addr %s504, 8
        %s506 = scalar_lea.vmem %s0, %s505
        %p507 = pneg %p56
        %p508 = pneg %p53
        %p509 = pneg %p77
        %p510 = pneg %p74
        %p511 = pneg %p98
        %p512 = pneg %p95
        %p513 = pneg %p119
        %p514 = pneg %p116
        %p515 = pneg %p140
        %p516 = pneg %p137
        %p517 = pneg %p161
        %p518 = pneg %p158
        %p519 = pneg %p182
        %p520 = pneg %p179
        %p521 = pneg %p203
        %p522 = pneg %p200
        %p523 = pneg %p224
        %p524 = pneg %p221
        %p525 = pneg %p245
        %p526 = pneg %p242
        %p527 = pneg %p266
        %p528 = pneg %p263
        %p529 = pneg %p287
        %p530 = pneg %p284
        %p531 = pneg %p308
        %p532 = pneg %p305
        %p533 = pneg %p329
        %p534 = pneg %p326
        %p535 = pneg %p350
        %p536 = pneg %p347
        %p537 = pneg %p371
        %p538 = pneg %p368
        %p539 = pneg %p397
        %p540 = pneg %p394
        %s541 = sand.u32 %s384, 1
        %s542 = scalar_lea.sflag [#allocation8], %s541
        %s543 = sand.u32 %s384, 1
        %s544 = smul.addr %s543, 4
        %s545 = scalar_lea.vmem [#allocation7], %s544
        %p546 = pneg %p423
        %p547 = pneg %p420
        %s548 = sand.u32 %s410, 1
        %s549 = scalar_lea.sflag [#allocation10], %s548
        %s550 = sand.u32 %s410, 1
        %s551 = scalar_lea.vmem [#allocation9], %s550
        %p552 = scmp.lt.s32.totalorder %s35, 1
        %s553 = scalar_select %p552, %s35, 1
        %s554 = smul.addr %s553, 82
        %s555 = smul.addr %s554, 8
        %s556 = scalar_lea.vmem %s0, %s555
        %v557 = vld [vmem:[%s556] sm:$0xff]
        %v558 = vld [vmem:[%s556 + $0x8] sm:$0xff]
        %v559 = vld [vmem:[%s556 + $0x10] sm:$0xff]
        %v560 = vld [vmem:[%s556 + $0x18] sm:$0xff]
        %v561 = vld [vmem:[%s556 + $0x20] sm:$0xff]
        %v562 = vld [vmem:[%s556 + $0x28] sm:$0xff]
        %v563 = vld [vmem:[%s556 + $0x30] sm:$0xff]
        %v564 = vld [vmem:[%s556 + $0x38] sm:$0xff]
        %v565 = vld [vmem:[%s556 + $0x40] sm:$0xff]
        %v566 = vld [vmem:[%s556 + $0x48] sm:$0xff]
        %v567 = vld [vmem:[%s556 + $0x50] sm:$0xff]
        %v568 = vld [vmem:[%s556 + $0x58] sm:$0xff]
        %v569 = vld [vmem:[%s556 + $0x60] sm:$0xff]
        %v570 = vld [vmem:[%s556 + $0x68] sm:$0xff]
        %v571 = vld [vmem:[%s556 + $0x70] sm:$0xff]
        %v572 = vld [vmem:[%s556 + $0x78] sm:$0xff]
        %v573 = vld [vmem:[%s556 + $0x80] sm:$0xff]
        %v574 = vld [vmem:[%s556 + $0x88] sm:$0xff]
        %v575 = vld [vmem:[%s556 + $0x90] sm:$0xff]
        %v576 = vld [vmem:[%s556 + $0x98] sm:$0xff]
        %v577 = vld [vmem:[%s556 + $0xa0] sm:$0xff]
        %v578 = vld [vmem:[%s556 + $0xa8] sm:$0xff]
        %v579 = vld [vmem:[%s556 + $0xb0] sm:$0xff]
        %v580 = vld [vmem:[%s556 + $0xb8] sm:$0xff]
        %v581 = vld [vmem:[%s556 + $0xc0] sm:$0xff]
        %v582 = vld [vmem:[%s556 + $0xc8] sm:$0xff]
        %v583 = vld [vmem:[%s556 + $0xd0] sm:$0xff]
        %v584 = vld [vmem:[%s556 + $0xd8] sm:$0xff]
        %v585 = vld [vmem:[%s556 + $0xe0] sm:$0xff]
        %v586 = vld [vmem:[%s556 + $0xe8] sm:$0xff]
        %v587 = vld [vmem:[%s556 + $0xf0] sm:$0xff]
        %v588 = vld [vmem:[%s556 + $0xf8] sm:$0xff]
        %v589 = vld [vmem:[%s556 + $0x100] sm:$0xff]
        %v590 = vld [vmem:[%s556 + $0x108] sm:$0xff]
        %v591 = vld [vmem:[%s556 + $0x110] sm:$0xff]
        %v592 = vld [vmem:[%s556 + $0x118] sm:$0xff]
        %v593 = vld [vmem:[%s556 + $0x120] sm:$0xff]
        %v594 = vld [vmem:[%s556 + $0x128] sm:$0xff]
        %v595 = vld [vmem:[%s556 + $0x130] sm:$0xff]
        %v596 = vld [vmem:[%s556 + $0x138] sm:$0xff]
        %v597 = vld [vmem:[%s556 + $0x140] sm:$0xff]
        %v598 = vld [vmem:[%s556 + $0x148] sm:$0xff]
        %v599 = vld [vmem:[%s556 + $0x150] sm:$0xff]
        %v600 = vld [vmem:[%s556 + $0x158] sm:$0xff]
        %v601 = vld [vmem:[%s556 + $0x160] sm:$0xff]
        %v602 = vld [vmem:[%s556 + $0x168] sm:$0xff]
        %v603 = vld [vmem:[%s556 + $0x170] sm:$0xff]
        %v604 = vld [vmem:[%s556 + $0x178] sm:$0xff]
        %v605 = vld [vmem:[%s556 + $0x180] sm:$0xff]
        %v606 = vld [vmem:[%s556 + $0x188] sm:$0xff]
        %v607 = vld [vmem:[%s556 + $0x190] sm:$0xff]
        %v608 = vld [vmem:[%s556 + $0x198] sm:$0xff]
        %v609 = vld [vmem:[%s556 + $0x1a0] sm:$0xff]
        %v610 = vld [vmem:[%s556 + $0x1a8] sm:$0xff]
        %v611 = vld [vmem:[%s556 + $0x1b0] sm:$0xff]
        %v612 = vld [vmem:[%s556 + $0x1b8] sm:$0xff]
        %v613 = vld [vmem:[%s556 + $0x1c0] sm:$0xff]
        %v614 = vld [vmem:[%s556 + $0x1c8] sm:$0xff]
        %v615 = vld [vmem:[%s556 + $0x1d0] sm:$0xff]
        %v616 = vld [vmem:[%s556 + $0x1d8] sm:$0xff]
        %v617 = vld [vmem:[%s556 + $0x1e0] sm:$0xff]
        %v618 = vld [vmem:[%s556 + $0x1e8] sm:$0xff]
        %v619 = vld [vmem:[%s556 + $0x1f0] sm:$0xff]
        %v620 = vld [vmem:[%s556 + $0x1f8] sm:$0xff]
        %v621 = vld [vmem:[%s556 + $0x200] sm:$0xff]
        %v622 = vld [vmem:[%s556 + $0x208] sm:$0xff]
        %v623 = vld [vmem:[%s556 + $0x210] sm:$0xff]
        %v624 = vld [vmem:[%s556 + $0x218] sm:$0xff]
        %v625 = vld [vmem:[%s556 + $0x220] sm:$0xff]
        %v626 = vld [vmem:[%s556 + $0x228] sm:$0xff]
        %v627 = vld [vmem:[%s556 + $0x230] sm:$0xff]
        %v628 = vld [vmem:[%s556 + $0x238] sm:$0xff]
        %v629 = vld [vmem:[%s556 + $0x240] sm:$0xff]
        %v630 = vld [vmem:[%s556 + $0x248] sm:$0xff]
        %v631 = vld [vmem:[%s556 + $0x250] sm:$0xff]
        %v632 = vld [vmem:[%s556 + $0x258] sm:$0xff]
        %v633 = vld [vmem:[%s556 + $0x260] sm:$0xff]
        %v634 = vld [vmem:[%s556 + $0x268] sm:$0xff]
        %v635 = vld [vmem:[%s556 + $0x270] sm:$0xff]
        %v636 = vld [vmem:[%s556 + $0x278] sm:$0xff]
        %v637 = vld [vmem:[%s556 + $0x280] sm:$0xf]
        %v638 = vld [vmem:[%s556 + $0x288] sm:$0xf]
        %v639 = vld [vmem:[%s1] sm:$0xff]
        %v640 = vld [vmem:[%s1 + $0x8] sm:$0xff]
        %v641 = vld [vmem:[%s1 + $0x10] sm:$0xff]
        %v642 = vld [vmem:[%s1 + $0x18] sm:$0xff]
        %v643 = vld [vmem:[%s1 + $0x20] sm:$0xff]
        %v644 = vld [vmem:[%s1 + $0x28] sm:$0xff]
        %v645 = vld [vmem:[%s1 + $0x30] sm:$0xff]
        %v646 = vld [vmem:[%s1 + $0x38] sm:$0xff]
        %v647 = vld [vmem:[%s1 + $0x40] sm:$0xff]
        %v648 = vld [vmem:[%s1 + $0x48] sm:$0xff]
        %v649 = vld [vmem:[%s1 + $0x50] sm:$0xff]
        %v650 = vld [vmem:[%s1 + $0x58] sm:$0xff]
        %v651 = vld [vmem:[%s1 + $0x60] sm:$0xff]
        %v652 = vld [vmem:[%s1 + $0x68] sm:$0xff]
        %v653 = vld [vmem:[%s1 + $0x70] sm:$0xff]
        %v654 = vld [vmem:[%s1 + $0x78] sm:$0xff]
        %v655 = vld [vmem:[%s1 + $0x80] sm:$0xff]
        %v656 = vld [vmem:[%s1 + $0x88] sm:$0xff]
        %v657 = vld [vmem:[%s1 + $0x90] sm:$0xff]
        %v658 = vld [vmem:[%s1 + $0x98] sm:$0xff]
        %v659 = vld [vmem:[%s1 + $0xa0] sm:$0xff]
        %v660 = vld [vmem:[%s1 + $0xa8] sm:$0xff]
        %v661 = vld [vmem:[%s1 + $0xb0] sm:$0xff]
        %v662 = vld [vmem:[%s1 + $0xb8] sm:$0xff]
        %v663 = vld [vmem:[%s1 + $0xc0] sm:$0xff]
        %v664 = vld [vmem:[%s1 + $0xc8] sm:$0xff]
        %v665 = vld [vmem:[%s1 + $0xd0] sm:$0xff]
        %v666 = vld [vmem:[%s1 + $0xd8] sm:$0xff]
        %v667 = vld [vmem:[%s1 + $0xe0] sm:$0xff]
        %v668 = vld [vmem:[%s1 + $0xe8] sm:$0xff]
        %v669 = vld [vmem:[%s1 + $0xf0] sm:$0xff]
        %v670 = vld [vmem:[%s1 + $0xf8] sm:$0xff]
        %671 = vmatprep.subr.mxu0 0.0
        %672 = vmatpush1.msra.mxu0 %v654
        %673 = vmatprep.subr.mxu0 0.0
        %674 = vmatpush1.msra.mxu0 %v653
        %675 = vmatprep.subr.mxu0 0.0
        %676 = vmatpush1.msra.mxu0 %v652
        %677 = vmatprep.subr.mxu0 0.0
        %678 = vmatpush1.msra.mxu0 %v651
        %679 = vmatprep.subr.mxu0 0.0
        %680 = vmatpush1.msra.mxu0 %v650
        %681 = vmatprep.subr.mxu0 0.0
        %682 = vmatpush1.msra.mxu0 %v649
        %683 = vmatprep.subr.mxu0 0.0
        %684 = vmatpush1.msra.mxu0 %v648
        %685 = vmatprep.subr.mxu0 0.0
        %686 = vmatpush1.msra.mxu0 %v647
        %687 = vmatprep.subr.mxu0 0.0
        %688 = vmatpush1.msra.mxu0 %v646
        %689 = vmatprep.subr.mxu0 0.0
        %690 = vmatpush1.msra.mxu0 %v645
        %691 = vmatprep.subr.mxu0 0.0
        %692 = vmatpush1.msra.mxu0 %v644
        %693 = vmatprep.subr.mxu0 0.0
        %694 = vmatpush1.msra.mxu0 %v643
        %695 = vmatprep.subr.mxu0 0.0
        %696 = vmatpush1.msra.mxu0 %v642
        %697 = vmatprep.subr.mxu0 0.0
        %698 = vmatpush1.msra.mxu0 %v641
        %699 = vmatprep.subr.mxu0 0.0
        %700 = vmatpush1.msra.mxu0 %v640
        %701 = vmatprep.subr.mxu0 0.0
        %702 = vmatpush1.msra.mxu0 %v639
        %703 = vmatprep.subr.mxu0 0.0
        %704 = vmatpush2.msra.mxu0 %v670
        %705 = vmatprep.subr.mxu0 0.0
        %706 = vmatpush2.msra.mxu0 %v669
        %707 = vmatprep.subr.mxu0 0.0
        %708 = vmatpush2.msra.mxu0 %v668
        %709 = vmatprep.subr.mxu0 0.0
        %710 = vmatpush2.msra.mxu0 %v667
        %711 = vmatprep.subr.mxu0 0.0
        %712 = vmatpush2.msra.mxu0 %v666
        %713 = vmatprep.subr.mxu0 0.0
        %714 = vmatpush2.msra.mxu0 %v665
        %715 = vmatprep.subr.mxu0 0.0
        %716 = vmatpush2.msra.mxu0 %v664
        %717 = vmatprep.subr.mxu0 0.0
        %718 = vmatpush2.msra.mxu0 %v663
        %719 = vmatprep.subr.mxu0 0.0
        %720 = vmatpush2.msra.mxu0 %v662
        %721 = vmatprep.subr.mxu0 0.0
        %722 = vmatpush2.msra.mxu0 %v661
        %723 = vmatprep.subr.mxu0 0.0
        %724 = vmatpush2.msra.mxu0 %v660
        %725 = vmatprep.subr.mxu0 0.0
        %726 = vmatpush2.msra.mxu0 %v659
        %727 = vmatprep.subr.mxu0 0.0
        %728 = vmatpush2.msra.mxu0 %v658
        %729 = vmatprep.subr.mxu0 0.0
        %730 = vmatpush2.msra.mxu0 %v657
        %731 = vmatprep.subr.mxu0 0.0
        %732 = vmatpush2.msra.mxu0 %v656
        %733 = vmatprep.subr.mxu0 0.0
        %734 = vmatpush2.msra.mxu0 %v655
        %735 = vmatprep.mubr.f32.mxu0 %v558
        %736 = vmatmul.mubr.f32.gmra.mxu0 %v557
        %v737 = vpop.f32.mrf.mxu0
        %v738 = vadd.f32 0.0, %v737
        %v739 = vpop.f32.mrf.mxu0
        %740 = vmatprep.mubr.f32.mxu0 %v560
        %741 = vmatmul.mubr.f32.gmra.mxu0 %v559
        %v742 = vpop.f32.mrf.mxu0
        %v743 = vadd.f32 0.0, %v742
        %v744 = vpop.f32.mrf.mxu0
        %745 = vmatprep.mubr.f32.mxu0 %v562
        %746 = vmatmul.mubr.f32.gmra.mxu0 %v561
        %v747 = vpop.f32.mrf.mxu0
        %v748 = vadd.f32 0.0, %v747
        %v749 = vpop.f32.mrf.mxu0
        %750 = vmatprep.mubr.f32.mxu0 %v564
        %751 = vmatmul.mubr.f32.gmra.mxu0 %v563
        %v752 = vpop.f32.mrf.mxu0
        %v753 = vadd.f32 0.0, %v752
        %v754 = vpop.f32.mrf.mxu0
        %755 = vmatprep.mubr.f32.mxu0 %v566
        %756 = vmatmul.mubr.f32.gmra.mxu0 %v565
        %v757 = vpop.f32.mrf.mxu0
        %v758 = vadd.f32 0.0, %v757
        %v759 = vpop.f32.mrf.mxu0
        %760 = vmatprep.mubr.f32.mxu0 %v568
        %761 = vmatmul.mubr.f32.gmra.mxu0 %v567
        %v762 = vpop.f32.mrf.mxu0
        %v763 = vadd.f32 0.0, %v762
        %v764 = vpop.f32.mrf.mxu0
        %765 = vmatprep.mubr.f32.mxu0 %v570
        %766 = vmatmul.mubr.f32.gmra.mxu0 %v569
        %v767 = vpop.f32.mrf.mxu0
        %v768 = vadd.f32 0.0, %v767
        %v769 = vpop.f32.mrf.mxu0
        %770 = vmatprep.mubr.f32.mxu0 %v572
        %771 = vmatmul.mubr.f32.gmra.mxu0 %v571
        %v772 = vpop.f32.mrf.mxu0
        %v773 = vadd.f32 0.0, %v772
        %v774 = vpop.f32.mrf.mxu0
        %775 = vmatprep.mubr.f32.mxu0 %v574
        %776 = vmatmul.mubr.f32.gmra.mxu0 %v573
        %v777 = vpop.f32.mrf.mxu0
        %v778 = vadd.f32 0.0, %v777
        %v779 = vpop.f32.mrf.mxu0
        %780 = vmatprep.mubr.f32.mxu0 %v576
        %781 = vmatmul.mubr.f32.gmra.mxu0 %v575
        %v782 = vpop.f32.mrf.mxu0
        %v783 = vadd.f32 0.0, %v782
        %v784 = vpop.f32.mrf.mxu0
        %785 = vmatprep.mubr.f32.mxu0 %v578
        %786 = vmatmul.mubr.f32.gmra.mxu0 %v577
        %v787 = vpop.f32.mrf.mxu0
        %v788 = vadd.f32 0.0, %v787
        %v789 = vpop.f32.mrf.mxu0
        %790 = vmatprep.mubr.f32.mxu0 %v580
        %791 = vmatmul.mubr.f32.gmra.mxu0 %v579
        %v792 = vpop.f32.mrf.mxu0
        %v793 = vadd.f32 0.0, %v792
        %v794 = vpop.f32.mrf.mxu0
        %795 = vmatprep.mubr.f32.mxu0 %v582
        %796 = vmatmul.mubr.f32.gmra.mxu0 %v581
        %v797 = vpop.f32.mrf.mxu0
        %v798 = vadd.f32 0.0, %v797
        %v799 = vpop.f32.mrf.mxu0
        %800 = vmatprep.mubr.f32.mxu0 %v584
        %801 = vmatmul.mubr.f32.gmra.mxu0 %v583
        %v802 = vpop.f32.mrf.mxu0
        %v803 = vadd.f32 0.0, %v802
        %v804 = vpop.f32.mrf.mxu0
        %805 = vmatprep.mubr.f32.mxu0 %v586
        %806 = vmatmul.mubr.f32.gmra.mxu0 %v585
        %v807 = vpop.f32.mrf.mxu0
        %v808 = vadd.f32 0.0, %v807
        %v809 = vpop.f32.mrf.mxu0
        %810 = vmatprep.mubr.f32.mxu0 %v588
        %811 = vmatmul.mubr.f32.gmra.mxu0 %v587
        %v812 = vpop.f32.mrf.mxu0
        %v813 = vadd.f32 0.0, %v812
        %v814 = vpop.f32.mrf.mxu0
        %815 = vmatprep.mubr.f32.mxu0 %v590
        %816 = vmatmul.mubr.f32.gmra.mxu0 %v589
        %v817 = vpop.f32.mrf.mxu0
        %v818 = vadd.f32 0.0, %v817
        %v819 = vpop.f32.mrf.mxu0
        %820 = vmatprep.mubr.f32.mxu0 %v592
        %821 = vmatmul.mubr.f32.gmra.mxu0 %v591
        %v822 = vpop.f32.mrf.mxu0
        %v823 = vadd.f32 0.0, %v822
        %v824 = vpop.f32.mrf.mxu0
        %825 = vmatprep.mubr.f32.mxu0 %v594
        %826 = vmatmul.mubr.f32.gmra.mxu0 %v593
        %v827 = vpop.f32.mrf.mxu0
        %v828 = vadd.f32 0.0, %v827
        %v829 = vpop.f32.mrf.mxu0
        %830 = vmatprep.mubr.f32.mxu0 %v596
        %831 = vmatmul.mubr.f32.gmra.mxu0 %v595
        %v832 = vpop.f32.mrf.mxu0
        %v833 = vadd.f32 0.0, %v832
        %v834 = vpop.f32.mrf.mxu0
        %835 = vmatprep.mubr.f32.mxu0 %v598
        %836 = vmatmul.mubr.f32.gmra.mxu0 %v597
        %v837 = vpop.f32.mrf.mxu0
        %v838 = vadd.f32 0.0, %v837
        %v839 = vpop.f32.mrf.mxu0
        %840 = vmatprep.mubr.f32.mxu0 %v600
        %841 = vmatmul.mubr.f32.gmra.mxu0 %v599
        %v842 = vpop.f32.mrf.mxu0
        %v843 = vadd.f32 0.0, %v842
        %v844 = vpop.f32.mrf.mxu0
        %845 = vmatprep.mubr.f32.mxu0 %v602
        %846 = vmatmul.mubr.f32.gmra.mxu0 %v601
        %v847 = vpop.f32.mrf.mxu0
        %v848 = vadd.f32 0.0, %v847
        %v849 = vpop.f32.mrf.mxu0
        %850 = vmatprep.mubr.f32.mxu0 %v604
        %851 = vmatmul.mubr.f32.gmra.mxu0 %v603
        %v852 = vpop.f32.mrf.mxu0
        %v853 = vadd.f32 0.0, %v852
        %v854 = vpop.f32.mrf.mxu0
        %855 = vmatprep.mubr.f32.mxu0 %v606
        %856 = vmatmul.mubr.f32.gmra.mxu0 %v605
        %v857 = vpop.f32.mrf.mxu0
        %v858 = vadd.f32 0.0, %v857
        %v859 = vpop.f32.mrf.mxu0
        %860 = vmatprep.mubr.f32.mxu0 %v608
        %861 = vmatmul.mubr.f32.gmra.mxu0 %v607
        %v862 = vpop.f32.mrf.mxu0
        %v863 = vadd.f32 0.0, %v862
        %v864 = vpop.f32.mrf.mxu0
        %865 = vmatprep.mubr.f32.mxu0 %v610
        %866 = vmatmul.mubr.f32.gmra.mxu0 %v609
        %v867 = vpop.f32.mrf.mxu0
        %v868 = vadd.f32 0.0, %v867
        %v869 = vpop.f32.mrf.mxu0
        %870 = vmatprep.mubr.f32.mxu0 %v612
        %871 = vmatmul.mubr.f32.gmra.mxu0 %v611
        %v872 = vpop.f32.mrf.mxu0
        %v873 = vadd.f32 0.0, %v872
        %v874 = vpop.f32.mrf.mxu0
        %875 = vmatprep.mubr.f32.mxu0 %v614
        %876 = vmatmul.mubr.f32.gmra.mxu0 %v613
        %v877 = vpop.f32.mrf.mxu0
        %v878 = vadd.f32 0.0, %v877
        %v879 = vpop.f32.mrf.mxu0
        %880 = vmatprep.mubr.f32.mxu0 %v616
        %881 = vmatmul.mubr.f32.gmra.mxu0 %v615
        %v882 = vpop.f32.mrf.mxu0
        %v883 = vadd.f32 0.0, %v882
        %v884 = vpop.f32.mrf.mxu0
        %885 = vmatprep.mubr.f32.mxu0 %v618
        %886 = vmatmul.mubr.f32.gmra.mxu0 %v617
        %v887 = vpop.f32.mrf.mxu0
        %v888 = vadd.f32 0.0, %v887
        %v889 = vpop.f32.mrf.mxu0
        %890 = vmatprep.mubr.f32.mxu0 %v620
        %891 = vmatmul.mubr.f32.gmra.mxu0 %v619
        %v892 = vpop.f32.mrf.mxu0
        %v893 = vadd.f32 0.0, %v892
        %v894 = vpop.f32.mrf.mxu0
        %895 = vmatprep.mubr.f32.mxu0 %v622
        %896 = vmatmul.mubr.f32.gmra.mxu0 %v621
        %v897 = vpop.f32.mrf.mxu0
        %v898 = vadd.f32 0.0, %v897
        %v899 = vpop.f32.mrf.mxu0
        %900 = vmatprep.mubr.f32.mxu0 %v624
        %901 = vmatmul.mubr.f32.gmra.mxu0 %v623
        %v902 = vpop.f32.mrf.mxu0
        %v903 = vadd.f32 0.0, %v902
        %v904 = vpop.f32.mrf.mxu0
        %905 = vmatprep.mubr.f32.mxu0 %v626
        %906 = vmatmul.mubr.f32.gmra.mxu0 %v625
        %v907 = vpop.f32.mrf.mxu0
        %v908 = vadd.f32 0.0, %v907
        %v909 = vpop.f32.mrf.mxu0
        %910 = vmatprep.mubr.f32.mxu0 %v628
        %911 = vmatmul.mubr.f32.gmra.mxu0 %v627
        %v912 = vpop.f32.mrf.mxu0
        %v913 = vadd.f32 0.0, %v912
        %v914 = vpop.f32.mrf.mxu0
        %915 = vmatprep.mubr.f32.mxu0 %v630
        %916 = vmatmul.mubr.f32.gmra.mxu0 %v629
        %v917 = vpop.f32.mrf.mxu0
        %v918 = vadd.f32 0.0, %v917
        %v919 = vpop.f32.mrf.mxu0
        %920 = vmatprep.mubr.f32.mxu0 %v632
        %921 = vmatmul.mubr.f32.gmra.mxu0 %v631
        %v922 = vpop.f32.mrf.mxu0
        %v923 = vadd.f32 0.0, %v922
        %v924 = vpop.f32.mrf.mxu0
        %925 = vmatprep.mubr.f32.mxu0 %v634
        %926 = vmatmul.mubr.f32.gmra.mxu0 %v633
        %v927 = vpop.f32.mrf.mxu0
        %v928 = vadd.f32 0.0, %v927
        %v929 = vpop.f32.mrf.mxu0
        %930 = vmatprep.mubr.f32.mxu0 %v636
        %931 = vmatmul.mubr.f32.gmra.mxu0 %v635
        %v932 = vpop.f32.mrf.mxu0
        %v933 = vadd.f32 0.0, %v932
        %v934 = vpop.f32.mrf.mxu0
        %935 = vmatprep.mubr.f32.mxu0 %v638
        %936 = vmatmul.mubr.f32.gmra.mxu0 %v637
        %v937 = vpop.f32.mrf.mxu0
        %v938 = vadd.f32 0.0, %v937
        %v939 = vpop.f32.mrf.mxu0
        %940 = vdwg.mxu0
        %v941 = vmax.f32 %v738, 0.0
        %v942 = vmax.f32 %v743, 0.0
        %v943 = vmax.f32 %v748, 0.0
        %v944 = vmax.f32 %v753, 0.0
        %v945 = vmax.f32 %v758, 0.0
        %v946 = vmax.f32 %v763, 0.0
        %v947 = vmax.f32 %v768, 0.0
        %v948 = vmax.f32 %v773, 0.0
        %v949 = vmax.f32 %v778, 0.0
        %v950 = vmax.f32 %v783, 0.0
        %v951 = vmax.f32 %v788, 0.0
        %v952 = vmax.f32 %v793, 0.0
        %v953 = vmax.f32 %v798, 0.0
        %v954 = vmax.f32 %v803, 0.0
        %v955 = vmax.f32 %v808, 0.0
        %v956 = vmax.f32 %v813, 0.0
        %v957 = vmax.f32 %v818, 0.0
        %v958 = vmax.f32 %v823, 0.0
        %v959 = vmax.f32 %v828, 0.0
        %v960 = vmax.f32 %v833, 0.0
        %v961 = vmax.f32 %v838, 0.0
        %v962 = vmax.f32 %v843, 0.0
        %v963 = vmax.f32 %v848, 0.0
        %v964 = vmax.f32 %v853, 0.0
        %v965 = vmax.f32 %v858, 0.0
        %v966 = vmax.f32 %v863, 0.0
        %v967 = vmax.f32 %v868, 0.0
        %v968 = vmax.f32 %v873, 0.0
        %v969 = vmax.f32 %v878, 0.0
        %v970 = vmax.f32 %v883, 0.0
        %v971 = vmax.f32 %v888, 0.0
        %v972 = vmax.f32 %v893, 0.0
        %v973 = vmax.f32 %v898, 0.0
        %v974 = vmax.f32 %v903, 0.0
        %v975 = vmax.f32 %v908, 0.0
        %v976 = vmax.f32 %v913, 0.0
        %v977 = vmax.f32 %v918, 0.0
        %v978 = vmax.f32 %v923, 0.0
        %v979 = vmax.f32 %v928, 0.0
        %v980 = vmax.f32 %v933, 0.0
        %v981 = vmax.f32 %v938, 0.0
        %982 = vst [vmem:[#allocation2] sm:$0xff] %v941
        %983 = vst [vmem:[#allocation2 + $0x8] sm:$0xff] %v942
        %984 = vst [vmem:[#allocation2 + $0x10] sm:$0xff] %v943
        %985 = vst [vmem:[#allocation2 + $0x18] sm:$0xff] %v944
        %986 = vst [vmem:[#allocation2 + $0x20] sm:$0xff] %v945
        %987 = vst [vmem:[#allocation2 + $0x28] sm:$0xff] %v946
        %988 = vst [vmem:[#allocation2 + $0x30] sm:$0xff] %v947
        %989 = vst [vmem:[#allocation2 + $0x38] sm:$0xff] %v948
        %990 = vst [vmem:[#allocation2 + $0x40] sm:$0xff] %v949
        %991 = vst [vmem:[#allocation2 + $0x48] sm:$0xff] %v950
        %992 = vst [vmem:[#allocation2 + $0x50] sm:$0xff] %v951
        %993 = vst [vmem:[#allocation2 + $0x58] sm:$0xff] %v952
        %994 = vst [vmem:[#allocation2 + $0x60] sm:$0xff] %v953
        %995 = vst [vmem:[#allocation2 + $0x68] sm:$0xff] %v954
        %996 = vst [vmem:[#allocation2 + $0x70] sm:$0xff] %v955
        %997 = vst [vmem:[#allocation2 + $0x78] sm:$0xff] %v956
        %998 = vst [vmem:[#allocation2 + $0x80] sm:$0xff] %v957
        %999 = vst [vmem:[#allocation2 + $0x88] sm:$0xff] %v958
        %1000 = vst [vmem:[#allocation2 + $0x90] sm:$0xff] %v959
        %1001 = vst [vmem:[#allocation2 + $0x98] sm:$0xff] %v960
        %1002 = vst [vmem:[#allocation2 + $0xa0] sm:$0xff] %v961
        %1003 = vst [vmem:[#allocation2 + $0xa8] sm:$0xff] %v962
        %1004 = vst [vmem:[#allocation2 + $0xb0] sm:$0xff] %v963
        %1005 = vst [vmem:[#allocation2 + $0xb8] sm:$0xff] %v964
        %1006 = vst [vmem:[#allocation2 + $0xc0] sm:$0xff] %v965
        %1007 = vst [vmem:[#allocation2 + $0xc8] sm:$0xff] %v966
        %1008 = vst [vmem:[#allocation2 + $0xd0] sm:$0xff] %v967
        %1009 = vst [vmem:[#allocation2 + $0xd8] sm:$0xff] %v968
        %1010 = vst [vmem:[#allocation2 + $0xe0] sm:$0xff] %v969
        %1011 = vst [vmem:[#allocation2 + $0xe8] sm:$0xff] %v970
        %1012 = vst [vmem:[#allocation2 + $0xf0] sm:$0xff] %v971
        %1013 = vst [vmem:[#allocation2 + $0xf8] sm:$0xff] %v972
        %1014 = vst [vmem:[#allocation2 + $0x100] sm:$0xff] %v973
        %1015 = vst [vmem:[#allocation2 + $0x108] sm:$0xff] %v974
        %1016 = vst [vmem:[#allocation2 + $0x110] sm:$0xff] %v975
        %1017 = vst [vmem:[#allocation2 + $0x118] sm:$0xff] %v976
        %1018 = vst [vmem:[#allocation2 + $0x120] sm:$0xff] %v977
        %1019 = vst [vmem:[#allocation2 + $0x128] sm:$0xff] %v978
        %1020 = vst [vmem:[#allocation2 + $0x130] sm:$0xff] %v979
        %1021 = vst [vmem:[#allocation2 + $0x138] sm:$0xff] %v980
        %1022 = vst [vmem:[#allocation2 + $0x140] sm:$0xf] %v981
        %v1023 = vld [vmem:[#allocation2] sm:$0xff]
        %v1024 = vld [vmem:[#allocation2 + $0x8] sm:$0xff]
        %v1025 = vld [vmem:[#allocation2 + $0x10] sm:$0xff]
        %v1026 = vld [vmem:[#allocation2 + $0x18] sm:$0xff]
        %v1027 = vld [vmem:[#allocation2 + $0x20] sm:$0xff]
        %v1028 = vld [vmem:[#allocation2 + $0x28] sm:$0xff]
        %v1029 = vld [vmem:[#allocation2 + $0x30] sm:$0xff]
        %v1030 = vld [vmem:[#allocation2 + $0x38] sm:$0xff]
        %v1031 = vld [vmem:[#allocation2 + $0x40] sm:$0xff]
        %v1032 = vld [vmem:[#allocation2 + $0x48] sm:$0xff]
        %v1033 = vld [vmem:[#allocation2 + $0x50] sm:$0xff]
        %v1034 = vld [vmem:[#allocation2 + $0x58] sm:$0xff]
        %v1035 = vld [vmem:[#allocation2 + $0x60] sm:$0xff]
        %v1036 = vld [vmem:[#allocation2 + $0x68] sm:$0xff]
        %v1037 = vld [vmem:[#allocation2 + $0x70] sm:$0xff]
        %v1038 = vld [vmem:[#allocation2 + $0x78] sm:$0xff]
        %v1039 = vld [vmem:[#allocation2 + $0x80] sm:$0xff]
        %v1040 = vld [vmem:[#allocation2 + $0x88] sm:$0xff]
        %v1041 = vld [vmem:[#allocation2 + $0x90] sm:$0xff]
        %v1042 = vld [vmem:[#allocation2 + $0x98] sm:$0xff]
        %v1043 = vld [vmem:[#allocation2 + $0xa0] sm:$0xff]
        %v1044 = vld [vmem:[#allocation2 + $0xa8] sm:$0xff]
        %v1045 = vld [vmem:[#allocation2 + $0xb0] sm:$0xff]
        %v1046 = vld [vmem:[#allocation2 + $0xb8] sm:$0xff]
        %v1047 = vld [vmem:[#allocation2 + $0xc0] sm:$0xff]
        %v1048 = vld [vmem:[#allocation2 + $0xc8] sm:$0xff]
        %v1049 = vld [vmem:[#allocation2 + $0xd0] sm:$0xff]
        %v1050 = vld [vmem:[#allocation2 + $0xd8] sm:$0xff]
        %v1051 = vld [vmem:[#allocation2 + $0xe0] sm:$0xff]
        %v1052 = vld [vmem:[#allocation2 + $0xe8] sm:$0xff]
        %v1053 = vld [vmem:[#allocation2 + $0xf0] sm:$0xff]
        %v1054 = vld [vmem:[#allocation2 + $0xf8] sm:$0xff]
        %v1055 = vld [vmem:[#allocation2 + $0x100] sm:$0xff]
        %v1056 = vld [vmem:[#allocation2 + $0x108] sm:$0xff]
        %v1057 = vld [vmem:[#allocation2 + $0x110] sm:$0xff]
        %v1058 = vld [vmem:[#allocation2 + $0x118] sm:$0x3f]
        %v1059 = vld [vmem:[#allocation2 + $0x1] sm:$0xff]
        %v1060 = vld [vmem:[#allocation2 + $0x9] sm:$0xff]
        %v1061 = vld [vmem:[#allocation2 + $0x11] sm:$0xff]
        %v1062 = vld [vmem:[#allocation2 + $0x19] sm:$0xff]
        %v1063 = vld [vmem:[#allocation2 + $0x21] sm:$0xff]
        %v1064 = vld [vmem:[#allocation2 + $0x29] sm:$0xff]
        %v1065 = vld [vmem:[#allocation2 + $0x31] sm:$0xff]
        %v1066 = vld [vmem:[#allocation2 + $0x39] sm:$0xff]
        %v1067 = vld [vmem:[#allocation2 + $0x41] sm:$0xff]
        %v1068 = vld [vmem:[#allocation2 + $0x49] sm:$0xff]
        %v1069 = vld [vmem:[#allocation2 + $0x51] sm:$0xff]
        %v1070 = vld [vmem:[#allocation2 + $0x59] sm:$0xff]
        %v1071 = vld [vmem:[#allocation2 + $0x61] sm:$0xff]
        %v1072 = vld [vmem:[#allocation2 + $0x69] sm:$0xff]
        %v1073 = vld [vmem:[#allocation2 + $0x71] sm:$0xff]
        %v1074 = vld [vmem:[#allocation2 + $0x79] sm:$0xff]
        %v1075 = vld [vmem:[#allocation2 + $0x81] sm:$0xff]
        %v1076 = vld [vmem:[#allocation2 + $0x89] sm:$0xff]
        %v1077 = vld [vmem:[#allocation2 + $0x91] sm:$0xff]
        %v1078 = vld [vmem:[#allocation2 + $0x99] sm:$0xff]
        %v1079 = vld [vmem:[#allocation2 + $0xa1] sm:$0xff]
        %v1080 = vld [vmem:[#allocation2 + $0xa9] sm:$0xff]
        %v1081 = vld [vmem:[#allocation2 + $0xb1] sm:$0xff]
        %v1082 = vld [vmem:[#allocation2 + $0xb9] sm:$0xff]
        %v1083 = vld [vmem:[#allocation2 + $0xc1] sm:$0xff]
        %v1084 = vld [vmem:[#allocation2 + $0xc9] sm:$0xff]
        %v1085 = vld [vmem:[#allocation2 + $0xd1] sm:$0xff]
        %v1086 = vld [vmem:[#allocation2 + $0xd9] sm:$0xff]
        %v1087 = vld [vmem:[#allocation2 + $0xe1] sm:$0xff]
        %v1088 = vld [vmem:[#allocation2 + $0xe9] sm:$0xff]
        %v1089 = vld [vmem:[#allocation2 + $0xf1] sm:$0xff]
        %v1090 = vld [vmem:[#allocation2 + $0xf9] sm:$0xff]
        %v1091 = vld [vmem:[#allocation2 + $0x101] sm:$0xff]
        %v1092 = vld [vmem:[#allocation2 + $0x109] sm:$0xff]
        %v1093 = vld [vmem:[#allocation2 + $0x111] sm:$0xff]
        %v1094 = vld [vmem:[#allocation2 + $0x119] sm:$0x3f]
        %v1095 = vmax.f32 %v1023, %v1059
        %v1096 = vmax.f32 %v1024, %v1060
        %v1097 = vmax.f32 %v1025, %v1061
        %v1098 = vmax.f32 %v1026, %v1062
        %v1099 = vmax.f32 %v1027, %v1063
        %v1100 = vmax.f32 %v1028, %v1064
        %v1101 = vmax.f32 %v1029, %v1065
        %v1102 = vmax.f32 %v1030, %v1066
        %v1103 = vmax.f32 %v1031, %v1067
        %v1104 = vmax.f32 %v1032, %v1068
        %v1105 = vmax.f32 %v1033, %v1069
        %v1106 = vmax.f32 %v1034, %v1070
        %v1107 = vmax.f32 %v1035, %v1071
        %v1108 = vmax.f32 %v1036, %v1072
        %v1109 = vmax.f32 %v1037, %v1073
        %v1110 = vmax.f32 %v1038, %v1074
        %v1111 = vmax.f32 %v1039, %v1075
        %v1112 = vmax.f32 %v1040, %v1076
        %v1113 = vmax.f32 %v1041, %v1077
        %v1114 = vmax.f32 %v1042, %v1078
        %v1115 = vmax.f32 %v1043, %v1079
        %v1116 = vmax.f32 %v1044, %v1080
        %v1117 = vmax.f32 %v1045, %v1081
        %v1118 = vmax.f32 %v1046, %v1082
        %v1119 = vmax.f32 %v1047, %v1083
        %v1120 = vmax.f32 %v1048, %v1084
        %v1121 = vmax.f32 %v1049, %v1085
        %v1122 = vmax.f32 %v1050, %v1086
        %v1123 = vmax.f32 %v1051, %v1087
        %v1124 = vmax.f32 %v1052, %v1088
        %v1125 = vmax.f32 %v1053, %v1089
        %v1126 = vmax.f32 %v1054, %v1090
        %v1127 = vmax.f32 %v1055, %v1091
        %v1128 = vmax.f32 %v1056, %v1092
        %v1129 = vmax.f32 %v1057, %v1093
        %v1130 = vmax.f32 %v1058, %v1094
        %v1131 = vld [vmem:[#allocation2 + $0x2] sm:$0xff]
        %v1132 = vld [vmem:[#allocation2 + $0xa] sm:$0xff]
        %v1133 = vld [vmem:[#allocation2 + $0x12] sm:$0xff]
        %v1134 = vld [vmem:[#allocation2 + $0x1a] sm:$0xff]
        %v1135 = vld [vmem:[#allocation2 + $0x22] sm:$0xff]
        %v1136 = vld [vmem:[#allocation2 + $0x2a] sm:$0xff]
        %v1137 = vld [vmem:[#allocation2 + $0x32] sm:$0xff]
        %v1138 = vld [vmem:[#allocation2 + $0x3a] sm:$0xff]
        %v1139 = vld [vmem:[#allocation2 + $0x42] sm:$0xff]
        %v1140 = vld [vmem:[#allocation2 + $0x4a] sm:$0xff]
        %v1141 = vld [vmem:[#allocation2 + $0x52] sm:$0xff]
        %v1142 = vld [vmem:[#allocation2 + $0x5a] sm:$0xff]
        %v1143 = vld [vmem:[#allocation2 + $0x62] sm:$0xff]
        %v1144 = vld [vmem:[#allocation2 + $0x6a] sm:$0xff]
        %v1145 = vld [vmem:[#allocation2 + $0x72] sm:$0xff]
        %v1146 = vld [vmem:[#allocation2 + $0x7a] sm:$0xff]
        %v1147 = vld [vmem:[#allocation2 + $0x82] sm:$0xff]
        %v1148 = vld [vmem:[#allocation2 + $0x8a] sm:$0xff]
        %v1149 = vld [vmem:[#allocation2 + $0x92] sm:$0xff]
        %v1150 = vld [vmem:[#allocation2 + $0x9a] sm:$0xff]
        %v1151 = vld [vmem:[#allocation2 + $0xa2] sm:$0xff]
        %v1152 = vld [vmem:[#allocation2 + $0xaa] sm:$0xff]
        %v1153 = vld [vmem:[#allocation2 + $0xb2] sm:$0xff]
        %v1154 = vld [vmem:[#allocation2 + $0xba] sm:$0xff]
        %v1155 = vld [vmem:[#allocation2 + $0xc2] sm:$0xff]
        %v1156 = vld [vmem:[#allocation2 + $0xca] sm:$0xff]
        %v1157 = vld [vmem:[#allocation2 + $0xd2] sm:$0xff]
        %v1158 = vld [vmem:[#allocation2 + $0xda] sm:$0xff]
        %v1159 = vld [vmem:[#allocation2 + $0xe2] sm:$0xff]
        %v1160 = vld [vmem:[#allocation2 + $0xea] sm:$0xff]
        %v1161 = vld [vmem:[#allocation2 + $0xf2] sm:$0xff]
        %v1162 = vld [vmem:[#allocation2 + $0xfa] sm:$0xff]
        %v1163 = vld [vmem:[#allocation2 + $0x102] sm:$0xff]
        %v1164 = vld [vmem:[#allocation2 + $0x10a] sm:$0xff]
        %v1165 = vld [vmem:[#allocation2 + $0x112] sm:$0xff]
        %v1166 = vld [vmem:[#allocation2 + $0x11a] sm:$0x3f]
        %v1167 = vmax.f32 %v1095, %v1131
        %v1168 = vmax.f32 %v1096, %v1132
        %v1169 = vmax.f32 %v1097, %v1133
        %v1170 = vmax.f32 %v1098, %v1134
        %v1171 = vmax.f32 %v1099, %v1135
        %v1172 = vmax.f32 %v1100, %v1136
        %v1173 = vmax.f32 %v1101, %v1137
        %v1174 = vmax.f32 %v1102, %v1138
        %v1175 = vmax.f32 %v1103, %v1139
        %v1176 = vmax.f32 %v1104, %v1140
        %v1177 = vmax.f32 %v1105, %v1141
        %v1178 = vmax.f32 %v1106, %v1142
        %v1179 = vmax.f32 %v1107, %v1143
        %v1180 = vmax.f32 %v1108, %v1144
        %v1181 = vmax.f32 %v1109, %v1145
        %v1182 = vmax.f32 %v1110, %v1146
        %v1183 = vmax.f32 %v1111, %v1147
        %v1184 = vmax.f32 %v1112, %v1148
        %v1185 = vmax.f32 %v1113, %v1149
        %v1186 = vmax.f32 %v1114, %v1150
        %v1187 = vmax.f32 %v1115, %v1151
        %v1188 = vmax.f32 %v1116, %v1152
        %v1189 = vmax.f32 %v1117, %v1153
        %v1190 = vmax.f32 %v1118, %v1154
        %v1191 = vmax.f32 %v1119, %v1155
        %v1192 = vmax.f32 %v1120, %v1156
        %v1193 = vmax.f32 %v1121, %v1157
        %v1194 = vmax.f32 %v1122, %v1158
        %v1195 = vmax.f32 %v1123, %v1159
        %v1196 = vmax.f32 %v1124, %v1160
        %v1197 = vmax.f32 %v1125, %v1161
        %v1198 = vmax.f32 %v1126, %v1162
        %v1199 = vmax.f32 %v1127, %v1163
        %v1200 = vmax.f32 %v1128, %v1164
        %v1201 = vmax.f32 %v1129, %v1165
        %v1202 = vmax.f32 %v1130, %v1166
        %v1203 = vld [vmem:[#allocation2 + $0x11a] sm:$0xff]
        %v1204 = vld [vmem:[#allocation2 + $0x122] sm:$0xff]
        %v1205 = vld [vmem:[#allocation2 + $0x12a] sm:$0x3f]
        %v1206 = vmax.f32 %v1167, %v1133
        %v1207 = vmax.f32 %v1168, %v1134
        %v1208 = vmax.f32 %v1169, %v1135
        %v1209 = vmax.f32 %v1170, %v1136
        %v1210 = vmax.f32 %v1171, %v1137
        %v1211 = vmax.f32 %v1172, %v1138
        %v1212 = vmax.f32 %v1173, %v1139
        %v1213 = vmax.f32 %v1174, %v1140
        %v1214 = vmax.f32 %v1175, %v1141
        %v1215 = vmax.f32 %v1176, %v1142
        %v1216 = vmax.f32 %v1177, %v1143
        %v1217 = vmax.f32 %v1178, %v1144
        %v1218 = vmax.f32 %v1179, %v1145
        %v1219 = vmax.f32 %v1180, %v1146
        %v1220 = vmax.f32 %v1181, %v1147
        %v1221 = vmax.f32 %v1182, %v1148
        %v1222 = vmax.f32 %v1183, %v1149
        %v1223 = vmax.f32 %v1184, %v1150
        %v1224 = vmax.f32 %v1185, %v1151
        %v1225 = vmax.f32 %v1186, %v1152
        %v1226 = vmax.f32 %v1187, %v1153
        %v1227 = vmax.f32 %v1188, %v1154
        %v1228 = vmax.f32 %v1189, %v1155
        %v1229 = vmax.f32 %v1190, %v1156
        %v1230 = vmax.f32 %v1191, %v1157
        %v1231 = vmax.f32 %v1192, %v1158
        %v1232 = vmax.f32 %v1193, %v1159
        %v1233 = vmax.f32 %v1194, %v1160
        %v1234 = vmax.f32 %v1195, %v1161
        %v1235 = vmax.f32 %v1196, %v1162
        %v1236 = vmax.f32 %v1197, %v1163
        %v1237 = vmax.f32 %v1198, %v1164
        %v1238 = vmax.f32 %v1199, %v1165
        %v1239 = vmax.f32 %v1200, %v1203
        %v1240 = vmax.f32 %v1201, %v1204
        %v1241 = vmax.f32 %v1202, %v1205
        %v1242 = vld [vmem:[#allocation2 + $0x13] sm:$0xff]
        %v1243 = vld [vmem:[#allocation2 + $0x1b] sm:$0xff]
        %v1244 = vld [vmem:[#allocation2 + $0x23] sm:$0xff]
        %v1245 = vld [vmem:[#allocation2 + $0x2b] sm:$0xff]
        %v1246 = vld [vmem:[#allocation2 + $0x33] sm:$0xff]
        %v1247 = vld [vmem:[#allocation2 + $0x3b] sm:$0xff]
        %v1248 = vld [vmem:[#allocation2 + $0x43] sm:$0xff]
        %v1249 = vld [vmem:[#allocation2 + $0x4b] sm:$0xff]
        %v1250 = vld [vmem:[#allocation2 + $0x53] sm:$0xff]
        %v1251 = vld [vmem:[#allocation2 + $0x5b] sm:$0xff]
        %v1252 = vld [vmem:[#allocation2 + $0x63] sm:$0xff]
        %v1253 = vld [vmem:[#allocation2 + $0x6b] sm:$0xff]
        %v1254 = vld [vmem:[#allocation2 + $0x73] sm:$0xff]
        %v1255 = vld [vmem:[#allocation2 + $0x7b] sm:$0xff]
        %v1256 = vld [vmem:[#allocation2 + $0x83] sm:$0xff]
        %v1257 = vld [vmem:[#allocation2 + $0x8b] sm:$0xff]
        %v1258 = vld [vmem:[#allocation2 + $0x93] sm:$0xff]
        %v1259 = vld [vmem:[#allocation2 + $0x9b] sm:$0xff]
        %v1260 = vld [vmem:[#allocation2 + $0xa3] sm:$0xff]
        %v1261 = vld [vmem:[#allocation2 + $0xab] sm:$0xff]
        %v1262 = vld [vmem:[#allocation2 + $0xb3] sm:$0xff]
        %v1263 = vld [vmem:[#allocation2 + $0xbb] sm:$0xff]
        %v1264 = vld [vmem:[#allocation2 + $0xc3] sm:$0xff]
        %v1265 = vld [vmem:[#allocation2 + $0xcb] sm:$0xff]
        %v1266 = vld [vmem:[#allocation2 + $0xd3] sm:$0xff]
        %v1267 = vld [vmem:[#allocation2 + $0xdb] sm:$0xff]
        %v1268 = vld [vmem:[#allocation2 + $0xe3] sm:$0xff]
        %v1269 = vld [vmem:[#allocation2 + $0xeb] sm:$0xff]
        %v1270 = vld [vmem:[#allocation2 + $0xf3] sm:$0xff]
        %v1271 = vld [vmem:[#allocation2 + $0xfb] sm:$0xff]
        %v1272 = vld [vmem:[#allocation2 + $0x103] sm:$0xff]
        %v1273 = vld [vmem:[#allocation2 + $0x10b] sm:$0xff]
        %v1274 = vld [vmem:[#allocation2 + $0x113] sm:$0xff]
        %v1275 = vld [vmem:[#allocation2 + $0x11b] sm:$0xff]
        %v1276 = vld [vmem:[#allocation2 + $0x123] sm:$0xff]
        %v1277 = vld [vmem:[#allocation2 + $0x12b] sm:$0x3f]
        %v1278 = vmax.f32 %v1206, %v1242
        %v1279 = vmax.f32 %v1207, %v1243
        %v1280 = vmax.f32 %v1208, %v1244
        %v1281 = vmax.f32 %v1209, %v1245
        %v1282 = vmax.f32 %v1210, %v1246
        %v1283 = vmax.f32 %v1211, %v1247
        %v1284 = vmax.f32 %v1212, %v1248
        %v1285 = vmax.f32 %v1213, %v1249
        %v1286 = vmax.f32 %v1214, %v1250
        %v1287 = vmax.f32 %v1215, %v1251
        %v1288 = vmax.f32 %v1216, %v1252
        %v1289 = vmax.f32 %v1217, %v1253
        %v1290 = vmax.f32 %v1218, %v1254
        %v1291 = vmax.f32 %v1219, %v1255
        %v1292 = vmax.f32 %v1220, %v1256
        %v1293 = vmax.f32 %v1221, %v1257
        %v1294 = vmax.f32 %v1222, %v1258
        %v1295 = vmax.f32 %v1223, %v1259
        %v1296 = vmax.f32 %v1224, %v1260
        %v1297 = vmax.f32 %v1225, %v1261
        %v1298 = vmax.f32 %v1226, %v1262
        %v1299 = vmax.f32 %v1227, %v1263
        %v1300 = vmax.f32 %v1228, %v1264
        %v1301 = vmax.f32 %v1229, %v1265
        %v1302 = vmax.f32 %v1230, %v1266
        %v1303 = vmax.f32 %v1231, %v1267
        %v1304 = vmax.f32 %v1232, %v1268
        %v1305 = vmax.f32 %v1233, %v1269
        %v1306 = vmax.f32 %v1234, %v1270
        %v1307 = vmax.f32 %v1235, %v1271
        %v1308 = vmax.f32 %v1236, %v1272
        %v1309 = vmax.f32 %v1237, %v1273
        %v1310 = vmax.f32 %v1238, %v1274
        %v1311 = vmax.f32 %v1239, %v1275
        %v1312 = vmax.f32 %v1240, %v1276
        %v1313 = vmax.f32 %v1241, %v1277
        %v1314 = vld [vmem:[#allocation2 + $0x14] sm:$0xff]
        %v1315 = vld [vmem:[#allocation2 + $0x1c] sm:$0xff]
        %v1316 = vld [vmem:[#allocation2 + $0x24] sm:$0xff]
        %v1317 = vld [vmem:[#allocation2 + $0x2c] sm:$0xff]
        %v1318 = vld [vmem:[#allocation2 + $0x34] sm:$0xff]
        %v1319 = vld [vmem:[#allocation2 + $0x3c] sm:$0xff]
        %v1320 = vld [vmem:[#allocation2 + $0x44] sm:$0xff]
        %v1321 = vld [vmem:[#allocation2 + $0x4c] sm:$0xff]
        %v1322 = vld [vmem:[#allocation2 + $0x54] sm:$0xff]
        %v1323 = vld [vmem:[#allocation2 + $0x5c] sm:$0xff]
        %v1324 = vld [vmem:[#allocation2 + $0x64] sm:$0xff]
        %v1325 = vld [vmem:[#allocation2 + $0x6c] sm:$0xff]
        %v1326 = vld [vmem:[#allocation2 + $0x74] sm:$0xff]
        %v1327 = vld [vmem:[#allocation2 + $0x7c] sm:$0xff]
        %v1328 = vld [vmem:[#allocation2 + $0x84] sm:$0xff]
        %v1329 = vld [vmem:[#allocation2 + $0x8c] sm:$0xff]
        %v1330 = vld [vmem:[#allocation2 + $0x94] sm:$0xff]
        %v1331 = vld [vmem:[#allocation2 + $0x9c] sm:$0xff]
        %v1332 = vld [vmem:[#allocation2 + $0xa4] sm:$0xff]
        %v1333 = vld [vmem:[#allocation2 + $0xac] sm:$0xff]
        %v1334 = vld [vmem:[#allocation2 + $0xb4] sm:$0xff]
        %v1335 = vld [vmem:[#allocation2 + $0xbc] sm:$0xff]
        %v1336 = vld [vmem:[#allocation2 + $0xc4] sm:$0xff]
        %v1337 = vld [vmem:[#allocation2 + $0xcc] sm:$0xff]
        %v1338 = vld [vmem:[#allocation2 + $0xd4] sm:$0xff]
        %v1339 = vld [vmem:[#allocation2 + $0xdc] sm:$0xff]
        %v1340 = vld [vmem:[#allocation2 + $0xe4] sm:$0xff]
        %v1341 = vld [vmem:[#allocation2 + $0xec] sm:$0xff]
        %v1342 = vld [vmem:[#allocation2 + $0xf4] sm:$0xff]
        %v1343 = vld [vmem:[#allocation2 + $0xfc] sm:$0xff]
        %v1344 = vld [vmem:[#allocation2 + $0x104] sm:$0xff]
        %v1345 = vld [vmem:[#allocation2 + $0x10c] sm:$0xff]
        %v1346 = vld [vmem:[#allocation2 + $0x114] sm:$0xff]
        %v1347 = vld [vmem:[#allocation2 + $0x11c] sm:$0xff]
        %v1348 = vld [vmem:[#allocation2 + $0x124] sm:$0xff]
        %v1349 = vld [vmem:[#allocation2 + $0x12c] sm:$0x3f]
        %v1350 = vmax.f32 %v1278, %v1314
        %v1351 = vmax.f32 %v1279, %v1315
        %v1352 = vmax.f32 %v1280, %v1316
        %v1353 = vmax.f32 %v1281, %v1317
        %v1354 = vmax.f32 %v1282, %v1318
        %v1355 = vmax.f32 %v1283, %v1319
        %v1356 = vmax.f32 %v1284, %v1320
        %v1357 = vmax.f32 %v1285, %v1321
        %v1358 = vmax.f32 %v1286, %v1322
        %v1359 = vmax.f32 %v1287, %v1323
        %v1360 = vmax.f32 %v1288, %v1324
        %v1361 = vmax.f32 %v1289, %v1325
        %v1362 = vmax.f32 %v1290, %v1326
        %v1363 = vmax.f32 %v1291, %v1327
        %v1364 = vmax.f32 %v1292, %v1328
        %v1365 = vmax.f32 %v1293, %v1329
        %v1366 = vmax.f32 %v1294, %v1330
        %v1367 = vmax.f32 %v1295, %v1331
        %v1368 = vmax.f32 %v1296, %v1332
        %v1369 = vmax.f32 %v1297, %v1333
        %v1370 = vmax.f32 %v1298, %v1334
        %v1371 = vmax.f32 %v1299, %v1335
        %v1372 = vmax.f32 %v1300, %v1336
        %v1373 = vmax.f32 %v1301, %v1337
        %v1374 = vmax.f32 %v1302, %v1338
        %v1375 = vmax.f32 %v1303, %v1339
        %v1376 = vmax.f32 %v1304, %v1340
        %v1377 = vmax.f32 %v1305, %v1341
        %v1378 = vmax.f32 %v1306, %v1342
        %v1379 = vmax.f32 %v1307, %v1343
        %v1380 = vmax.f32 %v1308, %v1344
        %v1381 = vmax.f32 %v1309, %v1345
        %v1382 = vmax.f32 %v1310, %v1346
        %v1383 = vmax.f32 %v1311, %v1347
        %v1384 = vmax.f32 %v1312, %v1348
        %v1385 = vmax.f32 %v1313, %v1349
        %v1386 = vld [vmem:[#allocation2 + $0x12c] sm:$0xff]
        %v1387 = vld [vmem:[#allocation2 + $0x134] sm:$0xff]
        %v1388 = vld [vmem:[#allocation2 + $0x13c] sm:$0x3f]
        %v1389 = vmax.f32 %v1350, %v1316
        %v1390 = vmax.f32 %v1351, %v1317
        %v1391 = vmax.f32 %v1352, %v1318
        %v1392 = vmax.f32 %v1353, %v1319
        %v1393 = vmax.f32 %v1354, %v1320
        %v1394 = vmax.f32 %v1355, %v1321
        %v1395 = vmax.f32 %v1356, %v1322
        %v1396 = vmax.f32 %v1357, %v1323
        %v1397 = vmax.f32 %v1358, %v1324
        %v1398 = vmax.f32 %v1359, %v1325
        %v1399 = vmax.f32 %v1360, %v1326
        %v1400 = vmax.f32 %v1361, %v1327
        %v1401 = vmax.f32 %v1362, %v1328
        %v1402 = vmax.f32 %v1363, %v1329
        %v1403 = vmax.f32 %v1364, %v1330
        %v1404 = vmax.f32 %v1365, %v1331
        %v1405 = vmax.f32 %v1366, %v1332
        %v1406 = vmax.f32 %v1367, %v1333
        %v1407 = vmax.f32 %v1368, %v1334
        %v1408 = vmax.f32 %v1369, %v1335
        %v1409 = vmax.f32 %v1370, %v1336
        %v1410 = vmax.f32 %v1371, %v1337
        %v1411 = vmax.f32 %v1372, %v1338
        %v1412 = vmax.f32 %v1373, %v1339
        %v1413 = vmax.f32 %v1374, %v1340
        %v1414 = vmax.f32 %v1375, %v1341
        %v1415 = vmax.f32 %v1376, %v1342
        %v1416 = vmax.f32 %v1377, %v1343
        %v1417 = vmax.f32 %v1378, %v1344
        %v1418 = vmax.f32 %v1379, %v1345
        %v1419 = vmax.f32 %v1380, %v1346
        %v1420 = vmax.f32 %v1381, %v1347
        %v1421 = vmax.f32 %v1382, %v1348
        %v1422 = vmax.f32 %v1383, %v1386
        %v1423 = vmax.f32 %v1384, %v1387
        %v1424 = vmax.f32 %v1385, %v1388
        %v1425 = vld [vmem:[#allocation2 + $0x25] sm:$0xff]
        %v1426 = vld [vmem:[#allocation2 + $0x2d] sm:$0xff]
        %v1427 = vld [vmem:[#allocation2 + $0x35] sm:$0xff]
        %v1428 = vld [vmem:[#allocation2 + $0x3d] sm:$0xff]
        %v1429 = vld [vmem:[#allocation2 + $0x45] sm:$0xff]
        %v1430 = vld [vmem:[#allocation2 + $0x4d] sm:$0xff]
        %v1431 = vld [vmem:[#allocation2 + $0x55] sm:$0xff]
        %v1432 = vld [vmem:[#allocation2 + $0x5d] sm:$0xff]
        %v1433 = vld [vmem:[#allocation2 + $0x65] sm:$0xff]
        %v1434 = vld [vmem:[#allocation2 + $0x6d] sm:$0xff]
        %v1435 = vld [vmem:[#allocation2 + $0x75] sm:$0xff]
        %v1436 = vld [vmem:[#allocation2 + $0x7d] sm:$0xff]
        %v1437 = vld [vmem:[#allocation2 + $0x85] sm:$0xff]
        %v1438 = vld [vmem:[#allocation2 + $0x8d] sm:$0xff]
        %v1439 = vld [vmem:[#allocation2 + $0x95] sm:$0xff]
        %v1440 = vld [vmem:[#allocation2 + $0x9d] sm:$0xff]
        %v1441 = vld [vmem:[#allocation2 + $0xa5] sm:$0xff]
        %v1442 = vld [vmem:[#allocation2 + $0xad] sm:$0xff]
        %v1443 = vld [vmem:[#allocation2 + $0xb5] sm:$0xff]
        %v1444 = vld [vmem:[#allocation2 + $0xbd] sm:$0xff]
        %v1445 = vld [vmem:[#allocation2 + $0xc5] sm:$0xff]
        %v1446 = vld [vmem:[#allocation2 + $0xcd] sm:$0xff]
        %v1447 = vld [vmem:[#allocation2 + $0xd5] sm:$0xff]
        %v1448 = vld [vmem:[#allocation2 + $0xdd] sm:$0xff]
        %v1449 = vld [vmem:[#allocation2 + $0xe5] sm:$0xff]
        %v1450 = vld [vmem:[#allocation2 + $0xed] sm:$0xff]
        %v1451 = vld [vmem:[#allocation2 + $0xf5] sm:$0xff]
        %v1452 = vld [vmem:[#allocation2 + $0xfd] sm:$0xff]
        %v1453 = vld [vmem:[#allocation2 + $0x105] sm:$0xff]
        %v1454 = vld [vmem:[#allocation2 + $0x10d] sm:$0xff]
        %v1455 = vld [vmem:[#allocation2 + $0x115] sm:$0xff]
        %v1456 = vld [vmem:[#allocation2 + $0x11d] sm:$0xff]
        %v1457 = vld [vmem:[#allocation2 + $0x125] sm:$0xff]
        %v1458 = vld [vmem:[#allocation2 + $0x12d] sm:$0xff]
        %v1459 = vld [vmem:[#allocation2 + $0x135] sm:$0xff]
        %v1460 = vld [vmem:[#allocation2 + $0x13d] sm:$0x3f]
        %v1461 = vmax.f32 %v1389, %v1425
        %v1462 = vmax.f32 %v1390, %v1426
        %v1463 = vmax.f32 %v1391, %v1427
        %v1464 = vmax.f32 %v1392, %v1428
        %v1465 = vmax.f32 %v1393, %v1429
        %v1466 = vmax.f32 %v1394, %v1430
        %v1467 = vmax.f32 %v1395, %v1431
        %v1468 = vmax.f32 %v1396, %v1432
        %v1469 = vmax.f32 %v1397, %v1433
        %v1470 = vmax.f32 %v1398, %v1434
        %v1471 = vmax.f32 %v1399, %v1435
        %v1472 = vmax.f32 %v1400, %v1436
        %v1473 = vmax.f32 %v1401, %v1437
        %v1474 = vmax.f32 %v1402, %v1438
        %v1475 = vmax.f32 %v1403, %v1439
        %v1476 = vmax.f32 %v1404, %v1440
        %v1477 = vmax.f32 %v1405, %v1441
        %v1478 = vmax.f32 %v1406, %v1442
        %v1479 = vmax.f32 %v1407, %v1443
        %v1480 = vmax.f32 %v1408, %v1444
        %v1481 = vmax.f32 %v1409, %v1445
        %v1482 = vmax.f32 %v1410, %v1446
        %v1483 = vmax.f32 %v1411, %v1447
        %v1484 = vmax.f32 %v1412, %v1448
        %v1485 = vmax.f32 %v1413, %v1449
        %v1486 = vmax.f32 %v1414, %v1450
        %v1487 = vmax.f32 %v1415, %v1451
        %v1488 = vmax.f32 %v1416, %v1452
        %v1489 = vmax.f32 %v1417, %v1453
        %v1490 = vmax.f32 %v1418, %v1454
        %v1491 = vmax.f32 %v1419, %v1455
        %v1492 = vmax.f32 %v1420, %v1456
        %v1493 = vmax.f32 %v1421, %v1457
        %v1494 = vmax.f32 %v1422, %v1458
        %v1495 = vmax.f32 %v1423, %v1459
        %v1496 = vmax.f32 %v1424, %v1460
        %v1497 = vld [vmem:[#allocation2 + $0x26] sm:$0xff]
        %v1498 = vld [vmem:[#allocation2 + $0x2e] sm:$0xff]
        %v1499 = vld [vmem:[#allocation2 + $0x36] sm:$0xff]
        %v1500 = vld [vmem:[#allocation2 + $0x3e] sm:$0xff]
        %v1501 = vld [vmem:[#allocation2 + $0x46] sm:$0xff]
        %v1502 = vld [vmem:[#allocation2 + $0x4e] sm:$0xff]
        %v1503 = vld [vmem:[#allocation2 + $0x56] sm:$0xff]
        %v1504 = vld [vmem:[#allocation2 + $0x5e] sm:$0xff]
        %v1505 = vld [vmem:[#allocation2 + $0x66] sm:$0xff]
        %v1506 = vld [vmem:[#allocation2 + $0x6e] sm:$0xff]
        %v1507 = vld [vmem:[#allocation2 + $0x76] sm:$0xff]
        %v1508 = vld [vmem:[#allocation2 + $0x7e] sm:$0xff]
        %v1509 = vld [vmem:[#allocation2 + $0x86] sm:$0xff]
        %v1510 = vld [vmem:[#allocation2 + $0x8e] sm:$0xff]
        %v1511 = vld [vmem:[#allocation2 + $0x96] sm:$0xff]
        %v1512 = vld [vmem:[#allocation2 + $0x9e] sm:$0xff]
        %v1513 = vld [vmem:[#allocation2 + $0xa6] sm:$0xff]
        %v1514 = vld [vmem:[#allocation2 + $0xae] sm:$0xff]
        %v1515 = vld [vmem:[#allocation2 + $0xb6] sm:$0xff]
        %v1516 = vld [vmem:[#allocation2 + $0xbe] sm:$0xff]
        %v1517 = vld [vmem:[#allocation2 + $0xc6] sm:$0xff]
        %v1518 = vld [vmem:[#allocation2 + $0xce] sm:$0xff]
        %v1519 = vld [vmem:[#allocation2 + $0xd6] sm:$0xff]
        %v1520 = vld [vmem:[#allocation2 + $0xde] sm:$0xff]
        %v1521 = vld [vmem:[#allocation2 + $0xe6] sm:$0xff]
        %v1522 = vld [vmem:[#allocation2 + $0xee] sm:$0xff]
        %v1523 = vld [vmem:[#allocation2 + $0xf6] sm:$0xff]
        %v1524 = vld [vmem:[#allocation2 + $0xfe] sm:$0xff]
        %v1525 = vld [vmem:[#allocation2 + $0x106] sm:$0xff]
        %v1526 = vld [vmem:[#allocation2 + $0x10e] sm:$0xff]
        %v1527 = vld [vmem:[#allocation2 + $0x116] sm:$0xff]
        %v1528 = vld [vmem:[#allocation2 + $0x11e] sm:$0xff]
        %v1529 = vld [vmem:[#allocation2 + $0x126] sm:$0xff]
        %v1530 = vld [vmem:[#allocation2 + $0x12e] sm:$0xff]
        %v1531 = vld [vmem:[#allocation2 + $0x136] sm:$0xff]
        %v1532 = vld [vmem:[#allocation2 + $0x13e] sm:$0x3f]
        %v1533 = vmax.f32 %v1461, %v1497
        %v1534 = vmax.f32 %v1462, %v1498
        %v1535 = vmax.f32 %v1463, %v1499
        %v1536 = vmax.f32 %v1464, %v1500
        %v1537 = vmax.f32 %v1465, %v1501
        %v1538 = vmax.f32 %v1466, %v1502
        %v1539 = vmax.f32 %v1467, %v1503
        %v1540 = vmax.f32 %v1468, %v1504
        %v1541 = vmax.f32 %v1469, %v1505
        %v1542 = vmax.f32 %v1470, %v1506
        %v1543 = vmax.f32 %v1471, %v1507
        %v1544 = vmax.f32 %v1472, %v1508
        %v1545 = vmax.f32 %v1473, %v1509
        %v1546 = vmax.f32 %v1474, %v1510
        %v1547 = vmax.f32 %v1475, %v1511
        %v1548 = vmax.f32 %v1476, %v1512
        %v1549 = vmax.f32 %v1477, %v1513
        %v1550 = vmax.f32 %v1478, %v1514
        %v1551 = vmax.f32 %v1479, %v1515
        %v1552 = vmax.f32 %v1480, %v1516
        %v1553 = vmax.f32 %v1481, %v1517
        %v1554 = vmax.f32 %v1482, %v1518
        %v1555 = vmax.f32 %v1483, %v1519
        %v1556 = vmax.f32 %v1484, %v1520
        %v1557 = vmax.f32 %v1485, %v1521
        %v1558 = vmax.f32 %v1486, %v1522
        %v1559 = vmax.f32 %v1487, %v1523
        %v1560 = vmax.f32 %v1488, %v1524
        %v1561 = vmax.f32 %v1489, %v1525
        %v1562 = vmax.f32 %v1490, %v1526
        %v1563 = vmax.f32 %v1491, %v1527
        %v1564 = vmax.f32 %v1492, %v1528
        %v1565 = vmax.f32 %v1493, %v1529
        %v1566 = vmax.f32 %v1494, %v1530
        %v1567 = vmax.f32 %v1495, %v1531
        %v1568 = vmax.f32 %v1496, %v1532
        %v1569 = vld [vmem:[%s2] sm:$0xff]
        %v1570 = vld [vmem:[%s2 + $0x8] sm:$0xff]
        %v1571 = vld [vmem:[%s2 + $0x10] sm:$0xff]
        %v1572 = vld [vmem:[%s2 + $0x18] sm:$0xff]
        %v1573 = vld [vmem:[%s2 + $0x20] sm:$0xff]
        %v1574 = vld [vmem:[%s2 + $0x28] sm:$0xff]
        %v1575 = vld [vmem:[%s2 + $0x30] sm:$0xff]
        %v1576 = vld [vmem:[%s2 + $0x38] sm:$0xff]
        %v1577 = vld [vmem:[%s2 + $0x40] sm:$0xff]
        %v1578 = vld [vmem:[%s2 + $0x48] sm:$0xff]
        %v1579 = vld [vmem:[%s2 + $0x50] sm:$0xff]
        %v1580 = vld [vmem:[%s2 + $0x58] sm:$0xff]
        %v1581 = vld [vmem:[%s2 + $0x60] sm:$0xff]
        %v1582 = vld [vmem:[%s2 + $0x68] sm:$0xff]
        %v1583 = vld [vmem:[%s2 + $0x70] sm:$0xff]
        %v1584 = vld [vmem:[%s2 + $0x78] sm:$0xff]
        %v1585 = vld [vmem:[%s2 + $0x80] sm:$0xff]
        %v1586 = vld [vmem:[%s2 + $0x88] sm:$0xff]
        %v1587 = vld [vmem:[%s2 + $0x90] sm:$0xff]
        %v1588 = vld [vmem:[%s2 + $0x98] sm:$0xff]
        %v1589 = vld [vmem:[%s2 + $0xa0] sm:$0xff]
        %v1590 = vld [vmem:[%s2 + $0xa8] sm:$0xff]
        %v1591 = vld [vmem:[%s2 + $0xb0] sm:$0xff]
        %v1592 = vld [vmem:[%s2 + $0xb8] sm:$0xff]
        %v1593 = vld [vmem:[%s2 + $0xc0] sm:$0xff]
        %v1594 = vld [vmem:[%s2 + $0xc8] sm:$0xff]
        %v1595 = vld [vmem:[%s2 + $0xd0] sm:$0xff]
        %v1596 = vld [vmem:[%s2 + $0xd8] sm:$0xff]
        %v1597 = vld [vmem:[%s2 + $0xe0] sm:$0xff]
        %v1598 = vld [vmem:[%s2 + $0xe8] sm:$0xff]
        %v1599 = vld [vmem:[%s2 + $0xf0] sm:$0xff]
        %v1600 = vld [vmem:[%s2 + $0xf8] sm:$0xff]
        %v1601 = vld [vmem:[%s2 + $0x100] sm:$0xff]
        %v1602 = vld [vmem:[%s2 + $0x108] sm:$0xff]
        %v1603 = vld [vmem:[%s2 + $0x110] sm:$0xff]
        %v1604 = vld [vmem:[%s2 + $0x118] sm:$0xff]
        %v1605 = vld [vmem:[%s2 + $0x120] sm:$0xf]
        %v1606 = vld [vmem:[%s2 + $0x128] sm:$0xf]
        %v1607 = vld [vmem:[%s2 + $0x130] sm:$0xf]
        %vm1608 = vcmask 244736
        %v1610 = vsel %vm1608, %v1571, 0
        %v1613 = vsel %vm1608, %v1574, 0
        %v1616 = vsel %vm1608, %v1577, 0
        %v1619 = vsel %vm1608, %v1580, 0
        %v1622 = vsel %vm1608, %v1583, 0
        %v1625 = vsel %vm1608, %v1586, 0
        %v1628 = vsel %vm1608, %v1589, 0
        %v1631 = vsel %vm1608, %v1592, 0
        %v1634 = vsel %vm1608, %v1595, 0
        %v1637 = vsel %vm1608, %v1598, 0
        %v1640 = vsel %vm1608, %v1601, 0
        %v1643 = vsel %vm1608, %v1604, 0
        %v1646 = vsel %vm1608, %v1607, 0
        %vm1648 = vcmask 1045504
        %v1650 = vsel %vm1648, %v1568, 0
        %1652 = vmatprep.subr.mxu0 0.0
        %1653 = vmatpush1.msra.mxu0 %v1548
        %1654 = vmatprep.subr.mxu0 0.0
        %1655 = vmatpush1.msra.mxu0 %v1547
        %1656 = vmatprep.subr.mxu0 0.0
        %1657 = vmatpush1.msra.mxu0 %v1546
        %1658 = vmatprep.subr.mxu0 0.0
        %1659 = vmatpush1.msra.mxu0 %v1545
        %1660 = vmatprep.subr.mxu0 0.0
        %1661 = vmatpush1.msra.mxu0 %v1544
        %1662 = vmatprep.subr.mxu0 0.0
        %1663 = vmatpush1.msra.mxu0 %v1543
        %1664 = vmatprep.subr.mxu0 0.0
        %1665 = vmatpush1.msra.mxu0 %v1542
        %1666 = vmatprep.subr.mxu0 0.0
        %1667 = vmatpush1.msra.mxu0 %v1541
        %1668 = vmatprep.subr.mxu0 0.0
        %1669 = vmatpush1.msra.mxu0 %v1540
        %1670 = vmatprep.subr.mxu0 0.0
        %1671 = vmatpush1.msra.mxu0 %v1539
        %1672 = vmatprep.subr.mxu0 0.0
        %1673 = vmatpush1.msra.mxu0 %v1538
        %1674 = vmatprep.subr.mxu0 0.0
        %1675 = vmatpush1.msra.mxu0 %v1537
        %1676 = vmatprep.subr.mxu0 0.0
        %1677 = vmatpush1.msra.mxu0 %v1536
        %1678 = vmatprep.subr.mxu0 0.0
        %1679 = vmatpush1.msra.mxu0 %v1535
        %1680 = vmatprep.subr.mxu0 0.0
        %1681 = vmatpush1.msra.mxu0 %v1534
        %1682 = vmatprep.subr.mxu0 0.0
        %1683 = vmatpush1.msra.mxu0 %v1533
        %1684 = vmatprep.subr.mxu0 0.0
        %1685 = vmatpush2.msra.mxu0 %v1564
        %1686 = vmatprep.subr.mxu0 0.0
        %1687 = vmatpush2.msra.mxu0 %v1563
        %1688 = vmatprep.subr.mxu0 0.0
        %1689 = vmatpush2.msra.mxu0 %v1562
        %1690 = vmatprep.subr.mxu0 0.0
        %1691 = vmatpush2.msra.mxu0 %v1561
        %1692 = vmatprep.subr.mxu0 0.0
        %1693 = vmatpush2.msra.mxu0 %v1560
        %1694 = vmatprep.subr.mxu0 0.0
        %1695 = vmatpush2.msra.mxu0 %v1559
        %1696 = vmatprep.subr.mxu0 0.0
        %1697 = vmatpush2.msra.mxu0 %v1558
        %1698 = vmatprep.subr.mxu0 0.0
        %1699 = vmatpush2.msra.mxu0 %v1557
        %1700 = vmatprep.subr.mxu0 0.0
        %1701 = vmatpush2.msra.mxu0 %v1556
        %1702 = vmatprep.subr.mxu0 0.0
        %1703 = vmatpush2.msra.mxu0 %v1555
        %1704 = vmatprep.subr.mxu0 0.0
        %1705 = vmatpush2.msra.mxu0 %v1554
        %1706 = vmatprep.subr.mxu0 0.0
        %1707 = vmatpush2.msra.mxu0 %v1553
        %1708 = vmatprep.subr.mxu0 0.0
        %1709 = vmatpush2.msra.mxu0 %v1552
        %1710 = vmatprep.subr.mxu0 0.0
        %1711 = vmatpush2.msra.mxu0 %v1551
        %1712 = vmatprep.subr.mxu0 0.0
        %1713 = vmatpush2.msra.mxu0 %v1550
        %1714 = vmatprep.subr.mxu0 0.0
        %1715 = vmatpush2.msra.mxu0 %v1549
        %1716 = vmatprep.mubr.f32.mxu0 %v1570
        %1717 = vmatmul.mubr.f32.gmra.mxu0 %v1569
        %v1718 = vpop.f32.mrf.mxu0
        %v1719 = vadd.f32 0.0, %v1718
        %v1720 = vpop.f32.mrf.mxu0
        %1721 = vmatprep.mubr.f32.mxu0 %v1573
        %1722 = vmatmul.mubr.f32.gmra.mxu0 %v1572
        %v1723 = vpop.f32.mrf.mxu0
        %v1724 = vadd.f32 0.0, %v1723
        %v1725 = vpop.f32.mrf.mxu0
        %1726 = vmatprep.mubr.f32.mxu0 %v1576
        %1727 = vmatmul.mubr.f32.gmra.mxu0 %v1575
        %v1728 = vpop.f32.mrf.mxu0
        %v1729 = vadd.f32 0.0, %v1728
        %v1730 = vpop.f32.mrf.mxu0
        %1731 = vmatprep.mubr.f32.mxu0 %v1579
        %1732 = vmatmul.mubr.f32.gmra.mxu0 %v1578
        %v1733 = vpop.f32.mrf.mxu0
        %v1734 = vadd.f32 0.0, %v1733
        %v1735 = vpop.f32.mrf.mxu0
        %1736 = vmatprep.mubr.f32.mxu0 %v1582
        %1737 = vmatmul.mubr.f32.gmra.mxu0 %v1581
        %v1738 = vpop.f32.mrf.mxu0
        %v1739 = vadd.f32 0.0, %v1738
        %v1740 = vpop.f32.mrf.mxu0
        %1741 = vmatprep.mubr.f32.mxu0 %v1585
        %1742 = vmatmul.mubr.f32.gmra.mxu0 %v1584
        %v1743 = vpop.f32.mrf.mxu0
        %v1744 = vadd.f32 0.0, %v1743
        %v1745 = vpop.f32.mrf.mxu0
        %1746 = vmatprep.mubr.f32.mxu0 %v1588
        %1747 = vmatmul.mubr.f32.gmra.mxu0 %v1587
        %v1748 = vpop.f32.mrf.mxu0
        %v1749 = vadd.f32 0.0, %v1748
        %v1750 = vpop.f32.mrf.mxu0
        %1751 = vmatprep.mubr.f32.mxu0 %v1591
        %1752 = vmatmul.mubr.f32.gmra.mxu0 %v1590
        %v1753 = vpop.f32.mrf.mxu0
        %v1754 = vadd.f32 0.0, %v1753
        %v1755 = vpop.f32.mrf.mxu0
        %1756 = vmatprep.mubr.f32.mxu0 %v1594
        %1757 = vmatmul.mubr.f32.gmra.mxu0 %v1593
        %v1758 = vpop.f32.mrf.mxu0
        %v1759 = vadd.f32 0.0, %v1758
        %v1760 = vpop.f32.mrf.mxu0
        %1761 = vmatprep.mubr.f32.mxu0 %v1597
        %1762 = vmatmul.mubr.f32.gmra.mxu0 %v1596
        %v1763 = vpop.f32.mrf.mxu0
        %v1764 = vadd.f32 0.0, %v1763
        %v1765 = vpop.f32.mrf.mxu0
        %1766 = vmatprep.mubr.f32.mxu0 %v1600
        %1767 = vmatmul.mubr.f32.gmra.mxu0 %v1599
        %v1768 = vpop.f32.mrf.mxu0
        %v1769 = vadd.f32 0.0, %v1768
        %v1770 = vpop.f32.mrf.mxu0
        %1771 = vmatprep.mubr.f32.mxu0 %v1603
        %1772 = vmatmul.mubr.f32.gmra.mxu0 %v1602
        %v1773 = vpop.f32.mrf.mxu0
        %v1774 = vadd.f32 0.0, %v1773
        %v1775 = vpop.f32.mrf.mxu0
        %1776 = vmatprep.mubr.f32.mxu0 %v1606
        %1777 = vmatmul.mubr.f32.gmra.mxu0 %v1605
        %v1778 = vpop.f32.mrf.mxu0
        %v1779 = vadd.f32 0.0, %v1778
        %v1780 = vpop.f32.mrf.mxu0
        %1781 = vdwg.mxu0
        %1782 = vmatprep.subr.mxu0 0.0
        %1783 = vmatpush1.msra.mxu0 0.0
        %1784 = vmatprep.subr.mxu0 0.0
        %1785 = vmatpush1.msra.mxu0 0.0
        %1786 = vmatprep.subr.mxu0 0.0
        %1787 = vmatpush1.msra.mxu0 0.0
        %1788 = vmatprep.subr.mxu0 0.0
        %1789 = vmatpush1.msra.mxu0 0.0
        %1790 = vmatprep.subr.mxu0 0.0
        %1791 = vmatpush1.msra.mxu0 0.0
        %1792 = vmatprep.subr.mxu0 0.0
        %1793 = vmatpush1.msra.mxu0 0.0
        %1794 = vmatprep.subr.mxu0 0.0
        %1795 = vmatpush1.msra.mxu0 0.0
        %1796 = vmatprep.subr.mxu0 0.0
        %1797 = vmatpush1.msra.mxu0 0.0
        %1798 = vmatprep.subr.mxu0 0.0
        %1799 = vmatpush1.msra.mxu0 0.0
        %1800 = vmatprep.subr.mxu0 0.0
        %1801 = vmatpush1.msra.mxu0 0.0
        %1802 = vmatprep.subr.mxu0 0.0
        %1803 = vmatpush1.msra.mxu0 0.0
        %1804 = vmatprep.subr.mxu0 0.0
        %1805 = vmatpush1.msra.mxu0 0.0
        %1806 = vmatprep.subr.mxu0 0.0
        %1807 = vmatpush1.msra.mxu0 %v1650
        %1808 = vmatprep.subr.mxu0 0.0
        %1809 = vmatpush1.msra.mxu0 %v1567
        %1810 = vmatprep.subr.mxu0 0.0
        %1811 = vmatpush1.msra.mxu0 %v1566
        %1812 = vmatprep.subr.mxu0 0.0
        %1813 = vmatpush1.msra.mxu0 %v1565
        %1814 = vmatprep.subr.mxu0 0.0
        %1815 = vmatpush2.msra.mxu0 0.0
        %1816 = vmatprep.subr.mxu0 0.0
        %1817 = vmatpush2.msra.mxu0 0.0
        %1818 = vmatprep.subr.mxu0 0.0
        %1819 = vmatpush2.msra.mxu0 0.0
        %1820 = vmatprep.subr.mxu0 0.0
        %1821 = vmatpush2.msra.mxu0 0.0
        %1822 = vmatprep.subr.mxu0 0.0
        %1823 = vmatpush2.msra.mxu0 0.0
        %1824 = vmatprep.subr.mxu0 0.0
        %1825 = vmatpush2.msra.mxu0 0.0
        %1826 = vmatprep.subr.mxu0 0.0
        %1827 = vmatpush2.msra.mxu0 0.0
        %1828 = vmatprep.subr.mxu0 0.0
        %1829 = vmatpush2.msra.mxu0 0.0
        %1830 = vmatprep.subr.mxu0 0.0
        %1831 = vmatpush2.msra.mxu0 0.0
        %1832 = vmatprep.subr.mxu0 0.0
        %1833 = vmatpush2.msra.mxu0 0.0
        %1834 = vmatprep.subr.mxu0 0.0
        %1835 = vmatpush2.msra.mxu0 0.0
        %1836 = vmatprep.subr.mxu0 0.0
        %1837 = vmatpush2.msra.mxu0 0.0
        %1838 = vmatprep.subr.mxu0 0.0
        %1839 = vmatpush2.msra.mxu0 0.0
        %1840 = vmatprep.subr.mxu0 0.0
        %1841 = vmatpush2.msra.mxu0 0.0
        %1842 = vmatprep.subr.mxu0 0.0
        %1843 = vmatpush2.msra.mxu0 0.0
        %1844 = vmatprep.subr.mxu0 0.0
        %1845 = vmatpush2.msra.mxu0 0.0
        %1846 = vmatprep.mubr.f32.mxu0 0.0
        %1847 = vmatmul.mubr.f32.gmra.mxu0 %v1610
        %v1848 = vpop.f32.mrf.mxu0
        %v1849 = vadd.f32 %v1719, %v1848
        %v1850 = vpop.f32.mrf.mxu0
        %1851 = vmatprep.mubr.f32.mxu0 0.0
        %1852 = vmatmul.mubr.f32.gmra.mxu0 %v1613
        %v1853 = vpop.f32.mrf.mxu0
        %v1854 = vadd.f32 %v1724, %v1853
        %v1855 = vpop.f32.mrf.mxu0
        %1856 = vmatprep.mubr.f32.mxu0 0.0
        %1857 = vmatmul.mubr.f32.gmra.mxu0 %v1616
        %v1858 = vpop.f32.mrf.mxu0
        %v1859 = vadd.f32 %v1729, %v1858
        %v1860 = vpop.f32.mrf.mxu0
        %1861 = vmatprep.mubr.f32.mxu0 0.0
        %1862 = vmatmul.mubr.f32.gmra.mxu0 %v1619
        %v1863 = vpop.f32.mrf.mxu0
        %v1864 = vadd.f32 %v1734, %v1863
        %v1865 = vpop.f32.mrf.mxu0
        %1866 = vmatprep.mubr.f32.mxu0 0.0
        %1867 = vmatmul.mubr.f32.gmra.mxu0 %v1622
        %v1868 = vpop.f32.mrf.mxu0
        %v1869 = vadd.f32 %v1739, %v1868
        %v1870 = vpop.f32.mrf.mxu0
        %1871 = vmatprep.mubr.f32.mxu0 0.0
        %1872 = vmatmul.mubr.f32.gmra.mxu0 %v1625
        %v1873 = vpop.f32.mrf.mxu0
        %v1874 = vadd.f32 %v1744, %v1873
        %v1875 = vpop.f32.mrf.mxu0
        %1876 = vmatprep.mubr.f32.mxu0 0.0
        %1877 = vmatmul.mubr.f32.gmra.mxu0 %v1628
        %v1878 = vpop.f32.mrf.mxu0
        %v1879 = vadd.f32 %v1749, %v1878
        %v1880 = vpop.f32.mrf.mxu0
        %1881 = vmatprep.mubr.f32.mxu0 0.0
        %1882 = vmatmul.mubr.f32.gmra.mxu0 %v1631
        %v1883 = vpop.f32.mrf.mxu0
        %v1884 = vadd.f32 %v1754, %v1883
        %v1885 = vpop.f32.mrf.mxu0
        %1886 = vmatprep.mubr.f32.mxu0 0.0
        %1887 = vmatmul.mubr.f32.gmra.mxu0 %v1634
        %v1888 = vpop.f32.mrf.mxu0
        %v1889 = vadd.f32 %v1759, %v1888
        %v1890 = vpop.f32.mrf.mxu0
        %1891 = vmatprep.mubr.f32.mxu0 0.0
        %1892 = vmatmul.mubr.f32.gmra.mxu0 %v1637
        %v1893 = vpop.f32.mrf.mxu0
        %v1894 = vadd.f32 %v1764, %v1893
        %v1895 = vpop.f32.mrf.mxu0
        %1896 = vmatprep.mubr.f32.mxu0 0.0
        %1897 = vmatmul.mubr.f32.gmra.mxu0 %v1640
        %v1898 = vpop.f32.mrf.mxu0
        %v1899 = vadd.f32 %v1769, %v1898
        %v1900 = vpop.f32.mrf.mxu0
        %1901 = vmatprep.mubr.f32.mxu0 0.0
        %1902 = vmatmul.mubr.f32.gmra.mxu0 %v1643
        %v1903 = vpop.f32.mrf.mxu0
        %v1904 = vadd.f32 %v1774, %v1903
        %v1905 = vpop.f32.mrf.mxu0
        %1906 = vmatprep.mubr.f32.mxu0 0.0
        %1907 = vmatmul.mubr.f32.gmra.mxu0 %v1646
        %v1908 = vpop.f32.mrf.mxu0
        %v1909 = vadd.f32 %v1779, %v1908
        %v1910 = vpop.f32.mrf.mxu0
        %1911 = vdwg.mxu0
        %1912 = vst [vmem:[#allocation3] sm:$0xff] %v1849
        %1913 = vst [vmem:[#allocation3 + $0x8] sm:$0xff] %v1854
        %1914 = vst [vmem:[#allocation3 + $0x10] sm:$0xff] %v1859
        %1915 = vst [vmem:[#allocation3 + $0x18] sm:$0xff] %v1864
        %1916 = vst [vmem:[#allocation3 + $0x20] sm:$0xff] %v1869
        %1917 = vst [vmem:[#allocation3 + $0x28] sm:$0xff] %v1874
        %1918 = vst [vmem:[#allocation3 + $0x30] sm:$0xff] %v1879
        %1919 = vst [vmem:[#allocation3 + $0x38] sm:$0xff] %v1884
        %1920 = vst [vmem:[#allocation3 + $0x40] sm:$0xff] %v1889
        %1921 = vst [vmem:[#allocation3 + $0x48] sm:$0xff] %v1894
        %1922 = vst [vmem:[#allocation3 + $0x50] sm:$0xff] %v1899
        %1923 = vst [vmem:[#allocation3 + $0x58] sm:$0xff] %v1904
        %1924 = vst [vmem:[#allocation3 + $0x60] sm:$0xf] %v1909
        %v1925 = vld [vmem:[%s6] sm:$0xff]
        %v1926 = vld [vmem:[%s6 + $0x8] sm:$0xff]
        %v1927 = vld [vmem:[%s6 + $0x10] sm:$0xff]
        %v1928 = vld [vmem:[%s6 + $0x18] sm:$0xff]
        %v1929 = vld [vmem:[%s6 + $0x20] sm:$0xff]
        %v1930 = vld [vmem:[%s6 + $0x28] sm:$0xff]
        %v1931 = vld [vmem:[%s6 + $0x30] sm:$0xff]
        %v1932 = vld [vmem:[%s6 + $0x38] sm:$0xff]
        %v1933 = vld [vmem:[%s6 + $0x40] sm:$0xff]
        %v1934 = vld [vmem:[%s6 + $0x48] sm:$0xff]
        %v1935 = vld [vmem:[%s6 + $0x50] sm:$0xff]
        %v1936 = vld [vmem:[%s6 + $0x58] sm:$0xff]
        %v1937 = vld [vmem:[%s6 + $0x60] sm:$0xff]
        %v1938 = vld [vmem:[%s6 + $0x68] sm:$0xff]
        %v1939 = vld [vmem:[%s6 + $0x70] sm:$0xff]
        %v1940 = vld [vmem:[%s6 + $0x78] sm:$0xff]
        %s1941 = scalar_lea.vmem %s6, 128
        %v1942 = vld [vmem:[%s1941] sm:$0xff]
        %v1943 = vld [vmem:[%s1941 + $0x8] sm:$0xff]
        %v1944 = vld [vmem:[%s1941 + $0x10] sm:$0xff]
        %v1945 = vld [vmem:[%s1941 + $0x18] sm:$0xff]
        %v1946 = vld [vmem:[%s1941 + $0x20] sm:$0xff]
        %v1947 = vld [vmem:[%s1941 + $0x28] sm:$0xff]
        %v1948 = vld [vmem:[%s1941 + $0x30] sm:$0xff]
        %v1949 = vld [vmem:[%s1941 + $0x38] sm:$0xff]
        %v1950 = vld [vmem:[%s1941 + $0x40] sm:$0xff]
        %v1951 = vld [vmem:[%s1941 + $0x48] sm:$0xff]
        %v1952 = vld [vmem:[%s1941 + $0x50] sm:$0xff]
        %v1953 = vld [vmem:[%s1941 + $0x58] sm:$0xff]
        %v1954 = vld [vmem:[%s1941 + $0x60] sm:$0xff]
        %v1955 = vld [vmem:[%s1941 + $0x68] sm:$0xff]
        %v1956 = vld [vmem:[%s1941 + $0x70] sm:$0xff]
        %v1957 = vld [vmem:[%s1941 + $0x78] sm:$0xff]
        %s1958 = scalar_lea.vmem %s6, 256
        %v1959 = vld [vmem:[%s1958] sm:$0xff]
        %v1960 = vld [vmem:[%s1958 + $0x8] sm:$0xff]
        %v1961 = vld [vmem:[%s1958 + $0x10] sm:$0xff]
        %v1962 = vld [vmem:[%s1958 + $0x18] sm:$0xff]
        %v1963 = vld [vmem:[%s1958 + $0x20] sm:$0xff]
        %v1964 = vld [vmem:[%s1958 + $0x28] sm:$0xff]
        %v1965 = vld [vmem:[%s1958 + $0x30] sm:$0xff]
        %v1966 = vld [vmem:[%s1958 + $0x38] sm:$0xff]
        %v1967 = vld [vmem:[%s1958 + $0x40] sm:$0xff]
        %v1968 = vld [vmem:[%s1958 + $0x48] sm:$0xff]
        %v1969 = vld [vmem:[%s1958 + $0x50] sm:$0xff]
        %v1970 = vld [vmem:[%s1958 + $0x58] sm:$0xff]
        %v1971 = vld [vmem:[%s1958 + $0x60] sm:$0xff]
        %v1972 = vld [vmem:[%s1958 + $0x68] sm:$0xff]
        %v1973 = vld [vmem:[%s1958 + $0x70] sm:$0xff]
        %v1974 = vld [vmem:[%s1958 + $0x78] sm:$0xff]
        %v1975 = vld [vmem:[%s9] sm:$0x1]
        %v1976 = vld [vmem:[%s9 + $0x1] sm:$0x1]
        %v1977 = vld [vmem:[%s9 + $0x2] sm:$0x1]
        %v1978 = vld [vmem:[#allocation3] sm:$0xff]
        %v1979 = vld [vmem:[#allocation3 + $0x8] sm:$0xff]
        %v1980 = vld [vmem:[#allocation3 + $0x10] sm:$0xff]
        %v1981 = vld [vmem:[#allocation3 + $0x18] sm:$0xff]
        %v1982 = vld [vmem:[#allocation3 + $0x20] sm:$0xff]
        %v1983 = vld [vmem:[#allocation3 + $0x28] sm:$0xff]
        %v1984 = vld [vmem:[#allocation3 + $0x30] sm:$0xff]
        %v1985 = vld [vmem:[#allocation3 + $0x38] sm:$0xff]
        %v1986 = vld [vmem:[#allocation3 + $0x40] sm:$0xff]
        %v1987 = vld [vmem:[#allocation3 + $0x48] sm:$0xff]
        %v1988 = vld [vmem:[#allocation3 + $0x50] sm:$0xff]
        %v1989 = vld [vmem:[#allocation3 + $0x58] sm:$0xff]
        %v1990 = vld [vmem:[#allocation3 + $0x60] sm:$0xf]
        %v1991 = vld [vmem:[%s8] sm:$0xff]
        %v1992 = vld [vmem:[%s8 + $0x8] sm:$0xff]
        %v1993 = vld [vmem:[%s8 + $0x10] sm:$0xff]
        %v1994 = vld [vmem:[%s8 + $0x18] sm:$0xff]
        %v1995 = vld [vmem:[%s8 + $0x20] sm:$0xff]
        %v1996 = vld [vmem:[%s8 + $0x28] sm:$0xff]
        %v1997 = vld [vmem:[%s8 + $0x30] sm:$0xff]
        %v1998 = vld [vmem:[%s8 + $0x38] sm:$0xff]
        %v1999 = vld [vmem:[%s8 + $0x40] sm:$0xff]
        %v2000 = vld [vmem:[%s8 + $0x48] sm:$0xff]
        %v2001 = vld [vmem:[%s8 + $0x50] sm:$0xff]
        %v2002 = vld [vmem:[%s8 + $0x58] sm:$0xff]
        %v2003 = vld [vmem:[%s8 + $0x60] sm:$0xf]
        %2004 = vmatprep.subr.mxu0 0.0
        %2005 = vmatpush1.msra.mxu0 %v1940
        %2006 = vmatprep.subr.mxu0 0.0
        %2007 = vmatpush1.msra.mxu0 %v1939
        %2008 = vmatprep.subr.mxu0 0.0
        %2009 = vmatpush1.msra.mxu0 %v1938
        %2010 = vmatprep.subr.mxu0 0.0
        %2011 = vmatpush1.msra.mxu0 %v1937
        %2012 = vmatprep.subr.mxu0 0.0
        %2013 = vmatpush1.msra.mxu0 %v1936
        %2014 = vmatprep.subr.mxu0 0.0
        %2015 = vmatpush1.msra.mxu0 %v1935
        %2016 = vmatprep.subr.mxu0 0.0
        %2017 = vmatpush1.msra.mxu0 %v1934
        %2018 = vmatprep.subr.mxu0 0.0
        %2019 = vmatpush1.msra.mxu0 %v1933
        %2020 = vmatprep.subr.mxu0 0.0
        %2021 = vmatpush1.msra.mxu0 %v1932
        %2022 = vmatprep.subr.mxu0 0.0
        %2023 = vmatpush1.msra.mxu0 %v1931
        %2024 = vmatprep.subr.mxu0 0.0
        %2025 = vmatpush1.msra.mxu0 %v1930
        %2026 = vmatprep.subr.mxu0 0.0
        %2027 = vmatpush1.msra.mxu0 %v1929
        %2028 = vmatprep.subr.mxu0 0.0
        %2029 = vmatpush1.msra.mxu0 %v1928
        %2030 = vmatprep.subr.mxu0 0.0
        %2031 = vmatpush1.msra.mxu0 %v1927
        %2032 = vmatprep.subr.mxu0 0.0
        %2033 = vmatpush1.msra.mxu0 %v1926
        %2034 = vmatprep.subr.mxu0 0.0
        %2035 = vmatpush1.msra.mxu0 %v1925
        %2036 = vmatprep.subr.mxu0 0.0
        %2037 = vmatpush2.msra.mxu0 0.0
        %2038 = vmatprep.subr.mxu0 0.0
        %2039 = vmatpush2.msra.mxu0 0.0
        %2040 = vmatprep.subr.mxu0 0.0
        %2041 = vmatpush2.msra.mxu0 0.0
        %2042 = vmatprep.subr.mxu0 0.0
        %2043 = vmatpush2.msra.mxu0 0.0
        %2044 = vmatprep.subr.mxu0 0.0
        %2045 = vmatpush2.msra.mxu0 0.0
        %2046 = vmatprep.subr.mxu0 0.0
        %2047 = vmatpush2.msra.mxu0 0.0
        %2048 = vmatprep.subr.mxu0 0.0
        %2049 = vmatpush2.msra.mxu0 0.0
        %2050 = vmatprep.subr.mxu0 0.0
        %2051 = vmatpush2.msra.mxu0 0.0
        %2052 = vmatprep.subr.mxu0 0.0
        %2053 = vmatpush2.msra.mxu0 0.0
        %2054 = vmatprep.subr.mxu0 0.0
        %2055 = vmatpush2.msra.mxu0 0.0
        %2056 = vmatprep.subr.mxu0 0.0
        %2057 = vmatpush2.msra.mxu0 0.0
        %2058 = vmatprep.subr.mxu0 0.0
        %2059 = vmatpush2.msra.mxu0 0.0
        %2060 = vmatprep.subr.mxu0 0.0
        %2061 = vmatpush2.msra.mxu0 0.0
        %2062 = vmatprep.subr.mxu0 0.0
        %2063 = vmatpush2.msra.mxu0 0.0
        %2064 = vmatprep.subr.mxu0 0.0
        %2065 = vmatpush2.msra.mxu0 0.0
        %2066 = vmatprep.subr.mxu0 0.0
        %2067 = vmatpush2.msra.mxu0 0.0
        %2068 = vmatprep.mubr.f32.mxu0 0.0
        %2069 = vmatmul.mubr.f32.gmra.mxu0 %v1978
        %v2070 = vpop.f32.mrf.mxu0
        %v2071 = vadd.f32 %v1991, %v2070
        %v2072 = vpop.f32.mrf.mxu0
        %2073 = vmatprep.mubr.f32.mxu0 0.0
        %2074 = vmatmul.mubr.f32.gmra.mxu0 %v1979
        %v2075 = vpop.f32.mrf.mxu0
        %v2076 = vadd.f32 %v1992, %v2075
        %v2077 = vpop.f32.mrf.mxu0
        %2078 = vmatprep.mubr.f32.mxu0 0.0
        %2079 = vmatmul.mubr.f32.gmra.mxu0 %v1980
        %v2080 = vpop.f32.mrf.mxu0
        %v2081 = vadd.f32 %v1993, %v2080
        %v2082 = vpop.f32.mrf.mxu0
        %2083 = vmatprep.mubr.f32.mxu0 0.0
        %2084 = vmatmul.mubr.f32.gmra.mxu0 %v1981
        %v2085 = vpop.f32.mrf.mxu0
        %v2086 = vadd.f32 %v1994, %v2085
        %v2087 = vpop.f32.mrf.mxu0
        %2088 = vmatprep.mubr.f32.mxu0 0.0
        %2089 = vmatmul.mubr.f32.gmra.mxu0 %v1982
        %v2090 = vpop.f32.mrf.mxu0
        %v2091 = vadd.f32 %v1995, %v2090
        %v2092 = vpop.f32.mrf.mxu0
        %2093 = vmatprep.mubr.f32.mxu0 0.0
        %2094 = vmatmul.mubr.f32.gmra.mxu0 %v1983
        %v2095 = vpop.f32.mrf.mxu0
        %v2096 = vadd.f32 %v1996, %v2095
        %v2097 = vpop.f32.mrf.mxu0
        %2098 = vmatprep.mubr.f32.mxu0 0.0
        %2099 = vmatmul.mubr.f32.gmra.mxu0 %v1984
        %v2100 = vpop.f32.mrf.mxu0
        %v2101 = vadd.f32 %v1997, %v2100
        %v2102 = vpop.f32.mrf.mxu0
        %2103 = vmatprep.mubr.f32.mxu0 0.0
        %2104 = vmatmul.mubr.f32.gmra.mxu0 %v1985
        %v2105 = vpop.f32.mrf.mxu0
        %v2106 = vadd.f32 %v1998, %v2105
        %v2107 = vpop.f32.mrf.mxu0
        %2108 = vmatprep.mubr.f32.mxu0 0.0
        %2109 = vmatmul.mubr.f32.gmra.mxu0 %v1986
        %v2110 = vpop.f32.mrf.mxu0
        %v2111 = vadd.f32 %v1999, %v2110
        %v2112 = vpop.f32.mrf.mxu0
        %2113 = vmatprep.mubr.f32.mxu0 0.0
        %2114 = vmatmul.mubr.f32.gmra.mxu0 %v1987
        %v2115 = vpop.f32.mrf.mxu0
        %v2116 = vadd.f32 %v2000, %v2115
        %v2117 = vpop.f32.mrf.mxu0
        %2118 = vmatprep.mubr.f32.mxu0 0.0
        %2119 = vmatmul.mubr.f32.gmra.mxu0 %v1988
        %v2120 = vpop.f32.mrf.mxu0
        %v2121 = vadd.f32 %v2001, %v2120
        %v2122 = vpop.f32.mrf.mxu0
        %2123 = vmatprep.mubr.f32.mxu0 0.0
        %2124 = vmatmul.mubr.f32.gmra.mxu0 %v1989
        %v2125 = vpop.f32.mrf.mxu0
        %v2126 = vadd.f32 %v2002, %v2125
        %v2127 = vpop.f32.mrf.mxu0
        %2128 = vmatprep.mubr.f32.mxu0 0.0
        %2129 = vmatmul.mubr.f32.gmra.mxu0 %v1990
        %v2130 = vpop.f32.mrf.mxu0
        %v2131 = vadd.f32 %v2003, %v2130
        %v2132 = vpop.f32.mrf.mxu0
        %2133 = vdwg.mxu0
        %v2134 = vmax.f32 %v2071, 0.0
        %v2135 = vmax.f32 %v2076, 0.0
        %v2136 = vmax.f32 %v2081, 0.0
        %v2137 = vmax.f32 %v2086, 0.0
        %v2138 = vmax.f32 %v2091, 0.0
        %v2139 = vmax.f32 %v2096, 0.0
        %v2140 = vmax.f32 %v2101, 0.0
        %v2141 = vmax.f32 %v2106, 0.0
        %v2142 = vmax.f32 %v2111, 0.0
        %v2143 = vmax.f32 %v2116, 0.0
        %v2144 = vmax.f32 %v2121, 0.0
        %v2145 = vmax.f32 %v2126, 0.0
        %v2146 = vmax.f32 %v2131, 0.0
        %2147 = vst [vmem:[#allocation4] sm:$0xff] %v2134
        %2148 = vst [vmem:[#allocation4 + $0x8] sm:$0xff] %v2135
        %2149 = vst [vmem:[#allocation4 + $0x10] sm:$0xff] %v2136
        %2150 = vst [vmem:[#allocation4 + $0x18] sm:$0xff] %v2137
        %2151 = vst [vmem:[#allocation4 + $0x20] sm:$0xff] %v2138
        %2152 = vst [vmem:[#allocation4 + $0x28] sm:$0xff] %v2139
        %2153 = vst [vmem:[#allocation4 + $0x30] sm:$0xff] %v2140
        %2154 = vst [vmem:[#allocation4 + $0x38] sm:$0xff] %v2141
        %2155 = vst [vmem:[#allocation4 + $0x40] sm:$0xff] %v2142
        %2156 = vst [vmem:[#allocation4 + $0x48] sm:$0xff] %v2143
        %2157 = vst [vmem:[#allocation4 + $0x50] sm:$0xff] %v2144
        %2158 = vst [vmem:[#allocation4 + $0x58] sm:$0xff] %v2145
        %2159 = vst [vmem:[#allocation4 + $0x60] sm:$0xf] %v2146
        %v2160 = vld [vmem:[#allocation4] sm:$0xff]
        %v2161 = vld [vmem:[#allocation4 + $0x8] sm:$0xff]
        %v2162 = vld [vmem:[#allocation4 + $0x10] sm:$0xff]
        %v2163 = vld [vmem:[#allocation4 + $0x18] sm:$0xff]
        %v2164 = vld [vmem:[#allocation4 + $0x20] sm:$0xff]
        %v2165 = vld [vmem:[#allocation4 + $0x28] sm:$0xff]
        %v2166 = vld [vmem:[#allocation4 + $0x30] sm:$0xff]
        %v2167 = vld [vmem:[#allocation4 + $0x38] sm:$0xff]
        %v2168 = vld [vmem:[#allocation4 + $0x40] sm:$0xff]
        %v2169 = vld [vmem:[#allocation4 + $0x48] sm:$0x3f]
        %v2170 = vld [vmem:[#allocation4 + $0x1] sm:$0xff]
        %v2171 = vld [vmem:[#allocation4 + $0x9] sm:$0xff]
        %v2172 = vld [vmem:[#allocation4 + $0x11] sm:$0xff]
        %v2173 = vld [vmem:[#allocation4 + $0x19] sm:$0xff]
        %v2174 = vld [vmem:[#allocation4 + $0x21] sm:$0xff]
        %v2175 = vld [vmem:[#allocation4 + $0x29] sm:$0xff]
        %v2176 = vld [vmem:[#allocation4 + $0x31] sm:$0xff]
        %v2177 = vld [vmem:[#allocation4 + $0x39] sm:$0xff]
        %v2178 = vld [vmem:[#allocation4 + $0x41] sm:$0xff]
        %v2179 = vld [vmem:[#allocation4 + $0x49] sm:$0x3f]
        %v2180 = vld [vmem:[#allocation4 + $0x2] sm:$0xff]
        %v2181 = vld [vmem:[#allocation4 + $0xa] sm:$0xff]
        %v2182 = vld [vmem:[#allocation4 + $0x12] sm:$0xff]
        %v2183 = vld [vmem:[#allocation4 + $0x1a] sm:$0xff]
        %v2184 = vld [vmem:[#allocation4 + $0x22] sm:$0xff]
        %v2185 = vld [vmem:[#allocation4 + $0x2a] sm:$0xff]
        %v2186 = vld [vmem:[#allocation4 + $0x32] sm:$0xff]
        %v2187 = vld [vmem:[#allocation4 + $0x3a] sm:$0xff]
        %v2188 = vld [vmem:[#allocation4 + $0x42] sm:$0xff]
        %v2189 = vld [vmem:[#allocation4 + $0x4a] sm:$0x3f]
        %v2190 = vld [vmem:[#allocation4 + $0x4a] sm:$0xff]
        %v2191 = vld [vmem:[#allocation4 + $0x52] sm:$0x3f]
        %v2192 = vld [vmem:[#allocation4 + $0xb] sm:$0xff]
        %v2193 = vld [vmem:[#allocation4 + $0x13] sm:$0xff]
        %v2194 = vld [vmem:[#allocation4 + $0x1b] sm:$0xff]
        %v2195 = vld [vmem:[#allocation4 + $0x23] sm:$0xff]
        %v2196 = vld [vmem:[#allocation4 + $0x2b] sm:$0xff]
        %v2197 = vld [vmem:[#allocation4 + $0x33] sm:$0xff]
        %v2198 = vld [vmem:[#allocation4 + $0x3b] sm:$0xff]
        %v2199 = vld [vmem:[#allocation4 + $0x43] sm:$0xff]
        %v2200 = vld [vmem:[#allocation4 + $0x4b] sm:$0xff]
        %v2201 = vld [vmem:[#allocation4 + $0x53] sm:$0x3f]
        %v2202 = vld [vmem:[#allocation4 + $0xc] sm:$0xff]
        %v2203 = vld [vmem:[#allocation4 + $0x14] sm:$0xff]
        %v2204 = vld [vmem:[#allocation4 + $0x1c] sm:$0xff]
        %v2205 = vld [vmem:[#allocation4 + $0x24] sm:$0xff]
        %v2206 = vld [vmem:[#allocation4 + $0x2c] sm:$0xff]
        %v2207 = vld [vmem:[#allocation4 + $0x34] sm:$0xff]
        %v2208 = vld [vmem:[#allocation4 + $0x3c] sm:$0xff]
        %v2209 = vld [vmem:[#allocation4 + $0x44] sm:$0xff]
        %v2210 = vld [vmem:[#allocation4 + $0x4c] sm:$0xff]
        %v2211 = vld [vmem:[#allocation4 + $0x54] sm:$0x3f]
        %v2212 = vld [vmem:[#allocation4 + $0x54] sm:$0xff]
        %v2213 = vld [vmem:[#allocation4 + $0x5c] sm:$0x3f]
        %v2214 = vld [vmem:[#allocation4 + $0x15] sm:$0xff]
        %v2215 = vld [vmem:[#allocation4 + $0x1d] sm:$0xff]
        %v2216 = vld [vmem:[#allocation4 + $0x25] sm:$0xff]
        %v2217 = vld [vmem:[#allocation4 + $0x2d] sm:$0xff]
        %v2218 = vld [vmem:[#allocation4 + $0x35] sm:$0xff]
        %v2219 = vld [vmem:[#allocation4 + $0x3d] sm:$0xff]
        %v2220 = vld [vmem:[#allocation4 + $0x45] sm:$0xff]
        %v2221 = vld [vmem:[#allocation4 + $0x4d] sm:$0xff]
        %v2222 = vld [vmem:[#allocation4 + $0x55] sm:$0xff]
        %v2223 = vld [vmem:[#allocation4 + $0x5d] sm:$0x3f]
        %v2224 = vld [vmem:[#allocation4 + $0x16] sm:$0xff]
        %v2225 = vld [vmem:[#allocation4 + $0x1e] sm:$0xff]
        %v2226 = vld [vmem:[#allocation4 + $0x26] sm:$0xff]
        %v2227 = vld [vmem:[#allocation4 + $0x2e] sm:$0xff]
        %v2228 = vld [vmem:[#allocation4 + $0x36] sm:$0xff]
        %v2229 = vld [vmem:[#allocation4 + $0x3e] sm:$0xff]
        %v2230 = vld [vmem:[#allocation4 + $0x46] sm:$0xff]
        %v2231 = vld [vmem:[#allocation4 + $0x4e] sm:$0xff]
        %v2232 = vld [vmem:[#allocation4 + $0x56] sm:$0xff]
        %v2233 = vld [vmem:[#allocation4 + $0x5e] sm:$0x3f]
        %v2234 = vld [vmem:[%s7] sm:$0xff]
        %v2235 = vld [vmem:[%s7 + $0x8] sm:$0xff]
        %v2236 = vld [vmem:[%s7 + $0x10] sm:$0xff]
        %v2237 = vld [vmem:[%s7 + $0x18] sm:$0xff]
        %v2238 = vld [vmem:[%s7 + $0x20] sm:$0xff]
        %v2239 = vld [vmem:[%s7 + $0x28] sm:$0xff]
        %v2240 = vld [vmem:[%s7 + $0x30] sm:$0xff]
        %v2241 = vld [vmem:[%s7 + $0x38] sm:$0xff]
        %v2242 = vld [vmem:[%s7 + $0x40] sm:$0xff]
        %v2243 = vld [vmem:[%s7 + $0x48] sm:$0xff]
        %v2244 = vld [vmem:[%s7 + $0x50] sm:$0xff]
        %v2245 = vld [vmem:[%s7 + $0x58] sm:$0xff]
        %v2246 = vld [vmem:[%s7 + $0x60] sm:$0xff]
        %v2247 = vld [vmem:[%s7 + $0x68] sm:$0xff]
        %v2248 = vld [vmem:[%s7 + $0x70] sm:$0xff]
        %v2249 = vld [vmem:[%s7 + $0x78] sm:$0xff]
        %v2250 = vld [vmem:[%s7 + $0x80] sm:$0xff]
        %v2251 = vld [vmem:[%s7 + $0x88] sm:$0xff]
        %v2252 = vld [vmem:[%s7 + $0x90] sm:$0xff]
        %v2253 = vld [vmem:[%s7 + $0x98] sm:$0xff]
        %v2254 = vld [vmem:[%s7 + $0xa0] sm:$0xff]
        %v2255 = vld [vmem:[%s7 + $0xa8] sm:$0xff]
        %v2256 = vld [vmem:[%s7 + $0xb0] sm:$0xff]
        %v2257 = vld [vmem:[%s7 + $0xb8] sm:$0xff]
        %v2258 = vld [vmem:[%s7 + $0xc0] sm:$0xff]
        %v2259 = vld [vmem:[%s7 + $0xc8] sm:$0xff]
        %v2260 = vld [vmem:[%s7 + $0xd0] sm:$0xff]
        %v2261 = vld [vmem:[%s7 + $0xd8] sm:$0xff]
        %v2262 = vld [vmem:[%s7 + $0xe0] sm:$0xff]
        %v2263 = vld [vmem:[%s7 + $0xe8] sm:$0xff]
        %v2264 = vld [vmem:[%s7 + $0xf0] sm:$0xff]
        %v2265 = vld [vmem:[%s7 + $0xf8] sm:$0xff]
        %v2266 = vld [vmem:[%s7 + $0x100] sm:$0xff]
        %v2267 = vld [vmem:[%s7 + $0x108] sm:$0xff]
        %v2268 = vld [vmem:[%s7 + $0x110] sm:$0xff]
        %v2269 = vld [vmem:[%s7 + $0x118] sm:$0xff]
        %v2270 = vld [vmem:[%s7 + $0x120] sm:$0xff]
        %v2271 = vld [vmem:[%s7 + $0x128] sm:$0xff]
        %v2272 = vld [vmem:[%s7 + $0x130] sm:$0xff]
        %v2273 = vld [vmem:[%s7 + $0x138] sm:$0xff]
        %v2274 = vld [vmem:[%s7 + $0x140] sm:$0xff]
        %v2275 = vld [vmem:[%s7 + $0x148] sm:$0xff]
        %v2276 = vld [vmem:[%s7 + $0x150] sm:$0xff]
        %v2277 = vld [vmem:[%s7 + $0x158] sm:$0xff]
        %v2278 = vld [vmem:[%s7 + $0x160] sm:$0xff]
        %v2279 = vld [vmem:[%s7 + $0x168] sm:$0xff]
        %v2280 = vld [vmem:[%s7 + $0x170] sm:$0xff]
        %v2281 = vld [vmem:[%s7 + $0x178] sm:$0xff]
        %v2282 = vld [vmem:[%s7 + $0x180] sm:$0xff]
        %v2283 = vld [vmem:[%s7 + $0x188] sm:$0xff]
        %v2284 = vld [vmem:[%s7 + $0x190] sm:$0xff]
        %v2285 = vld [vmem:[%s7 + $0x198] sm:$0xff]
        %v2286 = vld [vmem:[%s7 + $0x1a0] sm:$0xff]
        %v2287 = vld [vmem:[%s7 + $0x1a8] sm:$0xff]
        %v2288 = vld [vmem:[%s7 + $0x1b0] sm:$0xff]
        %v2289 = vld [vmem:[%s7 + $0x1b8] sm:$0xff]
        %v2290 = vld [vmem:[%s7 + $0x1c0] sm:$0xff]
        %v2291 = vld [vmem:[%s7 + $0x1c8] sm:$0xff]
        %v2292 = vld [vmem:[%s7 + $0x1d0] sm:$0xff]
        %v2293 = vld [vmem:[%s7 + $0x1d8] sm:$0xff]
        %v2294 = vld [vmem:[%s7 + $0x1e0] sm:$0xff]
        %v2295 = vld [vmem:[%s7 + $0x1e8] sm:$0xff]
        %v2296 = vld [vmem:[%s7 + $0x1f0] sm:$0xff]
        %v2297 = vld [vmem:[%s7 + $0x1f8] sm:$0xff]
        %v2298 = vld [vmem:[%s7 + $0x200] sm:$0xff]
        %v2299 = vld [vmem:[%s7 + $0x208] sm:$0xff]
        %v2300 = vld [vmem:[%s7 + $0x210] sm:$0xff]
        %v2301 = vld [vmem:[%s7 + $0x218] sm:$0xff]
        %v2302 = vld [vmem:[%s7 + $0x220] sm:$0xff]
        %v2303 = vld [vmem:[%s7 + $0x228] sm:$0xff]
        %v2304 = vld [vmem:[%s7 + $0x230] sm:$0xff]
        %v2305 = vld [vmem:[%s7 + $0x238] sm:$0xff]
        %v2306 = vld [vmem:[%s7 + $0x240] sm:$0xff]
        %v2307 = vld [vmem:[%s7 + $0x248] sm:$0xff]
        %v2308 = vld [vmem:[%s7 + $0x250] sm:$0xff]
        %v2309 = vld [vmem:[%s7 + $0x258] sm:$0xff]
        %v2310 = vld [vmem:[%s7 + $0x260] sm:$0xff]
        %v2311 = vld [vmem:[%s7 + $0x268] sm:$0xff]
        %v2312 = vld [vmem:[%s7 + $0x270] sm:$0xff]
        %v2313 = vld [vmem:[%s7 + $0x278] sm:$0xff]
        %v2314 = vld [vmem:[%s7 + $0x280] sm:$0xff]
        %v2315 = vld [vmem:[%s7 + $0x288] sm:$0xff]
        %v2316 = vld [vmem:[%s7 + $0x290] sm:$0xff]
        %v2317 = vld [vmem:[%s7 + $0x298] sm:$0xff]
        %v2318 = vld [vmem:[%s7 + $0x2a0] sm:$0xff]
        %v2319 = vld [vmem:[%s7 + $0x2a8] sm:$0xff]
        %v2320 = vld [vmem:[%s7 + $0x2b0] sm:$0xff]
        %v2321 = vld [vmem:[%s7 + $0x2b8] sm:$0xff]
        %v2322 = vld [vmem:[%s7 + $0x2c0] sm:$0xff]
        %v2323 = vld [vmem:[%s7 + $0x2c8] sm:$0xff]
        %v2324 = vld [vmem:[%s7 + $0x2d0] sm:$0xff]
        %v2325 = vld [vmem:[%s7 + $0x2d8] sm:$0xff]
        %v2326 = vld [vmem:[%s7 + $0x2e0] sm:$0xff]
        %v2327 = vld [vmem:[%s7 + $0x2e8] sm:$0xff]
        %v2328 = vld [vmem:[%s7 + $0x2f0] sm:$0xff]
        %v2329 = vld [vmem:[%s7 + $0x2f8] sm:$0xff]
        %v2330 = vld [vmem:[%s7 + $0x300] sm:$0xff]
        %v2331 = vld [vmem:[%s7 + $0x308] sm:$0xff]
        %v2332 = vld [vmem:[%s7 + $0x310] sm:$0xff]
        %v2333 = vld [vmem:[%s7 + $0x318] sm:$0xff]
        %v2334 = vld [vmem:[%s7 + $0x320] sm:$0xff]
        %v2335 = vld [vmem:[%s7 + $0x328] sm:$0xff]
        %v2336 = vld [vmem:[%s7 + $0x330] sm:$0xff]
        %v2337 = vld [vmem:[%s7 + $0x338] sm:$0xff]
        %v2338 = vld [vmem:[%s7 + $0x340] sm:$0xff]
        %v2339 = vld [vmem:[%s7 + $0x348] sm:$0xff]
        %v2340 = vld [vmem:[%s7 + $0x350] sm:$0xff]
        %v2341 = vld [vmem:[%s7 + $0x358] sm:$0xff]
        %v2342 = vld [vmem:[%s7 + $0x360] sm:$0xff]
        %v2343 = vld [vmem:[%s7 + $0x368] sm:$0xff]
        %v2344 = vld [vmem:[%s7 + $0x370] sm:$0xff]
        %v2345 = vld [vmem:[%s7 + $0x378] sm:$0xff]
        %v2346 = vld [vmem:[%s7 + $0x380] sm:$0xff]
        %v2347 = vld [vmem:[%s7 + $0x388] sm:$0xff]
        %v2348 = vld [vmem:[%s7 + $0x390] sm:$0xff]
        %v2349 = vld [vmem:[%s7 + $0x398] sm:$0xff]
        %v2350 = vld [vmem:[%s7 + $0x3a0] sm:$0xff]
        %v2351 = vld [vmem:[%s7 + $0x3a8] sm:$0xff]
        %v2352 = vld [vmem:[%s7 + $0x3b0] sm:$0xff]
        %v2353 = vld [vmem:[%s7 + $0x3b8] sm:$0xff]
        %v2354 = vld [vmem:[%s7 + $0x3c0] sm:$0xff]
        %v2355 = vld [vmem:[%s7 + $0x3c8] sm:$0xff]
        %v2356 = vld [vmem:[%s7 + $0x3d0] sm:$0xff]
        %v2357 = vld [vmem:[%s7 + $0x3d8] sm:$0xff]
        %v2358 = vld [vmem:[%s7 + $0x3e0] sm:$0xff]
        %v2359 = vld [vmem:[%s7 + $0x3e8] sm:$0xff]
        %v2360 = vld [vmem:[%s7 + $0x3f0] sm:$0xff]
        %v2361 = vld [vmem:[%s7 + $0x3f8] sm:$0xff]
        %v2362 = vld [vmem:[%s7 + $0x400] sm:$0xff]
        %v2363 = vld [vmem:[%s7 + $0x408] sm:$0xff]
        %v2364 = vld [vmem:[%s7 + $0x410] sm:$0xff]
        %v2365 = vld [vmem:[%s7 + $0x418] sm:$0xff]
        %v2366 = vld [vmem:[%s7 + $0x420] sm:$0xff]
        %v2367 = vld [vmem:[%s7 + $0x428] sm:$0xff]
        %v2368 = vld [vmem:[%s7 + $0x430] sm:$0xff]
        %v2369 = vld [vmem:[%s7 + $0x438] sm:$0xff]
        %v2370 = vld [vmem:[%s7 + $0x440] sm:$0xff]
        %v2371 = vld [vmem:[%s7 + $0x448] sm:$0xff]
        %v2372 = vld [vmem:[%s7 + $0x450] sm:$0xff]
        %v2373 = vld [vmem:[%s7 + $0x458] sm:$0xff]
        %v2374 = vld [vmem:[%s7 + $0x460] sm:$0xff]
        %v2375 = vld [vmem:[%s7 + $0x468] sm:$0xff]
        %v2376 = vld [vmem:[%s7 + $0x470] sm:$0xff]
        %v2377 = vld [vmem:[%s7 + $0x478] sm:$0xff]
        %v2378 = vlaneseq
        %v2379 = vshrl.u32 %v2378, 7
        %v2380 = vsub.s32 0, %v2379
        %v2381 = vrot.slane %v1975, %v2380
        %2382 = vmatprep.subr.mxu0 0.0
        %2383 = vmatpush1.msra.mxu0 %v2249
        %2384 = vmatprep.subr.mxu0 0.0
        %2385 = vmatpush1.msra.mxu0 %v2248
        %2386 = vmatprep.subr.mxu0 0.0
        %2387 = vmatpush1.msra.mxu0 %v2247
        %2388 = vmatprep.subr.mxu0 0.0
        %2389 = vmatpush1.msra.mxu0 %v2246
        %2390 = vmatprep.subr.mxu0 0.0
        %2391 = vmatpush1.msra.mxu0 %v2245
        %2392 = vmatprep.subr.mxu0 0.0
        %2393 = vmatpush1.msra.mxu0 %v2244
        %2394 = vmatprep.subr.mxu0 0.0
        %2395 = vmatpush1.msra.mxu0 %v2243
        %2396 = vmatprep.subr.mxu0 0.0
        %2397 = vmatpush1.msra.mxu0 %v2242
        %2398 = vmatprep.subr.mxu0 0.0
        %2399 = vmatpush1.msra.mxu0 %v2241
        %2400 = vmatprep.subr.mxu0 0.0
        %2401 = vmatpush1.msra.mxu0 %v2240
        %2402 = vmatprep.subr.mxu0 0.0
        %2403 = vmatpush1.msra.mxu0 %v2239
        %2404 = vmatprep.subr.mxu0 0.0
        %2405 = vmatpush1.msra.mxu0 %v2238
        %2406 = vmatprep.subr.mxu0 0.0
        %2407 = vmatpush1.msra.mxu0 %v2237
        %2408 = vmatprep.subr.mxu0 0.0
        %2409 = vmatpush1.msra.mxu0 %v2236
        %2410 = vmatprep.subr.mxu0 0.0
        %2411 = vmatpush1.msra.mxu0 %v2235
        %2412 = vmatprep.subr.mxu0 0.0
        %2413 = vmatpush1.msra.mxu0 %v2234
        %2414 = vmatprep.subr.mxu0 0.0
        %2415 = vmatpush2.msra.mxu0 %v2265
        %2416 = vmatprep.subr.mxu0 0.0
        %2417 = vmatpush2.msra.mxu0 %v2264
        %2418 = vmatprep.subr.mxu0 0.0
        %2419 = vmatpush2.msra.mxu0 %v2263
        %2420 = vmatprep.subr.mxu0 0.0
        %2421 = vmatpush2.msra.mxu0 %v2262
        %2422 = vmatprep.subr.mxu0 0.0
        %2423 = vmatpush2.msra.mxu0 %v2261
        %2424 = vmatprep.subr.mxu0 0.0
        %2425 = vmatpush2.msra.mxu0 %v2260
        %2426 = vmatprep.subr.mxu0 0.0
        %2427 = vmatpush2.msra.mxu0 %v2259
        %2428 = vmatprep.subr.mxu0 0.0
        %2429 = vmatpush2.msra.mxu0 %v2258
        %2430 = vmatprep.subr.mxu0 0.0
        %2431 = vmatpush2.msra.mxu0 %v2257
        %2432 = vmatprep.subr.mxu0 0.0
        %2433 = vmatpush2.msra.mxu0 %v2256
        %2434 = vmatprep.subr.mxu0 0.0
        %2435 = vmatpush2.msra.mxu0 %v2255
        %2436 = vmatprep.subr.mxu0 0.0
        %2437 = vmatpush2.msra.mxu0 %v2254
        %2438 = vmatprep.subr.mxu0 0.0
        %2439 = vmatpush2.msra.mxu0 %v2253
        %2440 = vmatprep.subr.mxu0 0.0
        %2441 = vmatpush2.msra.mxu0 %v2252
        %2442 = vmatprep.subr.mxu0 0.0
        %2443 = vmatpush2.msra.mxu0 %v2251
        %2444 = vmatprep.subr.mxu0 0.0
        %2445 = vmatpush2.msra.mxu0 %v2250
        %2446 = vmatprep.mubr.f32.mxu0 %v2170
        %2447 = vmatmul.mubr.f32.gmra.mxu0 %v2160
        %v2448 = vpop.f32.mrf.mxu0
        %v2449 = vadd.f32 %v2381, %v2448
        %v2450 = vpop.f32.mrf.mxu0
        %2451 = vmatprep.mubr.f32.mxu0 %v2171
        %2452 = vmatmul.mubr.f32.gmra.mxu0 %v2161
        %v2453 = vpop.f32.mrf.mxu0
        %v2454 = vadd.f32 %v2381, %v2453
        %v2455 = vpop.f32.mrf.mxu0
        %2456 = vmatprep.mubr.f32.mxu0 %v2172
        %2457 = vmatmul.mubr.f32.gmra.mxu0 %v2162
        %v2458 = vpop.f32.mrf.mxu0
        %v2459 = vadd.f32 %v2381, %v2458
        %v2460 = vpop.f32.mrf.mxu0
        %2461 = vmatprep.mubr.f32.mxu0 %v2173
        %2462 = vmatmul.mubr.f32.gmra.mxu0 %v2163
        %v2463 = vpop.f32.mrf.mxu0
        %v2464 = vadd.f32 %v2381, %v2463
        %v2465 = vpop.f32.mrf.mxu0
        %2466 = vmatprep.mubr.f32.mxu0 %v2174
        %2467 = vmatmul.mubr.f32.gmra.mxu0 %v2164
        %v2468 = vpop.f32.mrf.mxu0
        %v2469 = vadd.f32 %v2381, %v2468
        %v2470 = vpop.f32.mrf.mxu0
        %2471 = vmatprep.mubr.f32.mxu0 %v2175
        %2472 = vmatmul.mubr.f32.gmra.mxu0 %v2165
        %v2473 = vpop.f32.mrf.mxu0
        %v2474 = vadd.f32 %v2381, %v2473
        %v2475 = vpop.f32.mrf.mxu0
        %2476 = vmatprep.mubr.f32.mxu0 %v2176
        %2477 = vmatmul.mubr.f32.gmra.mxu0 %v2166
        %v2478 = vpop.f32.mrf.mxu0
        %v2479 = vadd.f32 %v2381, %v2478
        %v2480 = vpop.f32.mrf.mxu0
        %2481 = vmatprep.mubr.f32.mxu0 %v2177
        %2482 = vmatmul.mubr.f32.gmra.mxu0 %v2167
        %v2483 = vpop.f32.mrf.mxu0
        %v2484 = vadd.f32 %v2381, %v2483
        %v2485 = vpop.f32.mrf.mxu0
        %2486 = vmatprep.mubr.f32.mxu0 %v2178
        %2487 = vmatmul.mubr.f32.gmra.mxu0 %v2168
        %v2488 = vpop.f32.mrf.mxu0
        %v2489 = vadd.f32 %v2381, %v2488
        %v2490 = vpop.f32.mrf.mxu0
        %2491 = vmatprep.mubr.f32.mxu0 %v2179
        %2492 = vmatmul.mubr.f32.gmra.mxu0 %v2169
        %v2493 = vpop.f32.mrf.mxu0
        %v2494 = vadd.f32 %v2381, %v2493
        %v2495 = vpop.f32.mrf.mxu0
        %2496 = vdwg.mxu0
        %2497 = vmatprep.subr.mxu0 0.0
        %2498 = vmatpush1.msra.mxu0 %v2281
        %2499 = vmatprep.subr.mxu0 0.0
        %2500 = vmatpush1.msra.mxu0 %v2280
        %2501 = vmatprep.subr.mxu0 0.0
        %2502 = vmatpush1.msra.mxu0 %v2279
        %2503 = vmatprep.subr.mxu0 0.0
        %2504 = vmatpush1.msra.mxu0 %v2278
        %2505 = vmatprep.subr.mxu0 0.0
        %2506 = vmatpush1.msra.mxu0 %v2277
        %2507 = vmatprep.subr.mxu0 0.0
        %2508 = vmatpush1.msra.mxu0 %v2276
        %2509 = vmatprep.subr.mxu0 0.0
        %2510 = vmatpush1.msra.mxu0 %v2275
        %2511 = vmatprep.subr.mxu0 0.0
        %2512 = vmatpush1.msra.mxu0 %v2274
        %2513 = vmatprep.subr.mxu0 0.0
        %2514 = vmatpush1.msra.mxu0 %v2273
        %2515 = vmatprep.subr.mxu0 0.0
        %2516 = vmatpush1.msra.mxu0 %v2272
        %2517 = vmatprep.subr.mxu0 0.0
        %2518 = vmatpush1.msra.mxu0 %v2271
        %2519 = vmatprep.subr.mxu0 0.0
        %2520 = vmatpush1.msra.mxu0 %v2270
        %2521 = vmatprep.subr.mxu0 0.0
        %2522 = vmatpush1.msra.mxu0 %v2269
        %2523 = vmatprep.subr.mxu0 0.0
        %2524 = vmatpush1.msra.mxu0 %v2268
        %2525 = vmatprep.subr.mxu0 0.0
        %2526 = vmatpush1.msra.mxu0 %v2267
        %2527 = vmatprep.subr.mxu0 0.0
        %2528 = vmatpush1.msra.mxu0 %v2266
        %2529 = vmatprep.subr.mxu0 0.0
        %2530 = vmatpush2.msra.mxu0 %v2297
        %2531 = vmatprep.subr.mxu0 0.0
        %2532 = vmatpush2.msra.mxu0 %v2296
        %2533 = vmatprep.subr.mxu0 0.0
        %2534 = vmatpush2.msra.mxu0 %v2295
        %2535 = vmatprep.subr.mxu0 0.0
        %2536 = vmatpush2.msra.mxu0 %v2294
        %2537 = vmatprep.subr.mxu0 0.0
        %2538 = vmatpush2.msra.mxu0 %v2293
        %2539 = vmatprep.subr.mxu0 0.0
        %2540 = vmatpush2.msra.mxu0 %v2292
        %2541 = vmatprep.subr.mxu0 0.0
        %2542 = vmatpush2.msra.mxu0 %v2291
        %2543 = vmatprep.subr.mxu0 0.0
        %2544 = vmatpush2.msra.mxu0 %v2290
        %2545 = vmatprep.subr.mxu0 0.0
        %2546 = vmatpush2.msra.mxu0 %v2289
        %2547 = vmatprep.subr.mxu0 0.0
        %2548 = vmatpush2.msra.mxu0 %v2288
        %2549 = vmatprep.subr.mxu0 0.0
        %2550 = vmatpush2.msra.mxu0 %v2287
        %2551 = vmatprep.subr.mxu0 0.0
        %2552 = vmatpush2.msra.mxu0 %v2286
        %2553 = vmatprep.subr.mxu0 0.0
        %2554 = vmatpush2.msra.mxu0 %v2285
        %2555 = vmatprep.subr.mxu0 0.0
        %2556 = vmatpush2.msra.mxu0 %v2284
        %2557 = vmatprep.subr.mxu0 0.0
        %2558 = vmatpush2.msra.mxu0 %v2283
        %2559 = vmatprep.subr.mxu0 0.0
        %2560 = vmatpush2.msra.mxu0 %v2282
        %2561 = vmatprep.mubr.f32.mxu0 %v2181
        %2562 = vmatmul.mubr.f32.gmra.mxu0 %v2180
        %v2563 = vpop.f32.mrf.mxu0
        %v2564 = vadd.f32 %v2449, %v2563
        %v2565 = vpop.f32.mrf.mxu0
        %2566 = vmatprep.mubr.f32.mxu0 %v2182
        %2567 = vmatmul.mubr.f32.gmra.mxu0 %v2181
        %v2568 = vpop.f32.mrf.mxu0
        %v2569 = vadd.f32 %v2454, %v2568
        %v2570 = vpop.f32.mrf.mxu0
        %2571 = vmatprep.mubr.f32.mxu0 %v2183
        %2572 = vmatmul.mubr.f32.gmra.mxu0 %v2182
        %v2573 = vpop.f32.mrf.mxu0
        %v2574 = vadd.f32 %v2459, %v2573
        %v2575 = vpop.f32.mrf.mxu0
        %2576 = vmatprep.mubr.f32.mxu0 %v2184
        %2577 = vmatmul.mubr.f32.gmra.mxu0 %v2183
        %v2578 = vpop.f32.mrf.mxu0
        %v2579 = vadd.f32 %v2464, %v2578
        %v2580 = vpop.f32.mrf.mxu0
        %2581 = vmatprep.mubr.f32.mxu0 %v2185
        %2582 = vmatmul.mubr.f32.gmra.mxu0 %v2184
        %v2583 = vpop.f32.mrf.mxu0
        %v2584 = vadd.f32 %v2469, %v2583
        %v2585 = vpop.f32.mrf.mxu0
        %2586 = vmatprep.mubr.f32.mxu0 %v2186
        %2587 = vmatmul.mubr.f32.gmra.mxu0 %v2185
        %v2588 = vpop.f32.mrf.mxu0
        %v2589 = vadd.f32 %v2474, %v2588
        %v2590 = vpop.f32.mrf.mxu0
        %2591 = vmatprep.mubr.f32.mxu0 %v2187
        %2592 = vmatmul.mubr.f32.gmra.mxu0 %v2186
        %v2593 = vpop.f32.mrf.mxu0
        %v2594 = vadd.f32 %v2479, %v2593
        %v2595 = vpop.f32.mrf.mxu0
        %2596 = vmatprep.mubr.f32.mxu0 %v2188
        %2597 = vmatmul.mubr.f32.gmra.mxu0 %v2187
        %v2598 = vpop.f32.mrf.mxu0
        %v2599 = vadd.f32 %v2484, %v2598
        %v2600 = vpop.f32.mrf.mxu0
        %2601 = vmatprep.mubr.f32.mxu0 %v2190
        %2602 = vmatmul.mubr.f32.gmra.mxu0 %v2188
        %v2603 = vpop.f32.mrf.mxu0
        %v2604 = vadd.f32 %v2489, %v2603
        %v2605 = vpop.f32.mrf.mxu0
        %2606 = vmatprep.mubr.f32.mxu0 %v2191
        %2607 = vmatmul.mubr.f32.gmra.mxu0 %v2189
        %v2608 = vpop.f32.mrf.mxu0
        %v2609 = vadd.f32 %v2494, %v2608
        %v2610 = vpop.f32.mrf.mxu0
        %2611 = vdwg.mxu0
        %2612 = vmatprep.subr.mxu0 0.0
        %2613 = vmatpush1.msra.mxu0 %v2313
        %2614 = vmatprep.subr.mxu0 0.0
        %2615 = vmatpush1.msra.mxu0 %v2312
        %2616 = vmatprep.subr.mxu0 0.0
        %2617 = vmatpush1.msra.mxu0 %v2311
        %2618 = vmatprep.subr.mxu0 0.0
        %2619 = vmatpush1.msra.mxu0 %v2310
        %2620 = vmatprep.subr.mxu0 0.0
        %2621 = vmatpush1.msra.mxu0 %v2309
        %2622 = vmatprep.subr.mxu0 0.0
        %2623 = vmatpush1.msra.mxu0 %v2308
        %2624 = vmatprep.subr.mxu0 0.0
        %2625 = vmatpush1.msra.mxu0 %v2307
        %2626 = vmatprep.subr.mxu0 0.0
        %2627 = vmatpush1.msra.mxu0 %v2306
        %2628 = vmatprep.subr.mxu0 0.0
        %2629 = vmatpush1.msra.mxu0 %v2305
        %2630 = vmatprep.subr.mxu0 0.0
        %2631 = vmatpush1.msra.mxu0 %v2304
        %2632 = vmatprep.subr.mxu0 0.0
        %2633 = vmatpush1.msra.mxu0 %v2303
        %2634 = vmatprep.subr.mxu0 0.0
        %2635 = vmatpush1.msra.mxu0 %v2302
        %2636 = vmatprep.subr.mxu0 0.0
        %2637 = vmatpush1.msra.mxu0 %v2301
        %2638 = vmatprep.subr.mxu0 0.0
        %2639 = vmatpush1.msra.mxu0 %v2300
        %2640 = vmatprep.subr.mxu0 0.0
        %2641 = vmatpush1.msra.mxu0 %v2299
        %2642 = vmatprep.subr.mxu0 0.0
        %2643 = vmatpush1.msra.mxu0 %v2298
        %2644 = vmatprep.subr.mxu0 0.0
        %2645 = vmatpush2.msra.mxu0 %v2329
        %2646 = vmatprep.subr.mxu0 0.0
        %2647 = vmatpush2.msra.mxu0 %v2328
        %2648 = vmatprep.subr.mxu0 0.0
        %2649 = vmatpush2.msra.mxu0 %v2327
        %2650 = vmatprep.subr.mxu0 0.0
        %2651 = vmatpush2.msra.mxu0 %v2326
        %2652 = vmatprep.subr.mxu0 0.0
        %2653 = vmatpush2.msra.mxu0 %v2325
        %2654 = vmatprep.subr.mxu0 0.0
        %2655 = vmatpush2.msra.mxu0 %v2324
        %2656 = vmatprep.subr.mxu0 0.0
        %2657 = vmatpush2.msra.mxu0 %v2323
        %2658 = vmatprep.subr.mxu0 0.0
        %2659 = vmatpush2.msra.mxu0 %v2322
        %2660 = vmatprep.subr.mxu0 0.0
        %2661 = vmatpush2.msra.mxu0 %v2321
        %2662 = vmatprep.subr.mxu0 0.0
        %2663 = vmatpush2.msra.mxu0 %v2320
        %2664 = vmatprep.subr.mxu0 0.0
        %2665 = vmatpush2.msra.mxu0 %v2319
        %2666 = vmatprep.subr.mxu0 0.0
        %2667 = vmatpush2.msra.mxu0 %v2318
        %2668 = vmatprep.subr.mxu0 0.0
        %2669 = vmatpush2.msra.mxu0 %v2317
        %2670 = vmatprep.subr.mxu0 0.0
        %2671 = vmatpush2.msra.mxu0 %v2316
        %2672 = vmatprep.subr.mxu0 0.0
        %2673 = vmatpush2.msra.mxu0 %v2315
        %2674 = vmatprep.subr.mxu0 0.0
        %2675 = vmatpush2.msra.mxu0 %v2314
        %2676 = vmatprep.mubr.f32.mxu0 %v2202
        %2677 = vmatmul.mubr.f32.gmra.mxu0 %v2192
        %v2678 = vpop.f32.mrf.mxu0
        %v2679 = vadd.f32 %v2564, %v2678
        %v2680 = vpop.f32.mrf.mxu0
        %2681 = vmatprep.mubr.f32.mxu0 %v2203
        %2682 = vmatmul.mubr.f32.gmra.mxu0 %v2193
        %v2683 = vpop.f32.mrf.mxu0
        %v2684 = vadd.f32 %v2569, %v2683
        %v2685 = vpop.f32.mrf.mxu0
        %2686 = vmatprep.mubr.f32.mxu0 %v2204
        %2687 = vmatmul.mubr.f32.gmra.mxu0 %v2194
        %v2688 = vpop.f32.mrf.mxu0
        %v2689 = vadd.f32 %v2574, %v2688
        %v2690 = vpop.f32.mrf.mxu0
        %2691 = vmatprep.mubr.f32.mxu0 %v2205
        %2692 = vmatmul.mubr.f32.gmra.mxu0 %v2195
        %v2693 = vpop.f32.mrf.mxu0
        %v2694 = vadd.f32 %v2579, %v2693
        %v2695 = vpop.f32.mrf.mxu0
        %2696 = vmatprep.mubr.f32.mxu0 %v2206
        %2697 = vmatmul.mubr.f32.gmra.mxu0 %v2196
        %v2698 = vpop.f32.mrf.mxu0
        %v2699 = vadd.f32 %v2584, %v2698
        %v2700 = vpop.f32.mrf.mxu0
        %2701 = vmatprep.mubr.f32.mxu0 %v2207
        %2702 = vmatmul.mubr.f32.gmra.mxu0 %v2197
        %v2703 = vpop.f32.mrf.mxu0
        %v2704 = vadd.f32 %v2589, %v2703
        %v2705 = vpop.f32.mrf.mxu0
        %2706 = vmatprep.mubr.f32.mxu0 %v2208
        %2707 = vmatmul.mubr.f32.gmra.mxu0 %v2198
        %v2708 = vpop.f32.mrf.mxu0
        %v2709 = vadd.f32 %v2594, %v2708
        %v2710 = vpop.f32.mrf.mxu0
        %2711 = vmatprep.mubr.f32.mxu0 %v2209
        %2712 = vmatmul.mubr.f32.gmra.mxu0 %v2199
        %v2713 = vpop.f32.mrf.mxu0
        %v2714 = vadd.f32 %v2599, %v2713
        %v2715 = vpop.f32.mrf.mxu0
        %2716 = vmatprep.mubr.f32.mxu0 %v2210
        %2717 = vmatmul.mubr.f32.gmra.mxu0 %v2200
        %v2718 = vpop.f32.mrf.mxu0
        %v2719 = vadd.f32 %v2604, %v2718
        %v2720 = vpop.f32.mrf.mxu0
        %2721 = vmatprep.mubr.f32.mxu0 %v2211
        %2722 = vmatmul.mubr.f32.gmra.mxu0 %v2201
        %v2723 = vpop.f32.mrf.mxu0
        %v2724 = vadd.f32 %v2609, %v2723
        %v2725 = vpop.f32.mrf.mxu0
        %2726 = vdwg.mxu0
        %2727 = vmatprep.subr.mxu0 0.0
        %2728 = vmatpush1.msra.mxu0 %v2345
        %2729 = vmatprep.subr.mxu0 0.0
        %2730 = vmatpush1.msra.mxu0 %v2344
        %2731 = vmatprep.subr.mxu0 0.0
        %2732 = vmatpush1.msra.mxu0 %v2343
        %2733 = vmatprep.subr.mxu0 0.0
        %2734 = vmatpush1.msra.mxu0 %v2342
        %2735 = vmatprep.subr.mxu0 0.0
        %2736 = vmatpush1.msra.mxu0 %v2341
        %2737 = vmatprep.subr.mxu0 0.0
        %2738 = vmatpush1.msra.mxu0 %v2340
        %2739 = vmatprep.subr.mxu0 0.0
        %2740 = vmatpush1.msra.mxu0 %v2339
        %2741 = vmatprep.subr.mxu0 0.0
        %2742 = vmatpush1.msra.mxu0 %v2338
        %2743 = vmatprep.subr.mxu0 0.0
        %2744 = vmatpush1.msra.mxu0 %v2337
        %2745 = vmatprep.subr.mxu0 0.0
        %2746 = vmatpush1.msra.mxu0 %v2336
        %2747 = vmatprep.subr.mxu0 0.0
        %2748 = vmatpush1.msra.mxu0 %v2335
        %2749 = vmatprep.subr.mxu0 0.0
        %2750 = vmatpush1.msra.mxu0 %v2334
        %2751 = vmatprep.subr.mxu0 0.0
        %2752 = vmatpush1.msra.mxu0 %v2333
        %2753 = vmatprep.subr.mxu0 0.0
        %2754 = vmatpush1.msra.mxu0 %v2332
        %2755 = vmatprep.subr.mxu0 0.0
        %2756 = vmatpush1.msra.mxu0 %v2331
        %2757 = vmatprep.subr.mxu0 0.0
        %2758 = vmatpush1.msra.mxu0 %v2330
        %2759 = vmatprep.subr.mxu0 0.0
        %2760 = vmatpush2.msra.mxu0 %v2361
        %2761 = vmatprep.subr.mxu0 0.0
        %2762 = vmatpush2.msra.mxu0 %v2360
        %2763 = vmatprep.subr.mxu0 0.0
        %2764 = vmatpush2.msra.mxu0 %v2359
        %2765 = vmatprep.subr.mxu0 0.0
        %2766 = vmatpush2.msra.mxu0 %v2358
        %2767 = vmatprep.subr.mxu0 0.0
        %2768 = vmatpush2.msra.mxu0 %v2357
        %2769 = vmatprep.subr.mxu0 0.0
        %2770 = vmatpush2.msra.mxu0 %v2356
        %2771 = vmatprep.subr.mxu0 0.0
        %2772 = vmatpush2.msra.mxu0 %v2355
        %2773 = vmatprep.subr.mxu0 0.0
        %2774 = vmatpush2.msra.mxu0 %v2354
        %2775 = vmatprep.subr.mxu0 0.0
        %2776 = vmatpush2.msra.mxu0 %v2353
        %2777 = vmatprep.subr.mxu0 0.0
        %2778 = vmatpush2.msra.mxu0 %v2352
        %2779 = vmatprep.subr.mxu0 0.0
        %2780 = vmatpush2.msra.mxu0 %v2351
        %2781 = vmatprep.subr.mxu0 0.0
        %2782 = vmatpush2.msra.mxu0 %v2350
        %2783 = vmatprep.subr.mxu0 0.0
        %2784 = vmatpush2.msra.mxu0 %v2349
        %2785 = vmatprep.subr.mxu0 0.0
        %2786 = vmatpush2.msra.mxu0 %v2348
        %2787 = vmatprep.subr.mxu0 0.0
        %2788 = vmatpush2.msra.mxu0 %v2347
        %2789 = vmatprep.subr.mxu0 0.0
        %2790 = vmatpush2.msra.mxu0 %v2346
        %2791 = vmatprep.mubr.f32.mxu0 %v2214
        %2792 = vmatmul.mubr.f32.gmra.mxu0 %v2203
        %v2793 = vpop.f32.mrf.mxu0
        %v2794 = vadd.f32 %v2679, %v2793
        %v2795 = vpop.f32.mrf.mxu0
        %2796 = vmatprep.mubr.f32.mxu0 %v2215
        %2797 = vmatmul.mubr.f32.gmra.mxu0 %v2204
        %v2798 = vpop.f32.mrf.mxu0
        %v2799 = vadd.f32 %v2684, %v2798
        %v2800 = vpop.f32.mrf.mxu0
        %2801 = vmatprep.mubr.f32.mxu0 %v2216
        %2802 = vmatmul.mubr.f32.gmra.mxu0 %v2205
        %v2803 = vpop.f32.mrf.mxu0
        %v2804 = vadd.f32 %v2689, %v2803
        %v2805 = vpop.f32.mrf.mxu0
        %2806 = vmatprep.mubr.f32.mxu0 %v2217
        %2807 = vmatmul.mubr.f32.gmra.mxu0 %v2206
        %v2808 = vpop.f32.mrf.mxu0
        %v2809 = vadd.f32 %v2694, %v2808
        %v2810 = vpop.f32.mrf.mxu0
        %2811 = vmatprep.mubr.f32.mxu0 %v2218
        %2812 = vmatmul.mubr.f32.gmra.mxu0 %v2207
        %v2813 = vpop.f32.mrf.mxu0
        %v2814 = vadd.f32 %v2699, %v2813
        %v2815 = vpop.f32.mrf.mxu0
        %2816 = vmatprep.mubr.f32.mxu0 %v2219
        %2817 = vmatmul.mubr.f32.gmra.mxu0 %v2208
        %v2818 = vpop.f32.mrf.mxu0
        %v2819 = vadd.f32 %v2704, %v2818
        %v2820 = vpop.f32.mrf.mxu0
        %2821 = vmatprep.mubr.f32.mxu0 %v2220
        %2822 = vmatmul.mubr.f32.gmra.mxu0 %v2209
        %v2823 = vpop.f32.mrf.mxu0
        %v2824 = vadd.f32 %v2709, %v2823
        %v2825 = vpop.f32.mrf.mxu0
        %2826 = vmatprep.mubr.f32.mxu0 %v2221
        %2827 = vmatmul.mubr.f32.gmra.mxu0 %v2210
        %v2828 = vpop.f32.mrf.mxu0
        %v2829 = vadd.f32 %v2714, %v2828
        %v2830 = vpop.f32.mrf.mxu0
        %2831 = vmatprep.mubr.f32.mxu0 %v2222
        %2832 = vmatmul.mubr.f32.gmra.mxu0 %v2212
        %v2833 = vpop.f32.mrf.mxu0
        %v2834 = vadd.f32 %v2719, %v2833
        %v2835 = vpop.f32.mrf.mxu0
        %2836 = vmatprep.mubr.f32.mxu0 %v2223
        %2837 = vmatmul.mubr.f32.gmra.mxu0 %v2213
        %v2838 = vpop.f32.mrf.mxu0
        %v2839 = vadd.f32 %v2724, %v2838
        %v2840 = vpop.f32.mrf.mxu0
        %2841 = vdwg.mxu0
        %2842 = vmatprep.subr.mxu0 0.0
        %2843 = vmatpush1.msra.mxu0 %v2377
        %2844 = vmatprep.subr.mxu0 0.0
        %2845 = vmatpush1.msra.mxu0 %v2376
        %2846 = vmatprep.subr.mxu0 0.0
        %2847 = vmatpush1.msra.mxu0 %v2375
        %2848 = vmatprep.subr.mxu0 0.0
        %2849 = vmatpush1.msra.mxu0 %v2374
        %2850 = vmatprep.subr.mxu0 0.0
        %2851 = vmatpush1.msra.mxu0 %v2373
        %2852 = vmatprep.subr.mxu0 0.0
        %2853 = vmatpush1.msra.mxu0 %v2372
        %2854 = vmatprep.subr.mxu0 0.0
        %2855 = vmatpush1.msra.mxu0 %v2371
        %2856 = vmatprep.subr.mxu0 0.0
        %2857 = vmatpush1.msra.mxu0 %v2370
        %2858 = vmatprep.subr.mxu0 0.0
        %2859 = vmatpush1.msra.mxu0 %v2369
        %2860 = vmatprep.subr.mxu0 0.0
        %2861 = vmatpush1.msra.mxu0 %v2368
        %2862 = vmatprep.subr.mxu0 0.0
        %2863 = vmatpush1.msra.mxu0 %v2367
        %2864 = vmatprep.subr.mxu0 0.0
        %2865 = vmatpush1.msra.mxu0 %v2366
        %2866 = vmatprep.subr.mxu0 0.0
        %2867 = vmatpush1.msra.mxu0 %v2365
        %2868 = vmatprep.subr.mxu0 0.0
        %2869 = vmatpush1.msra.mxu0 %v2364
        %2870 = vmatprep.subr.mxu0 0.0
        %2871 = vmatpush1.msra.mxu0 %v2363
        %2872 = vmatprep.subr.mxu0 0.0
        %2873 = vmatpush1.msra.mxu0 %v2362
        %2874 = vmatprep.subr.mxu0 0.0
        %2875 = vmatpush2.msra.mxu0 0.0
        %2876 = vmatprep.subr.mxu0 0.0
        %2877 = vmatpush2.msra.mxu0 0.0
        %2878 = vmatprep.subr.mxu0 0.0
        %2879 = vmatpush2.msra.mxu0 0.0
        %2880 = vmatprep.subr.mxu0 0.0
        %2881 = vmatpush2.msra.mxu0 0.0
        %2882 = vmatprep.subr.mxu0 0.0
        %2883 = vmatpush2.msra.mxu0 0.0
        %2884 = vmatprep.subr.mxu0 0.0
        %2885 = vmatpush2.msra.mxu0 0.0
        %2886 = vmatprep.subr.mxu0 0.0
        %2887 = vmatpush2.msra.mxu0 0.0
        %2888 = vmatprep.subr.mxu0 0.0
        %2889 = vmatpush2.msra.mxu0 0.0
        %2890 = vmatprep.subr.mxu0 0.0
        %2891 = vmatpush2.msra.mxu0 0.0
        %2892 = vmatprep.subr.mxu0 0.0
        %2893 = vmatpush2.msra.mxu0 0.0
        %2894 = vmatprep.subr.mxu0 0.0
        %2895 = vmatpush2.msra.mxu0 0.0
        %2896 = vmatprep.subr.mxu0 0.0
        %2897 = vmatpush2.msra.mxu0 0.0
        %2898 = vmatprep.subr.mxu0 0.0
        %2899 = vmatpush2.msra.mxu0 0.0
        %2900 = vmatprep.subr.mxu0 0.0
        %2901 = vmatpush2.msra.mxu0 0.0
        %2902 = vmatprep.subr.mxu0 0.0
        %2903 = vmatpush2.msra.mxu0 0.0
        %2904 = vmatprep.subr.mxu0 0.0
        %2905 = vmatpush2.msra.mxu0 0.0
        %2906 = vmatprep.mubr.f32.mxu0 0.0
        %2907 = vmatmul.mubr.f32.gmra.mxu0 %v2224
        %v2908 = vpop.f32.mrf.mxu0
        %v2909 = vadd.f32 %v2794, %v2908
        %v2910 = vpop.f32.mrf.mxu0
        %2911 = vmatprep.mubr.f32.mxu0 0.0
        %2912 = vmatmul.mubr.f32.gmra.mxu0 %v2225
        %v2913 = vpop.f32.mrf.mxu0
        %v2914 = vadd.f32 %v2799, %v2913
        %v2915 = vpop.f32.mrf.mxu0
        %2916 = vmatprep.mubr.f32.mxu0 0.0
        %2917 = vmatmul.mubr.f32.gmra.mxu0 %v2226
        %v2918 = vpop.f32.mrf.mxu0
        %v2919 = vadd.f32 %v2804, %v2918
        %v2920 = vpop.f32.mrf.mxu0
        %2921 = vmatprep.mubr.f32.mxu0 0.0
        %2922 = vmatmul.mubr.f32.gmra.mxu0 %v2227
        %v2923 = vpop.f32.mrf.mxu0
        %v2924 = vadd.f32 %v2809, %v2923
        %v2925 = vpop.f32.mrf.mxu0
        %2926 = vmatprep.mubr.f32.mxu0 0.0
        %2927 = vmatmul.mubr.f32.gmra.mxu0 %v2228
        %v2928 = vpop.f32.mrf.mxu0
        %v2929 = vadd.f32 %v2814, %v2928
        %v2930 = vpop.f32.mrf.mxu0
        %2931 = vmatprep.mubr.f32.mxu0 0.0
        %2932 = vmatmul.mubr.f32.gmra.mxu0 %v2229
        %v2933 = vpop.f32.mrf.mxu0
        %v2934 = vadd.f32 %v2819, %v2933
        %v2935 = vpop.f32.mrf.mxu0
        %2936 = vmatprep.mubr.f32.mxu0 0.0
        %2937 = vmatmul.mubr.f32.gmra.mxu0 %v2230
        %v2938 = vpop.f32.mrf.mxu0
        %v2939 = vadd.f32 %v2824, %v2938
        %v2940 = vpop.f32.mrf.mxu0
        %2941 = vmatprep.mubr.f32.mxu0 0.0
        %2942 = vmatmul.mubr.f32.gmra.mxu0 %v2231
        %v2943 = vpop.f32.mrf.mxu0
        %v2944 = vadd.f32 %v2829, %v2943
        %v2945 = vpop.f32.mrf.mxu0
        %2946 = vmatprep.mubr.f32.mxu0 0.0
        %2947 = vmatmul.mubr.f32.gmra.mxu0 %v2232
        %v2948 = vpop.f32.mrf.mxu0
        %v2949 = vadd.f32 %v2834, %v2948
        %v2950 = vpop.f32.mrf.mxu0
        %2951 = vmatprep.mubr.f32.mxu0 0.0
        %2952 = vmatmul.mubr.f32.gmra.mxu0 %v2233
        %v2953 = vpop.f32.mrf.mxu0
        %v2954 = vadd.f32 %v2839, %v2953
        %v2955 = vpop.f32.mrf.mxu0
        %2956 = vdwg.mxu0
        %v2957 = vmax.f32 %v2909, 0.0
        %v2958 = vmax.f32 %v2914, 0.0
        %v2959 = vmax.f32 %v2919, 0.0
        %v2960 = vmax.f32 %v2924, 0.0
        %v2961 = vmax.f32 %v2929, 0.0
        %v2962 = vmax.f32 %v2934, 0.0
        %v2963 = vmax.f32 %v2939, 0.0
        %v2964 = vmax.f32 %v2944, 0.0
        %v2965 = vmax.f32 %v2949, 0.0
        %v2966 = vmax.f32 %v2954, 0.0
        %v2967 = vld [vmem:[#allocation3 + $0xb] sm:$0xff]
        %v2968 = vld [vmem:[#allocation3 + $0x13] sm:$0xff]
        %v2969 = vld [vmem:[#allocation3 + $0x1b] sm:$0xff]
        %v2970 = vld [vmem:[#allocation3 + $0x23] sm:$0xff]
        %v2971 = vld [vmem:[#allocation3 + $0x2b] sm:$0xff]
        %v2972 = vld [vmem:[#allocation3 + $0x33] sm:$0xff]
        %v2973 = vld [vmem:[#allocation3 + $0x3b] sm:$0xff]
        %v2974 = vld [vmem:[#allocation3 + $0x43] sm:$0xff]
        %v2975 = vld [vmem:[#allocation3 + $0x4b] sm:$0xff]
        %v2976 = vld [vmem:[#allocation3 + $0x53] sm:$0x3f]
        %v2977 = vlaneseq
        %v2978 = vshrl.u32 %v2977, 7
        %v2979 = vsub.s32 0, %v2978
        %v2980 = vrot.slane %v1976, %v2979
        %2981 = vmatprep.subr.mxu0 0.0
        %2982 = vmatpush1.msra.mxu0 %v1957
        %2983 = vmatprep.subr.mxu0 0.0
        %2984 = vmatpush1.msra.mxu0 %v1956
        %2985 = vmatprep.subr.mxu0 0.0
        %2986 = vmatpush1.msra.mxu0 %v1955
        %2987 = vmatprep.subr.mxu0 0.0
        %2988 = vmatpush1.msra.mxu0 %v1954
        %2989 = vmatprep.subr.mxu0 0.0
        %2990 = vmatpush1.msra.mxu0 %v1953
        %2991 = vmatprep.subr.mxu0 0.0
        %2992 = vmatpush1.msra.mxu0 %v1952
        %2993 = vmatprep.subr.mxu0 0.0
        %2994 = vmatpush1.msra.mxu0 %v1951
        %2995 = vmatprep.subr.mxu0 0.0
        %2996 = vmatpush1.msra.mxu0 %v1950
        %2997 = vmatprep.subr.mxu0 0.0
        %2998 = vmatpush1.msra.mxu0 %v1949
        %2999 = vmatprep.subr.mxu0 0.0
        %3000 = vmatpush1.msra.mxu0 %v1948
        %3001 = vmatprep.subr.mxu0 0.0
        %3002 = vmatpush1.msra.mxu0 %v1947
        %3003 = vmatprep.subr.mxu0 0.0
        %3004 = vmatpush1.msra.mxu0 %v1946
        %3005 = vmatprep.subr.mxu0 0.0
        %3006 = vmatpush1.msra.mxu0 %v1945
        %3007 = vmatprep.subr.mxu0 0.0
        %3008 = vmatpush1.msra.mxu0 %v1944
        %3009 = vmatprep.subr.mxu0 0.0
        %3010 = vmatpush1.msra.mxu0 %v1943
        %3011 = vmatprep.subr.mxu0 0.0
        %3012 = vmatpush1.msra.mxu0 %v1942
        %3013 = vmatprep.subr.mxu0 0.0
        %3014 = vmatpush2.msra.mxu0 0.0
        %3015 = vmatprep.subr.mxu0 0.0
        %3016 = vmatpush2.msra.mxu0 0.0
        %3017 = vmatprep.subr.mxu0 0.0
        %3018 = vmatpush2.msra.mxu0 0.0
        %3019 = vmatprep.subr.mxu0 0.0
        %3020 = vmatpush2.msra.mxu0 0.0
        %3021 = vmatprep.subr.mxu0 0.0
        %3022 = vmatpush2.msra.mxu0 0.0
        %3023 = vmatprep.subr.mxu0 0.0
        %3024 = vmatpush2.msra.mxu0 0.0
        %3025 = vmatprep.subr.mxu0 0.0
        %3026 = vmatpush2.msra.mxu0 0.0
        %3027 = vmatprep.subr.mxu0 0.0
        %3028 = vmatpush2.msra.mxu0 0.0
        %3029 = vmatprep.subr.mxu0 0.0
        %3030 = vmatpush2.msra.mxu0 0.0
        %3031 = vmatprep.subr.mxu0 0.0
        %3032 = vmatpush2.msra.mxu0 0.0
        %3033 = vmatprep.subr.mxu0 0.0
        %3034 = vmatpush2.msra.mxu0 0.0
        %3035 = vmatprep.subr.mxu0 0.0
        %3036 = vmatpush2.msra.mxu0 0.0
        %3037 = vmatprep.subr.mxu0 0.0
        %3038 = vmatpush2.msra.mxu0 0.0
        %3039 = vmatprep.subr.mxu0 0.0
        %3040 = vmatpush2.msra.mxu0 0.0
        %3041 = vmatprep.subr.mxu0 0.0
        %3042 = vmatpush2.msra.mxu0 0.0
        %3043 = vmatprep.subr.mxu0 0.0
        %3044 = vmatpush2.msra.mxu0 0.0
        %3045 = vmatprep.mubr.f32.mxu0 0.0
        %3046 = vmatmul.mubr.f32.gmra.mxu0 %v2957
        %v3047 = vpop.f32.mrf.mxu0
        %v3048 = vadd.f32 %v2980, %v3047
        %v3049 = vpop.f32.mrf.mxu0
        %3050 = vmatprep.mubr.f32.mxu0 0.0
        %3051 = vmatmul.mubr.f32.gmra.mxu0 %v2958
        %v3052 = vpop.f32.mrf.mxu0
        %v3053 = vadd.f32 %v2980, %v3052
        %v3054 = vpop.f32.mrf.mxu0
        %3055 = vmatprep.mubr.f32.mxu0 0.0
        %3056 = vmatmul.mubr.f32.gmra.mxu0 %v2959
        %v3057 = vpop.f32.mrf.mxu0
        %v3058 = vadd.f32 %v2980, %v3057
        %v3059 = vpop.f32.mrf.mxu0
        %3060 = vmatprep.mubr.f32.mxu0 0.0
        %3061 = vmatmul.mubr.f32.gmra.mxu0 %v2960
        %v3062 = vpop.f32.mrf.mxu0
        %v3063 = vadd.f32 %v2980, %v3062
        %v3064 = vpop.f32.mrf.mxu0
        %3065 = vmatprep.mubr.f32.mxu0 0.0
        %3066 = vmatmul.mubr.f32.gmra.mxu0 %v2961
        %v3067 = vpop.f32.mrf.mxu0
        %v3068 = vadd.f32 %v2980, %v3067
        %v3069 = vpop.f32.mrf.mxu0
        %3070 = vmatprep.mubr.f32.mxu0 0.0
        %3071 = vmatmul.mubr.f32.gmra.mxu0 %v2962
        %v3072 = vpop.f32.mrf.mxu0
        %v3073 = vadd.f32 %v2980, %v3072
        %v3074 = vpop.f32.mrf.mxu0
        %3075 = vmatprep.mubr.f32.mxu0 0.0
        %3076 = vmatmul.mubr.f32.gmra.mxu0 %v2963
        %v3077 = vpop.f32.mrf.mxu0
        %v3078 = vadd.f32 %v2980, %v3077
        %v3079 = vpop.f32.mrf.mxu0
        %3080 = vmatprep.mubr.f32.mxu0 0.0
        %3081 = vmatmul.mubr.f32.gmra.mxu0 %v2964
        %v3082 = vpop.f32.mrf.mxu0
        %v3083 = vadd.f32 %v2980, %v3082
        %v3084 = vpop.f32.mrf.mxu0
        %3085 = vmatprep.mubr.f32.mxu0 0.0
        %3086 = vmatmul.mubr.f32.gmra.mxu0 %v2965
        %v3087 = vpop.f32.mrf.mxu0
        %v3088 = vadd.f32 %v2980, %v3087
        %v3089 = vpop.f32.mrf.mxu0
        %3090 = vmatprep.mubr.f32.mxu0 0.0
        %3091 = vmatmul.mubr.f32.gmra.mxu0 %v2966
        %v3092 = vpop.f32.mrf.mxu0
        %v3093 = vadd.f32 %v2980, %v3092
        %v3094 = vpop.f32.mrf.mxu0
        %3095 = vdwg.mxu0
        %3096 = vmatprep.subr.mxu0 0.0
        %3097 = vmatpush1.msra.mxu0 %v1974
        %3098 = vmatprep.subr.mxu0 0.0
        %3099 = vmatpush1.msra.mxu0 %v1973
        %3100 = vmatprep.subr.mxu0 0.0
        %3101 = vmatpush1.msra.mxu0 %v1972
        %3102 = vmatprep.subr.mxu0 0.0
        %3103 = vmatpush1.msra.mxu0 %v1971
        %3104 = vmatprep.subr.mxu0 0.0
        %3105 = vmatpush1.msra.mxu0 %v1970
        %3106 = vmatprep.subr.mxu0 0.0
        %3107 = vmatpush1.msra.mxu0 %v1969
        %3108 = vmatprep.subr.mxu0 0.0
        %3109 = vmatpush1.msra.mxu0 %v1968
        %3110 = vmatprep.subr.mxu0 0.0
        %3111 = vmatpush1.msra.mxu0 %v1967
        %3112 = vmatprep.subr.mxu0 0.0
        %3113 = vmatpush1.msra.mxu0 %v1966
        %3114 = vmatprep.subr.mxu0 0.0
        %3115 = vmatpush1.msra.mxu0 %v1965
        %3116 = vmatprep.subr.mxu0 0.0
        %3117 = vmatpush1.msra.mxu0 %v1964
        %3118 = vmatprep.subr.mxu0 0.0
        %3119 = vmatpush1.msra.mxu0 %v1963
        %3120 = vmatprep.subr.mxu0 0.0
        %3121 = vmatpush1.msra.mxu0 %v1962
        %3122 = vmatprep.subr.mxu0 0.0
        %3123 = vmatpush1.msra.mxu0 %v1961
        %3124 = vmatprep.subr.mxu0 0.0
        %3125 = vmatpush1.msra.mxu0 %v1960
        %3126 = vmatprep.subr.mxu0 0.0
        %3127 = vmatpush1.msra.mxu0 %v1959
        %3128 = vmatprep.subr.mxu0 0.0
        %3129 = vmatpush2.msra.mxu0 0.0
        %3130 = vmatprep.subr.mxu0 0.0
        %3131 = vmatpush2.msra.mxu0 0.0
        %3132 = vmatprep.subr.mxu0 0.0
        %3133 = vmatpush2.msra.mxu0 0.0
        %3134 = vmatprep.subr.mxu0 0.0
        %3135 = vmatpush2.msra.mxu0 0.0
        %3136 = vmatprep.subr.mxu0 0.0
        %3137 = vmatpush2.msra.mxu0 0.0
        %3138 = vmatprep.subr.mxu0 0.0
        %3139 = vmatpush2.msra.mxu0 0.0
        %3140 = vmatprep.subr.mxu0 0.0
        %3141 = vmatpush2.msra.mxu0 0.0
        %3142 = vmatprep.subr.mxu0 0.0
        %3143 = vmatpush2.msra.mxu0 0.0
        %3144 = vmatprep.subr.mxu0 0.0
        %3145 = vmatpush2.msra.mxu0 0.0
        %3146 = vmatprep.subr.mxu0 0.0
        %3147 = vmatpush2.msra.mxu0 0.0
        %3148 = vmatprep.subr.mxu0 0.0
        %3149 = vmatpush2.msra.mxu0 0.0
        %3150 = vmatprep.subr.mxu0 0.0
        %3151 = vmatpush2.msra.mxu0 0.0
        %3152 = vmatprep.subr.mxu0 0.0
        %3153 = vmatpush2.msra.mxu0 0.0
        %3154 = vmatprep.subr.mxu0 0.0
        %3155 = vmatpush2.msra.mxu0 0.0
        %3156 = vmatprep.subr.mxu0 0.0
        %3157 = vmatpush2.msra.mxu0 0.0
        %3158 = vmatprep.subr.mxu0 0.0
        %3159 = vmatpush2.msra.mxu0 0.0
        %3160 = vmatprep.mubr.f32.mxu0 0.0
        %3161 = vmatmul.mubr.f32.gmra.mxu0 %v2967
        %v3162 = vpop.f32.mrf.mxu0
        %v3163 = vadd.f32 0.0, %v3162
        %v3164 = vpop.f32.mrf.mxu0
        %3165 = vmatprep.mubr.f32.mxu0 0.0
        %3166 = vmatmul.mubr.f32.gmra.mxu0 %v2968
        %v3167 = vpop.f32.mrf.mxu0
        %v3168 = vadd.f32 0.0, %v3167
        %v3169 = vpop.f32.mrf.mxu0
        %3170 = vmatprep.mubr.f32.mxu0 0.0
        %3171 = vmatmul.mubr.f32.gmra.mxu0 %v2969
        %v3172 = vpop.f32.mrf.mxu0
        %v3173 = vadd.f32 0.0, %v3172
        %v3174 = vpop.f32.mrf.mxu0
        %3175 = vmatprep.mubr.f32.mxu0 0.0
        %3176 = vmatmul.mubr.f32.gmra.mxu0 %v2970
        %v3177 = vpop.f32.mrf.mxu0
        %v3178 = vadd.f32 0.0, %v3177
        %v3179 = vpop.f32.mrf.mxu0
        %3180 = vmatprep.mubr.f32.mxu0 0.0
        %3181 = vmatmul.mubr.f32.gmra.mxu0 %v2971
        %v3182 = vpop.f32.mrf.mxu0
        %v3183 = vadd.f32 0.0, %v3182
        %v3184 = vpop.f32.mrf.mxu0
        %3185 = vmatprep.mubr.f32.mxu0 0.0
        %3186 = vmatmul.mubr.f32.gmra.mxu0 %v2972
        %v3187 = vpop.f32.mrf.mxu0
        %v3188 = vadd.f32 0.0, %v3187
        %v3189 = vpop.f32.mrf.mxu0
        %3190 = vmatprep.mubr.f32.mxu0 0.0
        %3191 = vmatmul.mubr.f32.gmra.mxu0 %v2973
        %v3192 = vpop.f32.mrf.mxu0
        %v3193 = vadd.f32 0.0, %v3192
        %v3194 = vpop.f32.mrf.mxu0
        %3195 = vmatprep.mubr.f32.mxu0 0.0
        %3196 = vmatmul.mubr.f32.gmra.mxu0 %v2974
        %v3197 = vpop.f32.mrf.mxu0
        %v3198 = vadd.f32 0.0, %v3197
        %v3199 = vpop.f32.mrf.mxu0
        %3200 = vmatprep.mubr.f32.mxu0 0.0
        %3201 = vmatmul.mubr.f32.gmra.mxu0 %v2975
        %v3202 = vpop.f32.mrf.mxu0
        %v3203 = vadd.f32 0.0, %v3202
        %v3204 = vpop.f32.mrf.mxu0
        %3205 = vmatprep.mubr.f32.mxu0 0.0
        %3206 = vmatmul.mubr.f32.gmra.mxu0 %v2976
        %v3207 = vpop.f32.mrf.mxu0
        %v3208 = vadd.f32 0.0, %v3207
        %v3209 = vpop.f32.mrf.mxu0
        %3210 = vdwg.mxu0
        %v3211 = vadd.f32 %v3048, %v3163
        %v3212 = vadd.f32 %v3053, %v3168
        %v3213 = vadd.f32 %v3058, %v3173
        %v3214 = vadd.f32 %v3063, %v3178
        %v3215 = vadd.f32 %v3068, %v3183
        %v3216 = vadd.f32 %v3073, %v3188
        %v3217 = vadd.f32 %v3078, %v3193
        %v3218 = vadd.f32 %v3083, %v3198
        %v3219 = vadd.f32 %v3088, %v3203
        %v3220 = vadd.f32 %v3093, %v3208
        %v3221 = vlaneseq
        %v3222 = vshrl.u32 %v3221, 7
        %v3223 = vsub.s32 0, %v3222
        %v3224 = vrot.slane %v1977, %v3223
        %v3225 = vadd.f32 %v3211, %v3224
        %v3226 = vadd.f32 %v3212, %v3224
        %v3227 = vadd.f32 %v3213, %v3224
        %v3228 = vadd.f32 %v3214, %v3224
        %v3229 = vadd.f32 %v3215, %v3224
        %v3230 = vadd.f32 %v3216, %v3224
        %v3231 = vadd.f32 %v3217, %v3224
        %v3232 = vadd.f32 %v3218, %v3224
        %v3233 = vadd.f32 %v3219, %v3224
        %v3234 = vadd.f32 %v3220, %v3224
        %v3235 = vmax.f32 %v3225, 0.0
        %v3236 = vmax.f32 %v3226, 0.0
        %v3237 = vmax.f32 %v3227, 0.0
        %v3238 = vmax.f32 %v3228, 0.0
        %v3239 = vmax.f32 %v3229, 0.0
        %v3240 = vmax.f32 %v3230, 0.0
        %v3241 = vmax.f32 %v3231, 0.0
        %v3242 = vmax.f32 %v3232, 0.0
        %v3243 = vmax.f32 %v3233, 0.0
        %v3244 = vmax.f32 %v3234, 0.0
        %v3245 = vld [vmem:[%s3] sm:$0xff]
        %v3246 = vld [vmem:[%s3 + $0x8] sm:$0xff]
        %v3247 = vld [vmem:[%s3 + $0x10] sm:$0xff]
        %v3248 = vld [vmem:[%s3 + $0x18] sm:$0xff]
        %v3249 = vld [vmem:[%s3 + $0x20] sm:$0xff]
        %v3250 = vld [vmem:[%s3 + $0x28] sm:$0xff]
        %v3251 = vld [vmem:[%s3 + $0x30] sm:$0xff]
        %v3252 = vld [vmem:[%s3 + $0x38] sm:$0xff]
        %v3253 = vld [vmem:[%s3 + $0x40] sm:$0xff]
        %v3254 = vld [vmem:[%s3 + $0x48] sm:$0xff]
        %v3255 = vld [vmem:[%s3 + $0x50] sm:$0xff]
        %v3256 = vld [vmem:[%s3 + $0x58] sm:$0xff]
        %v3257 = vld [vmem:[%s3 + $0x60] sm:$0xf]
        %vm3258 = vcmask 637952
        %v3260 = vsel %vm3258, %v3245, 0
        %v3263 = vsel %vm3258, %v3246, 0
        %v3266 = vsel %vm3258, %v3247, 0
        %v3269 = vsel %vm3258, %v3248, 0
        %v3272 = vsel %vm3258, %v3249, 0
        %v3275 = vsel %vm3258, %v3250, 0
        %v3278 = vsel %vm3258, %v3251, 0
        %v3281 = vsel %vm3258, %v3252, 0
        %v3284 = vsel %vm3258, %v3253, 0
        %v3287 = vsel %vm3258, %v3254, 0
        %v3290 = vsel %vm3258, %v3255, 0
        %v3293 = vsel %vm3258, %v3256, 0
        %v3296 = vsel %vm3258, %v3257, 0
        %v3299 = vsel %vm1648, %v3244, 0
        %3301 = vmatprep.subr.mxu0 0.0
        %3302 = vmatpush1.msra.mxu0 0.0
        %3303 = vmatprep.subr.mxu0 0.0
        %3304 = vmatpush1.msra.mxu0 0.0
        %3305 = vmatprep.subr.mxu0 0.0
        %3306 = vmatpush1.msra.mxu0 0.0
        %3307 = vmatprep.subr.mxu0 0.0
        %3308 = vmatpush1.msra.mxu0 0.0
        %3309 = vmatprep.subr.mxu0 0.0
        %3310 = vmatpush1.msra.mxu0 0.0
        %3311 = vmatprep.subr.mxu0 0.0
        %3312 = vmatpush1.msra.mxu0 0.0
        %3313 = vmatprep.subr.mxu0 0.0
        %3314 = vmatpush1.msra.mxu0 %v3299
        %3315 = vmatprep.subr.mxu0 0.0
        %3316 = vmatpush1.msra.mxu0 %v3243
        %3317 = vmatprep.subr.mxu0 0.0
        %3318 = vmatpush1.msra.mxu0 %v3242
        %3319 = vmatprep.subr.mxu0 0.0
        %3320 = vmatpush1.msra.mxu0 %v3241
        %3321 = vmatprep.subr.mxu0 0.0
        %3322 = vmatpush1.msra.mxu0 %v3240
        %3323 = vmatprep.subr.mxu0 0.0
        %3324 = vmatpush1.msra.mxu0 %v3239
        %3325 = vmatprep.subr.mxu0 0.0
        %3326 = vmatpush1.msra.mxu0 %v3238
        %3327 = vmatprep.subr.mxu0 0.0
        %3328 = vmatpush1.msra.mxu0 %v3237
        %3329 = vmatprep.subr.mxu0 0.0
        %3330 = vmatpush1.msra.mxu0 %v3236
        %3331 = vmatprep.subr.mxu0 0.0
        %3332 = vmatpush1.msra.mxu0 %v3235
        %3333 = vmatprep.subr.mxu0 0.0
        %3334 = vmatpush2.msra.mxu0 0.0
        %3335 = vmatprep.subr.mxu0 0.0
        %3336 = vmatpush2.msra.mxu0 0.0
        %3337 = vmatprep.subr.mxu0 0.0
        %3338 = vmatpush2.msra.mxu0 0.0
        %3339 = vmatprep.subr.mxu0 0.0
        %3340 = vmatpush2.msra.mxu0 0.0
        %3341 = vmatprep.subr.mxu0 0.0
        %3342 = vmatpush2.msra.mxu0 0.0
        %3343 = vmatprep.subr.mxu0 0.0
        %3344 = vmatpush2.msra.mxu0 0.0
        %3345 = vmatprep.subr.mxu0 0.0
        %3346 = vmatpush2.msra.mxu0 0.0
        %3347 = vmatprep.subr.mxu0 0.0
        %3348 = vmatpush2.msra.mxu0 0.0
        %3349 = vmatprep.subr.mxu0 0.0
        %3350 = vmatpush2.msra.mxu0 0.0
        %3351 = vmatprep.subr.mxu0 0.0
        %3352 = vmatpush2.msra.mxu0 0.0
        %3353 = vmatprep.subr.mxu0 0.0
        %3354 = vmatpush2.msra.mxu0 0.0
        %3355 = vmatprep.subr.mxu0 0.0
        %3356 = vmatpush2.msra.mxu0 0.0
        %3357 = vmatprep.subr.mxu0 0.0
        %3358 = vmatpush2.msra.mxu0 0.0
        %3359 = vmatprep.subr.mxu0 0.0
        %3360 = vmatpush2.msra.mxu0 0.0
        %3361 = vmatprep.subr.mxu0 0.0
        %3362 = vmatpush2.msra.mxu0 0.0
        %3363 = vmatprep.subr.mxu0 0.0
        %3364 = vmatpush2.msra.mxu0 0.0
        %3365 = vmatprep.mubr.f32.mxu0 0.0
        %3366 = vmatmul.mubr.f32.gmra.mxu0 %v3260
        %v3367 = vpop.f32.mrf.mxu0
        %v3368 = vadd.f32 0.0, %v3367
        %v3369 = vpop.f32.mrf.mxu0
        %3370 = vmatprep.mubr.f32.mxu0 0.0
        %3371 = vmatmul.mubr.f32.gmra.mxu0 %v3263
        %v3372 = vpop.f32.mrf.mxu0
        %v3373 = vadd.f32 0.0, %v3372
        %v3374 = vpop.f32.mrf.mxu0
        %3375 = vmatprep.mubr.f32.mxu0 0.0
        %3376 = vmatmul.mubr.f32.gmra.mxu0 %v3266
        %v3377 = vpop.f32.mrf.mxu0
        %v3378 = vadd.f32 0.0, %v3377
        %v3379 = vpop.f32.mrf.mxu0
        %3380 = vmatprep.mubr.f32.mxu0 0.0
        %3381 = vmatmul.mubr.f32.gmra.mxu0 %v3269
        %v3382 = vpop.f32.mrf.mxu0
        %v3383 = vadd.f32 0.0, %v3382
        %v3384 = vpop.f32.mrf.mxu0
        %3385 = vmatprep.mubr.f32.mxu0 0.0
        %3386 = vmatmul.mubr.f32.gmra.mxu0 %v3272
        %v3387 = vpop.f32.mrf.mxu0
        %v3388 = vadd.f32 0.0, %v3387
        %v3389 = vpop.f32.mrf.mxu0
        %3390 = vmatprep.mubr.f32.mxu0 0.0
        %3391 = vmatmul.mubr.f32.gmra.mxu0 %v3275
        %v3392 = vpop.f32.mrf.mxu0
        %v3393 = vadd.f32 0.0, %v3392
        %v3394 = vpop.f32.mrf.mxu0
        %3395 = vmatprep.mubr.f32.mxu0 0.0
        %3396 = vmatmul.mubr.f32.gmra.mxu0 %v3278
        %v3397 = vpop.f32.mrf.mxu0
        %v3398 = vadd.f32 0.0, %v3397
        %v3399 = vpop.f32.mrf.mxu0
        %3400 = vmatprep.mubr.f32.mxu0 0.0
        %3401 = vmatmul.mubr.f32.gmra.mxu0 %v3281
        %v3402 = vpop.f32.mrf.mxu0
        %v3403 = vadd.f32 0.0, %v3402
        %v3404 = vpop.f32.mrf.mxu0
        %3405 = vmatprep.mubr.f32.mxu0 0.0
        %3406 = vmatmul.mubr.f32.gmra.mxu0 %v3284
        %v3407 = vpop.f32.mrf.mxu0
        %v3408 = vadd.f32 0.0, %v3407
        %v3409 = vpop.f32.mrf.mxu0
        %3410 = vmatprep.mubr.f32.mxu0 0.0
        %3411 = vmatmul.mubr.f32.gmra.mxu0 %v3287
        %v3412 = vpop.f32.mrf.mxu0
        %v3413 = vadd.f32 0.0, %v3412
        %v3414 = vpop.f32.mrf.mxu0
        %3415 = vmatprep.mubr.f32.mxu0 0.0
        %3416 = vmatmul.mubr.f32.gmra.mxu0 %v3290
        %v3417 = vpop.f32.mrf.mxu0
        %v3418 = vadd.f32 0.0, %v3417
        %v3419 = vpop.f32.mrf.mxu0
        %3420 = vmatprep.mubr.f32.mxu0 0.0
        %3421 = vmatmul.mubr.f32.gmra.mxu0 %v3293
        %v3422 = vpop.f32.mrf.mxu0
        %v3423 = vadd.f32 0.0, %v3422
        %v3424 = vpop.f32.mrf.mxu0
        %3425 = vmatprep.mubr.f32.mxu0 0.0
        %3426 = vmatmul.mubr.f32.gmra.mxu0 %v3296
        %v3427 = vpop.f32.mrf.mxu0
        %v3428 = vadd.f32 0.0, %v3427
        %v3429 = vpop.f32.mrf.mxu0
        %3430 = vdwg.mxu0
        %3431 = vst [vmem:[#allocation5] sm:$0xff] %v3368
        %3432 = vst [vmem:[#allocation5 + $0x8] sm:$0xff] %v3373
        %3433 = vst [vmem:[#allocation5 + $0x10] sm:$0xff] %v3378
        %3434 = vst [vmem:[#allocation5 + $0x18] sm:$0xff] %v3383
        %3435 = vst [vmem:[#allocation5 + $0x20] sm:$0xff] %v3388
        %3436 = vst [vmem:[#allocation5 + $0x28] sm:$0xff] %v3393
        %3437 = vst [vmem:[#allocation5 + $0x30] sm:$0xff] %v3398
        %3438 = vst [vmem:[#allocation5 + $0x38] sm:$0xff] %v3403
        %3439 = vst [vmem:[#allocation5 + $0x40] sm:$0xff] %v3408
        %3440 = vst [vmem:[#allocation5 + $0x48] sm:$0xff] %v3413
        %3441 = vst [vmem:[#allocation5 + $0x50] sm:$0xff] %v3418
        %3442 = vst [vmem:[#allocation5 + $0x58] sm:$0xff] %v3423
        %3443 = vst [vmem:[#allocation5 + $0x60] sm:$0xf] %v3428
        %v3444 = vadd.f32 %v3368, %v3373
        %v3445 = vadd.f32 %v3444, %v3378
        %v3446 = vadd.f32 %v3445, %v3383
        %v3447 = vadd.f32 %v3446, %v3388
        %v3448 = vadd.f32 %v3447, %v3393
        %v3449 = vadd.f32 %v3448, %v3398
        %v3450 = vadd.f32 %v3449, %v3403
        %v3451 = vadd.f32 %v3450, %v3408
        %v3452 = vadd.f32 %v3451, %v3413
        %v3453 = vadd.f32 %v3452, %v3418
        %v3454 = vadd.f32 %v3453, %v3423
        %vm3455 = vcmask 1043456
        %v3456 = vsel %vm3455, %v3428, 0.0
        %v3457 = vadd.f32 %v3454, %v3456
        %v3458 = vrot.slane %v3457, 4
        %v3459 = vadd.f32 %v3457, %v3458
        %v3460 = vrot.slane %v3459, 2
        %v3461 = vadd.f32 %v3459, %v3460
        %v3462 = vrot.slane %v3461, 1
        %v3463 = vadd.f32 %v3461, %v3462
        %v3464 = vmul.f32 %v3463, 0.015625
        %v3465 = vld [vmem:[%s10] sm:$0xff]
        %v3466 = vld [vmem:[%s10 + $0x8] sm:$0xff]
        %v3467 = vld [vmem:[%s10 + $0x10] sm:$0xff]
        %v3468 = vld [vmem:[%s10 + $0x18] sm:$0xff]
        %v3469 = vld [vmem:[%s10 + $0x20] sm:$0xff]
        %v3470 = vld [vmem:[%s10 + $0x28] sm:$0xff]
        %v3471 = vld [vmem:[%s10 + $0x30] sm:$0xff]
        %v3472 = vld [vmem:[%s10 + $0x38] sm:$0xff]
        %v3473 = vld [vmem:[%s10 + $0x40] sm:$0xff]
        %v3474 = vld [vmem:[%s10 + $0x48] sm:$0xff]
        %v3475 = vld [vmem:[%s10 + $0x50] sm:$0xff]
        %v3476 = vld [vmem:[%s10 + $0x58] sm:$0xff]
        %v3477 = vld [vmem:[%s10 + $0x60] sm:$0xff]
        %v3478 = vld [vmem:[%s10 + $0x68] sm:$0xff]
        %v3479 = vld [vmem:[%s10 + $0x70] sm:$0xff]
        %v3480 = vld [vmem:[%s10 + $0x78] sm:$0xff]
        %v3481 = vld [vmem:[%s11] sm:$0x1]
        %3482 = vmatprep.subr.mxu0 0.0
        %3483 = vmatpush1.msra.mxu0 %v3480
        %3484 = vmatprep.subr.mxu0 0.0
        %3485 = vmatpush1.msra.mxu0 %v3479
        %3486 = vmatprep.subr.mxu0 0.0
        %3487 = vmatpush1.msra.mxu0 %v3478
        %3488 = vmatprep.subr.mxu0 0.0
        %3489 = vmatpush1.msra.mxu0 %v3477
        %3490 = vmatprep.subr.mxu0 0.0
        %3491 = vmatpush1.msra.mxu0 %v3476
        %3492 = vmatprep.subr.mxu0 0.0
        %3493 = vmatpush1.msra.mxu0 %v3475
        %3494 = vmatprep.subr.mxu0 0.0
        %3495 = vmatpush1.msra.mxu0 %v3474
        %3496 = vmatprep.subr.mxu0 0.0
        %3497 = vmatpush1.msra.mxu0 %v3473
        %3498 = vmatprep.subr.mxu0 0.0
        %3499 = vmatpush1.msra.mxu0 %v3472
        %3500 = vmatprep.subr.mxu0 0.0
        %3501 = vmatpush1.msra.mxu0 %v3471
        %3502 = vmatprep.subr.mxu0 0.0
        %3503 = vmatpush1.msra.mxu0 %v3470
        %3504 = vmatprep.subr.mxu0 0.0
        %3505 = vmatpush1.msra.mxu0 %v3469
        %3506 = vmatprep.subr.mxu0 0.0
        %3507 = vmatpush1.msra.mxu0 %v3468
        %3508 = vmatprep.subr.mxu0 0.0
        %3509 = vmatpush1.msra.mxu0 %v3467
        %3510 = vmatprep.subr.mxu0 0.0
        %3511 = vmatpush1.msra.mxu0 %v3466
        %3512 = vmatprep.subr.mxu0 0.0
        %3513 = vmatpush1.msra.mxu0 %v3465
        %3514 = vmatprep.subr.mxu0 0.0
        %3515 = vmatpush2.msra.mxu0 0.0
        %3516 = vmatprep.subr.mxu0 0.0
        %3517 = vmatpush2.msra.mxu0 0.0
        %3518 = vmatprep.subr.mxu0 0.0
        %3519 = vmatpush2.msra.mxu0 0.0
        %3520 = vmatprep.subr.mxu0 0.0
        %3521 = vmatpush2.msra.mxu0 0.0
        %3522 = vmatprep.subr.mxu0 0.0
        %3523 = vmatpush2.msra.mxu0 0.0
        %3524 = vmatprep.subr.mxu0 0.0
        %3525 = vmatpush2.msra.mxu0 0.0
        %3526 = vmatprep.subr.mxu0 0.0
        %3527 = vmatpush2.msra.mxu0 0.0
        %3528 = vmatprep.subr.mxu0 0.0
        %3529 = vmatpush2.msra.mxu0 0.0
        %3530 = vmatprep.subr.mxu0 0.0
        %3531 = vmatpush2.msra.mxu0 0.0
        %3532 = vmatprep.subr.mxu0 0.0
        %3533 = vmatpush2.msra.mxu0 0.0
        %3534 = vmatprep.subr.mxu0 0.0
        %3535 = vmatpush2.msra.mxu0 0.0
        %3536 = vmatprep.subr.mxu0 0.0
        %3537 = vmatpush2.msra.mxu0 0.0
        %3538 = vmatprep.subr.mxu0 0.0
        %3539 = vmatpush2.msra.mxu0 0.0
        %3540 = vmatprep.subr.mxu0 0.0
        %3541 = vmatpush2.msra.mxu0 0.0
        %3542 = vmatprep.subr.mxu0 0.0
        %3543 = vmatpush2.msra.mxu0 0.0
        %3544 = vmatprep.subr.mxu0 0.0
        %3545 = vmatpush2.msra.mxu0 0.0
        %3546 = vmatprep.mubr.f32.mxu0 0.0
        %3547 = vmatmul.mubr.f32.gmra.mxu0 %v3464
        %v3548 = vpop.f32.mrf.mxu0
        %v3549 = vadd.f32 %v3481, %v3548
        %v3550 = vpop.f32.mrf.mxu0
        %3551 = vdwg.mxu0
        %s3552 = scalar_lea.vmem %s6, 384
        %v3553 = vld [vmem:[%s3552] sm:$0xff]
        %v3554 = vld [vmem:[%s3552 + $0x8] sm:$0xff]
        %v3555 = vld [vmem:[%s3552 + $0x10] sm:$0xff]
        %v3556 = vld [vmem:[%s3552 + $0x18] sm:$0xff]
        %v3557 = vld [vmem:[%s3552 + $0x20] sm:$0xff]
        %v3558 = vld [vmem:[%s3552 + $0x28] sm:$0xff]
        %v3559 = vld [vmem:[%s3552 + $0x30] sm:$0xff]
        %v3560 = vld [vmem:[%s3552 + $0x38] sm:$0xff]
        %v3561 = vld [vmem:[%s3552 + $0x40] sm:$0xff]
        %v3562 = vld [vmem:[%s3552 + $0x48] sm:$0xff]
        %v3563 = vld [vmem:[%s3552 + $0x50] sm:$0xff]
        %v3564 = vld [vmem:[%s3552 + $0x58] sm:$0xff]
        %v3565 = vld [vmem:[%s3552 + $0x60] sm:$0xff]
        %v3566 = vld [vmem:[%s3552 + $0x68] sm:$0xff]
        %v3567 = vld [vmem:[%s3552 + $0x70] sm:$0xff]
        %v3568 = vld [vmem:[%s3552 + $0x78] sm:$0xff]
        %s3569 = scalar_lea.vmem %s6, 512
        %v3570 = vld [vmem:[%s3569] sm:$0xff]
        %v3571 = vld [vmem:[%s3569 + $0x8] sm:$0xff]
        %v3572 = vld [vmem:[%s3569 + $0x10] sm:$0xff]
        %v3573 = vld [vmem:[%s3569 + $0x18] sm:$0xff]
        %v3574 = vld [vmem:[%s3569 + $0x20] sm:$0xff]
        %v3575 = vld [vmem:[%s3569 + $0x28] sm:$0xff]
        %v3576 = vld [vmem:[%s3569 + $0x30] sm:$0xff]
        %v3577 = vld [vmem:[%s3569 + $0x38] sm:$0xff]
        %v3578 = vld [vmem:[%s3569 + $0x40] sm:$0xff]
        %v3579 = vld [vmem:[%s3569 + $0x48] sm:$0xff]
        %v3580 = vld [vmem:[%s3569 + $0x50] sm:$0xff]
        %v3581 = vld [vmem:[%s3569 + $0x58] sm:$0xff]
        %v3582 = vld [vmem:[%s3569 + $0x60] sm:$0xff]
        %v3583 = vld [vmem:[%s3569 + $0x68] sm:$0xff]
        %v3584 = vld [vmem:[%s3569 + $0x70] sm:$0xff]
        %v3585 = vld [vmem:[%s3569 + $0x78] sm:$0xff]
        %s3586 = scalar_lea.vmem %s6, 640
        %v3587 = vld [vmem:[%s3586] sm:$0xff]
        %v3588 = vld [vmem:[%s3586 + $0x8] sm:$0xff]
        %v3589 = vld [vmem:[%s3586 + $0x10] sm:$0xff]
        %v3590 = vld [vmem:[%s3586 + $0x18] sm:$0xff]
        %v3591 = vld [vmem:[%s3586 + $0x20] sm:$0xff]
        %v3592 = vld [vmem:[%s3586 + $0x28] sm:$0xff]
        %v3593 = vld [vmem:[%s3586 + $0x30] sm:$0xff]
        %v3594 = vld [vmem:[%s3586 + $0x38] sm:$0xff]
        %v3595 = vld [vmem:[%s3586 + $0x40] sm:$0xff]
        %v3596 = vld [vmem:[%s3586 + $0x48] sm:$0xff]
        %v3597 = vld [vmem:[%s3586 + $0x50] sm:$0xff]
        %v3598 = vld [vmem:[%s3586 + $0x58] sm:$0xff]
        %v3599 = vld [vmem:[%s3586 + $0x60] sm:$0xff]
        %v3600 = vld [vmem:[%s3586 + $0x68] sm:$0xff]
        %v3601 = vld [vmem:[%s3586 + $0x70] sm:$0xff]
        %v3602 = vld [vmem:[%s3586 + $0x78] sm:$0xff]
        %v3603 = vld [vmem:[%s9 + $0x3] sm:$0x1]
        %v3604 = vld [vmem:[%s9 + $0x4] sm:$0x1]
        %v3605 = vld [vmem:[%s9 + $0x5] sm:$0x1]
        %v3606 = vld [vmem:[#allocation5] sm:$0xff]
        %v3607 = vld [vmem:[#allocation5 + $0x8] sm:$0xff]
        %v3608 = vld [vmem:[#allocation5 + $0x10] sm:$0xff]
        %v3609 = vld [vmem:[#allocation5 + $0x18] sm:$0xff]
        %v3610 = vld [vmem:[#allocation5 + $0x20] sm:$0xff]
        %v3611 = vld [vmem:[#allocation5 + $0x28] sm:$0xff]
        %v3612 = vld [vmem:[#allocation5 + $0x30] sm:$0xff]
        %v3613 = vld [vmem:[#allocation5 + $0x38] sm:$0xff]
        %v3614 = vld [vmem:[#allocation5 + $0x40] sm:$0xff]
        %v3615 = vld [vmem:[#allocation5 + $0x48] sm:$0xff]
        %v3616 = vld [vmem:[#allocation5 + $0x50] sm:$0xff]
        %v3617 = vld [vmem:[#allocation5 + $0x58] sm:$0xff]
        %v3618 = vld [vmem:[#allocation5 + $0x60] sm:$0xf]
        %s3619 = scalar_lea.vmem %s8, 104
        %v3620 = vld [vmem:[%s3619] sm:$0xff]
        %v3621 = vld [vmem:[%s3619 + $0x8] sm:$0xff]
        %v3622 = vld [vmem:[%s3619 + $0x10] sm:$0xff]
        %v3623 = vld [vmem:[%s3619 + $0x18] sm:$0xff]
        %v3624 = vld [vmem:[%s3619 + $0x20] sm:$0xff]
        %v3625 = vld [vmem:[%s3619 + $0x28] sm:$0xff]
        %v3626 = vld [vmem:[%s3619 + $0x30] sm:$0xff]
        %v3627 = vld [vmem:[%s3619 + $0x38] sm:$0xff]
        %v3628 = vld [vmem:[%s3619 + $0x40] sm:$0xff]
        %v3629 = vld [vmem:[%s3619 + $0x48] sm:$0xff]
        %v3630 = vld [vmem:[%s3619 + $0x50] sm:$0xff]
        %v3631 = vld [vmem:[%s3619 + $0x58] sm:$0xff]
        %v3632 = vld [vmem:[%s3619 + $0x60] sm:$0xf]
        %3633 = vmatprep.subr.mxu0 0.0
        %3634 = vmatpush1.msra.mxu0 %v3568
        %3635 = vmatprep.subr.mxu0 0.0
        %3636 = vmatpush1.msra.mxu0 %v3567
        %3637 = vmatprep.subr.mxu0 0.0
        %3638 = vmatpush1.msra.mxu0 %v3566
        %3639 = vmatprep.subr.mxu0 0.0
        %3640 = vmatpush1.msra.mxu0 %v3565
        %3641 = vmatprep.subr.mxu0 0.0
        %3642 = vmatpush1.msra.mxu0 %v3564
        %3643 = vmatprep.subr.mxu0 0.0
        %3644 = vmatpush1.msra.mxu0 %v3563
        %3645 = vmatprep.subr.mxu0 0.0
        %3646 = vmatpush1.msra.mxu0 %v3562
        %3647 = vmatprep.subr.mxu0 0.0
        %3648 = vmatpush1.msra.mxu0 %v3561
        %3649 = vmatprep.subr.mxu0 0.0
        %3650 = vmatpush1.msra.mxu0 %v3560
        %3651 = vmatprep.subr.mxu0 0.0
        %3652 = vmatpush1.msra.mxu0 %v3559
        %3653 = vmatprep.subr.mxu0 0.0
        %3654 = vmatpush1.msra.mxu0 %v3558
        %3655 = vmatprep.subr.mxu0 0.0
        %3656 = vmatpush1.msra.mxu0 %v3557
        %3657 = vmatprep.subr.mxu0 0.0
        %3658 = vmatpush1.msra.mxu0 %v3556
        %3659 = vmatprep.subr.mxu0 0.0
        %3660 = vmatpush1.msra.mxu0 %v3555
        %3661 = vmatprep.subr.mxu0 0.0
        %3662 = vmatpush1.msra.mxu0 %v3554
        %3663 = vmatprep.subr.mxu0 0.0
        %3664 = vmatpush1.msra.mxu0 %v3553
        %3665 = vmatprep.subr.mxu0 0.0
        %3666 = vmatpush2.msra.mxu0 0.0
        %3667 = vmatprep.subr.mxu0 0.0
        %3668 = vmatpush2.msra.mxu0 0.0
        %3669 = vmatprep.subr.mxu0 0.0
        %3670 = vmatpush2.msra.mxu0 0.0
        %3671 = vmatprep.subr.mxu0 0.0
        %3672 = vmatpush2.msra.mxu0 0.0
        %3673 = vmatprep.subr.mxu0 0.0
        %3674 = vmatpush2.msra.mxu0 0.0
        %3675 = vmatprep.subr.mxu0 0.0
        %3676 = vmatpush2.msra.mxu0 0.0
        %3677 = vmatprep.subr.mxu0 0.0
        %3678 = vmatpush2.msra.mxu0 0.0
        %3679 = vmatprep.subr.mxu0 0.0
        %3680 = vmatpush2.msra.mxu0 0.0
        %3681 = vmatprep.subr.mxu0 0.0
        %3682 = vmatpush2.msra.mxu0 0.0
        %3683 = vmatprep.subr.mxu0 0.0
        %3684 = vmatpush2.msra.mxu0 0.0
        %3685 = vmatprep.subr.mxu0 0.0
        %3686 = vmatpush2.msra.mxu0 0.0
        %3687 = vmatprep.subr.mxu0 0.0
        %3688 = vmatpush2.msra.mxu0 0.0
        %3689 = vmatprep.subr.mxu0 0.0
        %3690 = vmatpush2.msra.mxu0 0.0
        %3691 = vmatprep.subr.mxu0 0.0
        %3692 = vmatpush2.msra.mxu0 0.0
        %3693 = vmatprep.subr.mxu0 0.0
        %3694 = vmatpush2.msra.mxu0 0.0
        %3695 = vmatprep.subr.mxu0 0.0
        %3696 = vmatpush2.msra.mxu0 0.0
        %3697 = vmatprep.mubr.f32.mxu0 0.0
        %3698 = vmatmul.mubr.f32.gmra.mxu0 %v3606
        %v3699 = vpop.f32.mrf.mxu0
        %v3700 = vadd.f32 %v3620, %v3699
        %v3701 = vpop.f32.mrf.mxu0
        %3702 = vmatprep.mubr.f32.mxu0 0.0
        %3703 = vmatmul.mubr.f32.gmra.mxu0 %v3607
        %v3704 = vpop.f32.mrf.mxu0
        %v3705 = vadd.f32 %v3621, %v3704
        %v3706 = vpop.f32.mrf.mxu0
        %3707 = vmatprep.mubr.f32.mxu0 0.0
        %3708 = vmatmul.mubr.f32.gmra.mxu0 %v3608
        %v3709 = vpop.f32.mrf.mxu0
        %v3710 = vadd.f32 %v3622, %v3709
        %v3711 = vpop.f32.mrf.mxu0
        %3712 = vmatprep.mubr.f32.mxu0 0.0
        %3713 = vmatmul.mubr.f32.gmra.mxu0 %v3609
        %v3714 = vpop.f32.mrf.mxu0
        %v3715 = vadd.f32 %v3623, %v3714
        %v3716 = vpop.f32.mrf.mxu0
        %3717 = vmatprep.mubr.f32.mxu0 0.0
        %3718 = vmatmul.mubr.f32.gmra.mxu0 %v3610
        %v3719 = vpop.f32.mrf.mxu0
        %v3720 = vadd.f32 %v3624, %v3719
        %v3721 = vpop.f32.mrf.mxu0
        %3722 = vmatprep.mubr.f32.mxu0 0.0
        %3723 = vmatmul.mubr.f32.gmra.mxu0 %v3611
        %v3724 = vpop.f32.mrf.mxu0
        %v3725 = vadd.f32 %v3625, %v3724
        %v3726 = vpop.f32.mrf.mxu0
        %3727 = vmatprep.mubr.f32.mxu0 0.0
        %3728 = vmatmul.mubr.f32.gmra.mxu0 %v3612
        %v3729 = vpop.f32.mrf.mxu0
        %v3730 = vadd.f32 %v3626, %v3729
        %v3731 = vpop.f32.mrf.mxu0
        %3732 = vmatprep.mubr.f32.mxu0 0.0
        %3733 = vmatmul.mubr.f32.gmra.mxu0 %v3613
        %v3734 = vpop.f32.mrf.mxu0
        %v3735 = vadd.f32 %v3627, %v3734
        %v3736 = vpop.f32.mrf.mxu0
        %3737 = vmatprep.mubr.f32.mxu0 0.0
        %3738 = vmatmul.mubr.f32.gmra.mxu0 %v3614
        %v3739 = vpop.f32.mrf.mxu0
        %v3740 = vadd.f32 %v3628, %v3739
        %v3741 = vpop.f32.mrf.mxu0
        %3742 = vmatprep.mubr.f32.mxu0 0.0
        %3743 = vmatmul.mubr.f32.gmra.mxu0 %v3615
        %v3744 = vpop.f32.mrf.mxu0
        %v3745 = vadd.f32 %v3629, %v3744
        %v3746 = vpop.f32.mrf.mxu0
        %3747 = vmatprep.mubr.f32.mxu0 0.0
        %3748 = vmatmul.mubr.f32.gmra.mxu0 %v3616
        %v3749 = vpop.f32.mrf.mxu0
        %v3750 = vadd.f32 %v3630, %v3749
        %v3751 = vpop.f32.mrf.mxu0
        %3752 = vmatprep.mubr.f32.mxu0 0.0
        %3753 = vmatmul.mubr.f32.gmra.mxu0 %v3617
        %v3754 = vpop.f32.mrf.mxu0
        %v3755 = vadd.f32 %v3631, %v3754
        %v3756 = vpop.f32.mrf.mxu0
        %3757 = vmatprep.mubr.f32.mxu0 0.0
        %3758 = vmatmul.mubr.f32.gmra.mxu0 %v3618
        %v3759 = vpop.f32.mrf.mxu0
        %v3760 = vadd.f32 %v3632, %v3759
        %v3761 = vpop.f32.mrf.mxu0
        %3762 = vdwg.mxu0
        %v3763 = vmax.f32 %v3700, 0.0
        %v3764 = vmax.f32 %v3705, 0.0
        %v3765 = vmax.f32 %v3710, 0.0
        %v3766 = vmax.f32 %v3715, 0.0
        %v3767 = vmax.f32 %v3720, 0.0
        %v3768 = vmax.f32 %v3725, 0.0
        %v3769 = vmax.f32 %v3730, 0.0
        %v3770 = vmax.f32 %v3735, 0.0
        %v3771 = vmax.f32 %v3740, 0.0
        %v3772 = vmax.f32 %v3745, 0.0
        %v3773 = vmax.f32 %v3750, 0.0
        %v3774 = vmax.f32 %v3755, 0.0
        %v3775 = vmax.f32 %v3760, 0.0
        %3776 = vst [vmem:[#allocation4] sm:$0xff] %v3763
        %3777 = vst [vmem:[#allocation4 + $0x8] sm:$0xff] %v3764
        %3778 = vst [vmem:[#allocation4 + $0x10] sm:$0xff] %v3765
        %3779 = vst [vmem:[#allocation4 + $0x18] sm:$0xff] %v3766
        %3780 = vst [vmem:[#allocation4 + $0x20] sm:$0xff] %v3767
        %3781 = vst [vmem:[#allocation4 + $0x28] sm:$0xff] %v3768
        %3782 = vst [vmem:[#allocation4 + $0x30] sm:$0xff] %v3769
        %3783 = vst [vmem:[#allocation4 + $0x38] sm:$0xff] %v3770
        %3784 = vst [vmem:[#allocation4 + $0x40] sm:$0xff] %v3771
        %3785 = vst [vmem:[#allocation4 + $0x48] sm:$0xff] %v3772
        %3786 = vst [vmem:[#allocation4 + $0x50] sm:$0xff] %v3773
        %3787 = vst [vmem:[#allocation4 + $0x58] sm:$0xff] %v3774
        %3788 = vst [vmem:[#allocation4 + $0x60] sm:$0xf] %v3775
        %v3789 = vld [vmem:[#allocation4] sm:$0xff]
        %v3790 = vld [vmem:[#allocation4 + $0x8] sm:$0xff]
        %v3791 = vld [vmem:[#allocation4 + $0x10] sm:$0xff]
        %v3792 = vld [vmem:[#allocation4 + $0x18] sm:$0xff]
        %v3793 = vld [vmem:[#allocation4 + $0x20] sm:$0xff]
        %v3794 = vld [vmem:[#allocation4 + $0x28] sm:$0xff]
        %v3795 = vld [vmem:[#allocation4 + $0x30] sm:$0xff]
        %v3796 = vld [vmem:[#allocation4 + $0x38] sm:$0xff]
        %v3797 = vld [vmem:[#allocation4 + $0x40] sm:$0xff]
        %v3798 = vld [vmem:[#allocation4 + $0x48] sm:$0x3f]
        %v3799 = vld [vmem:[#allocation4 + $0x1] sm:$0xff]
        %v3800 = vld [vmem:[#allocation4 + $0x9] sm:$0xff]
        %v3801 = vld [vmem:[#allocation4 + $0x11] sm:$0xff]
        %v3802 = vld [vmem:[#allocation4 + $0x19] sm:$0xff]
        %v3803 = vld [vmem:[#allocation4 + $0x21] sm:$0xff]
        %v3804 = vld [vmem:[#allocation4 + $0x29] sm:$0xff]
        %v3805 = vld [vmem:[#allocation4 + $0x31] sm:$0xff]
        %v3806 = vld [vmem:[#allocation4 + $0x39] sm:$0xff]
        %v3807 = vld [vmem:[#allocation4 + $0x41] sm:$0xff]
        %v3808 = vld [vmem:[#allocation4 + $0x49] sm:$0x3f]
        %v3809 = vld [vmem:[#allocation4 + $0x2] sm:$0xff]
        %v3810 = vld [vmem:[#allocation4 + $0xa] sm:$0xff]
        %v3811 = vld [vmem:[#allocation4 + $0x12] sm:$0xff]
        %v3812 = vld [vmem:[#allocation4 + $0x1a] sm:$0xff]
        %v3813 = vld [vmem:[#allocation4 + $0x22] sm:$0xff]
        %v3814 = vld [vmem:[#allocation4 + $0x2a] sm:$0xff]
        %v3815 = vld [vmem:[#allocation4 + $0x32] sm:$0xff]
        %v3816 = vld [vmem:[#allocation4 + $0x3a] sm:$0xff]
        %v3817 = vld [vmem:[#allocation4 + $0x42] sm:$0xff]
        %v3818 = vld [vmem:[#allocation4 + $0x4a] sm:$0x3f]
        %v3819 = vld [vmem:[#allocation4 + $0x4a] sm:$0xff]
        %v3820 = vld [vmem:[#allocation4 + $0x52] sm:$0x3f]
        %v3821 = vld [vmem:[#allocation4 + $0xb] sm:$0xff]
        %v3822 = vld [vmem:[#allocation4 + $0x13] sm:$0xff]
        %v3823 = vld [vmem:[#allocation4 + $0x1b] sm:$0xff]
        %v3824 = vld [vmem:[#allocation4 + $0x23] sm:$0xff]
        %v3825 = vld [vmem:[#allocation4 + $0x2b] sm:$0xff]
        %v3826 = vld [vmem:[#allocation4 + $0x33] sm:$0xff]
        %v3827 = vld [vmem:[#allocation4 + $0x3b] sm:$0xff]
        %v3828 = vld [vmem:[#allocation4 + $0x43] sm:$0xff]
        %v3829 = vld [vmem:[#allocation4 + $0x4b] sm:$0xff]
        %v3830 = vld [vmem:[#allocation4 + $0x53] sm:$0x3f]
        %v3831 = vld [vmem:[#allocation4 + $0xc] sm:$0xff]
        %v3832 = vld [vmem:[#allocation4 + $0x14] sm:$0xff]
        %v3833 = vld [vmem:[#allocation4 + $0x1c] sm:$0xff]
        %v3834 = vld [vmem:[#allocation4 + $0x24] sm:$0xff]
        %v3835 = vld [vmem:[#allocation4 + $0x2c] sm:$0xff]
        %v3836 = vld [vmem:[#allocation4 + $0x34] sm:$0xff]
        %v3837 = vld [vmem:[#allocation4 + $0x3c] sm:$0xff]
        %v3838 = vld [vmem:[#allocation4 + $0x44] sm:$0xff]
        %v3839 = vld [vmem:[#allocation4 + $0x4c] sm:$0xff]
        %v3840 = vld [vmem:[#allocation4 + $0x54] sm:$0x3f]
        %v3841 = vld [vmem:[#allocation4 + $0x54] sm:$0xff]
        %v3842 = vld [vmem:[#allocation4 + $0x5c] sm:$0x3f]
        %v3843 = vld [vmem:[#allocation4 + $0x15] sm:$0xff]
        %v3844 = vld [vmem:[#allocation4 + $0x1d] sm:$0xff]
        %v3845 = vld [vmem:[#allocation4 + $0x25] sm:$0xff]
        %v3846 = vld [vmem:[#allocation4 + $0x2d] sm:$0xff]
        %v3847 = vld [vmem:[#allocation4 + $0x35] sm:$0xff]
        %v3848 = vld [vmem:[#allocation4 + $0x3d] sm:$0xff]
        %v3849 = vld [vmem:[#allocation4 + $0x45] sm:$0xff]
        %v3850 = vld [vmem:[#allocation4 + $0x4d] sm:$0xff]
        %v3851 = vld [vmem:[#allocation4 + $0x55] sm:$0xff]
        %v3852 = vld [vmem:[#allocation4 + $0x5d] sm:$0x3f]
        %v3853 = vld [vmem:[#allocation4 + $0x16] sm:$0xff]
        %v3854 = vld [vmem:[#allocation4 + $0x1e] sm:$0xff]
        %v3855 = vld [vmem:[#allocation4 + $0x26] sm:$0xff]
        %v3856 = vld [vmem:[#allocation4 + $0x2e] sm:$0xff]
        %v3857 = vld [vmem:[#allocation4 + $0x36] sm:$0xff]
        %v3858 = vld [vmem:[#allocation4 + $0x3e] sm:$0xff]
        %v3859 = vld [vmem:[#allocation4 + $0x46] sm:$0xff]
        %v3860 = vld [vmem:[#allocation4 + $0x4e] sm:$0xff]
        %v3861 = vld [vmem:[#allocation4 + $0x56] sm:$0xff]
        %v3862 = vld [vmem:[#allocation4 + $0x5e] sm:$0x3f]
        %s3863 = scalar_lea.vmem %s7, 1152
        %v3864 = vld [vmem:[%s3863] sm:$0xff]
        %v3865 = vld [vmem:[%s3863 + $0x8] sm:$0xff]
        %v3866 = vld [vmem:[%s3863 + $0x10] sm:$0xff]
        %v3867 = vld [vmem:[%s3863 + $0x18] sm:$0xff]
        %v3868 = vld [vmem:[%s3863 + $0x20] sm:$0xff]
        %v3869 = vld [vmem:[%s3863 + $0x28] sm:$0xff]
        %v3870 = vld [vmem:[%s3863 + $0x30] sm:$0xff]
        %v3871 = vld [vmem:[%s3863 + $0x38] sm:$0xff]
        %v3872 = vld [vmem:[%s3863 + $0x40] sm:$0xff]
        %v3873 = vld [vmem:[%s3863 + $0x48] sm:$0xff]
        %v3874 = vld [vmem:[%s3863 + $0x50] sm:$0xff]
        %v3875 = vld [vmem:[%s3863 + $0x58] sm:$0xff]
        %v3876 = vld [vmem:[%s3863 + $0x60] sm:$0xff]
        %v3877 = vld [vmem:[%s3863 + $0x68] sm:$0xff]
        %v3878 = vld [vmem:[%s3863 + $0x70] sm:$0xff]
        %v3879 = vld [vmem:[%s3863 + $0x78] sm:$0xff]
        %v3880 = vld [vmem:[%s3863 + $0x80] sm:$0xff]
        %v3881 = vld [vmem:[%s3863 + $0x88] sm:$0xff]
        %v3882 = vld [vmem:[%s3863 + $0x90] sm:$0xff]
        %v3883 = vld [vmem:[%s3863 + $0x98] sm:$0xff]
        %v3884 = vld [vmem:[%s3863 + $0xa0] sm:$0xff]
        %v3885 = vld [vmem:[%s3863 + $0xa8] sm:$0xff]
        %v3886 = vld [vmem:[%s3863 + $0xb0] sm:$0xff]
        %v3887 = vld [vmem:[%s3863 + $0xb8] sm:$0xff]
        %v3888 = vld [vmem:[%s3863 + $0xc0] sm:$0xff]
        %v3889 = vld [vmem:[%s3863 + $0xc8] sm:$0xff]
        %v3890 = vld [vmem:[%s3863 + $0xd0] sm:$0xff]
        %v3891 = vld [vmem:[%s3863 + $0xd8] sm:$0xff]
        %v3892 = vld [vmem:[%s3863 + $0xe0] sm:$0xff]
        %v3893 = vld [vmem:[%s3863 + $0xe8] sm:$0xff]
        %v3894 = vld [vmem:[%s3863 + $0xf0] sm:$0xff]
        %v3895 = vld [vmem:[%s3863 + $0xf8] sm:$0xff]
        %v3896 = vld [vmem:[%s3863 + $0x100] sm:$0xff]
        %v3897 = vld [vmem:[%s3863 + $0x108] sm:$0xff]
        %v3898 = vld [vmem:[%s3863 + $0x110] sm:$0xff]
        %v3899 = vld [vmem:[%s3863 + $0x118] sm:$0xff]
        %v3900 = vld [vmem:[%s3863 + $0x120] sm:$0xff]
        %v3901 = vld [vmem:[%s3863 + $0x128] sm:$0xff]
        %v3902 = vld [vmem:[%s3863 + $0x130] sm:$0xff]
        %v3903 = vld [vmem:[%s3863 + $0x138] sm:$0xff]
        %v3904 = vld [vmem:[%s3863 + $0x140] sm:$0xff]
        %v3905 = vld [vmem:[%s3863 + $0x148] sm:$0xff]
        %v3906 = vld [vmem:[%s3863 + $0x150] sm:$0xff]
        %v3907 = vld [vmem:[%s3863 + $0x158] sm:$0xff]
        %v3908 = vld [vmem:[%s3863 + $0x160] sm:$0xff]
        %v3909 = vld [vmem:[%s3863 + $0x168] sm:$0xff]
        %v3910 = vld [vmem:[%s3863 + $0x170] sm:$0xff]
        %v3911 = vld [vmem:[%s3863 + $0x178] sm:$0xff]
        %v3912 = vld [vmem:[%s3863 + $0x180] sm:$0xff]
        %v3913 = vld [vmem:[%s3863 + $0x188] sm:$0xff]
        %v3914 = vld [vmem:[%s3863 + $0x190] sm:$0xff]
        %v3915 = vld [vmem:[%s3863 + $0x198] sm:$0xff]
        %v3916 = vld [vmem:[%s3863 + $0x1a0] sm:$0xff]
        %v3917 = vld [vmem:[%s3863 + $0x1a8] sm:$0xff]
        %v3918 = vld [vmem:[%s3863 + $0x1b0] sm:$0xff]
        %v3919 = vld [vmem:[%s3863 + $0x1b8] sm:$0xff]
        %v3920 = vld [vmem:[%s3863 + $0x1c0] sm:$0xff]
        %v3921 = vld [vmem:[%s3863 + $0x1c8] sm:$0xff]
        %v3922 = vld [vmem:[%s3863 + $0x1d0] sm:$0xff]
        %v3923 = vld [vmem:[%s3863 + $0x1d8] sm:$0xff]
        %v3924 = vld [vmem:[%s3863 + $0x1e0] sm:$0xff]
        %v3925 = vld [vmem:[%s3863 + $0x1e8] sm:$0xff]
        %v3926 = vld [vmem:[%s3863 + $0x1f0] sm:$0xff]
        %v3927 = vld [vmem:[%s3863 + $0x1f8] sm:$0xff]
        %v3928 = vld [vmem:[%s3863 + $0x200] sm:$0xff]
        %v3929 = vld [vmem:[%s3863 + $0x208] sm:$0xff]
        %v3930 = vld [vmem:[%s3863 + $0x210] sm:$0xff]
        %v3931 = vld [vmem:[%s3863 + $0x218] sm:$0xff]
        %v3932 = vld [vmem:[%s3863 + $0x220] sm:$0xff]
        %v3933 = vld [vmem:[%s3863 + $0x228] sm:$0xff]
        %v3934 = vld [vmem:[%s3863 + $0x230] sm:$0xff]
        %v3935 = vld [vmem:[%s3863 + $0x238] sm:$0xff]
        %v3936 = vld [vmem:[%s3863 + $0x240] sm:$0xff]
        %v3937 = vld [vmem:[%s3863 + $0x248] sm:$0xff]
        %v3938 = vld [vmem:[%s3863 + $0x250] sm:$0xff]
        %v3939 = vld [vmem:[%s3863 + $0x258] sm:$0xff]
        %v3940 = vld [vmem:[%s3863 + $0x260] sm:$0xff]
        %v3941 = vld [vmem:[%s3863 + $0x268] sm:$0xff]
        %v3942 = vld [vmem:[%s3863 + $0x270] sm:$0xff]
        %v3943 = vld [vmem:[%s3863 + $0x278] sm:$0xff]
        %v3944 = vld [vmem:[%s3863 + $0x280] sm:$0xff]
        %v3945 = vld [vmem:[%s3863 + $0x288] sm:$0xff]
        %v3946 = vld [vmem:[%s3863 + $0x290] sm:$0xff]
        %v3947 = vld [vmem:[%s3863 + $0x298] sm:$0xff]
        %v3948 = vld [vmem:[%s3863 + $0x2a0] sm:$0xff]
        %v3949 = vld [vmem:[%s3863 + $0x2a8] sm:$0xff]
        %v3950 = vld [vmem:[%s3863 + $0x2b0] sm:$0xff]
        %v3951 = vld [vmem:[%s3863 + $0x2b8] sm:$0xff]
        %v3952 = vld [vmem:[%s3863 + $0x2c0] sm:$0xff]
        %v3953 = vld [vmem:[%s3863 + $0x2c8] sm:$0xff]
        %v3954 = vld [vmem:[%s3863 + $0x2d0] sm:$0xff]
        %v3955 = vld [vmem:[%s3863 + $0x2d8] sm:$0xff]
        %v3956 = vld [vmem:[%s3863 + $0x2e0] sm:$0xff]
        %v3957 = vld [vmem:[%s3863 + $0x2e8] sm:$0xff]
        %v3958 = vld [vmem:[%s3863 + $0x2f0] sm:$0xff]
        %v3959 = vld [vmem:[%s3863 + $0x2f8] sm:$0xff]
        %v3960 = vld [vmem:[%s3863 + $0x300] sm:$0xff]
        %v3961 = vld [vmem:[%s3863 + $0x308] sm:$0xff]
        %v3962 = vld [vmem:[%s3863 + $0x310] sm:$0xff]
        %v3963 = vld [vmem:[%s3863 + $0x318] sm:$0xff]
        %v3964 = vld [vmem:[%s3863 + $0x320] sm:$0xff]
        %v3965 = vld [vmem:[%s3863 + $0x328] sm:$0xff]
        %v3966 = vld [vmem:[%s3863 + $0x330] sm:$0xff]
        %v3967 = vld [vmem:[%s3863 + $0x338] sm:$0xff]
        %v3968 = vld [vmem:[%s3863 + $0x340] sm:$0xff]
        %v3969 = vld [vmem:[%s3863 + $0x348] sm:$0xff]
        %v3970 = vld [vmem:[%s3863 + $0x350] sm:$0xff]
        %v3971 = vld [vmem:[%s3863 + $0x358] sm:$0xff]
        %v3972 = vld [vmem:[%s3863 + $0x360] sm:$0xff]
        %v3973 = vld [vmem:[%s3863 + $0x368] sm:$0xff]
        %v3974 = vld [vmem:[%s3863 + $0x370] sm:$0xff]
        %v3975 = vld [vmem:[%s3863 + $0x378] sm:$0xff]
        %v3976 = vld [vmem:[%s3863 + $0x380] sm:$0xff]
        %v3977 = vld [vmem:[%s3863 + $0x388] sm:$0xff]
        %v3978 = vld [vmem:[%s3863 + $0x390] sm:$0xff]
        %v3979 = vld [vmem:[%s3863 + $0x398] sm:$0xff]
        %v3980 = vld [vmem:[%s3863 + $0x3a0] sm:$0xff]
        %v3981 = vld [vmem:[%s3863 + $0x3a8] sm:$0xff]
        %v3982 = vld [vmem:[%s3863 + $0x3b0] sm:$0xff]
        %v3983 = vld [vmem:[%s3863 + $0x3b8] sm:$0xff]
        %v3984 = vld [vmem:[%s3863 + $0x3c0] sm:$0xff]
        %v3985 = vld [vmem:[%s3863 + $0x3c8] sm:$0xff]
        %v3986 = vld [vmem:[%s3863 + $0x3d0] sm:$0xff]
        %v3987 = vld [vmem:[%s3863 + $0x3d8] sm:$0xff]
        %v3988 = vld [vmem:[%s3863 + $0x3e0] sm:$0xff]
        %v3989 = vld [vmem:[%s3863 + $0x3e8] sm:$0xff]
        %v3990 = vld [vmem:[%s3863 + $0x3f0] sm:$0xff]
        %v3991 = vld [vmem:[%s3863 + $0x3f8] sm:$0xff]
        %v3992 = vld [vmem:[%s3863 + $0x400] sm:$0xff]
        %v3993 = vld [vmem:[%s3863 + $0x408] sm:$0xff]
        %v3994 = vld [vmem:[%s3863 + $0x410] sm:$0xff]
        %v3995 = vld [vmem:[%s3863 + $0x418] sm:$0xff]
        %v3996 = vld [vmem:[%s3863 + $0x420] sm:$0xff]
        %v3997 = vld [vmem:[%s3863 + $0x428] sm:$0xff]
        %v3998 = vld [vmem:[%s3863 + $0x430] sm:$0xff]
        %v3999 = vld [vmem:[%s3863 + $0x438] sm:$0xff]
        %v4000 = vld [vmem:[%s3863 + $0x440] sm:$0xff]
        %v4001 = vld [vmem:[%s3863 + $0x448] sm:$0xff]
        %v4002 = vld [vmem:[%s3863 + $0x450] sm:$0xff]
        %v4003 = vld [vmem:[%s3863 + $0x458] sm:$0xff]
        %v4004 = vld [vmem:[%s3863 + $0x460] sm:$0xff]
        %v4005 = vld [vmem:[%s3863 + $0x468] sm:$0xff]
        %v4006 = vld [vmem:[%s3863 + $0x470] sm:$0xff]
        %v4007 = vld [vmem:[%s3863 + $0x478] sm:$0xff]
        %v4008 = vlaneseq
        %v4009 = vshrl.u32 %v4008, 7
        %v4010 = vsub.s32 0, %v4009
        %v4011 = vrot.slane %v3603, %v4010
        %4012 = vmatprep.subr.mxu0 0.0
        %4013 = vmatpush1.msra.mxu0 %v3879
        %4014 = vmatprep.subr.mxu0 0.0
        %4015 = vmatpush1.msra.mxu0 %v3878
        %4016 = vmatprep.subr.mxu0 0.0
        %4017 = vmatpush1.msra.mxu0 %v3877
        %4018 = vmatprep.subr.mxu0 0.0
        %4019 = vmatpush1.msra.mxu0 %v3876
        %4020 = vmatprep.subr.mxu0 0.0
        %4021 = vmatpush1.msra.mxu0 %v3875
        %4022 = vmatprep.subr.mxu0 0.0
        %4023 = vmatpush1.msra.mxu0 %v3874
        %4024 = vmatprep.subr.mxu0 0.0
        %4025 = vmatpush1.msra.mxu0 %v3873
        %4026 = vmatprep.subr.mxu0 0.0
        %4027 = vmatpush1.msra.mxu0 %v3872
        %4028 = vmatprep.subr.mxu0 0.0
        %4029 = vmatpush1.msra.mxu0 %v3871
        %4030 = vmatprep.subr.mxu0 0.0
        %4031 = vmatpush1.msra.mxu0 %v3870
        %4032 = vmatprep.subr.mxu0 0.0
        %4033 = vmatpush1.msra.mxu0 %v3869
        %4034 = vmatprep.subr.mxu0 0.0
        %4035 = vmatpush1.msra.mxu0 %v3868
        %4036 = vmatprep.subr.mxu0 0.0
        %4037 = vmatpush1.msra.mxu0 %v3867
        %4038 = vmatprep.subr.mxu0 0.0
        %4039 = vmatpush1.msra.mxu0 %v3866
        %4040 = vmatprep.subr.mxu0 0.0
        %4041 = vmatpush1.msra.mxu0 %v3865
        %4042 = vmatprep.subr.mxu0 0.0
        %4043 = vmatpush1.msra.mxu0 %v3864
        %4044 = vmatprep.subr.mxu0 0.0
        %4045 = vmatpush2.msra.mxu0 %v3895
        %4046 = vmatprep.subr.mxu0 0.0
        %4047 = vmatpush2.msra.mxu0 %v3894
        %4048 = vmatprep.subr.mxu0 0.0
        %4049 = vmatpush2.msra.mxu0 %v3893
        %4050 = vmatprep.subr.mxu0 0.0
        %4051 = vmatpush2.msra.mxu0 %v3892
        %4052 = vmatprep.subr.mxu0 0.0
        %4053 = vmatpush2.msra.mxu0 %v3891
        %4054 = vmatprep.subr.mxu0 0.0
        %4055 = vmatpush2.msra.mxu0 %v3890
        %4056 = vmatprep.subr.mxu0 0.0
        %4057 = vmatpush2.msra.mxu0 %v3889
        %4058 = vmatprep.subr.mxu0 0.0
        %4059 = vmatpush2.msra.mxu0 %v3888
        %4060 = vmatprep.subr.mxu0 0.0
        %4061 = vmatpush2.msra.mxu0 %v3887
        %4062 = vmatprep.subr.mxu0 0.0
        %4063 = vmatpush2.msra.mxu0 %v3886
        %4064 = vmatprep.subr.mxu0 0.0
        %4065 = vmatpush2.msra.mxu0 %v3885
        %4066 = vmatprep.subr.mxu0 0.0
        %4067 = vmatpush2.msra.mxu0 %v3884
        %4068 = vmatprep.subr.mxu0 0.0
        %4069 = vmatpush2.msra.mxu0 %v3883
        %4070 = vmatprep.subr.mxu0 0.0
        %4071 = vmatpush2.msra.mxu0 %v3882
        %4072 = vmatprep.subr.mxu0 0.0
        %4073 = vmatpush2.msra.mxu0 %v3881
        %4074 = vmatprep.subr.mxu0 0.0
        %4075 = vmatpush2.msra.mxu0 %v3880
        %4076 = vmatprep.mubr.f32.mxu0 %v3799
        %4077 = vmatmul.mubr.f32.gmra.mxu0 %v3789
        %v4078 = vpop.f32.mrf.mxu0
        %v4079 = vadd.f32 %v4011, %v4078
        %v4080 = vpop.f32.mrf.mxu0
        %4081 = vmatprep.mubr.f32.mxu0 %v3800
        %4082 = vmatmul.mubr.f32.gmra.mxu0 %v3790
        %v4083 = vpop.f32.mrf.mxu0
        %v4084 = vadd.f32 %v4011, %v4083
        %v4085 = vpop.f32.mrf.mxu0
        %4086 = vmatprep.mubr.f32.mxu0 %v3801
        %4087 = vmatmul.mubr.f32.gmra.mxu0 %v3791
        %v4088 = vpop.f32.mrf.mxu0
        %v4089 = vadd.f32 %v4011, %v4088
        %v4090 = vpop.f32.mrf.mxu0
        %4091 = vmatprep.mubr.f32.mxu0 %v3802
        %4092 = vmatmul.mubr.f32.gmra.mxu0 %v3792
        %v4093 = vpop.f32.mrf.mxu0
        %v4094 = vadd.f32 %v4011, %v4093
        %v4095 = vpop.f32.mrf.mxu0
        %4096 = vmatprep.mubr.f32.mxu0 %v3803
        %4097 = vmatmul.mubr.f32.gmra.mxu0 %v3793
        %v4098 = vpop.f32.mrf.mxu0
        %v4099 = vadd.f32 %v4011, %v4098
        %v4100 = vpop.f32.mrf.mxu0
        %4101 = vmatprep.mubr.f32.mxu0 %v3804
        %4102 = vmatmul.mubr.f32.gmra.mxu0 %v3794
        %v4103 = vpop.f32.mrf.mxu0
        %v4104 = vadd.f32 %v4011, %v4103
        %v4105 = vpop.f32.mrf.mxu0
        %4106 = vmatprep.mubr.f32.mxu0 %v3805
        %4107 = vmatmul.mubr.f32.gmra.mxu0 %v3795
        %v4108 = vpop.f32.mrf.mxu0
        %v4109 = vadd.f32 %v4011, %v4108
        %v4110 = vpop.f32.mrf.mxu0
        %4111 = vmatprep.mubr.f32.mxu0 %v3806
        %4112 = vmatmul.mubr.f32.gmra.mxu0 %v3796
        %v4113 = vpop.f32.mrf.mxu0
        %v4114 = vadd.f32 %v4011, %v4113
        %v4115 = vpop.f32.mrf.mxu0
        %4116 = vmatprep.mubr.f32.mxu0 %v3807
        %4117 = vmatmul.mubr.f32.gmra.mxu0 %v3797
        %v4118 = vpop.f32.mrf.mxu0
        %v4119 = vadd.f32 %v4011, %v4118
        %v4120 = vpop.f32.mrf.mxu0
        %4121 = vmatprep.mubr.f32.mxu0 %v3808
        %4122 = vmatmul.mubr.f32.gmra.mxu0 %v3798
        %v4123 = vpop.f32.mrf.mxu0
        %v4124 = vadd.f32 %v4011, %v4123
        %v4125 = vpop.f32.mrf.mxu0
        %4126 = vdwg.mxu0
        %4127 = vmatprep.subr.mxu0 0.0
        %4128 = vmatpush1.msra.mxu0 %v3911
        %4129 = vmatprep.subr.mxu0 0.0
        %4130 = vmatpush1.msra.mxu0 %v3910
        %4131 = vmatprep.subr.mxu0 0.0
        %4132 = vmatpush1.msra.mxu0 %v3909
        %4133 = vmatprep.subr.mxu0 0.0
        %4134 = vmatpush1.msra.mxu0 %v3908
        %4135 = vmatprep.subr.mxu0 0.0
        %4136 = vmatpush1.msra.mxu0 %v3907
        %4137 = vmatprep.subr.mxu0 0.0
        %4138 = vmatpush1.msra.mxu0 %v3906
        %4139 = vmatprep.subr.mxu0 0.0
        %4140 = vmatpush1.msra.mxu0 %v3905
        %4141 = vmatprep.subr.mxu0 0.0
        %4142 = vmatpush1.msra.mxu0 %v3904
        %4143 = vmatprep.subr.mxu0 0.0
        %4144 = vmatpush1.msra.mxu0 %v3903
        %4145 = vmatprep.subr.mxu0 0.0
        %4146 = vmatpush1.msra.mxu0 %v3902
        %4147 = vmatprep.subr.mxu0 0.0
        %4148 = vmatpush1.msra.mxu0 %v3901
        %4149 = vmatprep.subr.mxu0 0.0
        %4150 = vmatpush1.msra.mxu0 %v3900
        %4151 = vmatprep.subr.mxu0 0.0
        %4152 = vmatpush1.msra.mxu0 %v3899
        %4153 = vmatprep.subr.mxu0 0.0
        %4154 = vmatpush1.msra.mxu0 %v3898
        %4155 = vmatprep.subr.mxu0 0.0
        %4156 = vmatpush1.msra.mxu0 %v3897
        %4157 = vmatprep.subr.mxu0 0.0
        %4158 = vmatpush1.msra.mxu0 %v3896
        %4159 = vmatprep.subr.mxu0 0.0
        %4160 = vmatpush2.msra.mxu0 %v3927
        %4161 = vmatprep.subr.mxu0 0.0
        %4162 = vmatpush2.msra.mxu0 %v3926
        %4163 = vmatprep.subr.mxu0 0.0
        %4164 = vmatpush2.msra.mxu0 %v3925
        %4165 = vmatprep.subr.mxu0 0.0
        %4166 = vmatpush2.msra.mxu0 %v3924
        %4167 = vmatprep.subr.mxu0 0.0
        %4168 = vmatpush2.msra.mxu0 %v3923
        %4169 = vmatprep.subr.mxu0 0.0
        %4170 = vmatpush2.msra.mxu0 %v3922
        %4171 = vmatprep.subr.mxu0 0.0
        %4172 = vmatpush2.msra.mxu0 %v3921
        %4173 = vmatprep.subr.mxu0 0.0
        %4174 = vmatpush2.msra.mxu0 %v3920
        %4175 = vmatprep.subr.mxu0 0.0
        %4176 = vmatpush2.msra.mxu0 %v3919
        %4177 = vmatprep.subr.mxu0 0.0
        %4178 = vmatpush2.msra.mxu0 %v3918
        %4179 = vmatprep.subr.mxu0 0.0
        %4180 = vmatpush2.msra.mxu0 %v3917
        %4181 = vmatprep.subr.mxu0 0.0
        %4182 = vmatpush2.msra.mxu0 %v3916
        %4183 = vmatprep.subr.mxu0 0.0
        %4184 = vmatpush2.msra.mxu0 %v3915
        %4185 = vmatprep.subr.mxu0 0.0
        %4186 = vmatpush2.msra.mxu0 %v3914
        %4187 = vmatprep.subr.mxu0 0.0
        %4188 = vmatpush2.msra.mxu0 %v3913
        %4189 = vmatprep.subr.mxu0 0.0
        %4190 = vmatpush2.msra.mxu0 %v3912
        %4191 = vmatprep.mubr.f32.mxu0 %v3810
        %4192 = vmatmul.mubr.f32.gmra.mxu0 %v3809
        %v4193 = vpop.f32.mrf.mxu0
        %v4194 = vadd.f32 %v4079, %v4193
        %v4195 = vpop.f32.mrf.mxu0
        %4196 = vmatprep.mubr.f32.mxu0 %v3811
        %4197 = vmatmul.mubr.f32.gmra.mxu0 %v3810
        %v4198 = vpop.f32.mrf.mxu0
        %v4199 = vadd.f32 %v4084, %v4198
        %v4200 = vpop.f32.mrf.mxu0
        %4201 = vmatprep.mubr.f32.mxu0 %v3812
        %4202 = vmatmul.mubr.f32.gmra.mxu0 %v3811
        %v4203 = vpop.f32.mrf.mxu0
        %v4204 = vadd.f32 %v4089, %v4203
        %v4205 = vpop.f32.mrf.mxu0
        %4206 = vmatprep.mubr.f32.mxu0 %v3813
        %4207 = vmatmul.mubr.f32.gmra.mxu0 %v3812
        %v4208 = vpop.f32.mrf.mxu0
        %v4209 = vadd.f32 %v4094, %v4208
        %v4210 = vpop.f32.mrf.mxu0
        %4211 = vmatprep.mubr.f32.mxu0 %v3814
        %4212 = vmatmul.mubr.f32.gmra.mxu0 %v3813
        %v4213 = vpop.f32.mrf.mxu0
        %v4214 = vadd.f32 %v4099, %v4213
        %v4215 = vpop.f32.mrf.mxu0
        %4216 = vmatprep.mubr.f32.mxu0 %v3815
        %4217 = vmatmul.mubr.f32.gmra.mxu0 %v3814
        %v4218 = vpop.f32.mrf.mxu0
        %v4219 = vadd.f32 %v4104, %v4218
        %v4220 = vpop.f32.mrf.mxu0
        %4221 = vmatprep.mubr.f32.mxu0 %v3816
        %4222 = vmatmul.mubr.f32.gmra.mxu0 %v3815
        %v4223 = vpop.f32.mrf.mxu0
        %v4224 = vadd.f32 %v4109, %v4223
        %v4225 = vpop.f32.mrf.mxu0
        %4226 = vmatprep.mubr.f32.mxu0 %v3817
        %4227 = vmatmul.mubr.f32.gmra.mxu0 %v3816
        %v4228 = vpop.f32.mrf.mxu0
        %v4229 = vadd.f32 %v4114, %v4228
        %v4230 = vpop.f32.mrf.mxu0
        %4231 = vmatprep.mubr.f32.mxu0 %v3819
        %4232 = vmatmul.mubr.f32.gmra.mxu0 %v3817
        %v4233 = vpop.f32.mrf.mxu0
        %v4234 = vadd.f32 %v4119, %v4233
        %v4235 = vpop.f32.mrf.mxu0
        %4236 = vmatprep.mubr.f32.mxu0 %v3820
        %4237 = vmatmul.mubr.f32.gmra.mxu0 %v3818
        %v4238 = vpop.f32.mrf.mxu0
        %v4239 = vadd.f32 %v4124, %v4238
        %v4240 = vpop.f32.mrf.mxu0
        %4241 = vdwg.mxu0
        %4242 = vmatprep.subr.mxu0 0.0
        %4243 = vmatpush1.msra.mxu0 %v3943
        %4244 = vmatprep.subr.mxu0 0.0
        %4245 = vmatpush1.msra.mxu0 %v3942
        %4246 = vmatprep.subr.mxu0 0.0
        %4247 = vmatpush1.msra.mxu0 %v3941
        %4248 = vmatprep.subr.mxu0 0.0
        %4249 = vmatpush1.msra.mxu0 %v3940
        %4250 = vmatprep.subr.mxu0 0.0
        %4251 = vmatpush1.msra.mxu0 %v3939
        %4252 = vmatprep.subr.mxu0 0.0
        %4253 = vmatpush1.msra.mxu0 %v3938
        %4254 = vmatprep.subr.mxu0 0.0
        %4255 = vmatpush1.msra.mxu0 %v3937
        %4256 = vmatprep.subr.mxu0 0.0
        %4257 = vmatpush1.msra.mxu0 %v3936
        %4258 = vmatprep.subr.mxu0 0.0
        %4259 = vmatpush1.msra.mxu0 %v3935
        %4260 = vmatprep.subr.mxu0 0.0
        %4261 = vmatpush1.msra.mxu0 %v3934
        %4262 = vmatprep.subr.mxu0 0.0
        %4263 = vmatpush1.msra.mxu0 %v3933
        %4264 = vmatprep.subr.mxu0 0.0
        %4265 = vmatpush1.msra.mxu0 %v3932
        %4266 = vmatprep.subr.mxu0 0.0
        %4267 = vmatpush1.msra.mxu0 %v3931
        %4268 = vmatprep.subr.mxu0 0.0
        %4269 = vmatpush1.msra.mxu0 %v3930
        %4270 = vmatprep.subr.mxu0 0.0
        %4271 = vmatpush1.msra.mxu0 %v3929
        %4272 = vmatprep.subr.mxu0 0.0
        %4273 = vmatpush1.msra.mxu0 %v3928
        %4274 = vmatprep.subr.mxu0 0.0
        %4275 = vmatpush2.msra.mxu0 %v3959
        %4276 = vmatprep.subr.mxu0 0.0
        %4277 = vmatpush2.msra.mxu0 %v3958
        %4278 = vmatprep.subr.mxu0 0.0
        %4279 = vmatpush2.msra.mxu0 %v3957
        %4280 = vmatprep.subr.mxu0 0.0
        %4281 = vmatpush2.msra.mxu0 %v3956
        %4282 = vmatprep.subr.mxu0 0.0
        %4283 = vmatpush2.msra.mxu0 %v3955
        %4284 = vmatprep.subr.mxu0 0.0
        %4285 = vmatpush2.msra.mxu0 %v3954
        %4286 = vmatprep.subr.mxu0 0.0
        %4287 = vmatpush2.msra.mxu0 %v3953
        %4288 = vmatprep.subr.mxu0 0.0
        %4289 = vmatpush2.msra.mxu0 %v3952
        %4290 = vmatprep.subr.mxu0 0.0
        %4291 = vmatpush2.msra.mxu0 %v3951
        %4292 = vmatprep.subr.mxu0 0.0
        %4293 = vmatpush2.msra.mxu0 %v3950
        %4294 = vmatprep.subr.mxu0 0.0
        %4295 = vmatpush2.msra.mxu0 %v3949
        %4296 = vmatprep.subr.mxu0 0.0
        %4297 = vmatpush2.msra.mxu0 %v3948
        %4298 = vmatprep.subr.mxu0 0.0
        %4299 = vmatpush2.msra.mxu0 %v3947
        %4300 = vmatprep.subr.mxu0 0.0
        %4301 = vmatpush2.msra.mxu0 %v3946
        %4302 = vmatprep.subr.mxu0 0.0
        %4303 = vmatpush2.msra.mxu0 %v3945
        %4304 = vmatprep.subr.mxu0 0.0
        %4305 = vmatpush2.msra.mxu0 %v3944
        %4306 = vmatprep.mubr.f32.mxu0 %v3831
        %4307 = vmatmul.mubr.f32.gmra.mxu0 %v3821
        %v4308 = vpop.f32.mrf.mxu0
        %v4309 = vadd.f32 %v4194, %v4308
        %v4310 = vpop.f32.mrf.mxu0
        %4311 = vmatprep.mubr.f32.mxu0 %v3832
        %4312 = vmatmul.mubr.f32.gmra.mxu0 %v3822
        %v4313 = vpop.f32.mrf.mxu0
        %v4314 = vadd.f32 %v4199, %v4313
        %v4315 = vpop.f32.mrf.mxu0
        %4316 = vmatprep.mubr.f32.mxu0 %v3833
        %4317 = vmatmul.mubr.f32.gmra.mxu0 %v3823
        %v4318 = vpop.f32.mrf.mxu0
        %v4319 = vadd.f32 %v4204, %v4318
        %v4320 = vpop.f32.mrf.mxu0
        %4321 = vmatprep.mubr.f32.mxu0 %v3834
        %4322 = vmatmul.mubr.f32.gmra.mxu0 %v3824
        %v4323 = vpop.f32.mrf.mxu0
        %v4324 = vadd.f32 %v4209, %v4323
        %v4325 = vpop.f32.mrf.mxu0
        %4326 = vmatprep.mubr.f32.mxu0 %v3835
        %4327 = vmatmul.mubr.f32.gmra.mxu0 %v3825
        %v4328 = vpop.f32.mrf.mxu0
        %v4329 = vadd.f32 %v4214, %v4328
        %v4330 = vpop.f32.mrf.mxu0
        %4331 = vmatprep.mubr.f32.mxu0 %v3836
        %4332 = vmatmul.mubr.f32.gmra.mxu0 %v3826
        %v4333 = vpop.f32.mrf.mxu0
        %v4334 = vadd.f32 %v4219, %v4333
        %v4335 = vpop.f32.mrf.mxu0
        %4336 = vmatprep.mubr.f32.mxu0 %v3837
        %4337 = vmatmul.mubr.f32.gmra.mxu0 %v3827
        %v4338 = vpop.f32.mrf.mxu0
        %v4339 = vadd.f32 %v4224, %v4338
        %v4340 = vpop.f32.mrf.mxu0
        %4341 = vmatprep.mubr.f32.mxu0 %v3838
        %4342 = vmatmul.mubr.f32.gmra.mxu0 %v3828
        %v4343 = vpop.f32.mrf.mxu0
        %v4344 = vadd.f32 %v4229, %v4343
        %v4345 = vpop.f32.mrf.mxu0
        %4346 = vmatprep.mubr.f32.mxu0 %v3839
        %4347 = vmatmul.mubr.f32.gmra.mxu0 %v3829
        %v4348 = vpop.f32.mrf.mxu0
        %v4349 = vadd.f32 %v4234, %v4348
        %v4350 = vpop.f32.mrf.mxu0
        %4351 = vmatprep.mubr.f32.mxu0 %v3840
        %4352 = vmatmul.mubr.f32.gmra.mxu0 %v3830
        %v4353 = vpop.f32.mrf.mxu0
        %v4354 = vadd.f32 %v4239, %v4353
        %v4355 = vpop.f32.mrf.mxu0
        %4356 = vdwg.mxu0
        %4357 = vmatprep.subr.mxu0 0.0
        %4358 = vmatpush1.msra.mxu0 %v3975
        %4359 = vmatprep.subr.mxu0 0.0
        %4360 = vmatpush1.msra.mxu0 %v3974
        %4361 = vmatprep.subr.mxu0 0.0
        %4362 = vmatpush1.msra.mxu0 %v3973
        %4363 = vmatprep.subr.mxu0 0.0
        %4364 = vmatpush1.msra.mxu0 %v3972
        %4365 = vmatprep.subr.mxu0 0.0
        %4366 = vmatpush1.msra.mxu0 %v3971
        %4367 = vmatprep.subr.mxu0 0.0
        %4368 = vmatpush1.msra.mxu0 %v3970
        %4369 = vmatprep.subr.mxu0 0.0
        %4370 = vmatpush1.msra.mxu0 %v3969
        %4371 = vmatprep.subr.mxu0 0.0
        %4372 = vmatpush1.msra.mxu0 %v3968
        %4373 = vmatprep.subr.mxu0 0.0
        %4374 = vmatpush1.msra.mxu0 %v3967
        %4375 = vmatprep.subr.mxu0 0.0
        %4376 = vmatpush1.msra.mxu0 %v3966
        %4377 = vmatprep.subr.mxu0 0.0
        %4378 = vmatpush1.msra.mxu0 %v3965
        %4379 = vmatprep.subr.mxu0 0.0
        %4380 = vmatpush1.msra.mxu0 %v3964
        %4381 = vmatprep.subr.mxu0 0.0
        %4382 = vmatpush1.msra.mxu0 %v3963
        %4383 = vmatprep.subr.mxu0 0.0
        %4384 = vmatpush1.msra.mxu0 %v3962
        %4385 = vmatprep.subr.mxu0 0.0
        %4386 = vmatpush1.msra.mxu0 %v3961
        %4387 = vmatprep.subr.mxu0 0.0
        %4388 = vmatpush1.msra.mxu0 %v3960
        %4389 = vmatprep.subr.mxu0 0.0
        %4390 = vmatpush2.msra.mxu0 %v3991
        %4391 = vmatprep.subr.mxu0 0.0
        %4392 = vmatpush2.msra.mxu0 %v3990
        %4393 = vmatprep.subr.mxu0 0.0
        %4394 = vmatpush2.msra.mxu0 %v3989
        %4395 = vmatprep.subr.mxu0 0.0
        %4396 = vmatpush2.msra.mxu0 %v3988
        %4397 = vmatprep.subr.mxu0 0.0
        %4398 = vmatpush2.msra.mxu0 %v3987
        %4399 = vmatprep.subr.mxu0 0.0
        %4400 = vmatpush2.msra.mxu0 %v3986
        %4401 = vmatprep.subr.mxu0 0.0
        %4402 = vmatpush2.msra.mxu0 %v3985
        %4403 = vmatprep.subr.mxu0 0.0
        %4404 = vmatpush2.msra.mxu0 %v3984
        %4405 = vmatprep.subr.mxu0 0.0
        %4406 = vmatpush2.msra.mxu0 %v3983
        %4407 = vmatprep.subr.mxu0 0.0
        %4408 = vmatpush2.msra.mxu0 %v3982
        %4409 = vmatprep.subr.mxu0 0.0
        %4410 = vmatpush2.msra.mxu0 %v3981
        %4411 = vmatprep.subr.mxu0 0.0
        %4412 = vmatpush2.msra.mxu0 %v3980
        %4413 = vmatprep.subr.mxu0 0.0
        %4414 = vmatpush2.msra.mxu0 %v3979
        %4415 = vmatprep.subr.mxu0 0.0
        %4416 = vmatpush2.msra.mxu0 %v3978
        %4417 = vmatprep.subr.mxu0 0.0
        %4418 = vmatpush2.msra.mxu0 %v3977
        %4419 = vmatprep.subr.mxu0 0.0
        %4420 = vmatpush2.msra.mxu0 %v3976
        %4421 = vmatprep.mubr.f32.mxu0 %v3843
        %4422 = vmatmul.mubr.f32.gmra.mxu0 %v3832
        %v4423 = vpop.f32.mrf.mxu0
        %v4424 = vadd.f32 %v4309, %v4423
        %v4425 = vpop.f32.mrf.mxu0
        %4426 = vmatprep.mubr.f32.mxu0 %v3844
        %4427 = vmatmul.mubr.f32.gmra.mxu0 %v3833
        %v4428 = vpop.f32.mrf.mxu0
        %v4429 = vadd.f32 %v4314, %v4428
        %v4430 = vpop.f32.mrf.mxu0
        %4431 = vmatprep.mubr.f32.mxu0 %v3845
        %4432 = vmatmul.mubr.f32.gmra.mxu0 %v3834
        %v4433 = vpop.f32.mrf.mxu0
        %v4434 = vadd.f32 %v4319, %v4433
        %v4435 = vpop.f32.mrf.mxu0
        %4436 = vmatprep.mubr.f32.mxu0 %v3846
        %4437 = vmatmul.mubr.f32.gmra.mxu0 %v3835
        %v4438 = vpop.f32.mrf.mxu0
        %v4439 = vadd.f32 %v4324, %v4438
        %v4440 = vpop.f32.mrf.mxu0
        %4441 = vmatprep.mubr.f32.mxu0 %v3847
        %4442 = vmatmul.mubr.f32.gmra.mxu0 %v3836
        %v4443 = vpop.f32.mrf.mxu0
        %v4444 = vadd.f32 %v4329, %v4443
        %v4445 = vpop.f32.mrf.mxu0
        %4446 = vmatprep.mubr.f32.mxu0 %v3848
        %4447 = vmatmul.mubr.f32.gmra.mxu0 %v3837
        %v4448 = vpop.f32.mrf.mxu0
        %v4449 = vadd.f32 %v4334, %v4448
        %v4450 = vpop.f32.mrf.mxu0
        %4451 = vmatprep.mubr.f32.mxu0 %v3849
        %4452 = vmatmul.mubr.f32.gmra.mxu0 %v3838
        %v4453 = vpop.f32.mrf.mxu0
        %v4454 = vadd.f32 %v4339, %v4453
        %v4455 = vpop.f32.mrf.mxu0
        %4456 = vmatprep.mubr.f32.mxu0 %v3850
        %4457 = vmatmul.mubr.f32.gmra.mxu0 %v3839
        %v4458 = vpop.f32.mrf.mxu0
        %v4459 = vadd.f32 %v4344, %v4458
        %v4460 = vpop.f32.mrf.mxu0
        %4461 = vmatprep.mubr.f32.mxu0 %v3851
        %4462 = vmatmul.mubr.f32.gmra.mxu0 %v3841
        %v4463 = vpop.f32.mrf.mxu0
        %v4464 = vadd.f32 %v4349, %v4463
        %v4465 = vpop.f32.mrf.mxu0
        %4466 = vmatprep.mubr.f32.mxu0 %v3852
        %4467 = vmatmul.mubr.f32.gmra.mxu0 %v3842
        %v4468 = vpop.f32.mrf.mxu0
        %v4469 = vadd.f32 %v4354, %v4468
        %v4470 = vpop.f32.mrf.mxu0
        %4471 = vdwg.mxu0
        %4472 = vmatprep.subr.mxu0 0.0
        %4473 = vmatpush1.msra.mxu0 %v4007
        %4474 = vmatprep.subr.mxu0 0.0
        %4475 = vmatpush1.msra.mxu0 %v4006
        %4476 = vmatprep.subr.mxu0 0.0
        %4477 = vmatpush1.msra.mxu0 %v4005
        %4478 = vmatprep.subr.mxu0 0.0
        %4479 = vmatpush1.msra.mxu0 %v4004
        %4480 = vmatprep.subr.mxu0 0.0
        %4481 = vmatpush1.msra.mxu0 %v4003
        %4482 = vmatprep.subr.mxu0 0.0
        %4483 = vmatpush1.msra.mxu0 %v4002
        %4484 = vmatprep.subr.mxu0 0.0
        %4485 = vmatpush1.msra.mxu0 %v4001
        %4486 = vmatprep.subr.mxu0 0.0
        %4487 = vmatpush1.msra.mxu0 %v4000
        %4488 = vmatprep.subr.mxu0 0.0
        %4489 = vmatpush1.msra.mxu0 %v3999
        %4490 = vmatprep.subr.mxu0 0.0
        %4491 = vmatpush1.msra.mxu0 %v3998
        %4492 = vmatprep.subr.mxu0 0.0
        %4493 = vmatpush1.msra.mxu0 %v3997
        %4494 = vmatprep.subr.mxu0 0.0
        %4495 = vmatpush1.msra.mxu0 %v3996
        %4496 = vmatprep.subr.mxu0 0.0
        %4497 = vmatpush1.msra.mxu0 %v3995
        %4498 = vmatprep.subr.mxu0 0.0
        %4499 = vmatpush1.msra.mxu0 %v3994
        %4500 = vmatprep.subr.mxu0 0.0
        %4501 = vmatpush1.msra.mxu0 %v3993
        %4502 = vmatprep.subr.mxu0 0.0
        %4503 = vmatpush1.msra.mxu0 %v3992
        %4504 = vmatprep.subr.mxu0 0.0
        %4505 = vmatpush2.msra.mxu0 0.0
        %4506 = vmatprep.subr.mxu0 0.0
        %4507 = vmatpush2.msra.mxu0 0.0
        %4508 = vmatprep.subr.mxu0 0.0
        %4509 = vmatpush2.msra.mxu0 0.0
        %4510 = vmatprep.subr.mxu0 0.0
        %4511 = vmatpush2.msra.mxu0 0.0
        %4512 = vmatprep.subr.mxu0 0.0
        %4513 = vmatpush2.msra.mxu0 0.0
        %4514 = vmatprep.subr.mxu0 0.0
        %4515 = vmatpush2.msra.mxu0 0.0
        %4516 = vmatprep.subr.mxu0 0.0
        %4517 = vmatpush2.msra.mxu0 0.0
        %4518 = vmatprep.subr.mxu0 0.0
        %4519 = vmatpush2.msra.mxu0 0.0
        %4520 = vmatprep.subr.mxu0 0.0
        %4521 = vmatpush2.msra.mxu0 0.0
        %4522 = vmatprep.subr.mxu0 0.0
        %4523 = vmatpush2.msra.mxu0 0.0
        %4524 = vmatprep.subr.mxu0 0.0
        %4525 = vmatpush2.msra.mxu0 0.0
        %4526 = vmatprep.subr.mxu0 0.0
        %4527 = vmatpush2.msra.mxu0 0.0
        %4528 = vmatprep.subr.mxu0 0.0
        %4529 = vmatpush2.msra.mxu0 0.0
        %4530 = vmatprep.subr.mxu0 0.0
        %4531 = vmatpush2.msra.mxu0 0.0
        %4532 = vmatprep.subr.mxu0 0.0
        %4533 = vmatpush2.msra.mxu0 0.0
        %4534 = vmatprep.subr.mxu0 0.0
        %4535 = vmatpush2.msra.mxu0 0.0
        %4536 = vmatprep.mubr.f32.mxu0 0.0
        %4537 = vmatmul.mubr.f32.gmra.mxu0 %v3853
        %v4538 = vpop.f32.mrf.mxu0
        %v4539 = vadd.f32 %v4424, %v4538
        %v4540 = vpop.f32.mrf.mxu0
        %4541 = vmatprep.mubr.f32.mxu0 0.0
        %4542 = vmatmul.mubr.f32.gmra.mxu0 %v3854
        %v4543 = vpop.f32.mrf.mxu0
        %v4544 = vadd.f32 %v4429, %v4543
        %v4545 = vpop.f32.mrf.mxu0
        %4546 = vmatprep.mubr.f32.mxu0 0.0
        %4547 = vmatmul.mubr.f32.gmra.mxu0 %v3855
        %v4548 = vpop.f32.mrf.mxu0
        %v4549 = vadd.f32 %v4434, %v4548
        %v4550 = vpop.f32.mrf.mxu0
        %4551 = vmatprep.mubr.f32.mxu0 0.0
        %4552 = vmatmul.mubr.f32.gmra.mxu0 %v3856
        %v4553 = vpop.f32.mrf.mxu0
        %v4554 = vadd.f32 %v4439, %v4553
        %v4555 = vpop.f32.mrf.mxu0
        %4556 = vmatprep.mubr.f32.mxu0 0.0
        %4557 = vmatmul.mubr.f32.gmra.mxu0 %v3857
        %v4558 = vpop.f32.mrf.mxu0
        %v4559 = vadd.f32 %v4444, %v4558
        %v4560 = vpop.f32.mrf.mxu0
        %4561 = vmatprep.mubr.f32.mxu0 0.0
        %4562 = vmatmul.mubr.f32.gmra.mxu0 %v3858
        %v4563 = vpop.f32.mrf.mxu0
        %v4564 = vadd.f32 %v4449, %v4563
        %v4565 = vpop.f32.mrf.mxu0
        %4566 = vmatprep.mubr.f32.mxu0 0.0
        %4567 = vmatmul.mubr.f32.gmra.mxu0 %v3859
        %v4568 = vpop.f32.mrf.mxu0
        %v4569 = vadd.f32 %v4454, %v4568
        %v4570 = vpop.f32.mrf.mxu0
        %4571 = vmatprep.mubr.f32.mxu0 0.0
        %4572 = vmatmul.mubr.f32.gmra.mxu0 %v3860
        %v4573 = vpop.f32.mrf.mxu0
        %v4574 = vadd.f32 %v4459, %v4573
        %v4575 = vpop.f32.mrf.mxu0
        %4576 = vmatprep.mubr.f32.mxu0 0.0
        %4577 = vmatmul.mubr.f32.gmra.mxu0 %v3861
        %v4578 = vpop.f32.mrf.mxu0
        %v4579 = vadd.f32 %v4464, %v4578
        %v4580 = vpop.f32.mrf.mxu0
        %4581 = vmatprep.mubr.f32.mxu0 0.0
        %4582 = vmatmul.mubr.f32.gmra.mxu0 %v3862
        %v4583 = vpop.f32.mrf.mxu0
        %v4584 = vadd.f32 %v4469, %v4583
        %v4585 = vpop.f32.mrf.mxu0
        %4586 = vdwg.mxu0
        %v4587 = vmax.f32 %v4539, 0.0
        %v4588 = vmax.f32 %v4544, 0.0
        %v4589 = vmax.f32 %v4549, 0.0
        %v4590 = vmax.f32 %v4554, 0.0
        %v4591 = vmax.f32 %v4559, 0.0
        %v4592 = vmax.f32 %v4564, 0.0
        %v4593 = vmax.f32 %v4569, 0.0
        %v4594 = vmax.f32 %v4574, 0.0
        %v4595 = vmax.f32 %v4579, 0.0
        %v4596 = vmax.f32 %v4584, 0.0
        %v4597 = vld [vmem:[#allocation5 + $0xb] sm:$0xff]
        %v4598 = vld [vmem:[#allocation5 + $0x13] sm:$0xff]
        %v4599 = vld [vmem:[#allocation5 + $0x1b] sm:$0xff]
        %v4600 = vld [vmem:[#allocation5 + $0x23] sm:$0xff]
        %v4601 = vld [vmem:[#allocation5 + $0x2b] sm:$0xff]
        %v4602 = vld [vmem:[#allocation5 + $0x33] sm:$0xff]
        %v4603 = vld [vmem:[#allocation5 + $0x3b] sm:$0xff]
        %v4604 = vld [vmem:[#allocation5 + $0x43] sm:$0xff]
        %v4605 = vld [vmem:[#allocation5 + $0x4b] sm:$0xff]
        %v4606 = vld [vmem:[#allocation5 + $0x53] sm:$0x3f]
        %v4607 = vlaneseq
        %v4608 = vshrl.u32 %v4607, 7
        %v4609 = vsub.s32 0, %v4608
        %v4610 = vrot.slane %v3604, %v4609
        %4611 = vmatprep.subr.mxu0 0.0
        %4612 = vmatpush1.msra.mxu0 %v3585
        %4613 = vmatprep.subr.mxu0 0.0
        %4614 = vmatpush1.msra.mxu0 %v3584
        %4615 = vmatprep.subr.mxu0 0.0
        %4616 = vmatpush1.msra.mxu0 %v3583
        %4617 = vmatprep.subr.mxu0 0.0
        %4618 = vmatpush1.msra.mxu0 %v3582
        %4619 = vmatprep.subr.mxu0 0.0
        %4620 = vmatpush1.msra.mxu0 %v3581
        %4621 = vmatprep.subr.mxu0 0.0
        %4622 = vmatpush1.msra.mxu0 %v3580
        %4623 = vmatprep.subr.mxu0 0.0
        %4624 = vmatpush1.msra.mxu0 %v3579
        %4625 = vmatprep.subr.mxu0 0.0
        %4626 = vmatpush1.msra.mxu0 %v3578
        %4627 = vmatprep.subr.mxu0 0.0
        %4628 = vmatpush1.msra.mxu0 %v3577
        %4629 = vmatprep.subr.mxu0 0.0
        %4630 = vmatpush1.msra.mxu0 %v3576
        %4631 = vmatprep.subr.mxu0 0.0
        %4632 = vmatpush1.msra.mxu0 %v3575
        %4633 = vmatprep.subr.mxu0 0.0
        %4634 = vmatpush1.msra.mxu0 %v3574
        %4635 = vmatprep.subr.mxu0 0.0
        %4636 = vmatpush1.msra.mxu0 %v3573
        %4637 = vmatprep.subr.mxu0 0.0
        %4638 = vmatpush1.msra.mxu0 %v3572
        %4639 = vmatprep.subr.mxu0 0.0
        %4640 = vmatpush1.msra.mxu0 %v3571
        %4641 = vmatprep.subr.mxu0 0.0
        %4642 = vmatpush1.msra.mxu0 %v3570
        %4643 = vmatprep.subr.mxu0 0.0
        %4644 = vmatpush2.msra.mxu0 0.0
        %4645 = vmatprep.subr.mxu0 0.0
        %4646 = vmatpush2.msra.mxu0 0.0
        %4647 = vmatprep.subr.mxu0 0.0
        %4648 = vmatpush2.msra.mxu0 0.0
        %4649 = vmatprep.subr.mxu0 0.0
        %4650 = vmatpush2.msra.mxu0 0.0
        %4651 = vmatprep.subr.mxu0 0.0
        %4652 = vmatpush2.msra.mxu0 0.0
        %4653 = vmatprep.subr.mxu0 0.0
        %4654 = vmatpush2.msra.mxu0 0.0
        %4655 = vmatprep.subr.mxu0 0.0
        %4656 = vmatpush2.msra.mxu0 0.0
        %4657 = vmatprep.subr.mxu0 0.0
        %4658 = vmatpush2.msra.mxu0 0.0
        %4659 = vmatprep.subr.mxu0 0.0
        %4660 = vmatpush2.msra.mxu0 0.0
        %4661 = vmatprep.subr.mxu0 0.0
        %4662 = vmatpush2.msra.mxu0 0.0
        %4663 = vmatprep.subr.mxu0 0.0
        %4664 = vmatpush2.msra.mxu0 0.0
        %4665 = vmatprep.subr.mxu0 0.0
        %4666 = vmatpush2.msra.mxu0 0.0
        %4667 = vmatprep.subr.mxu0 0.0
        %4668 = vmatpush2.msra.mxu0 0.0
        %4669 = vmatprep.subr.mxu0 0.0
        %4670 = vmatpush2.msra.mxu0 0.0
        %4671 = vmatprep.subr.mxu0 0.0
        %4672 = vmatpush2.msra.mxu0 0.0
        %4673 = vmatprep.subr.mxu0 0.0
        %4674 = vmatpush2.msra.mxu0 0.0
        %4675 = vmatprep.mubr.f32.mxu0 0.0
        %4676 = vmatmul.mubr.f32.gmra.mxu0 %v4587
        %v4677 = vpop.f32.mrf.mxu0
        %v4678 = vadd.f32 %v4610, %v4677
        %v4679 = vpop.f32.mrf.mxu0
        %4680 = vmatprep.mubr.f32.mxu0 0.0
        %4681 = vmatmul.mubr.f32.gmra.mxu0 %v4588
        %v4682 = vpop.f32.mrf.mxu0
        %v4683 = vadd.f32 %v4610, %v4682
        %v4684 = vpop.f32.mrf.mxu0
        %4685 = vmatprep.mubr.f32.mxu0 0.0
        %4686 = vmatmul.mubr.f32.gmra.mxu0 %v4589
        %v4687 = vpop.f32.mrf.mxu0
        %v4688 = vadd.f32 %v4610, %v4687
        %v4689 = vpop.f32.mrf.mxu0
        %4690 = vmatprep.mubr.f32.mxu0 0.0
        %4691 = vmatmul.mubr.f32.gmra.mxu0 %v4590
        %v4692 = vpop.f32.mrf.mxu0
        %v4693 = vadd.f32 %v4610, %v4692
        %v4694 = vpop.f32.mrf.mxu0
        %4695 = vmatprep.mubr.f32.mxu0 0.0
        %4696 = vmatmul.mubr.f32.gmra.mxu0 %v4591
        %v4697 = vpop.f32.mrf.mxu0
        %v4698 = vadd.f32 %v4610, %v4697
        %v4699 = vpop.f32.mrf.mxu0
        %4700 = vmatprep.mubr.f32.mxu0 0.0
        %4701 = vmatmul.mubr.f32.gmra.mxu0 %v4592
        %v4702 = vpop.f32.mrf.mxu0
        %v4703 = vadd.f32 %v4610, %v4702
        %v4704 = vpop.f32.mrf.mxu0
        %4705 = vmatprep.mubr.f32.mxu0 0.0
        %4706 = vmatmul.mubr.f32.gmra.mxu0 %v4593
        %v4707 = vpop.f32.mrf.mxu0
        %v4708 = vadd.f32 %v4610, %v4707
        %v4709 = vpop.f32.mrf.mxu0
        %4710 = vmatprep.mubr.f32.mxu0 0.0
        %4711 = vmatmul.mubr.f32.gmra.mxu0 %v4594
        %v4712 = vpop.f32.mrf.mxu0
        %v4713 = vadd.f32 %v4610, %v4712
        %v4714 = vpop.f32.mrf.mxu0
        %4715 = vmatprep.mubr.f32.mxu0 0.0
        %4716 = vmatmul.mubr.f32.gmra.mxu0 %v4595
        %v4717 = vpop.f32.mrf.mxu0
        %v4718 = vadd.f32 %v4610, %v4717
        %v4719 = vpop.f32.mrf.mxu0
        %4720 = vmatprep.mubr.f32.mxu0 0.0
        %4721 = vmatmul.mubr.f32.gmra.mxu0 %v4596
        %v4722 = vpop.f32.mrf.mxu0
        %v4723 = vadd.f32 %v4610, %v4722
        %v4724 = vpop.f32.mrf.mxu0
        %4725 = vdwg.mxu0
        %4726 = vmatprep.subr.mxu0 0.0
        %4727 = vmatpush1.msra.mxu0 %v3602
        %4728 = vmatprep.subr.mxu0 0.0
        %4729 = vmatpush1.msra.mxu0 %v3601
        %4730 = vmatprep.subr.mxu0 0.0
        %4731 = vmatpush1.msra.mxu0 %v3600
        %4732 = vmatprep.subr.mxu0 0.0
        %4733 = vmatpush1.msra.mxu0 %v3599
        %4734 = vmatprep.subr.mxu0 0.0
        %4735 = vmatpush1.msra.mxu0 %v3598
        %4736 = vmatprep.subr.mxu0 0.0
        %4737 = vmatpush1.msra.mxu0 %v3597
        %4738 = vmatprep.subr.mxu0 0.0
        %4739 = vmatpush1.msra.mxu0 %v3596
        %4740 = vmatprep.subr.mxu0 0.0
        %4741 = vmatpush1.msra.mxu0 %v3595
        %4742 = vmatprep.subr.mxu0 0.0
        %4743 = vmatpush1.msra.mxu0 %v3594
        %4744 = vmatprep.subr.mxu0 0.0
        %4745 = vmatpush1.msra.mxu0 %v3593
        %4746 = vmatprep.subr.mxu0 0.0
        %4747 = vmatpush1.msra.mxu0 %v3592
        %4748 = vmatprep.subr.mxu0 0.0
        %4749 = vmatpush1.msra.mxu0 %v3591
        %4750 = vmatprep.subr.mxu0 0.0
        %4751 = vmatpush1.msra.mxu0 %v3590
        %4752 = vmatprep.subr.mxu0 0.0
        %4753 = vmatpush1.msra.mxu0 %v3589
        %4754 = vmatprep.subr.mxu0 0.0
        %4755 = vmatpush1.msra.mxu0 %v3588
        %4756 = vmatprep.subr.mxu0 0.0
        %4757 = vmatpush1.msra.mxu0 %v3587
        %4758 = vmatprep.subr.mxu0 0.0
        %4759 = vmatpush2.msra.mxu0 0.0
        %4760 = vmatprep.subr.mxu0 0.0
        %4761 = vmatpush2.msra.mxu0 0.0
        %4762 = vmatprep.subr.mxu0 0.0
        %4763 = vmatpush2.msra.mxu0 0.0
        %4764 = vmatprep.subr.mxu0 0.0
        %4765 = vmatpush2.msra.mxu0 0.0
        %4766 = vmatprep.subr.mxu0 0.0
        %4767 = vmatpush2.msra.mxu0 0.0
        %4768 = vmatprep.subr.mxu0 0.0
        %4769 = vmatpush2.msra.mxu0 0.0
        %4770 = vmatprep.subr.mxu0 0.0
        %4771 = vmatpush2.msra.mxu0 0.0
        %4772 = vmatprep.subr.mxu0 0.0
        %4773 = vmatpush2.msra.mxu0 0.0
        %4774 = vmatprep.subr.mxu0 0.0
        %4775 = vmatpush2.msra.mxu0 0.0
        %4776 = vmatprep.subr.mxu0 0.0
        %4777 = vmatpush2.msra.mxu0 0.0
        %4778 = vmatprep.subr.mxu0 0.0
        %4779 = vmatpush2.msra.mxu0 0.0
        %4780 = vmatprep.subr.mxu0 0.0
        %4781 = vmatpush2.msra.mxu0 0.0
        %4782 = vmatprep.subr.mxu0 0.0
        %4783 = vmatpush2.msra.mxu0 0.0
        %4784 = vmatprep.subr.mxu0 0.0
        %4785 = vmatpush2.msra.mxu0 0.0
        %4786 = vmatprep.subr.mxu0 0.0
        %4787 = vmatpush2.msra.mxu0 0.0
        %4788 = vmatprep.subr.mxu0 0.0
        %4789 = vmatpush2.msra.mxu0 0.0
        %4790 = vmatprep.mubr.f32.mxu0 0.0
        %4791 = vmatmul.mubr.f32.gmra.mxu0 %v4597
        %v4792 = vpop.f32.mrf.mxu0
        %v4793 = vadd.f32 0.0, %v4792
        %v4794 = vpop.f32.mrf.mxu0
        %4795 = vmatprep.mubr.f32.mxu0 0.0
        %4796 = vmatmul.mubr.f32.gmra.mxu0 %v4598
        %v4797 = vpop.f32.mrf.mxu0
        %v4798 = vadd.f32 0.0, %v4797
        %v4799 = vpop.f32.mrf.mxu0
        %4800 = vmatprep.mubr.f32.mxu0 0.0
        %4801 = vmatmul.mubr.f32.gmra.mxu0 %v4599
        %v4802 = vpop.f32.mrf.mxu0
        %v4803 = vadd.f32 0.0, %v4802
        %v4804 = vpop.f32.mrf.mxu0
        %4805 = vmatprep.mubr.f32.mxu0 0.0
        %4806 = vmatmul.mubr.f32.gmra.mxu0 %v4600
        %v4807 = vpop.f32.mrf.mxu0
        %v4808 = vadd.f32 0.0, %v4807
        %v4809 = vpop.f32.mrf.mxu0
        %4810 = vmatprep.mubr.f32.mxu0 0.0
        %4811 = vmatmul.mubr.f32.gmra.mxu0 %v4601
        %v4812 = vpop.f32.mrf.mxu0
        %v4813 = vadd.f32 0.0, %v4812
        %v4814 = vpop.f32.mrf.mxu0
        %4815 = vmatprep.mubr.f32.mxu0 0.0
        %4816 = vmatmul.mubr.f32.gmra.mxu0 %v4602
        %v4817 = vpop.f32.mrf.mxu0
        %v4818 = vadd.f32 0.0, %v4817
        %v4819 = vpop.f32.mrf.mxu0
        %4820 = vmatprep.mubr.f32.mxu0 0.0
        %4821 = vmatmul.mubr.f32.gmra.mxu0 %v4603
        %v4822 = vpop.f32.mrf.mxu0
        %v4823 = vadd.f32 0.0, %v4822
        %v4824 = vpop.f32.mrf.mxu0
        %4825 = vmatprep.mubr.f32.mxu0 0.0
        %4826 = vmatmul.mubr.f32.gmra.mxu0 %v4604
        %v4827 = vpop.f32.mrf.mxu0
        %v4828 = vadd.f32 0.0, %v4827
        %v4829 = vpop.f32.mrf.mxu0
        %4830 = vmatprep.mubr.f32.mxu0 0.0
        %4831 = vmatmul.mubr.f32.gmra.mxu0 %v4605
        %v4832 = vpop.f32.mrf.mxu0
        %v4833 = vadd.f32 0.0, %v4832
        %v4834 = vpop.f32.mrf.mxu0
        %4835 = vmatprep.mubr.f32.mxu0 0.0
        %4836 = vmatmul.mubr.f32.gmra.mxu0 %v4606
        %v4837 = vpop.f32.mrf.mxu0
        %v4838 = vadd.f32 0.0, %v4837
        %v4839 = vpop.f32.mrf.mxu0
        %4840 = vdwg.mxu0
        %v4841 = vadd.f32 %v4678, %v4793
        %v4842 = vadd.f32 %v4683, %v4798
        %v4843 = vadd.f32 %v4688, %v4803
        %v4844 = vadd.f32 %v4693, %v4808
        %v4845 = vadd.f32 %v4698, %v4813
        %v4846 = vadd.f32 %v4703, %v4818
        %v4847 = vadd.f32 %v4708, %v4823
        %v4848 = vadd.f32 %v4713, %v4828
        %v4849 = vadd.f32 %v4718, %v4833
        %v4850 = vadd.f32 %v4723, %v4838
        %v4851 = vlaneseq
        %v4852 = vshrl.u32 %v4851, 7
        %v4853 = vsub.s32 0, %v4852
        %v4854 = vrot.slane %v3605, %v4853
        %v4855 = vadd.f32 %v4841, %v4854
        %v4856 = vadd.f32 %v4842, %v4854
        %v4857 = vadd.f32 %v4843, %v4854
        %v4858 = vadd.f32 %v4844, %v4854
        %v4859 = vadd.f32 %v4845, %v4854
        %v4860 = vadd.f32 %v4846, %v4854
        %v4861 = vadd.f32 %v4847, %v4854
        %v4862 = vadd.f32 %v4848, %v4854
        %v4863 = vadd.f32 %v4849, %v4854
        %v4864 = vadd.f32 %v4850, %v4854
        %v4865 = vmax.f32 %v4855, 0.0
        %v4866 = vmax.f32 %v4856, 0.0
        %v4867 = vmax.f32 %v4857, 0.0
        %v4868 = vmax.f32 %v4858, 0.0
        %v4869 = vmax.f32 %v4859, 0.0
        %v4870 = vmax.f32 %v4860, 0.0
        %v4871 = vmax.f32 %v4861, 0.0
        %v4872 = vmax.f32 %v4862, 0.0
        %v4873 = vmax.f32 %v4863, 0.0
        %v4874 = vmax.f32 %v4864, 0.0
        %v4875 = vld [vmem:[%s4] sm:$0xff]
        %v4876 = vld [vmem:[%s4 + $0x8] sm:$0xff]
        %v4877 = vld [vmem:[%s4 + $0x10] sm:$0xff]
        %v4878 = vld [vmem:[%s4 + $0x18] sm:$0xff]
        %v4879 = vld [vmem:[%s4 + $0x20] sm:$0xf]
        %v4881 = vsel %vm3258, %v4875, 0
        %v4884 = vsel %vm3258, %v4876, 0
        %v4887 = vsel %vm3258, %v4877, 0
        %v4890 = vsel %vm3258, %v4878, 0
        %v4893 = vsel %vm3258, %v4879, 0
        %v4896 = vsel %vm1648, %v4874, 0
        %4898 = vmatprep.subr.mxu0 0.0
        %4899 = vmatpush1.msra.mxu0 0.0
        %4900 = vmatprep.subr.mxu0 0.0
        %4901 = vmatpush1.msra.mxu0 0.0
        %4902 = vmatprep.subr.mxu0 0.0
        %4903 = vmatpush1.msra.mxu0 0.0
        %4904 = vmatprep.subr.mxu0 0.0
        %4905 = vmatpush1.msra.mxu0 0.0
        %4906 = vmatprep.subr.mxu0 0.0
        %4907 = vmatpush1.msra.mxu0 0.0
        %4908 = vmatprep.subr.mxu0 0.0
        %4909 = vmatpush1.msra.mxu0 0.0
        %4910 = vmatprep.subr.mxu0 0.0
        %4911 = vmatpush1.msra.mxu0 %v4896
        %4912 = vmatprep.subr.mxu0 0.0
        %4913 = vmatpush1.msra.mxu0 %v4873
        %4914 = vmatprep.subr.mxu0 0.0
        %4915 = vmatpush1.msra.mxu0 %v4872
        %4916 = vmatprep.subr.mxu0 0.0
        %4917 = vmatpush1.msra.mxu0 %v4871
        %4918 = vmatprep.subr.mxu0 0.0
        %4919 = vmatpush1.msra.mxu0 %v4870
        %4920 = vmatprep.subr.mxu0 0.0
        %4921 = vmatpush1.msra.mxu0 %v4869
        %4922 = vmatprep.subr.mxu0 0.0
        %4923 = vmatpush1.msra.mxu0 %v4868
        %4924 = vmatprep.subr.mxu0 0.0
        %4925 = vmatpush1.msra.mxu0 %v4867
        %4926 = vmatprep.subr.mxu0 0.0
        %4927 = vmatpush1.msra.mxu0 %v4866
        %4928 = vmatprep.subr.mxu0 0.0
        %4929 = vmatpush1.msra.mxu0 %v4865
        %4930 = vmatprep.subr.mxu0 0.0
        %4931 = vmatpush2.msra.mxu0 0.0
        %4932 = vmatprep.subr.mxu0 0.0
        %4933 = vmatpush2.msra.mxu0 0.0
        %4934 = vmatprep.subr.mxu0 0.0
        %4935 = vmatpush2.msra.mxu0 0.0
        %4936 = vmatprep.subr.mxu0 0.0
        %4937 = vmatpush2.msra.mxu0 0.0
        %4938 = vmatprep.subr.mxu0 0.0
        %4939 = vmatpush2.msra.mxu0 0.0
        %4940 = vmatprep.subr.mxu0 0.0
        %4941 = vmatpush2.msra.mxu0 0.0
        %4942 = vmatprep.subr.mxu0 0.0
        %4943 = vmatpush2.msra.mxu0 0.0
        %4944 = vmatprep.subr.mxu0 0.0
        %4945 = vmatpush2.msra.mxu0 0.0
        %4946 = vmatprep.subr.mxu0 0.0
        %4947 = vmatpush2.msra.mxu0 0.0
        %4948 = vmatprep.subr.mxu0 0.0
        %4949 = vmatpush2.msra.mxu0 0.0
        %4950 = vmatprep.subr.mxu0 0.0
        %4951 = vmatpush2.msra.mxu0 0.0
        %4952 = vmatprep.subr.mxu0 0.0
        %4953 = vmatpush2.msra.mxu0 0.0
        %4954 = vmatprep.subr.mxu0 0.0
        %4955 = vmatpush2.msra.mxu0 0.0
        %4956 = vmatprep.subr.mxu0 0.0
        %4957 = vmatpush2.msra.mxu0 0.0
        %4958 = vmatprep.subr.mxu0 0.0
        %4959 = vmatpush2.msra.mxu0 0.0
        %4960 = vmatprep.subr.mxu0 0.0
        %4961 = vmatpush2.msra.mxu0 0.0
        %4962 = vmatprep.mubr.f32.mxu0 0.0
        %4963 = vmatmul.mubr.f32.gmra.mxu0 %v4881
        %v4964 = vpop.f32.mrf.mxu0
        %v4965 = vadd.f32 0.0, %v4964
        %v4966 = vpop.f32.mrf.mxu0
        %4967 = vmatprep.mubr.f32.mxu0 0.0
        %4968 = vmatmul.mubr.f32.gmra.mxu0 %v4884
        %v4969 = vpop.f32.mrf.mxu0
        %v4970 = vadd.f32 0.0, %v4969
        %v4971 = vpop.f32.mrf.mxu0
        %4972 = vmatprep.mubr.f32.mxu0 0.0
        %4973 = vmatmul.mubr.f32.gmra.mxu0 %v4887
        %v4974 = vpop.f32.mrf.mxu0
        %v4975 = vadd.f32 0.0, %v4974
        %v4976 = vpop.f32.mrf.mxu0
        %4977 = vmatprep.mubr.f32.mxu0 0.0
        %4978 = vmatmul.mubr.f32.gmra.mxu0 %v4890
        %v4979 = vpop.f32.mrf.mxu0
        %v4980 = vadd.f32 0.0, %v4979
        %v4981 = vpop.f32.mrf.mxu0
        %4982 = vmatprep.mubr.f32.mxu0 0.0
        %4983 = vmatmul.mubr.f32.gmra.mxu0 %v4893
        %v4984 = vpop.f32.mrf.mxu0
        %v4985 = vadd.f32 0.0, %v4984
        %v4986 = vpop.f32.mrf.mxu0
        %4987 = vdwg.mxu0
        %4988 = vst [vmem:[#allocation6] sm:$0xff] %v4965
        %4989 = vst [vmem:[#allocation6 + $0x8] sm:$0xff] %v4970
        %4990 = vst [vmem:[#allocation6 + $0x10] sm:$0xff] %v4975
        %4991 = vst [vmem:[#allocation6 + $0x18] sm:$0xff] %v4980
        %4992 = vst [vmem:[#allocation6 + $0x20] sm:$0xf] %v4985
        %v4993 = vadd.f32 %v4965, %v4970
        %v4994 = vadd.f32 %v4993, %v4975
        %v4995 = vadd.f32 %v4994, %v4980
        %v4996 = vsel %vm3455, %v4985, 0.0
        %v4997 = vadd.f32 %v4995, %v4996
        %v4998 = vrot.slane %v4997, 4
        %v4999 = vadd.f32 %v4997, %v4998
        %v5000 = vrot.slane %v4999, 2
        %v5001 = vadd.f32 %v4999, %v5000
        %v5002 = vrot.slane %v5001, 1
        %v5003 = vadd.f32 %v5001, %v5002
        %v5004 = vmul.f32 %v5003, 0.0625
        %s5005 = scalar_lea.vmem %s10, 128
        %v5006 = vld [vmem:[%s5005] sm:$0xff]
        %v5007 = vld [vmem:[%s5005 + $0x8] sm:$0xff]
        %v5008 = vld [vmem:[%s5005 + $0x10] sm:$0xff]
        %v5009 = vld [vmem:[%s5005 + $0x18] sm:$0xff]
        %v5010 = vld [vmem:[%s5005 + $0x20] sm:$0xff]
        %v5011 = vld [vmem:[%s5005 + $0x28] sm:$0xff]
        %v5012 = vld [vmem:[%s5005 + $0x30] sm:$0xff]
        %v5013 = vld [vmem:[%s5005 + $0x38] sm:$0xff]
        %v5014 = vld [vmem:[%s5005 + $0x40] sm:$0xff]
        %v5015 = vld [vmem:[%s5005 + $0x48] sm:$0xff]
        %v5016 = vld [vmem:[%s5005 + $0x50] sm:$0xff]
        %v5017 = vld [vmem:[%s5005 + $0x58] sm:$0xff]
        %v5018 = vld [vmem:[%s5005 + $0x60] sm:$0xff]
        %v5019 = vld [vmem:[%s5005 + $0x68] sm:$0xff]
        %v5020 = vld [vmem:[%s5005 + $0x70] sm:$0xff]
        %v5021 = vld [vmem:[%s5005 + $0x78] sm:$0xff]
        %v5022 = vld [vmem:[%s11 + $0x1] sm:$0x1]
        %5023 = vmatprep.subr.mxu0 0.0
        %5024 = vmatpush1.msra.mxu0 %v5021
        %5025 = vmatprep.subr.mxu0 0.0
        %5026 = vmatpush1.msra.mxu0 %v5020
        %5027 = vmatprep.subr.mxu0 0.0
        %5028 = vmatpush1.msra.mxu0 %v5019
        %5029 = vmatprep.subr.mxu0 0.0
        %5030 = vmatpush1.msra.mxu0 %v5018
        %5031 = vmatprep.subr.mxu0 0.0
        %5032 = vmatpush1.msra.mxu0 %v5017
        %5033 = vmatprep.subr.mxu0 0.0
        %5034 = vmatpush1.msra.mxu0 %v5016
        %5035 = vmatprep.subr.mxu0 0.0
        %5036 = vmatpush1.msra.mxu0 %v5015
        %5037 = vmatprep.subr.mxu0 0.0
        %5038 = vmatpush1.msra.mxu0 %v5014
        %5039 = vmatprep.subr.mxu0 0.0
        %5040 = vmatpush1.msra.mxu0 %v5013
        %5041 = vmatprep.subr.mxu0 0.0
        %5042 = vmatpush1.msra.mxu0 %v5012
        %5043 = vmatprep.subr.mxu0 0.0
        %5044 = vmatpush1.msra.mxu0 %v5011
        %5045 = vmatprep.subr.mxu0 0.0
        %5046 = vmatpush1.msra.mxu0 %v5010
        %5047 = vmatprep.subr.mxu0 0.0
        %5048 = vmatpush1.msra.mxu0 %v5009
        %5049 = vmatprep.subr.mxu0 0.0
        %5050 = vmatpush1.msra.mxu0 %v5008
        %5051 = vmatprep.subr.mxu0 0.0
        %5052 = vmatpush1.msra.mxu0 %v5007
        %5053 = vmatprep.subr.mxu0 0.0
        %5054 = vmatpush1.msra.mxu0 %v5006
        %5055 = vmatprep.subr.mxu0 0.0
        %5056 = vmatpush2.msra.mxu0 0.0
        %5057 = vmatprep.subr.mxu0 0.0
        %5058 = vmatpush2.msra.mxu0 0.0
        %5059 = vmatprep.subr.mxu0 0.0
        %5060 = vmatpush2.msra.mxu0 0.0
        %5061 = vmatprep.subr.mxu0 0.0
        %5062 = vmatpush2.msra.mxu0 0.0
        %5063 = vmatprep.subr.mxu0 0.0
        %5064 = vmatpush2.msra.mxu0 0.0
        %5065 = vmatprep.subr.mxu0 0.0
        %5066 = vmatpush2.msra.mxu0 0.0
        %5067 = vmatprep.subr.mxu0 0.0
        %5068 = vmatpush2.msra.mxu0 0.0
        %5069 = vmatprep.subr.mxu0 0.0
        %5070 = vmatpush2.msra.mxu0 0.0
        %5071 = vmatprep.subr.mxu0 0.0
        %5072 = vmatpush2.msra.mxu0 0.0
        %5073 = vmatprep.subr.mxu0 0.0
        %5074 = vmatpush2.msra.mxu0 0.0
        %5075 = vmatprep.subr.mxu0 0.0
        %5076 = vmatpush2.msra.mxu0 0.0
        %5077 = vmatprep.subr.mxu0 0.0
        %5078 = vmatpush2.msra.mxu0 0.0
        %5079 = vmatprep.subr.mxu0 0.0
        %5080 = vmatpush2.msra.mxu0 0.0
        %5081 = vmatprep.subr.mxu0 0.0
        %5082 = vmatpush2.msra.mxu0 0.0
        %5083 = vmatprep.subr.mxu0 0.0
        %5084 = vmatpush2.msra.mxu0 0.0
        %5085 = vmatprep.subr.mxu0 0.0
        %5086 = vmatpush2.msra.mxu0 0.0
        %5087 = vmatprep.mubr.f32.mxu0 0.0
        %5088 = vmatmul.mubr.f32.gmra.mxu0 %v5004
        %v5089 = vpop.f32.mrf.mxu0
        %v5090 = vadd.f32 %v5022, %v5089
        %v5091 = vpop.f32.mrf.mxu0
        %5092 = vdwg.mxu0
        %s5093 = scalar_lea.vmem %s6, 768
        %v5094 = vld [vmem:[%s5093] sm:$0xff]
        %v5095 = vld [vmem:[%s5093 + $0x8] sm:$0xff]
        %v5096 = vld [vmem:[%s5093 + $0x10] sm:$0xff]
        %v5097 = vld [vmem:[%s5093 + $0x18] sm:$0xff]
        %v5098 = vld [vmem:[%s5093 + $0x20] sm:$0xff]
        %v5099 = vld [vmem:[%s5093 + $0x28] sm:$0xff]
        %v5100 = vld [vmem:[%s5093 + $0x30] sm:$0xff]
        %v5101 = vld [vmem:[%s5093 + $0x38] sm:$0xff]
        %v5102 = vld [vmem:[%s5093 + $0x40] sm:$0xff]
        %v5103 = vld [vmem:[%s5093 + $0x48] sm:$0xff]
        %v5104 = vld [vmem:[%s5093 + $0x50] sm:$0xff]
        %v5105 = vld [vmem:[%s5093 + $0x58] sm:$0xff]
        %v5106 = vld [vmem:[%s5093 + $0x60] sm:$0xff]
        %v5107 = vld [vmem:[%s5093 + $0x68] sm:$0xff]
        %v5108 = vld [vmem:[%s5093 + $0x70] sm:$0xff]
        %v5109 = vld [vmem:[%s5093 + $0x78] sm:$0xff]
        %s5110 = scalar_lea.vmem %s6, 896
        %v5111 = vld [vmem:[%s5110] sm:$0xff]
        %v5112 = vld [vmem:[%s5110 + $0x8] sm:$0xff]
        %v5113 = vld [vmem:[%s5110 + $0x10] sm:$0xff]
        %v5114 = vld [vmem:[%s5110 + $0x18] sm:$0xff]
        %v5115 = vld [vmem:[%s5110 + $0x20] sm:$0xff]
        %v5116 = vld [vmem:[%s5110 + $0x28] sm:$0xff]
        %v5117 = vld [vmem:[%s5110 + $0x30] sm:$0xff]
        %v5118 = vld [vmem:[%s5110 + $0x38] sm:$0xff]
        %v5119 = vld [vmem:[%s5110 + $0x40] sm:$0xff]
        %v5120 = vld [vmem:[%s5110 + $0x48] sm:$0xff]
        %v5121 = vld [vmem:[%s5110 + $0x50] sm:$0xff]
        %v5122 = vld [vmem:[%s5110 + $0x58] sm:$0xff]
        %v5123 = vld [vmem:[%s5110 + $0x60] sm:$0xff]
        %v5124 = vld [vmem:[%s5110 + $0x68] sm:$0xff]
        %v5125 = vld [vmem:[%s5110 + $0x70] sm:$0xff]
        %v5126 = vld [vmem:[%s5110 + $0x78] sm:$0xff]
        %s5127 = scalar_lea.vmem %s6, 1024
        %v5128 = vld [vmem:[%s5127] sm:$0xff]
        %v5129 = vld [vmem:[%s5127 + $0x8] sm:$0xff]
        %v5130 = vld [vmem:[%s5127 + $0x10] sm:$0xff]
        %v5131 = vld [vmem:[%s5127 + $0x18] sm:$0xff]
        %v5132 = vld [vmem:[%s5127 + $0x20] sm:$0xff]
        %v5133 = vld [vmem:[%s5127 + $0x28] sm:$0xff]
        %v5134 = vld [vmem:[%s5127 + $0x30] sm:$0xff]
        %v5135 = vld [vmem:[%s5127 + $0x38] sm:$0xff]
        %v5136 = vld [vmem:[%s5127 + $0x40] sm:$0xff]
        %v5137 = vld [vmem:[%s5127 + $0x48] sm:$0xff]
        %v5138 = vld [vmem:[%s5127 + $0x50] sm:$0xff]
        %v5139 = vld [vmem:[%s5127 + $0x58] sm:$0xff]
        %v5140 = vld [vmem:[%s5127 + $0x60] sm:$0xff]
        %v5141 = vld [vmem:[%s5127 + $0x68] sm:$0xff]
        %v5142 = vld [vmem:[%s5127 + $0x70] sm:$0xff]
        %v5143 = vld [vmem:[%s5127 + $0x78] sm:$0xff]
        %v5144 = vld [vmem:[%s9 + $0x6] sm:$0x1]
        %v5145 = vld [vmem:[%s9 + $0x7] sm:$0x1]
        %v5146 = vld [vmem:[%s9 + $0x8] sm:$0x1]
        %v5147 = vld [vmem:[#allocation6] sm:$0xff]
        %v5148 = vld [vmem:[#allocation6 + $0x8] sm:$0xff]
        %v5149 = vld [vmem:[#allocation6 + $0x10] sm:$0xff]
        %v5150 = vld [vmem:[#allocation6 + $0x18] sm:$0xff]
        %v5151 = vld [vmem:[#allocation6 + $0x20] sm:$0xf]
        %s5152 = scalar_lea.vmem %s8, 208
        %v5153 = vld [vmem:[%s5152] sm:$0xff]
        %v5154 = vld [vmem:[%s5152 + $0x8] sm:$0xff]
        %v5155 = vld [vmem:[%s5152 + $0x10] sm:$0xff]
        %v5156 = vld [vmem:[%s5152 + $0x18] sm:$0xff]
        %v5157 = vld [vmem:[%s5152 + $0x20] sm:$0xf]
        %5158 = vmatprep.subr.mxu0 0.0
        %5159 = vmatpush1.msra.mxu0 %v5109
        %5160 = vmatprep.subr.mxu0 0.0
        %5161 = vmatpush1.msra.mxu0 %v5108
        %5162 = vmatprep.subr.mxu0 0.0
        %5163 = vmatpush1.msra.mxu0 %v5107
        %5164 = vmatprep.subr.mxu0 0.0
        %5165 = vmatpush1.msra.mxu0 %v5106
        %5166 = vmatprep.subr.mxu0 0.0
        %5167 = vmatpush1.msra.mxu0 %v5105
        %5168 = vmatprep.subr.mxu0 0.0
        %5169 = vmatpush1.msra.mxu0 %v5104
        %5170 = vmatprep.subr.mxu0 0.0
        %5171 = vmatpush1.msra.mxu0 %v5103
        %5172 = vmatprep.subr.mxu0 0.0
        %5173 = vmatpush1.msra.mxu0 %v5102
        %5174 = vmatprep.subr.mxu0 0.0
        %5175 = vmatpush1.msra.mxu0 %v5101
        %5176 = vmatprep.subr.mxu0 0.0
        %5177 = vmatpush1.msra.mxu0 %v5100
        %5178 = vmatprep.subr.mxu0 0.0
        %5179 = vmatpush1.msra.mxu0 %v5099
        %5180 = vmatprep.subr.mxu0 0.0
        %5181 = vmatpush1.msra.mxu0 %v5098
        %5182 = vmatprep.subr.mxu0 0.0
        %5183 = vmatpush1.msra.mxu0 %v5097
        %5184 = vmatprep.subr.mxu0 0.0
        %5185 = vmatpush1.msra.mxu0 %v5096
        %5186 = vmatprep.subr.mxu0 0.0
        %5187 = vmatpush1.msra.mxu0 %v5095
        %5188 = vmatprep.subr.mxu0 0.0
        %5189 = vmatpush1.msra.mxu0 %v5094
        %5190 = vmatprep.subr.mxu0 0.0
        %5191 = vmatpush2.msra.mxu0 0.0
        %5192 = vmatprep.subr.mxu0 0.0
        %5193 = vmatpush2.msra.mxu0 0.0
        %5194 = vmatprep.subr.mxu0 0.0
        %5195 = vmatpush2.msra.mxu0 0.0
        %5196 = vmatprep.subr.mxu0 0.0
        %5197 = vmatpush2.msra.mxu0 0.0
        %5198 = vmatprep.subr.mxu0 0.0
        %5199 = vmatpush2.msra.mxu0 0.0
        %5200 = vmatprep.subr.mxu0 0.0
        %5201 = vmatpush2.msra.mxu0 0.0
        %5202 = vmatprep.subr.mxu0 0.0
        %5203 = vmatpush2.msra.mxu0 0.0
        %5204 = vmatprep.subr.mxu0 0.0
        %5205 = vmatpush2.msra.mxu0 0.0
        %5206 = vmatprep.subr.mxu0 0.0
        %5207 = vmatpush2.msra.mxu0 0.0
        %5208 = vmatprep.subr.mxu0 0.0
        %5209 = vmatpush2.msra.mxu0 0.0
        %5210 = vmatprep.subr.mxu0 0.0
        %5211 = vmatpush2.msra.mxu0 0.0
        %5212 = vmatprep.subr.mxu0 0.0
        %5213 = vmatpush2.msra.mxu0 0.0
        %5214 = vmatprep.subr.mxu0 0.0
        %5215 = vmatpush2.msra.mxu0 0.0
        %5216 = vmatprep.subr.mxu0 0.0
        %5217 = vmatpush2.msra.mxu0 0.0
        %5218 = vmatprep.subr.mxu0 0.0
        %5219 = vmatpush2.msra.mxu0 0.0
        %5220 = vmatprep.subr.mxu0 0.0
        %5221 = vmatpush2.msra.mxu0 0.0
        %5222 = vmatprep.mubr.f32.mxu0 0.0
        %5223 = vmatmul.mubr.f32.gmra.mxu0 %v5147
        %v5224 = vpop.f32.mrf.mxu0
        %v5225 = vadd.f32 %v5153, %v5224
        %v5226 = vpop.f32.mrf.mxu0
        %5227 = vmatprep.mubr.f32.mxu0 0.0
        %5228 = vmatmul.mubr.f32.gmra.mxu0 %v5148
        %v5229 = vpop.f32.mrf.mxu0
        %v5230 = vadd.f32 %v5154, %v5229
        %v5231 = vpop.f32.mrf.mxu0
        %5232 = vmatprep.mubr.f32.mxu0 0.0
        %5233 = vmatmul.mubr.f32.gmra.mxu0 %v5149
        %v5234 = vpop.f32.mrf.mxu0
        %v5235 = vadd.f32 %v5155, %v5234
        %v5236 = vpop.f32.mrf.mxu0
        %5237 = vmatprep.mubr.f32.mxu0 0.0
        %5238 = vmatmul.mubr.f32.gmra.mxu0 %v5150
        %v5239 = vpop.f32.mrf.mxu0
        %v5240 = vadd.f32 %v5156, %v5239
        %v5241 = vpop.f32.mrf.mxu0
        %5242 = vmatprep.mubr.f32.mxu0 0.0
        %5243 = vmatmul.mubr.f32.gmra.mxu0 %v5151
        %v5244 = vpop.f32.mrf.mxu0
        %v5245 = vadd.f32 %v5157, %v5244
        %v5246 = vpop.f32.mrf.mxu0
        %5247 = vdwg.mxu0
        %v5248 = vmax.f32 %v5225, 0.0
        %v5249 = vmax.f32 %v5230, 0.0
        %v5250 = vmax.f32 %v5235, 0.0
        %v5251 = vmax.f32 %v5240, 0.0
        %v5252 = vmax.f32 %v5245, 0.0
        %5253 = vst [vmem:[#allocation4] sm:$0xff] %v5248
        %5254 = vst [vmem:[#allocation4 + $0x8] sm:$0xff] %v5249
        %5255 = vst [vmem:[#allocation4 + $0x10] sm:$0xff] %v5250
        %5256 = vst [vmem:[#allocation4 + $0x18] sm:$0xff] %v5251
        %5257 = vst [vmem:[#allocation4 + $0x20] sm:$0xf] %v5252
        %v5258 = vld [vmem:[#allocation4] sm:$0xff]
        %v5259 = vld [vmem:[#allocation4 + $0x8] sm:$0xff]
        %v5260 = vld [vmem:[#allocation4 + $0x10] sm:$0x3f]
        %v5261 = vld [vmem:[#allocation4 + $0x1] sm:$0xff]
        %v5262 = vld [vmem:[#allocation4 + $0x9] sm:$0xff]
        %v5263 = vld [vmem:[#allocation4 + $0x11] sm:$0x3f]
        %v5264 = vld [vmem:[#allocation4 + $0x2] sm:$0xff]
        %v5265 = vld [vmem:[#allocation4 + $0xa] sm:$0xff]
        %v5266 = vld [vmem:[#allocation4 + $0x12] sm:$0x3f]
        %v5267 = vld [vmem:[#allocation4 + $0x6] sm:$0xff]
        %v5268 = vld [vmem:[#allocation4 + $0xe] sm:$0xff]
        %v5269 = vld [vmem:[#allocation4 + $0x16] sm:$0x3f]
        %v5270 = vld [vmem:[#allocation4 + $0x7] sm:$0xff]
        %v5271 = vld [vmem:[#allocation4 + $0xf] sm:$0xff]
        %v5272 = vld [vmem:[#allocation4 + $0x17] sm:$0x3f]
        %v5273 = vld [vmem:[#allocation4 + $0x10] sm:$0xff]
        %v5274 = vld [vmem:[#allocation4 + $0x18] sm:$0x3f]
        %v5275 = vld [vmem:[#allocation4 + $0xc] sm:$0xff]
        %v5276 = vld [vmem:[#allocation4 + $0x14] sm:$0xff]
        %v5277 = vld [vmem:[#allocation4 + $0x1c] sm:$0x3f]
        %v5278 = vld [vmem:[#allocation4 + $0xd] sm:$0xff]
        %v5279 = vld [vmem:[#allocation4 + $0x15] sm:$0xff]
        %v5280 = vld [vmem:[#allocation4 + $0x1d] sm:$0x3f]
        %v5281 = vld [vmem:[#allocation4 + $0x16] sm:$0xff]
        %v5282 = vld [vmem:[#allocation4 + $0x1e] sm:$0x3f]
        %s5283 = scalar_lea.vmem %s7, 2304
        %v5284 = vld [vmem:[%s5283] sm:$0xff]
        %v5285 = vld [vmem:[%s5283 + $0x8] sm:$0xff]
        %v5286 = vld [vmem:[%s5283 + $0x10] sm:$0xff]
        %v5287 = vld [vmem:[%s5283 + $0x18] sm:$0xff]
        %v5288 = vld [vmem:[%s5283 + $0x20] sm:$0xff]
        %v5289 = vld [vmem:[%s5283 + $0x28] sm:$0xff]
        %v5290 = vld [vmem:[%s5283 + $0x30] sm:$0xff]
        %v5291 = vld [vmem:[%s5283 + $0x38] sm:$0xff]
        %v5292 = vld [vmem:[%s5283 + $0x40] sm:$0xff]
        %v5293 = vld [vmem:[%s5283 + $0x48] sm:$0xff]
        %v5294 = vld [vmem:[%s5283 + $0x50] sm:$0xff]
        %v5295 = vld [vmem:[%s5283 + $0x58] sm:$0xff]
        %v5296 = vld [vmem:[%s5283 + $0x60] sm:$0xff]
        %v5297 = vld [vmem:[%s5283 + $0x68] sm:$0xff]
        %v5298 = vld [vmem:[%s5283 + $0x70] sm:$0xff]
        %v5299 = vld [vmem:[%s5283 + $0x78] sm:$0xff]
        %v5300 = vld [vmem:[%s5283 + $0x80] sm:$0xff]
        %v5301 = vld [vmem:[%s5283 + $0x88] sm:$0xff]
        %v5302 = vld [vmem:[%s5283 + $0x90] sm:$0xff]
        %v5303 = vld [vmem:[%s5283 + $0x98] sm:$0xff]
        %v5304 = vld [vmem:[%s5283 + $0xa0] sm:$0xff]
        %v5305 = vld [vmem:[%s5283 + $0xa8] sm:$0xff]
        %v5306 = vld [vmem:[%s5283 + $0xb0] sm:$0xff]
        %v5307 = vld [vmem:[%s5283 + $0xb8] sm:$0xff]
        %v5308 = vld [vmem:[%s5283 + $0xc0] sm:$0xff]
        %v5309 = vld [vmem:[%s5283 + $0xc8] sm:$0xff]
        %v5310 = vld [vmem:[%s5283 + $0xd0] sm:$0xff]
        %v5311 = vld [vmem:[%s5283 + $0xd8] sm:$0xff]
        %v5312 = vld [vmem:[%s5283 + $0xe0] sm:$0xff]
        %v5313 = vld [vmem:[%s5283 + $0xe8] sm:$0xff]
        %v5314 = vld [vmem:[%s5283 + $0xf0] sm:$0xff]
        %v5315 = vld [vmem:[%s5283 + $0xf8] sm:$0xff]
        %v5316 = vld [vmem:[%s5283 + $0x100] sm:$0xff]
        %v5317 = vld [vmem:[%s5283 + $0x108] sm:$0xff]
        %v5318 = vld [vmem:[%s5283 + $0x110] sm:$0xff]
        %v5319 = vld [vmem:[%s5283 + $0x118] sm:$0xff]
        %v5320 = vld [vmem:[%s5283 + $0x120] sm:$0xff]
        %v5321 = vld [vmem:[%s5283 + $0x128] sm:$0xff]
        %v5322 = vld [vmem:[%s5283 + $0x130] sm:$0xff]
        %v5323 = vld [vmem:[%s5283 + $0x138] sm:$0xff]
        %v5324 = vld [vmem:[%s5283 + $0x140] sm:$0xff]
        %v5325 = vld [vmem:[%s5283 + $0x148] sm:$0xff]
        %v5326 = vld [vmem:[%s5283 + $0x150] sm:$0xff]
        %v5327 = vld [vmem:[%s5283 + $0x158] sm:$0xff]
        %v5328 = vld [vmem:[%s5283 + $0x160] sm:$0xff]
        %v5329 = vld [vmem:[%s5283 + $0x168] sm:$0xff]
        %v5330 = vld [vmem:[%s5283 + $0x170] sm:$0xff]
        %v5331 = vld [vmem:[%s5283 + $0x178] sm:$0xff]
        %v5332 = vld [vmem:[%s5283 + $0x180] sm:$0xff]
        %v5333 = vld [vmem:[%s5283 + $0x188] sm:$0xff]
        %v5334 = vld [vmem:[%s5283 + $0x190] sm:$0xff]
        %v5335 = vld [vmem:[%s5283 + $0x198] sm:$0xff]
        %v5336 = vld [vmem:[%s5283 + $0x1a0] sm:$0xff]
        %v5337 = vld [vmem:[%s5283 + $0x1a8] sm:$0xff]
        %v5338 = vld [vmem:[%s5283 + $0x1b0] sm:$0xff]
        %v5339 = vld [vmem:[%s5283 + $0x1b8] sm:$0xff]
        %v5340 = vld [vmem:[%s5283 + $0x1c0] sm:$0xff]
        %v5341 = vld [vmem:[%s5283 + $0x1c8] sm:$0xff]
        %v5342 = vld [vmem:[%s5283 + $0x1d0] sm:$0xff]
        %v5343 = vld [vmem:[%s5283 + $0x1d8] sm:$0xff]
        %v5344 = vld [vmem:[%s5283 + $0x1e0] sm:$0xff]
        %v5345 = vld [vmem:[%s5283 + $0x1e8] sm:$0xff]
        %v5346 = vld [vmem:[%s5283 + $0x1f0] sm:$0xff]
        %v5347 = vld [vmem:[%s5283 + $0x1f8] sm:$0xff]
        %v5348 = vld [vmem:[%s5283 + $0x200] sm:$0xff]
        %v5349 = vld [vmem:[%s5283 + $0x208] sm:$0xff]
        %v5350 = vld [vmem:[%s5283 + $0x210] sm:$0xff]
        %v5351 = vld [vmem:[%s5283 + $0x218] sm:$0xff]
        %v5352 = vld [vmem:[%s5283 + $0x220] sm:$0xff]
        %v5353 = vld [vmem:[%s5283 + $0x228] sm:$0xff]
        %v5354 = vld [vmem:[%s5283 + $0x230] sm:$0xff]
        %v5355 = vld [vmem:[%s5283 + $0x238] sm:$0xff]
        %v5356 = vld [vmem:[%s5283 + $0x240] sm:$0xff]
        %v5357 = vld [vmem:[%s5283 + $0x248] sm:$0xff]
        %v5358 = vld [vmem:[%s5283 + $0x250] sm:$0xff]
        %v5359 = vld [vmem:[%s5283 + $0x258] sm:$0xff]
        %v5360 = vld [vmem:[%s5283 + $0x260] sm:$0xff]
        %v5361 = vld [vmem:[%s5283 + $0x268] sm:$0xff]
        %v5362 = vld [vmem:[%s5283 + $0x270] sm:$0xff]
        %v5363 = vld [vmem:[%s5283 + $0x278] sm:$0xff]
        %v5364 = vld [vmem:[%s5283 + $0x280] sm:$0xff]
        %v5365 = vld [vmem:[%s5283 + $0x288] sm:$0xff]
        %v5366 = vld [vmem:[%s5283 + $0x290] sm:$0xff]
        %v5367 = vld [vmem:[%s5283 + $0x298] sm:$0xff]
        %v5368 = vld [vmem:[%s5283 + $0x2a0] sm:$0xff]
        %v5369 = vld [vmem:[%s5283 + $0x2a8] sm:$0xff]
        %v5370 = vld [vmem:[%s5283 + $0x2b0] sm:$0xff]
        %v5371 = vld [vmem:[%s5283 + $0x2b8] sm:$0xff]
        %v5372 = vld [vmem:[%s5283 + $0x2c0] sm:$0xff]
        %v5373 = vld [vmem:[%s5283 + $0x2c8] sm:$0xff]
        %v5374 = vld [vmem:[%s5283 + $0x2d0] sm:$0xff]
        %v5375 = vld [vmem:[%s5283 + $0x2d8] sm:$0xff]
        %v5376 = vld [vmem:[%s5283 + $0x2e0] sm:$0xff]
        %v5377 = vld [vmem:[%s5283 + $0x2e8] sm:$0xff]
        %v5378 = vld [vmem:[%s5283 + $0x2f0] sm:$0xff]
        %v5379 = vld [vmem:[%s5283 + $0x2f8] sm:$0xff]
        %v5380 = vld [vmem:[%s5283 + $0x300] sm:$0xff]
        %v5381 = vld [vmem:[%s5283 + $0x308] sm:$0xff]
        %v5382 = vld [vmem:[%s5283 + $0x310] sm:$0xff]
        %v5383 = vld [vmem:[%s5283 + $0x318] sm:$0xff]
        %v5384 = vld [vmem:[%s5283 + $0x320] sm:$0xff]
        %v5385 = vld [vmem:[%s5283 + $0x328] sm:$0xff]
        %v5386 = vld [vmem:[%s5283 + $0x330] sm:$0xff]
        %v5387 = vld [vmem:[%s5283 + $0x338] sm:$0xff]
        %v5388 = vld [vmem:[%s5283 + $0x340] sm:$0xff]
        %v5389 = vld [vmem:[%s5283 + $0x348] sm:$0xff]
        %v5390 = vld [vmem:[%s5283 + $0x350] sm:$0xff]
        %v5391 = vld [vmem:[%s5283 + $0x358] sm:$0xff]
        %v5392 = vld [vmem:[%s5283 + $0x360] sm:$0xff]
        %v5393 = vld [vmem:[%s5283 + $0x368] sm:$0xff]
        %v5394 = vld [vmem:[%s5283 + $0x370] sm:$0xff]
        %v5395 = vld [vmem:[%s5283 + $0x378] sm:$0xff]
        %v5396 = vld [vmem:[%s5283 + $0x380] sm:$0xff]
        %v5397 = vld [vmem:[%s5283 + $0x388] sm:$0xff]
        %v5398 = vld [vmem:[%s5283 + $0x390] sm:$0xff]
        %v5399 = vld [vmem:[%s5283 + $0x398] sm:$0xff]
        %v5400 = vld [vmem:[%s5283 + $0x3a0] sm:$0xff]
        %v5401 = vld [vmem:[%s5283 + $0x3a8] sm:$0xff]
        %v5402 = vld [vmem:[%s5283 + $0x3b0] sm:$0xff]
        %v5403 = vld [vmem:[%s5283 + $0x3b8] sm:$0xff]
        %v5404 = vld [vmem:[%s5283 + $0x3c0] sm:$0xff]
        %v5405 = vld [vmem:[%s5283 + $0x3c8] sm:$0xff]
        %v5406 = vld [vmem:[%s5283 + $0x3d0] sm:$0xff]
        %v5407 = vld [vmem:[%s5283 + $0x3d8] sm:$0xff]
        %v5408 = vld [vmem:[%s5283 + $0x3e0] sm:$0xff]
        %v5409 = vld [vmem:[%s5283 + $0x3e8] sm:$0xff]
        %v5410 = vld [vmem:[%s5283 + $0x3f0] sm:$0xff]
        %v5411 = vld [vmem:[%s5283 + $0x3f8] sm:$0xff]
        %v5412 = vld [vmem:[%s5283 + $0x400] sm:$0xff]
        %v5413 = vld [vmem:[%s5283 + $0x408] sm:$0xff]
        %v5414 = vld [vmem:[%s5283 + $0x410] sm:$0xff]
        %v5415 = vld [vmem:[%s5283 + $0x418] sm:$0xff]
        %v5416 = vld [vmem:[%s5283 + $0x420] sm:$0xff]
        %v5417 = vld [vmem:[%s5283 + $0x428] sm:$0xff]
        %v5418 = vld [vmem:[%s5283 + $0x430] sm:$0xff]
        %v5419 = vld [vmem:[%s5283 + $0x438] sm:$0xff]
        %v5420 = vld [vmem:[%s5283 + $0x440] sm:$0xff]
        %v5421 = vld [vmem:[%s5283 + $0x448] sm:$0xff]
        %v5422 = vld [vmem:[%s5283 + $0x450] sm:$0xff]
        %v5423 = vld [vmem:[%s5283 + $0x458] sm:$0xff]
        %v5424 = vld [vmem:[%s5283 + $0x460] sm:$0xff]
        %v5425 = vld [vmem:[%s5283 + $0x468] sm:$0xff]
        %v5426 = vld [vmem:[%s5283 + $0x470] sm:$0xff]
        %v5427 = vld [vmem:[%s5283 + $0x478] sm:$0xff]
        %v5428 = vlaneseq
        %v5429 = vshrl.u32 %v5428, 7
        %v5430 = vsub.s32 0, %v5429
        %v5431 = vrot.slane %v5144, %v5430
        %5432 = vmatprep.subr.mxu0 0.0
        %5433 = vmatpush1.msra.mxu0 %v5299
        %5434 = vmatprep.subr.mxu0 0.0
        %5435 = vmatpush1.msra.mxu0 %v5298
        %5436 = vmatprep.subr.mxu0 0.0
        %5437 = vmatpush1.msra.mxu0 %v5297
        %5438 = vmatprep.subr.mxu0 0.0
        %5439 = vmatpush1.msra.mxu0 %v5296
        %5440 = vmatprep.subr.mxu0 0.0
        %5441 = vmatpush1.msra.mxu0 %v5295
        %5442 = vmatprep.subr.mxu0 0.0
        %5443 = vmatpush1.msra.mxu0 %v5294
        %5444 = vmatprep.subr.mxu0 0.0
        %5445 = vmatpush1.msra.mxu0 %v5293
        %5446 = vmatprep.subr.mxu0 0.0
        %5447 = vmatpush1.msra.mxu0 %v5292
        %5448 = vmatprep.subr.mxu0 0.0
        %5449 = vmatpush1.msra.mxu0 %v5291
        %5450 = vmatprep.subr.mxu0 0.0
        %5451 = vmatpush1.msra.mxu0 %v5290
        %5452 = vmatprep.subr.mxu0 0.0
        %5453 = vmatpush1.msra.mxu0 %v5289
        %5454 = vmatprep.subr.mxu0 0.0
        %5455 = vmatpush1.msra.mxu0 %v5288
        %5456 = vmatprep.subr.mxu0 0.0
        %5457 = vmatpush1.msra.mxu0 %v5287
        %5458 = vmatprep.subr.mxu0 0.0
        %5459 = vmatpush1.msra.mxu0 %v5286
        %5460 = vmatprep.subr.mxu0 0.0
        %5461 = vmatpush1.msra.mxu0 %v5285
        %5462 = vmatprep.subr.mxu0 0.0
        %5463 = vmatpush1.msra.mxu0 %v5284
        %5464 = vmatprep.subr.mxu0 0.0
        %5465 = vmatpush2.msra.mxu0 %v5315
        %5466 = vmatprep.subr.mxu0 0.0
        %5467 = vmatpush2.msra.mxu0 %v5314
        %5468 = vmatprep.subr.mxu0 0.0
        %5469 = vmatpush2.msra.mxu0 %v5313
        %5470 = vmatprep.subr.mxu0 0.0
        %5471 = vmatpush2.msra.mxu0 %v5312
        %5472 = vmatprep.subr.mxu0 0.0
        %5473 = vmatpush2.msra.mxu0 %v5311
        %5474 = vmatprep.subr.mxu0 0.0
        %5475 = vmatpush2.msra.mxu0 %v5310
        %5476 = vmatprep.subr.mxu0 0.0
        %5477 = vmatpush2.msra.mxu0 %v5309
        %5478 = vmatprep.subr.mxu0 0.0
        %5479 = vmatpush2.msra.mxu0 %v5308
        %5480 = vmatprep.subr.mxu0 0.0
        %5481 = vmatpush2.msra.mxu0 %v5307
        %5482 = vmatprep.subr.mxu0 0.0
        %5483 = vmatpush2.msra.mxu0 %v5306
        %5484 = vmatprep.subr.mxu0 0.0
        %5485 = vmatpush2.msra.mxu0 %v5305
        %5486 = vmatprep.subr.mxu0 0.0
        %5487 = vmatpush2.msra.mxu0 %v5304
        %5488 = vmatprep.subr.mxu0 0.0
        %5489 = vmatpush2.msra.mxu0 %v5303
        %5490 = vmatprep.subr.mxu0 0.0
        %5491 = vmatpush2.msra.mxu0 %v5302
        %5492 = vmatprep.subr.mxu0 0.0
        %5493 = vmatpush2.msra.mxu0 %v5301
        %5494 = vmatprep.subr.mxu0 0.0
        %5495 = vmatpush2.msra.mxu0 %v5300
        %5496 = vmatprep.mubr.f32.mxu0 %v5261
        %5497 = vmatmul.mubr.f32.gmra.mxu0 %v5258
        %v5498 = vpop.f32.mrf.mxu0
        %v5499 = vadd.f32 %v5431, %v5498
        %v5500 = vpop.f32.mrf.mxu0
        %5501 = vmatprep.mubr.f32.mxu0 %v5262
        %5502 = vmatmul.mubr.f32.gmra.mxu0 %v5259
        %v5503 = vpop.f32.mrf.mxu0
        %v5504 = vadd.f32 %v5431, %v5503
        %v5505 = vpop.f32.mrf.mxu0
        %5506 = vmatprep.mubr.f32.mxu0 %v5263
        %5507 = vmatmul.mubr.f32.gmra.mxu0 %v5260
        %v5508 = vpop.f32.mrf.mxu0
        %v5509 = vadd.f32 %v5431, %v5508
        %v5510 = vpop.f32.mrf.mxu0
        %5511 = vdwg.mxu0
        %5512 = vmatprep.subr.mxu0 0.0
        %5513 = vmatpush1.msra.mxu0 %v5331
        %5514 = vmatprep.subr.mxu0 0.0
        %5515 = vmatpush1.msra.mxu0 %v5330
        %5516 = vmatprep.subr.mxu0 0.0
        %5517 = vmatpush1.msra.mxu0 %v5329
        %5518 = vmatprep.subr.mxu0 0.0
        %5519 = vmatpush1.msra.mxu0 %v5328
        %5520 = vmatprep.subr.mxu0 0.0
        %5521 = vmatpush1.msra.mxu0 %v5327
        %5522 = vmatprep.subr.mxu0 0.0
        %5523 = vmatpush1.msra.mxu0 %v5326
        %5524 = vmatprep.subr.mxu0 0.0
        %5525 = vmatpush1.msra.mxu0 %v5325
        %5526 = vmatprep.subr.mxu0 0.0
        %5527 = vmatpush1.msra.mxu0 %v5324
        %5528 = vmatprep.subr.mxu0 0.0
        %5529 = vmatpush1.msra.mxu0 %v5323
        %5530 = vmatprep.subr.mxu0 0.0
        %5531 = vmatpush1.msra.mxu0 %v5322
        %5532 = vmatprep.subr.mxu0 0.0
        %5533 = vmatpush1.msra.mxu0 %v5321
        %5534 = vmatprep.subr.mxu0 0.0
        %5535 = vmatpush1.msra.mxu0 %v5320
        %5536 = vmatprep.subr.mxu0 0.0
        %5537 = vmatpush1.msra.mxu0 %v5319
        %5538 = vmatprep.subr.mxu0 0.0
        %5539 = vmatpush1.msra.mxu0 %v5318
        %5540 = vmatprep.subr.mxu0 0.0
        %5541 = vmatpush1.msra.mxu0 %v5317
        %5542 = vmatprep.subr.mxu0 0.0
        %5543 = vmatpush1.msra.mxu0 %v5316
        %5544 = vmatprep.subr.mxu0 0.0
        %5545 = vmatpush2.msra.mxu0 %v5347
        %5546 = vmatprep.subr.mxu0 0.0
        %5547 = vmatpush2.msra.mxu0 %v5346
        %5548 = vmatprep.subr.mxu0 0.0
        %5549 = vmatpush2.msra.mxu0 %v5345
        %5550 = vmatprep.subr.mxu0 0.0
        %5551 = vmatpush2.msra.mxu0 %v5344
        %5552 = vmatprep.subr.mxu0 0.0
        %5553 = vmatpush2.msra.mxu0 %v5343
        %5554 = vmatprep.subr.mxu0 0.0
        %5555 = vmatpush2.msra.mxu0 %v5342
        %5556 = vmatprep.subr.mxu0 0.0
        %5557 = vmatpush2.msra.mxu0 %v5341
        %5558 = vmatprep.subr.mxu0 0.0
        %5559 = vmatpush2.msra.mxu0 %v5340
        %5560 = vmatprep.subr.mxu0 0.0
        %5561 = vmatpush2.msra.mxu0 %v5339
        %5562 = vmatprep.subr.mxu0 0.0
        %5563 = vmatpush2.msra.mxu0 %v5338
        %5564 = vmatprep.subr.mxu0 0.0
        %5565 = vmatpush2.msra.mxu0 %v5337
        %5566 = vmatprep.subr.mxu0 0.0
        %5567 = vmatpush2.msra.mxu0 %v5336
        %5568 = vmatprep.subr.mxu0 0.0
        %5569 = vmatpush2.msra.mxu0 %v5335
        %5570 = vmatprep.subr.mxu0 0.0
        %5571 = vmatpush2.msra.mxu0 %v5334
        %5572 = vmatprep.subr.mxu0 0.0
        %5573 = vmatpush2.msra.mxu0 %v5333
        %5574 = vmatprep.subr.mxu0 0.0
        %5575 = vmatpush2.msra.mxu0 %v5332
        %5576 = vmatprep.mubr.f32.mxu0 %v5267
        %5577 = vmatmul.mubr.f32.gmra.mxu0 %v5264
        %v5578 = vpop.f32.mrf.mxu0
        %v5579 = vadd.f32 %v5499, %v5578
        %v5580 = vpop.f32.mrf.mxu0
        %5581 = vmatprep.mubr.f32.mxu0 %v5268
        %5582 = vmatmul.mubr.f32.gmra.mxu0 %v5265
        %v5583 = vpop.f32.mrf.mxu0
        %v5584 = vadd.f32 %v5504, %v5583
        %v5585 = vpop.f32.mrf.mxu0
        %5586 = vmatprep.mubr.f32.mxu0 %v5269
        %5587 = vmatmul.mubr.f32.gmra.mxu0 %v5266
        %v5588 = vpop.f32.mrf.mxu0
        %v5589 = vadd.f32 %v5509, %v5588
        %v5590 = vpop.f32.mrf.mxu0
        %5591 = vdwg.mxu0
        %5592 = vmatprep.subr.mxu0 0.0
        %5593 = vmatpush1.msra.mxu0 %v5363
        %5594 = vmatprep.subr.mxu0 0.0
        %5595 = vmatpush1.msra.mxu0 %v5362
        %5596 = vmatprep.subr.mxu0 0.0
        %5597 = vmatpush1.msra.mxu0 %v5361
        %5598 = vmatprep.subr.mxu0 0.0
        %5599 = vmatpush1.msra.mxu0 %v5360
        %5600 = vmatprep.subr.mxu0 0.0
        %5601 = vmatpush1.msra.mxu0 %v5359
        %5602 = vmatprep.subr.mxu0 0.0
        %5603 = vmatpush1.msra.mxu0 %v5358
        %5604 = vmatprep.subr.mxu0 0.0
        %5605 = vmatpush1.msra.mxu0 %v5357
        %5606 = vmatprep.subr.mxu0 0.0
        %5607 = vmatpush1.msra.mxu0 %v5356
        %5608 = vmatprep.subr.mxu0 0.0
        %5609 = vmatpush1.msra.mxu0 %v5355
        %5610 = vmatprep.subr.mxu0 0.0
        %5611 = vmatpush1.msra.mxu0 %v5354
        %5612 = vmatprep.subr.mxu0 0.0
        %5613 = vmatpush1.msra.mxu0 %v5353
        %5614 = vmatprep.subr.mxu0 0.0
        %5615 = vmatpush1.msra.mxu0 %v5352
        %5616 = vmatprep.subr.mxu0 0.0
        %5617 = vmatpush1.msra.mxu0 %v5351
        %5618 = vmatprep.subr.mxu0 0.0
        %5619 = vmatpush1.msra.mxu0 %v5350
        %5620 = vmatprep.subr.mxu0 0.0
        %5621 = vmatpush1.msra.mxu0 %v5349
        %5622 = vmatprep.subr.mxu0 0.0
        %5623 = vmatpush1.msra.mxu0 %v5348
        %5624 = vmatprep.subr.mxu0 0.0
        %5625 = vmatpush2.msra.mxu0 %v5379
        %5626 = vmatprep.subr.mxu0 0.0
        %5627 = vmatpush2.msra.mxu0 %v5378
        %5628 = vmatprep.subr.mxu0 0.0
        %5629 = vmatpush2.msra.mxu0 %v5377
        %5630 = vmatprep.subr.mxu0 0.0
        %5631 = vmatpush2.msra.mxu0 %v5376
        %5632 = vmatprep.subr.mxu0 0.0
        %5633 = vmatpush2.msra.mxu0 %v5375
        %5634 = vmatprep.subr.mxu0 0.0
        %5635 = vmatpush2.msra.mxu0 %v5374
        %5636 = vmatprep.subr.mxu0 0.0
        %5637 = vmatpush2.msra.mxu0 %v5373
        %5638 = vmatprep.subr.mxu0 0.0
        %5639 = vmatpush2.msra.mxu0 %v5372
        %5640 = vmatprep.subr.mxu0 0.0
        %5641 = vmatpush2.msra.mxu0 %v5371
        %5642 = vmatprep.subr.mxu0 0.0
        %5643 = vmatpush2.msra.mxu0 %v5370
        %5644 = vmatprep.subr.mxu0 0.0
        %5645 = vmatpush2.msra.mxu0 %v5369
        %5646 = vmatprep.subr.mxu0 0.0
        %5647 = vmatpush2.msra.mxu0 %v5368
        %5648 = vmatprep.subr.mxu0 0.0
        %5649 = vmatpush2.msra.mxu0 %v5367
        %5650 = vmatprep.subr.mxu0 0.0
        %5651 = vmatpush2.msra.mxu0 %v5366
        %5652 = vmatprep.subr.mxu0 0.0
        %5653 = vmatpush2.msra.mxu0 %v5365
        %5654 = vmatprep.subr.mxu0 0.0
        %5655 = vmatpush2.msra.mxu0 %v5364
        %5656 = vmatprep.mubr.f32.mxu0 %v5259
        %5657 = vmatmul.mubr.f32.gmra.mxu0 %v5270
        %v5658 = vpop.f32.mrf.mxu0
        %v5659 = vadd.f32 %v5579, %v5658
        %v5660 = vpop.f32.mrf.mxu0
        %5661 = vmatprep.mubr.f32.mxu0 %v5273
        %5662 = vmatmul.mubr.f32.gmra.mxu0 %v5271
        %v5663 = vpop.f32.mrf.mxu0
        %v5664 = vadd.f32 %v5584, %v5663
        %v5665 = vpop.f32.mrf.mxu0
        %5666 = vmatprep.mubr.f32.mxu0 %v5274
        %5667 = vmatmul.mubr.f32.gmra.mxu0 %v5272
        %v5668 = vpop.f32.mrf.mxu0
        %v5669 = vadd.f32 %v5589, %v5668
        %v5670 = vpop.f32.mrf.mxu0
        %5671 = vdwg.mxu0
        %5672 = vmatprep.subr.mxu0 0.0
        %5673 = vmatpush1.msra.mxu0 %v5395
        %5674 = vmatprep.subr.mxu0 0.0
        %5675 = vmatpush1.msra.mxu0 %v5394
        %5676 = vmatprep.subr.mxu0 0.0
        %5677 = vmatpush1.msra.mxu0 %v5393
        %5678 = vmatprep.subr.mxu0 0.0
        %5679 = vmatpush1.msra.mxu0 %v5392
        %5680 = vmatprep.subr.mxu0 0.0
        %5681 = vmatpush1.msra.mxu0 %v5391
        %5682 = vmatprep.subr.mxu0 0.0
        %5683 = vmatpush1.msra.mxu0 %v5390
        %5684 = vmatprep.subr.mxu0 0.0
        %5685 = vmatpush1.msra.mxu0 %v5389
        %5686 = vmatprep.subr.mxu0 0.0
        %5687 = vmatpush1.msra.mxu0 %v5388
        %5688 = vmatprep.subr.mxu0 0.0
        %5689 = vmatpush1.msra.mxu0 %v5387
        %5690 = vmatprep.subr.mxu0 0.0
        %5691 = vmatpush1.msra.mxu0 %v5386
        %5692 = vmatprep.subr.mxu0 0.0
        %5693 = vmatpush1.msra.mxu0 %v5385
        %5694 = vmatprep.subr.mxu0 0.0
        %5695 = vmatpush1.msra.mxu0 %v5384
        %5696 = vmatprep.subr.mxu0 0.0
        %5697 = vmatpush1.msra.mxu0 %v5383
        %5698 = vmatprep.subr.mxu0 0.0
        %5699 = vmatpush1.msra.mxu0 %v5382
        %5700 = vmatprep.subr.mxu0 0.0
        %5701 = vmatpush1.msra.mxu0 %v5381
        %5702 = vmatprep.subr.mxu0 0.0
        %5703 = vmatpush1.msra.mxu0 %v5380
        %5704 = vmatprep.subr.mxu0 0.0
        %5705 = vmatpush2.msra.mxu0 %v5411
        %5706 = vmatprep.subr.mxu0 0.0
        %5707 = vmatpush2.msra.mxu0 %v5410
        %5708 = vmatprep.subr.mxu0 0.0
        %5709 = vmatpush2.msra.mxu0 %v5409
        %5710 = vmatprep.subr.mxu0 0.0
        %5711 = vmatpush2.msra.mxu0 %v5408
        %5712 = vmatprep.subr.mxu0 0.0
        %5713 = vmatpush2.msra.mxu0 %v5407
        %5714 = vmatprep.subr.mxu0 0.0
        %5715 = vmatpush2.msra.mxu0 %v5406
        %5716 = vmatprep.subr.mxu0 0.0
        %5717 = vmatpush2.msra.mxu0 %v5405
        %5718 = vmatprep.subr.mxu0 0.0
        %5719 = vmatpush2.msra.mxu0 %v5404
        %5720 = vmatprep.subr.mxu0 0.0
        %5721 = vmatpush2.msra.mxu0 %v5403
        %5722 = vmatprep.subr.mxu0 0.0
        %5723 = vmatpush2.msra.mxu0 %v5402
        %5724 = vmatprep.subr.mxu0 0.0
        %5725 = vmatpush2.msra.mxu0 %v5401
        %5726 = vmatprep.subr.mxu0 0.0
        %5727 = vmatpush2.msra.mxu0 %v5400
        %5728 = vmatprep.subr.mxu0 0.0
        %5729 = vmatpush2.msra.mxu0 %v5399
        %5730 = vmatprep.subr.mxu0 0.0
        %5731 = vmatpush2.msra.mxu0 %v5398
        %5732 = vmatprep.subr.mxu0 0.0
        %5733 = vmatpush2.msra.mxu0 %v5397
        %5734 = vmatprep.subr.mxu0 0.0
        %5735 = vmatpush2.msra.mxu0 %v5396
        %5736 = vmatprep.mubr.f32.mxu0 %v5278
        %5737 = vmatmul.mubr.f32.gmra.mxu0 %v5275
        %v5738 = vpop.f32.mrf.mxu0
        %v5739 = vadd.f32 %v5659, %v5738
        %v5740 = vpop.f32.mrf.mxu0
        %5741 = vmatprep.mubr.f32.mxu0 %v5279
        %5742 = vmatmul.mubr.f32.gmra.mxu0 %v5276
        %v5743 = vpop.f32.mrf.mxu0
        %v5744 = vadd.f32 %v5664, %v5743
        %v5745 = vpop.f32.mrf.mxu0
        %5746 = vmatprep.mubr.f32.mxu0 %v5280
        %5747 = vmatmul.mubr.f32.gmra.mxu0 %v5277
        %v5748 = vpop.f32.mrf.mxu0
        %v5749 = vadd.f32 %v5669, %v5748
        %v5750 = vpop.f32.mrf.mxu0
        %5751 = vdwg.mxu0
        %5752 = vmatprep.subr.mxu0 0.0
        %5753 = vmatpush1.msra.mxu0 %v5427
        %5754 = vmatprep.subr.mxu0 0.0
        %5755 = vmatpush1.msra.mxu0 %v5426
        %5756 = vmatprep.subr.mxu0 0.0
        %5757 = vmatpush1.msra.mxu0 %v5425
        %5758 = vmatprep.subr.mxu0 0.0
        %5759 = vmatpush1.msra.mxu0 %v5424
        %5760 = vmatprep.subr.mxu0 0.0
        %5761 = vmatpush1.msra.mxu0 %v5423
        %5762 = vmatprep.subr.mxu0 0.0
        %5763 = vmatpush1.msra.mxu0 %v5422
        %5764 = vmatprep.subr.mxu0 0.0
        %5765 = vmatpush1.msra.mxu0 %v5421
        %5766 = vmatprep.subr.mxu0 0.0
        %5767 = vmatpush1.msra.mxu0 %v5420
        %5768 = vmatprep.subr.mxu0 0.0
        %5769 = vmatpush1.msra.mxu0 %v5419
        %5770 = vmatprep.subr.mxu0 0.0
        %5771 = vmatpush1.msra.mxu0 %v5418
        %5772 = vmatprep.subr.mxu0 0.0
        %5773 = vmatpush1.msra.mxu0 %v5417
        %5774 = vmatprep.subr.mxu0 0.0
        %5775 = vmatpush1.msra.mxu0 %v5416
        %5776 = vmatprep.subr.mxu0 0.0
        %5777 = vmatpush1.msra.mxu0 %v5415
        %5778 = vmatprep.subr.mxu0 0.0
        %5779 = vmatpush1.msra.mxu0 %v5414
        %5780 = vmatprep.subr.mxu0 0.0
        %5781 = vmatpush1.msra.mxu0 %v5413
        %5782 = vmatprep.subr.mxu0 0.0
        %5783 = vmatpush1.msra.mxu0 %v5412
        %5784 = vmatprep.subr.mxu0 0.0
        %5785 = vmatpush2.msra.mxu0 0.0
        %5786 = vmatprep.subr.mxu0 0.0
        %5787 = vmatpush2.msra.mxu0 0.0
        %5788 = vmatprep.subr.mxu0 0.0
        %5789 = vmatpush2.msra.mxu0 0.0
        %5790 = vmatprep.subr.mxu0 0.0
        %5791 = vmatpush2.msra.mxu0 0.0
        %5792 = vmatprep.subr.mxu0 0.0
        %5793 = vmatpush2.msra.mxu0 0.0
        %5794 = vmatprep.subr.mxu0 0.0
        %5795 = vmatpush2.msra.mxu0 0.0
        %5796 = vmatprep.subr.mxu0 0.0
        %5797 = vmatpush2.msra.mxu0 0.0
        %5798 = vmatprep.subr.mxu0 0.0
        %5799 = vmatpush2.msra.mxu0 0.0
        %5800 = vmatprep.subr.mxu0 0.0
        %5801 = vmatpush2.msra.mxu0 0.0
        %5802 = vmatprep.subr.mxu0 0.0
        %5803 = vmatpush2.msra.mxu0 0.0
        %5804 = vmatprep.subr.mxu0 0.0
        %5805 = vmatpush2.msra.mxu0 0.0
        %5806 = vmatprep.subr.mxu0 0.0
        %5807 = vmatpush2.msra.mxu0 0.0
        %5808 = vmatprep.subr.mxu0 0.0
        %5809 = vmatpush2.msra.mxu0 0.0
        %5810 = vmatprep.subr.mxu0 0.0
        %5811 = vmatpush2.msra.mxu0 0.0
        %5812 = vmatprep.subr.mxu0 0.0
        %5813 = vmatpush2.msra.mxu0 0.0
        %5814 = vmatprep.subr.mxu0 0.0
        %5815 = vmatpush2.msra.mxu0 0.0
        %5816 = vmatprep.mubr.f32.mxu0 0.0
        %5817 = vmatmul.mubr.f32.gmra.mxu0 %v5268
        %v5818 = vpop.f32.mrf.mxu0
        %v5819 = vadd.f32 %v5739, %v5818
        %v5820 = vpop.f32.mrf.mxu0
        %5821 = vmatprep.mubr.f32.mxu0 0.0
        %5822 = vmatmul.mubr.f32.gmra.mxu0 %v5281
        %v5823 = vpop.f32.mrf.mxu0
        %v5824 = vadd.f32 %v5744, %v5823
        %v5825 = vpop.f32.mrf.mxu0
        %5826 = vmatprep.mubr.f32.mxu0 0.0
        %5827 = vmatmul.mubr.f32.gmra.mxu0 %v5282
        %v5828 = vpop.f32.mrf.mxu0
        %v5829 = vadd.f32 %v5749, %v5828
        %v5830 = vpop.f32.mrf.mxu0
        %5831 = vdwg.mxu0
        %v5832 = vmax.f32 %v5819, 0.0
        %v5833 = vmax.f32 %v5824, 0.0
        %v5834 = vmax.f32 %v5829, 0.0
        %v5835 = vld [vmem:[#allocation6 + $0x7] sm:$0xff]
        %v5836 = vld [vmem:[#allocation6 + $0xf] sm:$0xff]
        %v5837 = vld [vmem:[#allocation6 + $0x17] sm:$0x3f]
        %v5838 = vlaneseq
        %v5839 = vshrl.u32 %v5838, 7
        %v5840 = vsub.s32 0, %v5839
        %v5841 = vrot.slane %v5145, %v5840
        %5842 = vmatprep.subr.mxu0 0.0
        %5843 = vmatpush1.msra.mxu0 %v5126
        %5844 = vmatprep.subr.mxu0 0.0
        %5845 = vmatpush1.msra.mxu0 %v5125
        %5846 = vmatprep.subr.mxu0 0.0
        %5847 = vmatpush1.msra.mxu0 %v5124
        %5848 = vmatprep.subr.mxu0 0.0
        %5849 = vmatpush1.msra.mxu0 %v5123
        %5850 = vmatprep.subr.mxu0 0.0
        %5851 = vmatpush1.msra.mxu0 %v5122
        %5852 = vmatprep.subr.mxu0 0.0
        %5853 = vmatpush1.msra.mxu0 %v5121
        %5854 = vmatprep.subr.mxu0 0.0
        %5855 = vmatpush1.msra.mxu0 %v5120
        %5856 = vmatprep.subr.mxu0 0.0
        %5857 = vmatpush1.msra.mxu0 %v5119
        %5858 = vmatprep.subr.mxu0 0.0
        %5859 = vmatpush1.msra.mxu0 %v5118
        %5860 = vmatprep.subr.mxu0 0.0
        %5861 = vmatpush1.msra.mxu0 %v5117
        %5862 = vmatprep.subr.mxu0 0.0
        %5863 = vmatpush1.msra.mxu0 %v5116
        %5864 = vmatprep.subr.mxu0 0.0
        %5865 = vmatpush1.msra.mxu0 %v5115
        %5866 = vmatprep.subr.mxu0 0.0
        %5867 = vmatpush1.msra.mxu0 %v5114
        %5868 = vmatprep.subr.mxu0 0.0
        %5869 = vmatpush1.msra.mxu0 %v5113
        %5870 = vmatprep.subr.mxu0 0.0
        %5871 = vmatpush1.msra.mxu0 %v5112
        %5872 = vmatprep.subr.mxu0 0.0
        %5873 = vmatpush1.msra.mxu0 %v5111
        %5874 = vmatprep.subr.mxu0 0.0
        %5875 = vmatpush2.msra.mxu0 0.0
        %5876 = vmatprep.subr.mxu0 0.0
        %5877 = vmatpush2.msra.mxu0 0.0
        %5878 = vmatprep.subr.mxu0 0.0
        %5879 = vmatpush2.msra.mxu0 0.0
        %5880 = vmatprep.subr.mxu0 0.0
        %5881 = vmatpush2.msra.mxu0 0.0
        %5882 = vmatprep.subr.mxu0 0.0
        %5883 = vmatpush2.msra.mxu0 0.0
        %5884 = vmatprep.subr.mxu0 0.0
        %5885 = vmatpush2.msra.mxu0 0.0
        %5886 = vmatprep.subr.mxu0 0.0
        %5887 = vmatpush2.msra.mxu0 0.0
        %5888 = vmatprep.subr.mxu0 0.0
        %5889 = vmatpush2.msra.mxu0 0.0
        %5890 = vmatprep.subr.mxu0 0.0
        %5891 = vmatpush2.msra.mxu0 0.0
        %5892 = vmatprep.subr.mxu0 0.0
        %5893 = vmatpush2.msra.mxu0 0.0
        %5894 = vmatprep.subr.mxu0 0.0
        %5895 = vmatpush2.msra.mxu0 0.0
        %5896 = vmatprep.subr.mxu0 0.0
        %5897 = vmatpush2.msra.mxu0 0.0
        %5898 = vmatprep.subr.mxu0 0.0
        %5899 = vmatpush2.msra.mxu0 0.0
        %5900 = vmatprep.subr.mxu0 0.0
        %5901 = vmatpush2.msra.mxu0 0.0
        %5902 = vmatprep.subr.mxu0 0.0
        %5903 = vmatpush2.msra.mxu0 0.0
        %5904 = vmatprep.subr.mxu0 0.0
        %5905 = vmatpush2.msra.mxu0 0.0
        %5906 = vmatprep.mubr.f32.mxu0 0.0
        %5907 = vmatmul.mubr.f32.gmra.mxu0 %v5832
        %v5908 = vpop.f32.mrf.mxu0
        %v5909 = vadd.f32 %v5841, %v5908
        %v5910 = vpop.f32.mrf.mxu0
        %5911 = vmatprep.mubr.f32.mxu0 0.0
        %5912 = vmatmul.mubr.f32.gmra.mxu0 %v5833
        %v5913 = vpop.f32.mrf.mxu0
        %v5914 = vadd.f32 %v5841, %v5913
        %v5915 = vpop.f32.mrf.mxu0
        %5916 = vmatprep.mubr.f32.mxu0 0.0
        %5917 = vmatmul.mubr.f32.gmra.mxu0 %v5834
        %v5918 = vpop.f32.mrf.mxu0
        %v5919 = vadd.f32 %v5841, %v5918
        %v5920 = vpop.f32.mrf.mxu0
        %5921 = vdwg.mxu0
        %5922 = vmatprep.subr.mxu0 0.0
        %5923 = vmatpush1.msra.mxu0 %v5143
        %5924 = vmatprep.subr.mxu0 0.0
        %5925 = vmatpush1.msra.mxu0 %v5142
        %5926 = vmatprep.subr.mxu0 0.0
        %5927 = vmatpush1.msra.mxu0 %v5141
        %5928 = vmatprep.subr.mxu0 0.0
        %5929 = vmatpush1.msra.mxu0 %v5140
        %5930 = vmatprep.subr.mxu0 0.0
        %5931 = vmatpush1.msra.mxu0 %v5139
        %5932 = vmatprep.subr.mxu0 0.0
        %5933 = vmatpush1.msra.mxu0 %v5138
        %5934 = vmatprep.subr.mxu0 0.0
        %5935 = vmatpush1.msra.mxu0 %v5137
        %5936 = vmatprep.subr.mxu0 0.0
        %5937 = vmatpush1.msra.mxu0 %v5136
        %5938 = vmatprep.subr.mxu0 0.0
        %5939 = vmatpush1.msra.mxu0 %v5135
        %5940 = vmatprep.subr.mxu0 0.0
        %5941 = vmatpush1.msra.mxu0 %v5134
        %5942 = vmatprep.subr.mxu0 0.0
        %5943 = vmatpush1.msra.mxu0 %v5133
        %5944 = vmatprep.subr.mxu0 0.0
        %5945 = vmatpush1.msra.mxu0 %v5132
        %5946 = vmatprep.subr.mxu0 0.0
        %5947 = vmatpush1.msra.mxu0 %v5131
        %5948 = vmatprep.subr.mxu0 0.0
        %5949 = vmatpush1.msra.mxu0 %v5130
        %5950 = vmatprep.subr.mxu0 0.0
        %5951 = vmatpush1.msra.mxu0 %v5129
        %5952 = vmatprep.subr.mxu0 0.0
        %5953 = vmatpush1.msra.mxu0 %v5128
        %5954 = vmatprep.subr.mxu0 0.0
        %5955 = vmatpush2.msra.mxu0 0.0
        %5956 = vmatprep.subr.mxu0 0.0
        %5957 = vmatpush2.msra.mxu0 0.0
        %5958 = vmatprep.subr.mxu0 0.0
        %5959 = vmatpush2.msra.mxu0 0.0
        %5960 = vmatprep.subr.mxu0 0.0
        %5961 = vmatpush2.msra.mxu0 0.0
        %5962 = vmatprep.subr.mxu0 0.0
        %5963 = vmatpush2.msra.mxu0 0.0
        %5964 = vmatprep.subr.mxu0 0.0
        %5965 = vmatpush2.msra.mxu0 0.0
        %5966 = vmatprep.subr.mxu0 0.0
        %5967 = vmatpush2.msra.mxu0 0.0
        %5968 = vmatprep.subr.mxu0 0.0
        %5969 = vmatpush2.msra.mxu0 0.0
        %5970 = vmatprep.subr.mxu0 0.0
        %5971 = vmatpush2.msra.mxu0 0.0
        %5972 = vmatprep.subr.mxu0 0.0
        %5973 = vmatpush2.msra.mxu0 0.0
        %5974 = vmatprep.subr.mxu0 0.0
        %5975 = vmatpush2.msra.mxu0 0.0
        %5976 = vmatprep.subr.mxu0 0.0
        %5977 = vmatpush2.msra.mxu0 0.0
        %5978 = vmatprep.subr.mxu0 0.0
        %5979 = vmatpush2.msra.mxu0 0.0
        %5980 = vmatprep.subr.mxu0 0.0
        %5981 = vmatpush2.msra.mxu0 0.0
        %5982 = vmatprep.subr.mxu0 0.0
        %5983 = vmatpush2.msra.mxu0 0.0
        %5984 = vmatprep.subr.mxu0 0.0
        %5985 = vmatpush2.msra.mxu0 0.0
        %5986 = vmatprep.mubr.f32.mxu0 0.0
        %5987 = vmatmul.mubr.f32.gmra.mxu0 %v5835
        %v5988 = vpop.f32.mrf.mxu0
        %v5989 = vadd.f32 0.0, %v5988
        %v5990 = vpop.f32.mrf.mxu0
        %5991 = vmatprep.mubr.f32.mxu0 0.0
        %5992 = vmatmul.mubr.f32.gmra.mxu0 %v5836
        %v5993 = vpop.f32.mrf.mxu0
        %v5994 = vadd.f32 0.0, %v5993
        %v5995 = vpop.f32.mrf.mxu0
        %5996 = vmatprep.mubr.f32.mxu0 0.0
        %5997 = vmatmul.mubr.f32.gmra.mxu0 %v5837
        %v5998 = vpop.f32.mrf.mxu0
        %v5999 = vadd.f32 0.0, %v5998
        %v6000 = vpop.f32.mrf.mxu0
        %6001 = vdwg.mxu0
        %v6002 = vadd.f32 %v5909, %v5989
        %v6003 = vadd.f32 %v5914, %v5994
        %v6004 = vadd.f32 %v5919, %v5999
        %v6005 = vlaneseq
        %v6006 = vshrl.u32 %v6005, 7
        %v6007 = vsub.s32 0, %v6006
        %v6008 = vrot.slane %v5146, %v6007
        %v6009 = vadd.f32 %v6002, %v6008
        %v6010 = vadd.f32 %v6003, %v6008
        %v6011 = vadd.f32 %v6004, %v6008
        %v6012 = vmax.f32 %v6009, 0.0
        %v6013 = vmax.f32 %v6010, 0.0
        %v6014 = vmax.f32 %v6011, 0.0
        %v6015 = vld [vmem:[%s5] sm:$0xf]
        %vm6016 = vcmask 179200
        %v6018 = vsel %vm6016, %v6015, 0
        %v6021 = vsel %vm1648, %v6014, 0
        %6023 = vmatprep.subr.mxu0 0.0
        %6024 = vmatpush1.msra.mxu0 0.0
        %6025 = vmatprep.subr.mxu0 0.0
        %6026 = vmatpush1.msra.mxu0 0.0
        %6027 = vmatprep.subr.mxu0 0.0
        %6028 = vmatpush1.msra.mxu0 0.0
        %6029 = vmatprep.subr.mxu0 0.0
        %6030 = vmatpush1.msra.mxu0 0.0
        %6031 = vmatprep.subr.mxu0 0.0
        %6032 = vmatpush1.msra.mxu0 0.0
        %6033 = vmatprep.subr.mxu0 0.0
        %6034 = vmatpush1.msra.mxu0 0.0
        %6035 = vmatprep.subr.mxu0 0.0
        %6036 = vmatpush1.msra.mxu0 0.0
        %6037 = vmatprep.subr.mxu0 0.0
        %6038 = vmatpush1.msra.mxu0 0.0
        %6039 = vmatprep.subr.mxu0 0.0
        %6040 = vmatpush1.msra.mxu0 0.0
        %6041 = vmatprep.subr.mxu0 0.0
        %6042 = vmatpush1.msra.mxu0 0.0
        %6043 = vmatprep.subr.mxu0 0.0
        %6044 = vmatpush1.msra.mxu0 0.0
        %6045 = vmatprep.subr.mxu0 0.0
        %6046 = vmatpush1.msra.mxu0 0.0
        %6047 = vmatprep.subr.mxu0 0.0
        %6048 = vmatpush1.msra.mxu0 0.0
        %6049 = vmatprep.subr.mxu0 0.0
        %6050 = vmatpush1.msra.mxu0 %v6021
        %6051 = vmatprep.subr.mxu0 0.0
        %6052 = vmatpush1.msra.mxu0 %v6013
        %6053 = vmatprep.subr.mxu0 0.0
        %6054 = vmatpush1.msra.mxu0 %v6012
        %6055 = vmatprep.subr.mxu0 0.0
        %6056 = vmatpush2.msra.mxu0 0.0
        %6057 = vmatprep.subr.mxu0 0.0
        %6058 = vmatpush2.msra.mxu0 0.0
        %6059 = vmatprep.subr.mxu0 0.0
        %6060 = vmatpush2.msra.mxu0 0.0
        %6061 = vmatprep.subr.mxu0 0.0
        %6062 = vmatpush2.msra.mxu0 0.0
        %6063 = vmatprep.subr.mxu0 0.0
        %6064 = vmatpush2.msra.mxu0 0.0
        %6065 = vmatprep.subr.mxu0 0.0
        %6066 = vmatpush2.msra.mxu0 0.0
        %6067 = vmatprep.subr.mxu0 0.0
        %6068 = vmatpush2.msra.mxu0 0.0
        %6069 = vmatprep.subr.mxu0 0.0
        %6070 = vmatpush2.msra.mxu0 0.0
        %6071 = vmatprep.subr.mxu0 0.0
        %6072 = vmatpush2.msra.mxu0 0.0
        %6073 = vmatprep.subr.mxu0 0.0
        %6074 = vmatpush2.msra.mxu0 0.0
        %6075 = vmatprep.subr.mxu0 0.0
        %6076 = vmatpush2.msra.mxu0 0.0
        %6077 = vmatprep.subr.mxu0 0.0
        %6078 = vmatpush2.msra.mxu0 0.0
        %6079 = vmatprep.subr.mxu0 0.0
        %6080 = vmatpush2.msra.mxu0 0.0
        %6081 = vmatprep.subr.mxu0 0.0
        %6082 = vmatpush2.msra.mxu0 0.0
        %6083 = vmatprep.subr.mxu0 0.0
        %6084 = vmatpush2.msra.mxu0 0.0
        %6085 = vmatprep.subr.mxu0 0.0
        %6086 = vmatpush2.msra.mxu0 0.0
        %6087 = vmatprep.mubr.f32.mxu0 0.0
        %6088 = vmatmul.mubr.f32.gmra.mxu0 %v6018
        %v6089 = vpop.f32.mrf.mxu0
        %v6090 = vadd.f32 0.0, %v6089
        %v6091 = vpop.f32.mrf.mxu0
        %6092 = vdwg.mxu0
        %6093 = vst [vmem:[%s545] sm:$0xf] %v6090
        %v6094 = vsel %vm3455, %v6090, 0.0
        %v6095 = vrot.slane %v6094, 4
        %v6096 = vadd.f32 %v6094, %v6095
        %v6097 = vrot.slane %v6096, 2
        %v6098 = vadd.f32 %v6096, %v6097
        %v6099 = vrot.slane %v6098, 1
        %v6100 = vadd.f32 %v6098, %v6099
        %v6101 = vmul.f32 %v6100, 0.25
        %s6102 = scalar_lea.vmem %s10, 256
        %v6103 = vld [vmem:[%s6102] sm:$0xff]
        %v6104 = vld [vmem:[%s6102 + $0x8] sm:$0xff]
        %v6105 = vld [vmem:[%s6102 + $0x10] sm:$0xff]
        %v6106 = vld [vmem:[%s6102 + $0x18] sm:$0xff]
        %v6107 = vld [vmem:[%s6102 + $0x20] sm:$0xff]
        %v6108 = vld [vmem:[%s6102 + $0x28] sm:$0xff]
        %v6109 = vld [vmem:[%s6102 + $0x30] sm:$0xff]
        %v6110 = vld [vmem:[%s6102 + $0x38] sm:$0xff]
        %v6111 = vld [vmem:[%s6102 + $0x40] sm:$0xff]
        %v6112 = vld [vmem:[%s6102 + $0x48] sm:$0xff]
        %v6113 = vld [vmem:[%s6102 + $0x50] sm:$0xff]
        %v6114 = vld [vmem:[%s6102 + $0x58] sm:$0xff]
        %v6115 = vld [vmem:[%s6102 + $0x60] sm:$0xff]
        %v6116 = vld [vmem:[%s6102 + $0x68] sm:$0xff]
        %v6117 = vld [vmem:[%s6102 + $0x70] sm:$0xff]
        %v6118 = vld [vmem:[%s6102 + $0x78] sm:$0xff]
        %v6119 = vld [vmem:[%s11 + $0x2] sm:$0x1]
        %6120 = vmatprep.subr.mxu0 0.0
        %6121 = vmatpush1.msra.mxu0 %v6118
        %6122 = vmatprep.subr.mxu0 0.0
        %6123 = vmatpush1.msra.mxu0 %v6117
        %6124 = vmatprep.subr.mxu0 0.0
        %6125 = vmatpush1.msra.mxu0 %v6116
        %6126 = vmatprep.subr.mxu0 0.0
        %6127 = vmatpush1.msra.mxu0 %v6115
        %6128 = vmatprep.subr.mxu0 0.0
        %6129 = vmatpush1.msra.mxu0 %v6114
        %6130 = vmatprep.subr.mxu0 0.0
        %6131 = vmatpush1.msra.mxu0 %v6113
        %6132 = vmatprep.subr.mxu0 0.0
        %6133 = vmatpush1.msra.mxu0 %v6112
        %6134 = vmatprep.subr.mxu0 0.0
        %6135 = vmatpush1.msra.mxu0 %v6111
        %6136 = vmatprep.subr.mxu0 0.0
        %6137 = vmatpush1.msra.mxu0 %v6110
        %6138 = vmatprep.subr.mxu0 0.0
        %6139 = vmatpush1.msra.mxu0 %v6109
        %6140 = vmatprep.subr.mxu0 0.0
        %6141 = vmatpush1.msra.mxu0 %v6108
        %6142 = vmatprep.subr.mxu0 0.0
        %6143 = vmatpush1.msra.mxu0 %v6107
        %6144 = vmatprep.subr.mxu0 0.0
        %6145 = vmatpush1.msra.mxu0 %v6106
        %6146 = vmatprep.subr.mxu0 0.0
        %6147 = vmatpush1.msra.mxu0 %v6105
        %6148 = vmatprep.subr.mxu0 0.0
        %6149 = vmatpush1.msra.mxu0 %v6104
        %6150 = vmatprep.subr.mxu0 0.0
        %6151 = vmatpush1.msra.mxu0 %v6103
        %6152 = vmatprep.subr.mxu0 0.0
        %6153 = vmatpush2.msra.mxu0 0.0
        %6154 = vmatprep.subr.mxu0 0.0
        %6155 = vmatpush2.msra.mxu0 0.0
        %6156 = vmatprep.subr.mxu0 0.0
        %6157 = vmatpush2.msra.mxu0 0.0
        %6158 = vmatprep.subr.mxu0 0.0
        %6159 = vmatpush2.msra.mxu0 0.0
        %6160 = vmatprep.subr.mxu0 0.0
        %6161 = vmatpush2.msra.mxu0 0.0
        %6162 = vmatprep.subr.mxu0 0.0
        %6163 = vmatpush2.msra.mxu0 0.0
        %6164 = vmatprep.subr.mxu0 0.0
        %6165 = vmatpush2.msra.mxu0 0.0
        %6166 = vmatprep.subr.mxu0 0.0
        %6167 = vmatpush2.msra.mxu0 0.0
        %6168 = vmatprep.subr.mxu0 0.0
        %6169 = vmatpush2.msra.mxu0 0.0
        %6170 = vmatprep.subr.mxu0 0.0
        %6171 = vmatpush2.msra.mxu0 0.0
        %6172 = vmatprep.subr.mxu0 0.0
        %6173 = vmatpush2.msra.mxu0 0.0
        %6174 = vmatprep.subr.mxu0 0.0
        %6175 = vmatpush2.msra.mxu0 0.0
        %6176 = vmatprep.subr.mxu0 0.0
        %6177 = vmatpush2.msra.mxu0 0.0
        %6178 = vmatprep.subr.mxu0 0.0
        %6179 = vmatpush2.msra.mxu0 0.0
        %6180 = vmatprep.subr.mxu0 0.0
        %6181 = vmatpush2.msra.mxu0 0.0
        %6182 = vmatprep.subr.mxu0 0.0
        %6183 = vmatpush2.msra.mxu0 0.0
        %6184 = vmatprep.mubr.f32.mxu0 0.0
        %6185 = vmatmul.mubr.f32.gmra.mxu0 %v6101
        %v6186 = vpop.f32.mrf.mxu0
        %v6187 = vadd.f32 %v6119, %v6186
        %v6188 = vpop.f32.mrf.mxu0
        %6189 = vdwg.mxu0
        %v6190 = vld [vmem:[%s12] sm:$0xff]
        %v6191 = vld [vmem:[%s12 + $0x8] sm:$0xff]
        %v6192 = vld [vmem:[%s12 + $0x10] sm:$0xff]
        %v6193 = vld [vmem:[%s12 + $0x18] sm:$0xff]
        %v6194 = vld [vmem:[%s12 + $0x20] sm:$0xff]
        %v6195 = vld [vmem:[%s12 + $0x28] sm:$0xff]
        %v6196 = vld [vmem:[%s12 + $0x30] sm:$0xff]
        %v6197 = vld [vmem:[%s12 + $0x38] sm:$0xff]
        %v6198 = vld [vmem:[%s12 + $0x40] sm:$0xff]
        %v6199 = vld [vmem:[%s12 + $0x48] sm:$0xff]
        %v6200 = vld [vmem:[%s12 + $0x50] sm:$0xff]
        %v6201 = vld [vmem:[%s12 + $0x58] sm:$0xff]
        %v6202 = vld [vmem:[%s12 + $0x60] sm:$0xff]
        %v6203 = vld [vmem:[%s12 + $0x68] sm:$0xff]
        %v6204 = vld [vmem:[%s12 + $0x70] sm:$0xff]
        %v6205 = vld [vmem:[%s12 + $0x78] sm:$0xff]
        %v6206 = vld [vmem:[%s12 + $0x80] sm:$0xff]
        %v6207 = vld [vmem:[%s12 + $0x88] sm:$0xff]
        %v6208 = vld [vmem:[%s12 + $0x90] sm:$0xff]
        %v6209 = vld [vmem:[%s12 + $0x98] sm:$0xff]
        %v6210 = vld [vmem:[%s12 + $0xa0] sm:$0xff]
        %v6211 = vld [vmem:[%s12 + $0xa8] sm:$0xff]
        %v6212 = vld [vmem:[%s12 + $0xb0] sm:$0xff]
        %v6213 = vld [vmem:[%s12 + $0xb8] sm:$0xff]
        %v6214 = vld [vmem:[%s12 + $0xc0] sm:$0xff]
        %v6215 = vld [vmem:[%s12 + $0xc8] sm:$0xff]
        %v6216 = vld [vmem:[%s12 + $0xd0] sm:$0xff]
        %v6217 = vld [vmem:[%s12 + $0xd8] sm:$0xff]
        %v6218 = vld [vmem:[%s12 + $0xe0] sm:$0xff]
        %v6219 = vld [vmem:[%s12 + $0xe8] sm:$0xff]
        %v6220 = vld [vmem:[%s12 + $0xf0] sm:$0xff]
        %v6221 = vld [vmem:[%s12 + $0xf8] sm:$0xff]
        %v6222 = vld [vmem:[%s12 + $0x100] sm:$0xff]
        %v6223 = vld [vmem:[%s12 + $0x108] sm:$0xff]
        %v6224 = vld [vmem:[%s12 + $0x110] sm:$0xff]
        %v6225 = vld [vmem:[%s12 + $0x118] sm:$0xff]
        %v6226 = vld [vmem:[%s12 + $0x120] sm:$0xff]
        %v6227 = vld [vmem:[%s12 + $0x128] sm:$0xff]
        %v6228 = vld [vmem:[%s12 + $0x130] sm:$0xff]
        %v6229 = vld [vmem:[%s12 + $0x138] sm:$0xff]
        %v6230 = vld [vmem:[%s12 + $0x140] sm:$0xff]
        %v6231 = vld [vmem:[%s12 + $0x148] sm:$0xff]
        %v6232 = vld [vmem:[%s12 + $0x150] sm:$0xff]
        %v6233 = vld [vmem:[%s12 + $0x158] sm:$0xff]
        %v6234 = vld [vmem:[%s12 + $0x160] sm:$0xff]
        %v6235 = vld [vmem:[%s12 + $0x168] sm:$0xff]
        %v6236 = vld [vmem:[%s12 + $0x170] sm:$0xff]
        %v6237 = vld [vmem:[%s12 + $0x178] sm:$0xff]
        %v6238 = vld [vmem:[%s13] ss:$4 sm:$0x7]
        %v6240 = vlaneseq
        %v6241 = vshrl.u32 %v6240, 7
        %v6242 = vsub.s32 0, %v6241
        %v6243 = vrot.slane %v6238, %v6242
        %v6244 = vlaneseq
        %v6245 = vshrl.u32 %v6244, 7
        %v6246 = vsub.s32 1, %v6245
        %v6247 = vrot.slane %v6238, %v6246
        %v6248 = vlaneseq
        %v6249 = vshrl.u32 %v6248, 7
        %v6250 = vsub.s32 2, %v6249
        %v6251 = vrot.slane %v6238, %v6250
        %6255 = vmatprep.subr.mxu0 %v6236
        %6256 = vmatpush1.msra.mxu0 %v6235
        %6257 = vmatprep.subr.mxu0 %v6233
        %6258 = vmatpush1.msra.mxu0 %v6232
        %6259 = vmatprep.subr.mxu0 %v6230
        %6260 = vmatpush1.msra.mxu0 %v6229
        %6261 = vmatprep.subr.mxu0 %v6227
        %6262 = vmatpush1.msra.mxu0 %v6226
        %6263 = vmatprep.subr.mxu0 %v6224
        %6264 = vmatpush1.msra.mxu0 %v6223
        %6265 = vmatprep.subr.mxu0 %v6221
        %6266 = vmatpush1.msra.mxu0 %v6220
        %6267 = vmatprep.subr.mxu0 %v6218
        %6268 = vmatpush1.msra.mxu0 %v6217
        %6269 = vmatprep.subr.mxu0 %v6215
        %6270 = vmatpush1.msra.mxu0 %v6214
        %6271 = vmatprep.subr.mxu0 %v6212
        %6272 = vmatpush1.msra.mxu0 %v6211
        %6273 = vmatprep.subr.mxu0 %v6209
        %6274 = vmatpush1.msra.mxu0 %v6208
        %6275 = vmatprep.subr.mxu0 %v6206
        %6276 = vmatpush1.msra.mxu0 %v6205
        %6277 = vmatprep.subr.mxu0 %v6203
        %6278 = vmatpush1.msra.mxu0 %v6202
        %6279 = vmatprep.subr.mxu0 %v6200
        %6280 = vmatpush1.msra.mxu0 %v6199
        %6281 = vmatprep.subr.mxu0 %v6197
        %6282 = vmatpush1.msra.mxu0 %v6196
        %6283 = vmatprep.subr.mxu0 %v6194
        %6284 = vmatpush1.msra.mxu0 %v6193
        %6285 = vmatprep.subr.mxu0 %v6191
        %6286 = vmatpush1.msra.mxu0 %v6190
        %6287 = vmatprep.subr.mxu0 0.0
        %6288 = vmatpush2.msra.mxu0 0.0
        %6289 = vmatprep.subr.mxu0 0.0
        %6290 = vmatpush2.msra.mxu0 0.0
        %6291 = vmatprep.subr.mxu0 0.0
        %6292 = vmatpush2.msra.mxu0 0.0
        %6293 = vmatprep.subr.mxu0 0.0
        %6294 = vmatpush2.msra.mxu0 0.0
        %6295 = vmatprep.subr.mxu0 0.0
        %6296 = vmatpush2.msra.mxu0 0.0
        %6297 = vmatprep.subr.mxu0 0.0
        %6298 = vmatpush2.msra.mxu0 0.0
        %6299 = vmatprep.subr.mxu0 0.0
        %6300 = vmatpush2.msra.mxu0 0.0
        %6301 = vmatprep.subr.mxu0 0.0
        %6302 = vmatpush2.msra.mxu0 0.0
        %6303 = vmatprep.subr.mxu0 0.0
        %6304 = vmatpush2.msra.mxu0 0.0
        %6305 = vmatprep.subr.mxu0 0.0
        %6306 = vmatpush2.msra.mxu0 0.0
        %6307 = vmatprep.subr.mxu0 0.0
        %6308 = vmatpush2.msra.mxu0 0.0
        %6309 = vmatprep.subr.mxu0 0.0
        %6310 = vmatpush2.msra.mxu0 0.0
        %6311 = vmatprep.subr.mxu0 0.0
        %6312 = vmatpush2.msra.mxu0 0.0
        %6313 = vmatprep.subr.mxu0 0.0
        %6314 = vmatpush2.msra.mxu0 0.0
        %6315 = vmatprep.subr.mxu0 0.0
        %6316 = vmatpush2.msra.mxu0 0.0
        %6317 = vmatprep.subr.mxu0 0.0
        %6318 = vmatpush2.msra.mxu0 0.0
        %6319 = vmatprep.mubr.f32.mxu0 0.0
        %6320 = vmatmul.mubr.f32.gmra.mxu0 %v3549
        %v6321 = vpop.f32.mrf.mxu0
        %v6322 = vadd.f32 %v6243, %v6321
        %v6323 = vpop.f32.mrf.mxu0
        %v6324 = vadd.f32 %v6247, %v6323
        %6325 = vdwg.mxu0
        %6326 = vmatprep.subr.mxu0 0.0
        %6327 = vmatpush1.msra.mxu0 %v6237
        %6328 = vmatprep.subr.mxu0 0.0
        %6329 = vmatpush1.msra.mxu0 %v6234
        %6330 = vmatprep.subr.mxu0 0.0
        %6331 = vmatpush1.msra.mxu0 %v6231
        %6332 = vmatprep.subr.mxu0 0.0
        %6333 = vmatpush1.msra.mxu0 %v6228
        %6334 = vmatprep.subr.mxu0 0.0
        %6335 = vmatpush1.msra.mxu0 %v6225
        %6336 = vmatprep.subr.mxu0 0.0
        %6337 = vmatpush1.msra.mxu0 %v6222
        %6338 = vmatprep.subr.mxu0 0.0
        %6339 = vmatpush1.msra.mxu0 %v6219
        %6340 = vmatprep.subr.mxu0 0.0
        %6341 = vmatpush1.msra.mxu0 %v6216
        %6342 = vmatprep.subr.mxu0 0.0
        %6343 = vmatpush1.msra.mxu0 %v6213
        %6344 = vmatprep.subr.mxu0 0.0
        %6345 = vmatpush1.msra.mxu0 %v6210
        %6346 = vmatprep.subr.mxu0 0.0
        %6347 = vmatpush1.msra.mxu0 %v6207
        %6348 = vmatprep.subr.mxu0 0.0
        %6349 = vmatpush1.msra.mxu0 %v6204
        %6350 = vmatprep.subr.mxu0 0.0
        %6351 = vmatpush1.msra.mxu0 %v6201
        %6352 = vmatprep.subr.mxu0 0.0
        %6353 = vmatpush1.msra.mxu0 %v6198
        %6354 = vmatprep.subr.mxu0 0.0
        %6355 = vmatpush1.msra.mxu0 %v6195
        %6356 = vmatprep.subr.mxu0 0.0
        %6357 = vmatpush1.msra.mxu0 %v6192
        %6358 = vmatprep.subr.mxu0 0.0
        %6359 = vmatpush2.msra.mxu0 0.0
        %6360 = vmatprep.subr.mxu0 0.0
        %6361 = vmatpush2.msra.mxu0 0.0
        %6362 = vmatprep.subr.mxu0 0.0
        %6363 = vmatpush2.msra.mxu0 0.0
        %6364 = vmatprep.subr.mxu0 0.0
        %6365 = vmatpush2.msra.mxu0 0.0
        %6366 = vmatprep.subr.mxu0 0.0
        %6367 = vmatpush2.msra.mxu0 0.0
        %6368 = vmatprep.subr.mxu0 0.0
        %6369 = vmatpush2.msra.mxu0 0.0
        %6370 = vmatprep.subr.mxu0 0.0
        %6371 = vmatpush2.msra.mxu0 0.0
        %6372 = vmatprep.subr.mxu0 0.0
        %6373 = vmatpush2.msra.mxu0 0.0
        %6374 = vmatprep.subr.mxu0 0.0
        %6375 = vmatpush2.msra.mxu0 0.0
        %6376 = vmatprep.subr.mxu0 0.0
        %6377 = vmatpush2.msra.mxu0 0.0
        %6378 = vmatprep.subr.mxu0 0.0
        %6379 = vmatpush2.msra.mxu0 0.0
        %6380 = vmatprep.subr.mxu0 0.0
        %6381 = vmatpush2.msra.mxu0 0.0
        %6382 = vmatprep.subr.mxu0 0.0
        %6383 = vmatpush2.msra.mxu0 0.0
        %6384 = vmatprep.subr.mxu0 0.0
        %6385 = vmatpush2.msra.mxu0 0.0
        %6386 = vmatprep.subr.mxu0 0.0
        %6387 = vmatpush2.msra.mxu0 0.0
        %6388 = vmatprep.subr.mxu0 0.0
        %6389 = vmatpush2.msra.mxu0 0.0
        %6390 = vmatprep.mubr.f32.mxu0 0.0
        %6391 = vmatmul.mubr.f32.gmra.mxu0 %v3549
        %v6392 = vpop.f32.mrf.mxu0
        %v6393 = vadd.f32 %v6251, %v6392
        %v6394 = vpop.f32.mrf.mxu0
        %6395 = vdwg.mxu0
        %s6396 = scalar_lea.vmem %s12, 384
        %v6397 = vld [vmem:[%s6396] sm:$0xff]
        %v6398 = vld [vmem:[%s6396 + $0x8] sm:$0xff]
        %v6399 = vld [vmem:[%s6396 + $0x10] sm:$0xff]
        %v6400 = vld [vmem:[%s6396 + $0x18] sm:$0xff]
        %v6401 = vld [vmem:[%s6396 + $0x20] sm:$0xff]
        %v6402 = vld [vmem:[%s6396 + $0x28] sm:$0xff]
        %v6403 = vld [vmem:[%s6396 + $0x30] sm:$0xff]
        %v6404 = vld [vmem:[%s6396 + $0x38] sm:$0xff]
        %v6405 = vld [vmem:[%s6396 + $0x40] sm:$0xff]
        %v6406 = vld [vmem:[%s6396 + $0x48] sm:$0xff]
        %v6407 = vld [vmem:[%s6396 + $0x50] sm:$0xff]
        %v6408 = vld [vmem:[%s6396 + $0x58] sm:$0xff]
        %v6409 = vld [vmem:[%s6396 + $0x60] sm:$0xff]
        %v6410 = vld [vmem:[%s6396 + $0x68] sm:$0xff]
        %v6411 = vld [vmem:[%s6396 + $0x70] sm:$0xff]
        %v6412 = vld [vmem:[%s6396 + $0x78] sm:$0xff]
        %v6413 = vld [vmem:[%s6396 + $0x80] sm:$0xff]
        %v6414 = vld [vmem:[%s6396 + $0x88] sm:$0xff]
        %v6415 = vld [vmem:[%s6396 + $0x90] sm:$0xff]
        %v6416 = vld [vmem:[%s6396 + $0x98] sm:$0xff]
        %v6417 = vld [vmem:[%s6396 + $0xa0] sm:$0xff]
        %v6418 = vld [vmem:[%s6396 + $0xa8] sm:$0xff]
        %v6419 = vld [vmem:[%s6396 + $0xb0] sm:$0xff]
        %v6420 = vld [vmem:[%s6396 + $0xb8] sm:$0xff]
        %v6421 = vld [vmem:[%s6396 + $0xc0] sm:$0xff]
        %v6422 = vld [vmem:[%s6396 + $0xc8] sm:$0xff]
        %v6423 = vld [vmem:[%s6396 + $0xd0] sm:$0xff]
        %v6424 = vld [vmem:[%s6396 + $0xd8] sm:$0xff]
        %v6425 = vld [vmem:[%s6396 + $0xe0] sm:$0xff]
        %v6426 = vld [vmem:[%s6396 + $0xe8] sm:$0xff]
        %v6427 = vld [vmem:[%s6396 + $0xf0] sm:$0xff]
        %v6428 = vld [vmem:[%s6396 + $0xf8] sm:$0xff]
        %v6429 = vld [vmem:[%s6396 + $0x100] sm:$0xff]
        %v6430 = vld [vmem:[%s6396 + $0x108] sm:$0xff]
        %v6431 = vld [vmem:[%s6396 + $0x110] sm:$0xff]
        %v6432 = vld [vmem:[%s6396 + $0x118] sm:$0xff]
        %v6433 = vld [vmem:[%s6396 + $0x120] sm:$0xff]
        %v6434 = vld [vmem:[%s6396 + $0x128] sm:$0xff]
        %v6435 = vld [vmem:[%s6396 + $0x130] sm:$0xff]
        %v6436 = vld [vmem:[%s6396 + $0x138] sm:$0xff]
        %v6437 = vld [vmem:[%s6396 + $0x140] sm:$0xff]
        %v6438 = vld [vmem:[%s6396 + $0x148] sm:$0xff]
        %v6439 = vld [vmem:[%s6396 + $0x150] sm:$0xff]
        %v6440 = vld [vmem:[%s6396 + $0x158] sm:$0xff]
        %v6441 = vld [vmem:[%s6396 + $0x160] sm:$0xff]
        %v6442 = vld [vmem:[%s6396 + $0x168] sm:$0xff]
        %v6443 = vld [vmem:[%s6396 + $0x170] sm:$0xff]
        %v6444 = vld [vmem:[%s6396 + $0x178] sm:$0xff]
        %s6445 = scalar_lea.vmem %s13, 1
        %v6446 = vld [vmem:[%s6445] ss:$4 sm:$0x7]
        %v6448 = vlaneseq
        %v6449 = vshrl.u32 %v6448, 7
        %v6450 = vsub.s32 0, %v6449
        %v6451 = vrot.slane %v6446, %v6450
        %v6452 = vlaneseq
        %v6453 = vshrl.u32 %v6452, 7
        %v6454 = vsub.s32 1, %v6453
        %v6455 = vrot.slane %v6446, %v6454
        %v6456 = vlaneseq
        %v6457 = vshrl.u32 %v6456, 7
        %v6458 = vsub.s32 2, %v6457
        %v6459 = vrot.slane %v6446, %v6458
        %6463 = vmatprep.subr.mxu0 %v6443
        %6464 = vmatpush1.msra.mxu0 %v6442
        %6465 = vmatprep.subr.mxu0 %v6440
        %6466 = vmatpush1.msra.mxu0 %v6439
        %6467 = vmatprep.subr.mxu0 %v6437
        %6468 = vmatpush1.msra.mxu0 %v6436
        %6469 = vmatprep.subr.mxu0 %v6434
        %6470 = vmatpush1.msra.mxu0 %v6433
        %6471 = vmatprep.subr.mxu0 %v6431
        %6472 = vmatpush1.msra.mxu0 %v6430
        %6473 = vmatprep.subr.mxu0 %v6428
        %6474 = vmatpush1.msra.mxu0 %v6427
        %6475 = vmatprep.subr.mxu0 %v6425
        %6476 = vmatpush1.msra.mxu0 %v6424
        %6477 = vmatprep.subr.mxu0 %v6422
        %6478 = vmatpush1.msra.mxu0 %v6421
        %6479 = vmatprep.subr.mxu0 %v6419
        %6480 = vmatpush1.msra.mxu0 %v6418
        %6481 = vmatprep.subr.mxu0 %v6416
        %6482 = vmatpush1.msra.mxu0 %v6415
        %6483 = vmatprep.subr.mxu0 %v6413
        %6484 = vmatpush1.msra.mxu0 %v6412
        %6485 = vmatprep.subr.mxu0 %v6410
        %6486 = vmatpush1.msra.mxu0 %v6409
        %6487 = vmatprep.subr.mxu0 %v6407
        %6488 = vmatpush1.msra.mxu0 %v6406
        %6489 = vmatprep.subr.mxu0 %v6404
        %6490 = vmatpush1.msra.mxu0 %v6403
        %6491 = vmatprep.subr.mxu0 %v6401
        %6492 = vmatpush1.msra.mxu0 %v6400
        %6493 = vmatprep.subr.mxu0 %v6398
        %6494 = vmatpush1.msra.mxu0 %v6397
        %6495 = vmatprep.subr.mxu0 0.0
        %6496 = vmatpush2.msra.mxu0 0.0
        %6497 = vmatprep.subr.mxu0 0.0
        %6498 = vmatpush2.msra.mxu0 0.0
        %6499 = vmatprep.subr.mxu0 0.0
        %6500 = vmatpush2.msra.mxu0 0.0
        %6501 = vmatprep.subr.mxu0 0.0
        %6502 = vmatpush2.msra.mxu0 0.0
        %6503 = vmatprep.subr.mxu0 0.0
        %6504 = vmatpush2.msra.mxu0 0.0
        %6505 = vmatprep.subr.mxu0 0.0
        %6506 = vmatpush2.msra.mxu0 0.0
        %6507 = vmatprep.subr.mxu0 0.0
        %6508 = vmatpush2.msra.mxu0 0.0
        %6509 = vmatprep.subr.mxu0 0.0
        %6510 = vmatpush2.msra.mxu0 0.0
        %6511 = vmatprep.subr.mxu0 0.0
        %6512 = vmatpush2.msra.mxu0 0.0
        %6513 = vmatprep.subr.mxu0 0.0
        %6514 = vmatpush2.msra.mxu0 0.0
        %6515 = vmatprep.subr.mxu0 0.0
        %6516 = vmatpush2.msra.mxu0 0.0
        %6517 = vmatprep.subr.mxu0 0.0
        %6518 = vmatpush2.msra.mxu0 0.0
        %6519 = vmatprep.subr.mxu0 0.0
        %6520 = vmatpush2.msra.mxu0 0.0
        %6521 = vmatprep.subr.mxu0 0.0
        %6522 = vmatpush2.msra.mxu0 0.0
        %6523 = vmatprep.subr.mxu0 0.0
        %6524 = vmatpush2.msra.mxu0 0.0
        %6525 = vmatprep.subr.mxu0 0.0
        %6526 = vmatpush2.msra.mxu0 0.0
        %6527 = vmatprep.mubr.f32.mxu0 0.0
        %6528 = vmatmul.mubr.f32.gmra.mxu0 0.0
        %v6529 = vpop.f32.mrf.mxu0
        %v6530 = vadd.f32 %v6451, %v6529
        %v6531 = vpop.f32.mrf.mxu0
        %v6532 = vadd.f32 %v6455, %v6531
        %6533 = vdwg.mxu0
        %6534 = vmatprep.subr.mxu0 0.0
        %6535 = vmatpush1.msra.mxu0 %v6444
        %6536 = vmatprep.subr.mxu0 0.0
        %6537 = vmatpush1.msra.mxu0 %v6441
        %6538 = vmatprep.subr.mxu0 0.0
        %6539 = vmatpush1.msra.mxu0 %v6438
        %6540 = vmatprep.subr.mxu0 0.0
        %6541 = vmatpush1.msra.mxu0 %v6435
        %6542 = vmatprep.subr.mxu0 0.0
        %6543 = vmatpush1.msra.mxu0 %v6432
        %6544 = vmatprep.subr.mxu0 0.0
        %6545 = vmatpush1.msra.mxu0 %v6429
        %6546 = vmatprep.subr.mxu0 0.0
        %6547 = vmatpush1.msra.mxu0 %v6426
        %6548 = vmatprep.subr.mxu0 0.0
        %6549 = vmatpush1.msra.mxu0 %v6423
        %6550 = vmatprep.subr.mxu0 0.0
        %6551 = vmatpush1.msra.mxu0 %v6420
        %6552 = vmatprep.subr.mxu0 0.0
        %6553 = vmatpush1.msra.mxu0 %v6417
        %6554 = vmatprep.subr.mxu0 0.0
        %6555 = vmatpush1.msra.mxu0 %v6414
        %6556 = vmatprep.subr.mxu0 0.0
        %6557 = vmatpush1.msra.mxu0 %v6411
        %6558 = vmatprep.subr.mxu0 0.0
        %6559 = vmatpush1.msra.mxu0 %v6408
        %6560 = vmatprep.subr.mxu0 0.0
        %6561 = vmatpush1.msra.mxu0 %v6405
        %6562 = vmatprep.subr.mxu0 0.0
        %6563 = vmatpush1.msra.mxu0 %v6402
        %6564 = vmatprep.subr.mxu0 0.0
        %6565 = vmatpush1.msra.mxu0 %v6399
        %6566 = vmatprep.subr.mxu0 0.0
        %6567 = vmatpush2.msra.mxu0 0.0
        %6568 = vmatprep.subr.mxu0 0.0
        %6569 = vmatpush2.msra.mxu0 0.0
        %6570 = vmatprep.subr.mxu0 0.0
        %6571 = vmatpush2.msra.mxu0 0.0
        %6572 = vmatprep.subr.mxu0 0.0
        %6573 = vmatpush2.msra.mxu0 0.0
        %6574 = vmatprep.subr.mxu0 0.0
        %6575 = vmatpush2.msra.mxu0 0.0
        %6576 = vmatprep.subr.mxu0 0.0
        %6577 = vmatpush2.msra.mxu0 0.0
        %6578 = vmatprep.subr.mxu0 0.0
        %6579 = vmatpush2.msra.mxu0 0.0
        %6580 = vmatprep.subr.mxu0 0.0
        %6581 = vmatpush2.msra.mxu0 0.0
        %6582 = vmatprep.subr.mxu0 0.0
        %6583 = vmatpush2.msra.mxu0 0.0
        %6584 = vmatprep.subr.mxu0 0.0
        %6585 = vmatpush2.msra.mxu0 0.0
        %6586 = vmatprep.subr.mxu0 0.0
        %6587 = vmatpush2.msra.mxu0 0.0
        %6588 = vmatprep.subr.mxu0 0.0
        %6589 = vmatpush2.msra.mxu0 0.0
        %6590 = vmatprep.subr.mxu0 0.0
        %6591 = vmatpush2.msra.mxu0 0.0
        %6592 = vmatprep.subr.mxu0 0.0
        %6593 = vmatpush2.msra.mxu0 0.0
        %6594 = vmatprep.subr.mxu0 0.0
        %6595 = vmatpush2.msra.mxu0 0.0
        %6596 = vmatprep.subr.mxu0 0.0
        %6597 = vmatpush2.msra.mxu0 0.0
        %6598 = vmatprep.mubr.f32.mxu0 0.0
        %6599 = vmatmul.mubr.f32.gmra.mxu0 0.0
        %v6600 = vpop.f32.mrf.mxu0
        %v6601 = vadd.f32 %v6459, %v6600
        %v6602 = vpop.f32.mrf.mxu0
        %6603 = vdwg.mxu0
        %v6604 = vadd.f32 %v6322, %v6530
        %v6605 = vxor.u32 %v6604, 2147483648
        %v6606 = vmul.f32 %v6605, 1.442695
        %v6607 = vpow.pop %v6606
        %v6608 = vadd.f32 %v6607, 1.0
        %v6609 = vrcp.pop %v6608
        %v6610 = vmul.f32 1.0, %v6609
        %v6611 = vadd.f32 %v6324, %v6532
        %v6612 = vxor.u32 %v6611, 2147483648
        %v6613 = vmul.f32 %v6612, 1.442695
        %v6614 = vpow.pop %v6613
        %v6615 = vadd.f32 %v6614, 1.0
        %v6616 = vrcp.pop %v6615
        %v6617 = vmul.f32 1.0, %v6616
        %v6618 = vmul.f32 %v6610, %v6601
        %v6619 = vadd.f32 %v6393, %v6618
        %v6620 = vtanh.pop %v6619
        %v6621 = vsub.f32 1.0, %v6617
        %v6622 = vmul.f32 %v6621, %v6620
        %v6623 = vmul.f32 %v6617, 0.0
        %v6624 = vadd.f32 %v6622, %v6623
        %6625 = vmatprep.subr.mxu0 %v6236
        %6626 = vmatpush1.msra.mxu0 %v6235
        %6627 = vmatprep.subr.mxu0 %v6233
        %6628 = vmatpush1.msra.mxu0 %v6232
        %6629 = vmatprep.subr.mxu0 %v6230
        %6630 = vmatpush1.msra.mxu0 %v6229
        %6631 = vmatprep.subr.mxu0 %v6227
        %6632 = vmatpush1.msra.mxu0 %v6226
        %6633 = vmatprep.subr.mxu0 %v6224
        %6634 = vmatpush1.msra.mxu0 %v6223
        %6635 = vmatprep.subr.mxu0 %v6221
        %6636 = vmatpush1.msra.mxu0 %v6220
        %6637 = vmatprep.subr.mxu0 %v6218
        %6638 = vmatpush1.msra.mxu0 %v6217
        %6639 = vmatprep.subr.mxu0 %v6215
        %6640 = vmatpush1.msra.mxu0 %v6214
        %6641 = vmatprep.subr.mxu0 %v6212
        %6642 = vmatpush1.msra.mxu0 %v6211
        %6643 = vmatprep.subr.mxu0 %v6209
        %6644 = vmatpush1.msra.mxu0 %v6208
        %6645 = vmatprep.subr.mxu0 %v6206
        %6646 = vmatpush1.msra.mxu0 %v6205
        %6647 = vmatprep.subr.mxu0 %v6203
        %6648 = vmatpush1.msra.mxu0 %v6202
        %6649 = vmatprep.subr.mxu0 %v6200
        %6650 = vmatpush1.msra.mxu0 %v6199
        %6651 = vmatprep.subr.mxu0 %v6197
        %6652 = vmatpush1.msra.mxu0 %v6196
        %6653 = vmatprep.subr.mxu0 %v6194
        %6654 = vmatpush1.msra.mxu0 %v6193
        %6655 = vmatprep.subr.mxu0 %v6191
        %6656 = vmatpush1.msra.mxu0 %v6190
        %6657 = vmatprep.subr.mxu0 0.0
        %6658 = vmatpush2.msra.mxu0 0.0
        %6659 = vmatprep.subr.mxu0 0.0
        %6660 = vmatpush2.msra.mxu0 0.0
        %6661 = vmatprep.subr.mxu0 0.0
        %6662 = vmatpush2.msra.mxu0 0.0
        %6663 = vmatprep.subr.mxu0 0.0
        %6664 = vmatpush2.msra.mxu0 0.0
        %6665 = vmatprep.subr.mxu0 0.0
        %6666 = vmatpush2.msra.mxu0 0.0
        %6667 = vmatprep.subr.mxu0 0.0
        %6668 = vmatpush2.msra.mxu0 0.0
        %6669 = vmatprep.subr.mxu0 0.0
        %6670 = vmatpush2.msra.mxu0 0.0
        %6671 = vmatprep.subr.mxu0 0.0
        %6672 = vmatpush2.msra.mxu0 0.0
        %6673 = vmatprep.subr.mxu0 0.0
        %6674 = vmatpush2.msra.mxu0 0.0
        %6675 = vmatprep.subr.mxu0 0.0
        %6676 = vmatpush2.msra.mxu0 0.0
        %6677 = vmatprep.subr.mxu0 0.0
        %6678 = vmatpush2.msra.mxu0 0.0
        %6679 = vmatprep.subr.mxu0 0.0
        %6680 = vmatpush2.msra.mxu0 0.0
        %6681 = vmatprep.subr.mxu0 0.0
        %6682 = vmatpush2.msra.mxu0 0.0
        %6683 = vmatprep.subr.mxu0 0.0
        %6684 = vmatpush2.msra.mxu0 0.0
        %6685 = vmatprep.subr.mxu0 0.0
        %6686 = vmatpush2.msra.mxu0 0.0
        %6687 = vmatprep.subr.mxu0 0.0
        %6688 = vmatpush2.msra.mxu0 0.0
        %6689 = vmatprep.mubr.f32.mxu0 0.0
        %6690 = vmatmul.mubr.f32.gmra.mxu0 %v5090
        %v6691 = vpop.f32.mrf.mxu0
        %v6692 = vadd.f32 %v6243, %v6691
        %v6693 = vpop.f32.mrf.mxu0
        %v6694 = vadd.f32 %v6247, %v6693
        %6695 = vdwg.mxu0
        %6696 = vmatprep.subr.mxu0 0.0
        %6697 = vmatpush1.msra.mxu0 %v6237
        %6698 = vmatprep.subr.mxu0 0.0
        %6699 = vmatpush1.msra.mxu0 %v6234
        %6700 = vmatprep.subr.mxu0 0.0
        %6701 = vmatpush1.msra.mxu0 %v6231
        %6702 = vmatprep.subr.mxu0 0.0
        %6703 = vmatpush1.msra.mxu0 %v6228
        %6704 = vmatprep.subr.mxu0 0.0
        %6705 = vmatpush1.msra.mxu0 %v6225
        %6706 = vmatprep.subr.mxu0 0.0
        %6707 = vmatpush1.msra.mxu0 %v6222
        %6708 = vmatprep.subr.mxu0 0.0
        %6709 = vmatpush1.msra.mxu0 %v6219
        %6710 = vmatprep.subr.mxu0 0.0
        %6711 = vmatpush1.msra.mxu0 %v6216
        %6712 = vmatprep.subr.mxu0 0.0
        %6713 = vmatpush1.msra.mxu0 %v6213
        %6714 = vmatprep.subr.mxu0 0.0
        %6715 = vmatpush1.msra.mxu0 %v6210
        %6716 = vmatprep.subr.mxu0 0.0
        %6717 = vmatpush1.msra.mxu0 %v6207
        %6718 = vmatprep.subr.mxu0 0.0
        %6719 = vmatpush1.msra.mxu0 %v6204
        %6720 = vmatprep.subr.mxu0 0.0
        %6721 = vmatpush1.msra.mxu0 %v6201
        %6722 = vmatprep.subr.mxu0 0.0
        %6723 = vmatpush1.msra.mxu0 %v6198
        %6724 = vmatprep.subr.mxu0 0.0
        %6725 = vmatpush1.msra.mxu0 %v6195
        %6726 = vmatprep.subr.mxu0 0.0
        %6727 = vmatpush1.msra.mxu0 %v6192
        %6728 = vmatprep.subr.mxu0 0.0
        %6729 = vmatpush2.msra.mxu0 0.0
        %6730 = vmatprep.subr.mxu0 0.0
        %6731 = vmatpush2.msra.mxu0 0.0
        %6732 = vmatprep.subr.mxu0 0.0
        %6733 = vmatpush2.msra.mxu0 0.0
        %6734 = vmatprep.subr.mxu0 0.0
        %6735 = vmatpush2.msra.mxu0 0.0
        %6736 = vmatprep.subr.mxu0 0.0
        %6737 = vmatpush2.msra.mxu0 0.0
        %6738 = vmatprep.subr.mxu0 0.0
        %6739 = vmatpush2.msra.mxu0 0.0
        %6740 = vmatprep.subr.mxu0 0.0
        %6741 = vmatpush2.msra.mxu0 0.0
        %6742 = vmatprep.subr.mxu0 0.0
        %6743 = vmatpush2.msra.mxu0 0.0
        %6744 = vmatprep.subr.mxu0 0.0
        %6745 = vmatpush2.msra.mxu0 0.0
        %6746 = vmatprep.subr.mxu0 0.0
        %6747 = vmatpush2.msra.mxu0 0.0
        %6748 = vmatprep.subr.mxu0 0.0
        %6749 = vmatpush2.msra.mxu0 0.0
        %6750 = vmatprep.subr.mxu0 0.0
        %6751 = vmatpush2.msra.mxu0 0.0
        %6752 = vmatprep.subr.mxu0 0.0
        %6753 = vmatpush2.msra.mxu0 0.0
        %6754 = vmatprep.subr.mxu0 0.0
        %6755 = vmatpush2.msra.mxu0 0.0
        %6756 = vmatprep.subr.mxu0 0.0
        %6757 = vmatpush2.msra.mxu0 0.0
        %6758 = vmatprep.subr.mxu0 0.0
        %6759 = vmatpush2.msra.mxu0 0.0
        %6760 = vmatprep.mubr.f32.mxu0 0.0
        %6761 = vmatmul.mubr.f32.gmra.mxu0 %v5090
        %v6762 = vpop.f32.mrf.mxu0
        %v6763 = vadd.f32 %v6251, %v6762
        %v6764 = vpop.f32.mrf.mxu0
        %6765 = vdwg.mxu0
        %6766 = vmatprep.subr.mxu0 %v6443
        %6767 = vmatpush1.msra.mxu0 %v6442
        %6768 = vmatprep.subr.mxu0 %v6440
        %6769 = vmatpush1.msra.mxu0 %v6439
        %6770 = vmatprep.subr.mxu0 %v6437
        %6771 = vmatpush1.msra.mxu0 %v6436
        %6772 = vmatprep.subr.mxu0 %v6434
        %6773 = vmatpush1.msra.mxu0 %v6433
        %6774 = vmatprep.subr.mxu0 %v6431
        %6775 = vmatpush1.msra.mxu0 %v6430
        %6776 = vmatprep.subr.mxu0 %v6428
        %6777 = vmatpush1.msra.mxu0 %v6427
        %6778 = vmatprep.subr.mxu0 %v6425
        %6779 = vmatpush1.msra.mxu0 %v6424
        %6780 = vmatprep.subr.mxu0 %v6422
        %6781 = vmatpush1.msra.mxu0 %v6421
        %6782 = vmatprep.subr.mxu0 %v6419
        %6783 = vmatpush1.msra.mxu0 %v6418
        %6784 = vmatprep.subr.mxu0 %v6416
        %6785 = vmatpush1.msra.mxu0 %v6415
        %6786 = vmatprep.subr.mxu0 %v6413
        %6787 = vmatpush1.msra.mxu0 %v6412
        %6788 = vmatprep.subr.mxu0 %v6410
        %6789 = vmatpush1.msra.mxu0 %v6409
        %6790 = vmatprep.subr.mxu0 %v6407
        %6791 = vmatpush1.msra.mxu0 %v6406
        %6792 = vmatprep.subr.mxu0 %v6404
        %6793 = vmatpush1.msra.mxu0 %v6403
        %6794 = vmatprep.subr.mxu0 %v6401
        %6795 = vmatpush1.msra.mxu0 %v6400
        %6796 = vmatprep.subr.mxu0 %v6398
        %6797 = vmatpush1.msra.mxu0 %v6397
        %6798 = vmatprep.subr.mxu0 0.0
        %6799 = vmatpush2.msra.mxu0 0.0
        %6800 = vmatprep.subr.mxu0 0.0
        %6801 = vmatpush2.msra.mxu0 0.0
        %6802 = vmatprep.subr.mxu0 0.0
        %6803 = vmatpush2.msra.mxu0 0.0
        %6804 = vmatprep.subr.mxu0 0.0
        %6805 = vmatpush2.msra.mxu0 0.0
        %6806 = vmatprep.subr.mxu0 0.0
        %6807 = vmatpush2.msra.mxu0 0.0
        %6808 = vmatprep.subr.mxu0 0.0
        %6809 = vmatpush2.msra.mxu0 0.0
        %6810 = vmatprep.subr.mxu0 0.0
        %6811 = vmatpush2.msra.mxu0 0.0
        %6812 = vmatprep.subr.mxu0 0.0
        %6813 = vmatpush2.msra.mxu0 0.0
        %6814 = vmatprep.subr.mxu0 0.0
        %6815 = vmatpush2.msra.mxu0 0.0
        %6816 = vmatprep.subr.mxu0 0.0
        %6817 = vmatpush2.msra.mxu0 0.0
        %6818 = vmatprep.subr.mxu0 0.0
        %6819 = vmatpush2.msra.mxu0 0.0
        %6820 = vmatprep.subr.mxu0 0.0
        %6821 = vmatpush2.msra.mxu0 0.0
        %6822 = vmatprep.subr.mxu0 0.0
        %6823 = vmatpush2.msra.mxu0 0.0
        %6824 = vmatprep.subr.mxu0 0.0
        %6825 = vmatpush2.msra.mxu0 0.0
        %6826 = vmatprep.subr.mxu0 0.0
        %6827 = vmatpush2.msra.mxu0 0.0
        %6828 = vmatprep.subr.mxu0 0.0
        %6829 = vmatpush2.msra.mxu0 0.0
        %6830 = vmatprep.mubr.f32.mxu0 0.0
        %6831 = vmatmul.mubr.f32.gmra.mxu0 %v6624
        %v6832 = vpop.f32.mrf.mxu0
        %v6833 = vadd.f32 %v6451, %v6832
        %v6834 = vpop.f32.mrf.mxu0
        %v6835 = vadd.f32 %v6455, %v6834
        %6836 = vdwg.mxu0
        %6837 = vmatprep.subr.mxu0 0.0
        %6838 = vmatpush1.msra.mxu0 %v6444
        %6839 = vmatprep.subr.mxu0 0.0
        %6840 = vmatpush1.msra.mxu0 %v6441
        %6841 = vmatprep.subr.mxu0 0.0
        %6842 = vmatpush1.msra.mxu0 %v6438
        %6843 = vmatprep.subr.mxu0 0.0
        %6844 = vmatpush1.msra.mxu0 %v6435
        %6845 = vmatprep.subr.mxu0 0.0
        %6846 = vmatpush1.msra.mxu0 %v6432
        %6847 = vmatprep.subr.mxu0 0.0
        %6848 = vmatpush1.msra.mxu0 %v6429
        %6849 = vmatprep.subr.mxu0 0.0
        %6850 = vmatpush1.msra.mxu0 %v6426
        %6851 = vmatprep.subr.mxu0 0.0
        %6852 = vmatpush1.msra.mxu0 %v6423
        %6853 = vmatprep.subr.mxu0 0.0
        %6854 = vmatpush1.msra.mxu0 %v6420
        %6855 = vmatprep.subr.mxu0 0.0
        %6856 = vmatpush1.msra.mxu0 %v6417
        %6857 = vmatprep.subr.mxu0 0.0
        %6858 = vmatpush1.msra.mxu0 %v6414
        %6859 = vmatprep.subr.mxu0 0.0
        %6860 = vmatpush1.msra.mxu0 %v6411
        %6861 = vmatprep.subr.mxu0 0.0
        %6862 = vmatpush1.msra.mxu0 %v6408
        %6863 = vmatprep.subr.mxu0 0.0
        %6864 = vmatpush1.msra.mxu0 %v6405
        %6865 = vmatprep.subr.mxu0 0.0
        %6866 = vmatpush1.msra.mxu0 %v6402
        %6867 = vmatprep.subr.mxu0 0.0
        %6868 = vmatpush1.msra.mxu0 %v6399
        %6869 = vmatprep.subr.mxu0 0.0
        %6870 = vmatpush2.msra.mxu0 0.0
        %6871 = vmatprep.subr.mxu0 0.0
        %6872 = vmatpush2.msra.mxu0 0.0
        %6873 = vmatprep.subr.mxu0 0.0
        %6874 = vmatpush2.msra.mxu0 0.0
        %6875 = vmatprep.subr.mxu0 0.0
        %6876 = vmatpush2.msra.mxu0 0.0
        %6877 = vmatprep.subr.mxu0 0.0
        %6878 = vmatpush2.msra.mxu0 0.0
        %6879 = vmatprep.subr.mxu0 0.0
        %6880 = vmatpush2.msra.mxu0 0.0
        %6881 = vmatprep.subr.mxu0 0.0
        %6882 = vmatpush2.msra.mxu0 0.0
        %6883 = vmatprep.subr.mxu0 0.0
        %6884 = vmatpush2.msra.mxu0 0.0
        %6885 = vmatprep.subr.mxu0 0.0
        %6886 = vmatpush2.msra.mxu0 0.0
        %6887 = vmatprep.subr.mxu0 0.0
        %6888 = vmatpush2.msra.mxu0 0.0
        %6889 = vmatprep.subr.mxu0 0.0
        %6890 = vmatpush2.msra.mxu0 0.0
        %6891 = vmatprep.subr.mxu0 0.0
        %6892 = vmatpush2.msra.mxu0 0.0
        %6893 = vmatprep.subr.mxu0 0.0
        %6894 = vmatpush2.msra.mxu0 0.0
        %6895 = vmatprep.subr.mxu0 0.0
        %6896 = vmatpush2.msra.mxu0 0.0
        %6897 = vmatprep.subr.mxu0 0.0
        %6898 = vmatpush2.msra.mxu0 0.0
        %6899 = vmatprep.subr.mxu0 0.0
        %6900 = vmatpush2.msra.mxu0 0.0
        %6901 = vmatprep.mubr.f32.mxu0 0.0
        %6902 = vmatmul.mubr.f32.gmra.mxu0 %v6624
        %v6903 = vpop.f32.mrf.mxu0
        %v6904 = vadd.f32 %v6459, %v6903
        %v6905 = vpop.f32.mrf.mxu0
        %6906 = vdwg.mxu0
        %v6907 = vadd.f32 %v6692, %v6833
        %v6908 = vxor.u32 %v6907, 2147483648
        %v6909 = vmul.f32 %v6908, 1.442695
        %v6910 = vpow.pop %v6909
        %v6911 = vadd.f32 %v6910, 1.0
        %v6912 = vrcp.pop %v6911
        %v6913 = vmul.f32 1.0, %v6912
        %v6914 = vadd.f32 %v6694, %v6835
        %v6915 = vxor.u32 %v6914, 2147483648
        %v6916 = vmul.f32 %v6915, 1.442695
        %v6917 = vpow.pop %v6916
        %v6918 = vadd.f32 %v6917, 1.0
        %v6919 = vrcp.pop %v6918
        %v6920 = vmul.f32 1.0, %v6919
        %v6921 = vmul.f32 %v6913, %v6904
        %v6922 = vadd.f32 %v6763, %v6921
        %v6923 = vtanh.pop %v6922
        %v6924 = vsub.f32 1.0, %v6920
        %v6925 = vmul.f32 %v6924, %v6923
        %v6926 = vmul.f32 %v6920, %v6624
        %v6927 = vadd.f32 %v6925, %v6926
        %6928 = vmatprep.subr.mxu0 %v6236
        %6929 = vmatpush1.msra.mxu0 %v6235
        %6930 = vmatprep.subr.mxu0 %v6233
        %6931 = vmatpush1.msra.mxu0 %v6232
        %6932 = vmatprep.subr.mxu0 %v6230
        %6933 = vmatpush1.msra.mxu0 %v6229
        %6934 = vmatprep.subr.mxu0 %v6227
        %6935 = vmatpush1.msra.mxu0 %v6226
        %6936 = vmatprep.subr.mxu0 %v6224
        %6937 = vmatpush1.msra.mxu0 %v6223
        %6938 = vmatprep.subr.mxu0 %v6221
        %6939 = vmatpush1.msra.mxu0 %v6220
        %6940 = vmatprep.subr.mxu0 %v6218
        %6941 = vmatpush1.msra.mxu0 %v6217
        %6942 = vmatprep.subr.mxu0 %v6215
        %6943 = vmatpush1.msra.mxu0 %v6214
        %6944 = vmatprep.subr.mxu0 %v6212
        %6945 = vmatpush1.msra.mxu0 %v6211
        %6946 = vmatprep.subr.mxu0 %v6209
        %6947 = vmatpush1.msra.mxu0 %v6208
        %6948 = vmatprep.subr.mxu0 %v6206
        %6949 = vmatpush1.msra.mxu0 %v6205
        %6950 = vmatprep.subr.mxu0 %v6203
        %6951 = vmatpush1.msra.mxu0 %v6202
        %6952 = vmatprep.subr.mxu0 %v6200
        %6953 = vmatpush1.msra.mxu0 %v6199
        %6954 = vmatprep.subr.mxu0 %v6197
        %6955 = vmatpush1.msra.mxu0 %v6196
        %6956 = vmatprep.subr.mxu0 %v6194
        %6957 = vmatpush1.msra.mxu0 %v6193
        %6958 = vmatprep.subr.mxu0 %v6191
        %6959 = vmatpush1.msra.mxu0 %v6190
        %6960 = vmatprep.subr.mxu0 0.0
        %6961 = vmatpush2.msra.mxu0 0.0
        %6962 = vmatprep.subr.mxu0 0.0
        %6963 = vmatpush2.msra.mxu0 0.0
        %6964 = vmatprep.subr.mxu0 0.0
        %6965 = vmatpush2.msra.mxu0 0.0
        %6966 = vmatprep.subr.mxu0 0.0
        %6967 = vmatpush2.msra.mxu0 0.0
        %6968 = vmatprep.subr.mxu0 0.0
        %6969 = vmatpush2.msra.mxu0 0.0
        %6970 = vmatprep.subr.mxu0 0.0
        %6971 = vmatpush2.msra.mxu0 0.0
        %6972 = vmatprep.subr.mxu0 0.0
        %6973 = vmatpush2.msra.mxu0 0.0
        %6974 = vmatprep.subr.mxu0 0.0
        %6975 = vmatpush2.msra.mxu0 0.0
        %6976 = vmatprep.subr.mxu0 0.0
        %6977 = vmatpush2.msra.mxu0 0.0
        %6978 = vmatprep.subr.mxu0 0.0
        %6979 = vmatpush2.msra.mxu0 0.0
        %6980 = vmatprep.subr.mxu0 0.0
        %6981 = vmatpush2.msra.mxu0 0.0
        %6982 = vmatprep.subr.mxu0 0.0
        %6983 = vmatpush2.msra.mxu0 0.0
        %6984 = vmatprep.subr.mxu0 0.0
        %6985 = vmatpush2.msra.mxu0 0.0
        %6986 = vmatprep.subr.mxu0 0.0
        %6987 = vmatpush2.msra.mxu0 0.0
        %6988 = vmatprep.subr.mxu0 0.0
        %6989 = vmatpush2.msra.mxu0 0.0
        %6990 = vmatprep.subr.mxu0 0.0
        %6991 = vmatpush2.msra.mxu0 0.0
        %6992 = vmatprep.mubr.f32.mxu0 0.0
        %6993 = vmatmul.mubr.f32.gmra.mxu0 %v6187
        %v6994 = vpop.f32.mrf.mxu0
        %v6995 = vadd.f32 %v6243, %v6994
        %v6996 = vpop.f32.mrf.mxu0
        %v6997 = vadd.f32 %v6247, %v6996
        %6998 = vdwg.mxu0
        %6999 = vmatprep.subr.mxu0 0.0
        %7000 = vmatpush1.msra.mxu0 %v6237
        %7001 = vmatprep.subr.mxu0 0.0
        %7002 = vmatpush1.msra.mxu0 %v6234
        %7003 = vmatprep.subr.mxu0 0.0
        %7004 = vmatpush1.msra.mxu0 %v6231
        %7005 = vmatprep.subr.mxu0 0.0
        %7006 = vmatpush1.msra.mxu0 %v6228
        %7007 = vmatprep.subr.mxu0 0.0
        %7008 = vmatpush1.msra.mxu0 %v6225
        %7009 = vmatprep.subr.mxu0 0.0
        %7010 = vmatpush1.msra.mxu0 %v6222
        %7011 = vmatprep.subr.mxu0 0.0
        %7012 = vmatpush1.msra.mxu0 %v6219
        %7013 = vmatprep.subr.mxu0 0.0
        %7014 = vmatpush1.msra.mxu0 %v6216
        %7015 = vmatprep.subr.mxu0 0.0
        %7016 = vmatpush1.msra.mxu0 %v6213
        %7017 = vmatprep.subr.mxu0 0.0
        %7018 = vmatpush1.msra.mxu0 %v6210
        %7019 = vmatprep.subr.mxu0 0.0
        %7020 = vmatpush1.msra.mxu0 %v6207
        %7021 = vmatprep.subr.mxu0 0.0
        %7022 = vmatpush1.msra.mxu0 %v6204
        %7023 = vmatprep.subr.mxu0 0.0
        %7024 = vmatpush1.msra.mxu0 %v6201
        %7025 = vmatprep.subr.mxu0 0.0
        %7026 = vmatpush1.msra.mxu0 %v6198
        %7027 = vmatprep.subr.mxu0 0.0
        %7028 = vmatpush1.msra.mxu0 %v6195
        %7029 = vmatprep.subr.mxu0 0.0
        %7030 = vmatpush1.msra.mxu0 %v6192
        %7031 = vmatprep.subr.mxu0 0.0
        %7032 = vmatpush2.msra.mxu0 0.0
        %7033 = vmatprep.subr.mxu0 0.0
        %7034 = vmatpush2.msra.mxu0 0.0
        %7035 = vmatprep.subr.mxu0 0.0
        %7036 = vmatpush2.msra.mxu0 0.0
        %7037 = vmatprep.subr.mxu0 0.0
        %7038 = vmatpush2.msra.mxu0 0.0
        %7039 = vmatprep.subr.mxu0 0.0
        %7040 = vmatpush2.msra.mxu0 0.0
        %7041 = vmatprep.subr.mxu0 0.0
        %7042 = vmatpush2.msra.mxu0 0.0
        %7043 = vmatprep.subr.mxu0 0.0
        %7044 = vmatpush2.msra.mxu0 0.0
        %7045 = vmatprep.subr.mxu0 0.0
        %7046 = vmatpush2.msra.mxu0 0.0
        %7047 = vmatprep.subr.mxu0 0.0
        %7048 = vmatpush2.msra.mxu0 0.0
        %7049 = vmatprep.subr.mxu0 0.0
        %7050 = vmatpush2.msra.mxu0 0.0
        %7051 = vmatprep.subr.mxu0 0.0
        %7052 = vmatpush2.msra.mxu0 0.0
        %7053 = vmatprep.subr.mxu0 0.0
        %7054 = vmatpush2.msra.mxu0 0.0
        %7055 = vmatprep.subr.mxu0 0.0
        %7056 = vmatpush2.msra.mxu0 0.0
        %7057 = vmatprep.subr.mxu0 0.0
        %7058 = vmatpush2.msra.mxu0 0.0
        %7059 = vmatprep.subr.mxu0 0.0
        %7060 = vmatpush2.msra.mxu0 0.0
        %7061 = vmatprep.subr.mxu0 0.0
        %7062 = vmatpush2.msra.mxu0 0.0
        %7063 = vmatprep.mubr.f32.mxu0 0.0
        %7064 = vmatmul.mubr.f32.gmra.mxu0 %v6187
        %v7065 = vpop.f32.mrf.mxu0
        %v7066 = vadd.f32 %v6251, %v7065
        %v7067 = vpop.f32.mrf.mxu0
        %7068 = vdwg.mxu0
        %7069 = vmatprep.subr.mxu0 %v6443
        %7070 = vmatpush1.msra.mxu0 %v6442
        %7071 = vmatprep.subr.mxu0 %v6440
        %7072 = vmatpush1.msra.mxu0 %v6439
        %7073 = vmatprep.subr.mxu0 %v6437
        %7074 = vmatpush1.msra.mxu0 %v6436
        %7075 = vmatprep.subr.mxu0 %v6434
        %7076 = vmatpush1.msra.mxu0 %v6433
        %7077 = vmatprep.subr.mxu0 %v6431
        %7078 = vmatpush1.msra.mxu0 %v6430
        %7079 = vmatprep.subr.mxu0 %v6428
        %7080 = vmatpush1.msra.mxu0 %v6427
        %7081 = vmatprep.subr.mxu0 %v6425
        %7082 = vmatpush1.msra.mxu0 %v6424
        %7083 = vmatprep.subr.mxu0 %v6422
        %7084 = vmatpush1.msra.mxu0 %v6421
        %7085 = vmatprep.subr.mxu0 %v6419
        %7086 = vmatpush1.msra.mxu0 %v6418
        %7087 = vmatprep.subr.mxu0 %v6416
        %7088 = vmatpush1.msra.mxu0 %v6415
        %7089 = vmatprep.subr.mxu0 %v6413
        %7090 = vmatpush1.msra.mxu0 %v6412
        %7091 = vmatprep.subr.mxu0 %v6410
        %7092 = vmatpush1.msra.mxu0 %v6409
        %7093 = vmatprep.subr.mxu0 %v6407
        %7094 = vmatpush1.msra.mxu0 %v6406
        %7095 = vmatprep.subr.mxu0 %v6404
        %7096 = vmatpush1.msra.mxu0 %v6403
        %7097 = vmatprep.subr.mxu0 %v6401
        %7098 = vmatpush1.msra.mxu0 %v6400
        %7099 = vmatprep.subr.mxu0 %v6398
        %7100 = vmatpush1.msra.mxu0 %v6397
        %7101 = vmatprep.subr.mxu0 0.0
        %7102 = vmatpush2.msra.mxu0 0.0
        %7103 = vmatprep.subr.mxu0 0.0
        %7104 = vmatpush2.msra.mxu0 0.0
        %7105 = vmatprep.subr.mxu0 0.0
        %7106 = vmatpush2.msra.mxu0 0.0
        %7107 = vmatprep.subr.mxu0 0.0
        %7108 = vmatpush2.msra.mxu0 0.0
        %7109 = vmatprep.subr.mxu0 0.0
        %7110 = vmatpush2.msra.mxu0 0.0
        %7111 = vmatprep.subr.mxu0 0.0
        %7112 = vmatpush2.msra.mxu0 0.0
        %7113 = vmatprep.subr.mxu0 0.0
        %7114 = vmatpush2.msra.mxu0 0.0
        %7115 = vmatprep.subr.mxu0 0.0
        %7116 = vmatpush2.msra.mxu0 0.0
        %7117 = vmatprep.subr.mxu0 0.0
        %7118 = vmatpush2.msra.mxu0 0.0
        %7119 = vmatprep.subr.mxu0 0.0
        %7120 = vmatpush2.msra.mxu0 0.0
        %7121 = vmatprep.subr.mxu0 0.0
        %7122 = vmatpush2.msra.mxu0 0.0
        %7123 = vmatprep.subr.mxu0 0.0
        %7124 = vmatpush2.msra.mxu0 0.0
        %7125 = vmatprep.subr.mxu0 0.0
        %7126 = vmatpush2.msra.mxu0 0.0
        %7127 = vmatprep.subr.mxu0 0.0
        %7128 = vmatpush2.msra.mxu0 0.0
        %7129 = vmatprep.subr.mxu0 0.0
        %7130 = vmatpush2.msra.mxu0 0.0
        %7131 = vmatprep.subr.mxu0 0.0
        %7132 = vmatpush2.msra.mxu0 0.0
        %7133 = vmatprep.mubr.f32.mxu0 0.0
        %7134 = vmatmul.mubr.f32.gmra.mxu0 %v6927
        %v7135 = vpop.f32.mrf.mxu0
        %v7136 = vadd.f32 %v6451, %v7135
        %v7137 = vpop.f32.mrf.mxu0
        %v7138 = vadd.f32 %v6455, %v7137
        %7139 = vdwg.mxu0
        %7140 = vmatprep.subr.mxu0 0.0
        %7141 = vmatpush1.msra.mxu0 %v6444
        %7142 = vmatprep.subr.mxu0 0.0
        %7143 = vmatpush1.msra.mxu0 %v6441
        %7144 = vmatprep.subr.mxu0 0.0
        %7145 = vmatpush1.msra.mxu0 %v6438
        %7146 = vmatprep.subr.mxu0 0.0
        %7147 = vmatpush1.msra.mxu0 %v6435
        %7148 = vmatprep.subr.mxu0 0.0
        %7149 = vmatpush1.msra.mxu0 %v6432
        %7150 = vmatprep.subr.mxu0 0.0
        %7151 = vmatpush1.msra.mxu0 %v6429
        %7152 = vmatprep.subr.mxu0 0.0
        %7153 = vmatpush1.msra.mxu0 %v6426
        %7154 = vmatprep.subr.mxu0 0.0
        %7155 = vmatpush1.msra.mxu0 %v6423
        %7156 = vmatprep.subr.mxu0 0.0
        %7157 = vmatpush1.msra.mxu0 %v6420
        %7158 = vmatprep.subr.mxu0 0.0
        %7159 = vmatpush1.msra.mxu0 %v6417
        %7160 = vmatprep.subr.mxu0 0.0
        %7161 = vmatpush1.msra.mxu0 %v6414
        %7162 = vmatprep.subr.mxu0 0.0
        %7163 = vmatpush1.msra.mxu0 %v6411
        %7164 = vmatprep.subr.mxu0 0.0
        %7165 = vmatpush1.msra.mxu0 %v6408
        %7166 = vmatprep.subr.mxu0 0.0
        %7167 = vmatpush1.msra.mxu0 %v6405
        %7168 = vmatprep.subr.mxu0 0.0
        %7169 = vmatpush1.msra.mxu0 %v6402
        %7170 = vmatprep.subr.mxu0 0.0
        %7171 = vmatpush1.msra.mxu0 %v6399
        %7172 = vmatprep.subr.mxu0 0.0
        %7173 = vmatpush2.msra.mxu0 0.0
        %7174 = vmatprep.subr.mxu0 0.0
        %7175 = vmatpush2.msra.mxu0 0.0
        %7176 = vmatprep.subr.mxu0 0.0
        %7177 = vmatpush2.msra.mxu0 0.0
        %7178 = vmatprep.subr.mxu0 0.0
        %7179 = vmatpush2.msra.mxu0 0.0
        %7180 = vmatprep.subr.mxu0 0.0
        %7181 = vmatpush2.msra.mxu0 0.0
        %7182 = vmatprep.subr.mxu0 0.0
        %7183 = vmatpush2.msra.mxu0 0.0
        %7184 = vmatprep.subr.mxu0 0.0
        %7185 = vmatpush2.msra.mxu0 0.0
        %7186 = vmatprep.subr.mxu0 0.0
        %7187 = vmatpush2.msra.mxu0 0.0
        %7188 = vmatprep.subr.mxu0 0.0
        %7189 = vmatpush2.msra.mxu0 0.0
        %7190 = vmatprep.subr.mxu0 0.0
        %7191 = vmatpush2.msra.mxu0 0.0
        %7192 = vmatprep.subr.mxu0 0.0
        %7193 = vmatpush2.msra.mxu0 0.0
        %7194 = vmatprep.subr.mxu0 0.0
        %7195 = vmatpush2.msra.mxu0 0.0
        %7196 = vmatprep.subr.mxu0 0.0
        %7197 = vmatpush2.msra.mxu0 0.0
        %7198 = vmatprep.subr.mxu0 0.0
        %7199 = vmatpush2.msra.mxu0 0.0
        %7200 = vmatprep.subr.mxu0 0.0
        %7201 = vmatpush2.msra.mxu0 0.0
        %7202 = vmatprep.subr.mxu0 0.0
        %7203 = vmatpush2.msra.mxu0 0.0
        %7204 = vmatprep.mubr.f32.mxu0 0.0
        %7205 = vmatmul.mubr.f32.gmra.mxu0 %v6927
        %v7206 = vpop.f32.mrf.mxu0
        %v7207 = vadd.f32 %v6459, %v7206
        %v7208 = vpop.f32.mrf.mxu0
        %7209 = vdwg.mxu0
        %v7210 = vadd.f32 %v6995, %v7136
        %v7211 = vxor.u32 %v7210, 2147483648
        %v7212 = vmul.f32 %v7211, 1.442695
        %v7213 = vpow.pop %v7212
        %v7214 = vadd.f32 %v7213, 1.0
        %v7215 = vrcp.pop %v7214
        %v7216 = vmul.f32 1.0, %v7215
        %v7217 = vadd.f32 %v6997, %v7138
        %v7218 = vxor.u32 %v7217, 2147483648
        %v7219 = vmul.f32 %v7218, 1.442695
        %v7220 = vpow.pop %v7219
        %v7221 = vadd.f32 %v7220, 1.0
        %v7222 = vrcp.pop %v7221
        %v7223 = vmul.f32 1.0, %v7222
        %v7224 = vmul.f32 %v7216, %v7207
        %v7225 = vadd.f32 %v7066, %v7224
        %v7226 = vtanh.pop %v7225
        %v7227 = vsub.f32 1.0, %v7223
        %v7228 = vmul.f32 %v7227, %v7226
        %v7229 = vmul.f32 %v7223, %v6927
        %v7230 = vadd.f32 %v7228, %v7229
        %s7231 = scalar_lea.vmem %s12, 768
        %v7232 = vld [vmem:[%s7231] sm:$0xff]
        %v7233 = vld [vmem:[%s7231 + $0x8] sm:$0xff]
        %v7234 = vld [vmem:[%s7231 + $0x10] sm:$0xff]
        %v7235 = vld [vmem:[%s7231 + $0x18] sm:$0xff]
        %v7236 = vld [vmem:[%s7231 + $0x20] sm:$0xff]
        %v7237 = vld [vmem:[%s7231 + $0x28] sm:$0xff]
        %v7238 = vld [vmem:[%s7231 + $0x30] sm:$0xff]
        %v7239 = vld [vmem:[%s7231 + $0x38] sm:$0xff]
        %v7240 = vld [vmem:[%s7231 + $0x40] sm:$0xff]
        %v7241 = vld [vmem:[%s7231 + $0x48] sm:$0xff]
        %v7242 = vld [vmem:[%s7231 + $0x50] sm:$0xff]
        %v7243 = vld [vmem:[%s7231 + $0x58] sm:$0xff]
        %v7244 = vld [vmem:[%s7231 + $0x60] sm:$0xff]
        %v7245 = vld [vmem:[%s7231 + $0x68] sm:$0xff]
        %v7246 = vld [vmem:[%s7231 + $0x70] sm:$0xff]
        %v7247 = vld [vmem:[%s7231 + $0x78] sm:$0xff]
        %v7248 = vld [vmem:[%s7231 + $0x80] sm:$0xff]
        %v7249 = vld [vmem:[%s7231 + $0x88] sm:$0xff]
        %v7250 = vld [vmem:[%s7231 + $0x90] sm:$0xff]
        %v7251 = vld [vmem:[%s7231 + $0x98] sm:$0xff]
        %v7252 = vld [vmem:[%s7231 + $0xa0] sm:$0xff]
        %v7253 = vld [vmem:[%s7231 + $0xa8] sm:$0xff]
        %v7254 = vld [vmem:[%s7231 + $0xb0] sm:$0xff]
        %v7255 = vld [vmem:[%s7231 + $0xb8] sm:$0xff]
        %v7256 = vld [vmem:[%s7231 + $0xc0] sm:$0xff]
        %v7257 = vld [vmem:[%s7231 + $0xc8] sm:$0xff]
        %v7258 = vld [vmem:[%s7231 + $0xd0] sm:$0xff]
        %v7259 = vld [vmem:[%s7231 + $0xd8] sm:$0xff]
        %v7260 = vld [vmem:[%s7231 + $0xe0] sm:$0xff]
        %v7261 = vld [vmem:[%s7231 + $0xe8] sm:$0xff]
        %v7262 = vld [vmem:[%s7231 + $0xf0] sm:$0xff]
        %v7263 = vld [vmem:[%s7231 + $0xf8] sm:$0xff]
        %v7264 = vld [vmem:[%s7231 + $0x100] sm:$0xff]
        %v7265 = vld [vmem:[%s7231 + $0x108] sm:$0xff]
        %v7266 = vld [vmem:[%s7231 + $0x110] sm:$0xff]
        %v7267 = vld [vmem:[%s7231 + $0x118] sm:$0xff]
        %v7268 = vld [vmem:[%s7231 + $0x120] sm:$0xff]
        %v7269 = vld [vmem:[%s7231 + $0x128] sm:$0xff]
        %v7270 = vld [vmem:[%s7231 + $0x130] sm:$0xff]
        %v7271 = vld [vmem:[%s7231 + $0x138] sm:$0xff]
        %v7272 = vld [vmem:[%s7231 + $0x140] sm:$0xff]
        %v7273 = vld [vmem:[%s7231 + $0x148] sm:$0xff]
        %v7274 = vld [vmem:[%s7231 + $0x150] sm:$0xff]
        %v7275 = vld [vmem:[%s7231 + $0x158] sm:$0xff]
        %v7276 = vld [vmem:[%s7231 + $0x160] sm:$0xff]
        %v7277 = vld [vmem:[%s7231 + $0x168] sm:$0xff]
        %v7278 = vld [vmem:[%s7231 + $0x170] sm:$0xff]
        %v7279 = vld [vmem:[%s7231 + $0x178] sm:$0xff]
        %s7280 = scalar_lea.vmem %s13, 2
        %v7281 = vld [vmem:[%s7280] ss:$4 sm:$0x7]
        %v7283 = vlaneseq
        %v7284 = vshrl.u32 %v7283, 7
        %v7285 = vsub.s32 0, %v7284
        %v7286 = vrot.slane %v7281, %v7285
        %v7287 = vlaneseq
        %v7288 = vshrl.u32 %v7287, 7
        %v7289 = vsub.s32 1, %v7288
        %v7290 = vrot.slane %v7281, %v7289
        %v7291 = vlaneseq
        %v7292 = vshrl.u32 %v7291, 7
        %v7293 = vsub.s32 2, %v7292
        %v7294 = vrot.slane %v7281, %v7293
        %7298 = vmatprep.subr.mxu0 %v7278
        %7299 = vmatpush1.msra.mxu0 %v7277
        %7300 = vmatprep.subr.mxu0 %v7275
        %7301 = vmatpush1.msra.mxu0 %v7274
        %7302 = vmatprep.subr.mxu0 %v7272
        %7303 = vmatpush1.msra.mxu0 %v7271
        %7304 = vmatprep.subr.mxu0 %v7269
        %7305 = vmatpush1.msra.mxu0 %v7268
        %7306 = vmatprep.subr.mxu0 %v7266
        %7307 = vmatpush1.msra.mxu0 %v7265
        %7308 = vmatprep.subr.mxu0 %v7263
        %7309 = vmatpush1.msra.mxu0 %v7262
        %7310 = vmatprep.subr.mxu0 %v7260
        %7311 = vmatpush1.msra.mxu0 %v7259
        %7312 = vmatprep.subr.mxu0 %v7257
        %7313 = vmatpush1.msra.mxu0 %v7256
        %7314 = vmatprep.subr.mxu0 %v7254
        %7315 = vmatpush1.msra.mxu0 %v7253
        %7316 = vmatprep.subr.mxu0 %v7251
        %7317 = vmatpush1.msra.mxu0 %v7250
        %7318 = vmatprep.subr.mxu0 %v7248
        %7319 = vmatpush1.msra.mxu0 %v7247
        %7320 = vmatprep.subr.mxu0 %v7245
        %7321 = vmatpush1.msra.mxu0 %v7244
        %7322 = vmatprep.subr.mxu0 %v7242
        %7323 = vmatpush1.msra.mxu0 %v7241
        %7324 = vmatprep.subr.mxu0 %v7239
        %7325 = vmatpush1.msra.mxu0 %v7238
        %7326 = vmatprep.subr.mxu0 %v7236
        %7327 = vmatpush1.msra.mxu0 %v7235
        %7328 = vmatprep.subr.mxu0 %v7233
        %7329 = vmatpush1.msra.mxu0 %v7232
        %7330 = vmatprep.subr.mxu0 0.0
        %7331 = vmatpush2.msra.mxu0 0.0
        %7332 = vmatprep.subr.mxu0 0.0
        %7333 = vmatpush2.msra.mxu0 0.0
        %7334 = vmatprep.subr.mxu0 0.0
        %7335 = vmatpush2.msra.mxu0 0.0
        %7336 = vmatprep.subr.mxu0 0.0
        %7337 = vmatpush2.msra.mxu0 0.0
        %7338 = vmatprep.subr.mxu0 0.0
        %7339 = vmatpush2.msra.mxu0 0.0
        %7340 = vmatprep.subr.mxu0 0.0
        %7341 = vmatpush2.msra.mxu0 0.0
        %7342 = vmatprep.subr.mxu0 0.0
        %7343 = vmatpush2.msra.mxu0 0.0
        %7344 = vmatprep.subr.mxu0 0.0
        %7345 = vmatpush2.msra.mxu0 0.0
        %7346 = vmatprep.subr.mxu0 0.0
        %7347 = vmatpush2.msra.mxu0 0.0
        %7348 = vmatprep.subr.mxu0 0.0
        %7349 = vmatpush2.msra.mxu0 0.0
        %7350 = vmatprep.subr.mxu0 0.0
        %7351 = vmatpush2.msra.mxu0 0.0
        %7352 = vmatprep.subr.mxu0 0.0
        %7353 = vmatpush2.msra.mxu0 0.0
        %7354 = vmatprep.subr.mxu0 0.0
        %7355 = vmatpush2.msra.mxu0 0.0
        %7356 = vmatprep.subr.mxu0 0.0
        %7357 = vmatpush2.msra.mxu0 0.0
        %7358 = vmatprep.subr.mxu0 0.0
        %7359 = vmatpush2.msra.mxu0 0.0
        %7360 = vmatprep.subr.mxu0 0.0
        %7361 = vmatpush2.msra.mxu0 0.0
        %7362 = vmatprep.mubr.f32.mxu0 0.0
        %7363 = vmatmul.mubr.f32.gmra.mxu0 %v6187
        %v7364 = vpop.f32.mrf.mxu0
        %v7365 = vadd.f32 %v7286, %v7364
        %v7366 = vpop.f32.mrf.mxu0
        %v7367 = vadd.f32 %v7290, %v7366
        %7368 = vdwg.mxu0
        %7369 = vmatprep.subr.mxu0 0.0
        %7370 = vmatpush1.msra.mxu0 %v7279
        %7371 = vmatprep.subr.mxu0 0.0
        %7372 = vmatpush1.msra.mxu0 %v7276
        %7373 = vmatprep.subr.mxu0 0.0
        %7374 = vmatpush1.msra.mxu0 %v7273
        %7375 = vmatprep.subr.mxu0 0.0
        %7376 = vmatpush1.msra.mxu0 %v7270
        %7377 = vmatprep.subr.mxu0 0.0
        %7378 = vmatpush1.msra.mxu0 %v7267
        %7379 = vmatprep.subr.mxu0 0.0
        %7380 = vmatpush1.msra.mxu0 %v7264
        %7381 = vmatprep.subr.mxu0 0.0
        %7382 = vmatpush1.msra.mxu0 %v7261
        %7383 = vmatprep.subr.mxu0 0.0
        %7384 = vmatpush1.msra.mxu0 %v7258
        %7385 = vmatprep.subr.mxu0 0.0
        %7386 = vmatpush1.msra.mxu0 %v7255
        %7387 = vmatprep.subr.mxu0 0.0
        %7388 = vmatpush1.msra.mxu0 %v7252
        %7389 = vmatprep.subr.mxu0 0.0
        %7390 = vmatpush1.msra.mxu0 %v7249
        %7391 = vmatprep.subr.mxu0 0.0
        %7392 = vmatpush1.msra.mxu0 %v7246
        %7393 = vmatprep.subr.mxu0 0.0
        %7394 = vmatpush1.msra.mxu0 %v7243
        %7395 = vmatprep.subr.mxu0 0.0
        %7396 = vmatpush1.msra.mxu0 %v7240
        %7397 = vmatprep.subr.mxu0 0.0
        %7398 = vmatpush1.msra.mxu0 %v7237
        %7399 = vmatprep.subr.mxu0 0.0
        %7400 = vmatpush1.msra.mxu0 %v7234
        %7401 = vmatprep.subr.mxu0 0.0
        %7402 = vmatpush2.msra.mxu0 0.0
        %7403 = vmatprep.subr.mxu0 0.0
        %7404 = vmatpush2.msra.mxu0 0.0
        %7405 = vmatprep.subr.mxu0 0.0
        %7406 = vmatpush2.msra.mxu0 0.0
        %7407 = vmatprep.subr.mxu0 0.0
        %7408 = vmatpush2.msra.mxu0 0.0
        %7409 = vmatprep.subr.mxu0 0.0
        %7410 = vmatpush2.msra.mxu0 0.0
        %7411 = vmatprep.subr.mxu0 0.0
        %7412 = vmatpush2.msra.mxu0 0.0
        %7413 = vmatprep.subr.mxu0 0.0
        %7414 = vmatpush2.msra.mxu0 0.0
        %7415 = vmatprep.subr.mxu0 0.0
        %7416 = vmatpush2.msra.mxu0 0.0
        %7417 = vmatprep.subr.mxu0 0.0
        %7418 = vmatpush2.msra.mxu0 0.0
        %7419 = vmatprep.subr.mxu0 0.0
        %7420 = vmatpush2.msra.mxu0 0.0
        %7421 = vmatprep.subr.mxu0 0.0
        %7422 = vmatpush2.msra.mxu0 0.0
        %7423 = vmatprep.subr.mxu0 0.0
        %7424 = vmatpush2.msra.mxu0 0.0
        %7425 = vmatprep.subr.mxu0 0.0
        %7426 = vmatpush2.msra.mxu0 0.0
        %7427 = vmatprep.subr.mxu0 0.0
        %7428 = vmatpush2.msra.mxu0 0.0
        %7429 = vmatprep.subr.mxu0 0.0
        %7430 = vmatpush2.msra.mxu0 0.0
        %7431 = vmatprep.subr.mxu0 0.0
        %7432 = vmatpush2.msra.mxu0 0.0
        %7433 = vmatprep.mubr.f32.mxu0 0.0
        %7434 = vmatmul.mubr.f32.gmra.mxu0 %v6187
        %v7435 = vpop.f32.mrf.mxu0
        %v7436 = vadd.f32 %v7294, %v7435
        %v7437 = vpop.f32.mrf.mxu0
        %7438 = vdwg.mxu0
        %s7439 = scalar_lea.vmem %s12, 1152
        %v7440 = vld [vmem:[%s7439] sm:$0xff]
        %v7441 = vld [vmem:[%s7439 + $0x8] sm:$0xff]
        %v7442 = vld [vmem:[%s7439 + $0x10] sm:$0xff]
        %v7443 = vld [vmem:[%s7439 + $0x18] sm:$0xff]
        %v7444 = vld [vmem:[%s7439 + $0x20] sm:$0xff]
        %v7445 = vld [vmem:[%s7439 + $0x28] sm:$0xff]
        %v7446 = vld [vmem:[%s7439 + $0x30] sm:$0xff]
        %v7447 = vld [vmem:[%s7439 + $0x38] sm:$0xff]
        %v7448 = vld [vmem:[%s7439 + $0x40] sm:$0xff]
        %v7449 = vld [vmem:[%s7439 + $0x48] sm:$0xff]
        %v7450 = vld [vmem:[%s7439 + $0x50] sm:$0xff]
        %v7451 = vld [vmem:[%s7439 + $0x58] sm:$0xff]
        %v7452 = vld [vmem:[%s7439 + $0x60] sm:$0xff]
        %v7453 = vld [vmem:[%s7439 + $0x68] sm:$0xff]
        %v7454 = vld [vmem:[%s7439 + $0x70] sm:$0xff]
        %v7455 = vld [vmem:[%s7439 + $0x78] sm:$0xff]
        %v7456 = vld [vmem:[%s7439 + $0x80] sm:$0xff]
        %v7457 = vld [vmem:[%s7439 + $0x88] sm:$0xff]
        %v7458 = vld [vmem:[%s7439 + $0x90] sm:$0xff]
        %v7459 = vld [vmem:[%s7439 + $0x98] sm:$0xff]
        %v7460 = vld [vmem:[%s7439 + $0xa0] sm:$0xff]
        %v7461 = vld [vmem:[%s7439 + $0xa8] sm:$0xff]
        %v7462 = vld [vmem:[%s7439 + $0xb0] sm:$0xff]
        %v7463 = vld [vmem:[%s7439 + $0xb8] sm:$0xff]
        %v7464 = vld [vmem:[%s7439 + $0xc0] sm:$0xff]
        %v7465 = vld [vmem:[%s7439 + $0xc8] sm:$0xff]
        %v7466 = vld [vmem:[%s7439 + $0xd0] sm:$0xff]
        %v7467 = vld [vmem:[%s7439 + $0xd8] sm:$0xff]
        %v7468 = vld [vmem:[%s7439 + $0xe0] sm:$0xff]
        %v7469 = vld [vmem:[%s7439 + $0xe8] sm:$0xff]
        %v7470 = vld [vmem:[%s7439 + $0xf0] sm:$0xff]
        %v7471 = vld [vmem:[%s7439 + $0xf8] sm:$0xff]
        %v7472 = vld [vmem:[%s7439 + $0x100] sm:$0xff]
        %v7473 = vld [vmem:[%s7439 + $0x108] sm:$0xff]
        %v7474 = vld [vmem:[%s7439 + $0x110] sm:$0xff]
        %v7475 = vld [vmem:[%s7439 + $0x118] sm:$0xff]
        %v7476 = vld [vmem:[%s7439 + $0x120] sm:$0xff]
        %v7477 = vld [vmem:[%s7439 + $0x128] sm:$0xff]
        %v7478 = vld [vmem:[%s7439 + $0x130] sm:$0xff]
        %v7479 = vld [vmem:[%s7439 + $0x138] sm:$0xff]
        %v7480 = vld [vmem:[%s7439 + $0x140] sm:$0xff]
        %v7481 = vld [vmem:[%s7439 + $0x148] sm:$0xff]
        %v7482 = vld [vmem:[%s7439 + $0x150] sm:$0xff]
        %v7483 = vld [vmem:[%s7439 + $0x158] sm:$0xff]
        %v7484 = vld [vmem:[%s7439 + $0x160] sm:$0xff]
        %v7485 = vld [vmem:[%s7439 + $0x168] sm:$0xff]
        %v7486 = vld [vmem:[%s7439 + $0x170] sm:$0xff]
        %v7487 = vld [vmem:[%s7439 + $0x178] sm:$0xff]
        %s7488 = scalar_lea.vmem %s13, 3
        %v7489 = vld [vmem:[%s7488] ss:$4 sm:$0x7]
        %v7491 = vlaneseq
        %v7492 = vshrl.u32 %v7491, 7
        %v7493 = vsub.s32 0, %v7492
        %v7494 = vrot.slane %v7489, %v7493
        %v7495 = vlaneseq
        %v7496 = vshrl.u32 %v7495, 7
        %v7497 = vsub.s32 1, %v7496
        %v7498 = vrot.slane %v7489, %v7497
        %v7499 = vlaneseq
        %v7500 = vshrl.u32 %v7499, 7
        %v7501 = vsub.s32 2, %v7500
        %v7502 = vrot.slane %v7489, %v7501
        %7506 = vmatprep.subr.mxu0 %v7486
        %7507 = vmatpush1.msra.mxu0 %v7485
        %7508 = vmatprep.subr.mxu0 %v7483
        %7509 = vmatpush1.msra.mxu0 %v7482
        %7510 = vmatprep.subr.mxu0 %v7480
        %7511 = vmatpush1.msra.mxu0 %v7479
        %7512 = vmatprep.subr.mxu0 %v7477
        %7513 = vmatpush1.msra.mxu0 %v7476
        %7514 = vmatprep.subr.mxu0 %v7474
        %7515 = vmatpush1.msra.mxu0 %v7473
        %7516 = vmatprep.subr.mxu0 %v7471
        %7517 = vmatpush1.msra.mxu0 %v7470
        %7518 = vmatprep.subr.mxu0 %v7468
        %7519 = vmatpush1.msra.mxu0 %v7467
        %7520 = vmatprep.subr.mxu0 %v7465
        %7521 = vmatpush1.msra.mxu0 %v7464
        %7522 = vmatprep.subr.mxu0 %v7462
        %7523 = vmatpush1.msra.mxu0 %v7461
        %7524 = vmatprep.subr.mxu0 %v7459
        %7525 = vmatpush1.msra.mxu0 %v7458
        %7526 = vmatprep.subr.mxu0 %v7456
        %7527 = vmatpush1.msra.mxu0 %v7455
        %7528 = vmatprep.subr.mxu0 %v7453
        %7529 = vmatpush1.msra.mxu0 %v7452
        %7530 = vmatprep.subr.mxu0 %v7450
        %7531 = vmatpush1.msra.mxu0 %v7449
        %7532 = vmatprep.subr.mxu0 %v7447
        %7533 = vmatpush1.msra.mxu0 %v7446
        %7534 = vmatprep.subr.mxu0 %v7444
        %7535 = vmatpush1.msra.mxu0 %v7443
        %7536 = vmatprep.subr.mxu0 %v7441
        %7537 = vmatpush1.msra.mxu0 %v7440
        %7538 = vmatprep.subr.mxu0 0.0
        %7539 = vmatpush2.msra.mxu0 0.0
        %7540 = vmatprep.subr.mxu0 0.0
        %7541 = vmatpush2.msra.mxu0 0.0
        %7542 = vmatprep.subr.mxu0 0.0
        %7543 = vmatpush2.msra.mxu0 0.0
        %7544 = vmatprep.subr.mxu0 0.0
        %7545 = vmatpush2.msra.mxu0 0.0
        %7546 = vmatprep.subr.mxu0 0.0
        %7547 = vmatpush2.msra.mxu0 0.0
        %7548 = vmatprep.subr.mxu0 0.0
        %7549 = vmatpush2.msra.mxu0 0.0
        %7550 = vmatprep.subr.mxu0 0.0
        %7551 = vmatpush2.msra.mxu0 0.0
        %7552 = vmatprep.subr.mxu0 0.0
        %7553 = vmatpush2.msra.mxu0 0.0
        %7554 = vmatprep.subr.mxu0 0.0
        %7555 = vmatpush2.msra.mxu0 0.0
        %7556 = vmatprep.subr.mxu0 0.0
        %7557 = vmatpush2.msra.mxu0 0.0
        %7558 = vmatprep.subr.mxu0 0.0
        %7559 = vmatpush2.msra.mxu0 0.0
        %7560 = vmatprep.subr.mxu0 0.0
        %7561 = vmatpush2.msra.mxu0 0.0
        %7562 = vmatprep.subr.mxu0 0.0
        %7563 = vmatpush2.msra.mxu0 0.0
        %7564 = vmatprep.subr.mxu0 0.0
        %7565 = vmatpush2.msra.mxu0 0.0
        %7566 = vmatprep.subr.mxu0 0.0
        %7567 = vmatpush2.msra.mxu0 0.0
        %7568 = vmatprep.subr.mxu0 0.0
        %7569 = vmatpush2.msra.mxu0 0.0
        %7570 = vmatprep.mubr.f32.mxu0 0.0
        %7571 = vmatmul.mubr.f32.gmra.mxu0 0.0
        %v7572 = vpop.f32.mrf.mxu0
        %v7573 = vadd.f32 %v7494, %v7572
        %v7574 = vpop.f32.mrf.mxu0
        %v7575 = vadd.f32 %v7498, %v7574
        %7576 = vdwg.mxu0
        %7577 = vmatprep.subr.mxu0 0.0
        %7578 = vmatpush1.msra.mxu0 %v7487
        %7579 = vmatprep.subr.mxu0 0.0
        %7580 = vmatpush1.msra.mxu0 %v7484
        %7581 = vmatprep.subr.mxu0 0.0
        %7582 = vmatpush1.msra.mxu0 %v7481
        %7583 = vmatprep.subr.mxu0 0.0
        %7584 = vmatpush1.msra.mxu0 %v7478
        %7585 = vmatprep.subr.mxu0 0.0
        %7586 = vmatpush1.msra.mxu0 %v7475
        %7587 = vmatprep.subr.mxu0 0.0
        %7588 = vmatpush1.msra.mxu0 %v7472
        %7589 = vmatprep.subr.mxu0 0.0
        %7590 = vmatpush1.msra.mxu0 %v7469
        %7591 = vmatprep.subr.mxu0 0.0
        %7592 = vmatpush1.msra.mxu0 %v7466
        %7593 = vmatprep.subr.mxu0 0.0
        %7594 = vmatpush1.msra.mxu0 %v7463
        %7595 = vmatprep.subr.mxu0 0.0
        %7596 = vmatpush1.msra.mxu0 %v7460
        %7597 = vmatprep.subr.mxu0 0.0
        %7598 = vmatpush1.msra.mxu0 %v7457
        %7599 = vmatprep.subr.mxu0 0.0
        %7600 = vmatpush1.msra.mxu0 %v7454
        %7601 = vmatprep.subr.mxu0 0.0
        %7602 = vmatpush1.msra.mxu0 %v7451
        %7603 = vmatprep.subr.mxu0 0.0
        %7604 = vmatpush1.msra.mxu0 %v7448
        %7605 = vmatprep.subr.mxu0 0.0
        %7606 = vmatpush1.msra.mxu0 %v7445
        %7607 = vmatprep.subr.mxu0 0.0
        %7608 = vmatpush1.msra.mxu0 %v7442
        %7609 = vmatprep.subr.mxu0 0.0
        %7610 = vmatpush2.msra.mxu0 0.0
        %7611 = vmatprep.subr.mxu0 0.0
        %7612 = vmatpush2.msra.mxu0 0.0
        %7613 = vmatprep.subr.mxu0 0.0
        %7614 = vmatpush2.msra.mxu0 0.0
        %7615 = vmatprep.subr.mxu0 0.0
        %7616 = vmatpush2.msra.mxu0 0.0
        %7617 = vmatprep.subr.mxu0 0.0
        %7618 = vmatpush2.msra.mxu0 0.0
        %7619 = vmatprep.subr.mxu0 0.0
        %7620 = vmatpush2.msra.mxu0 0.0
        %7621 = vmatprep.subr.mxu0 0.0
        %7622 = vmatpush2.msra.mxu0 0.0
        %7623 = vmatprep.subr.mxu0 0.0
        %7624 = vmatpush2.msra.mxu0 0.0
        %7625 = vmatprep.subr.mxu0 0.0
        %7626 = vmatpush2.msra.mxu0 0.0
        %7627 = vmatprep.subr.mxu0 0.0
        %7628 = vmatpush2.msra.mxu0 0.0
        %7629 = vmatprep.subr.mxu0 0.0
        %7630 = vmatpush2.msra.mxu0 0.0
        %7631 = vmatprep.subr.mxu0 0.0
        %7632 = vmatpush2.msra.mxu0 0.0
        %7633 = vmatprep.subr.mxu0 0.0
        %7634 = vmatpush2.msra.mxu0 0.0
        %7635 = vmatprep.subr.mxu0 0.0
        %7636 = vmatpush2.msra.mxu0 0.0
        %7637 = vmatprep.subr.mxu0 0.0
        %7638 = vmatpush2.msra.mxu0 0.0
        %7639 = vmatprep.subr.mxu0 0.0
        %7640 = vmatpush2.msra.mxu0 0.0
        %7641 = vmatprep.mubr.f32.mxu0 0.0
        %7642 = vmatmul.mubr.f32.gmra.mxu0 0.0
        %v7643 = vpop.f32.mrf.mxu0
        %v7644 = vadd.f32 %v7502, %v7643
        %v7645 = vpop.f32.mrf.mxu0
        %7646 = vdwg.mxu0
        %v7647 = vadd.f32 %v7365, %v7573
        %v7648 = vxor.u32 %v7647, 2147483648
        %v7649 = vmul.f32 %v7648, 1.442695
        %v7650 = vpow.pop %v7649
        %v7651 = vadd.f32 %v7650, 1.0
        %v7652 = vrcp.pop %v7651
        %v7653 = vmul.f32 1.0, %v7652
        %v7654 = vadd.f32 %v7367, %v7575
        %v7655 = vxor.u32 %v7654, 2147483648
        %v7656 = vmul.f32 %v7655, 1.442695
        %v7657 = vpow.pop %v7656
        %v7658 = vadd.f32 %v7657, 1.0
        %v7659 = vrcp.pop %v7658
        %v7660 = vmul.f32 1.0, %v7659
        %v7661 = vmul.f32 %v7653, %v7644
        %v7662 = vadd.f32 %v7436, %v7661
        %v7663 = vtanh.pop %v7662
        %v7664 = vsub.f32 1.0, %v7660
        %v7665 = vmul.f32 %v7664, %v7663
        %v7666 = vmul.f32 %v7660, 0.0
        %v7667 = vadd.f32 %v7665, %v7666
        %v7668 = vld [vmem:[%s14] sm:$0xff]
        %v7669 = vld [vmem:[%s14 + $0x8] sm:$0xff]
        %v7670 = vld [vmem:[%s14 + $0x10] sm:$0xff]
        %v7671 = vld [vmem:[%s14 + $0x18] sm:$0xff]
        %v7672 = vld [vmem:[%s14 + $0x20] sm:$0xff]
        %v7673 = vld [vmem:[%s14 + $0x28] sm:$0xff]
        %v7674 = vld [vmem:[%s14 + $0x30] sm:$0xff]
        %v7675 = vld [vmem:[%s14 + $0x38] sm:$0xff]
        %v7676 = vld [vmem:[%s14 + $0x40] sm:$0xff]
        %v7677 = vld [vmem:[%s14 + $0x48] sm:$0xff]
        %v7678 = vld [vmem:[%s14 + $0x50] sm:$0xff]
        %v7679 = vld [vmem:[%s14 + $0x58] sm:$0xff]
        %v7680 = vld [vmem:[%s14 + $0x60] sm:$0xff]
        %v7681 = vld [vmem:[%s14 + $0x68] sm:$0xff]
        %v7682 = vld [vmem:[%s14 + $0x70] sm:$0xff]
        %v7683 = vld [vmem:[%s14 + $0x78] sm:$0xff]
        %s7684 = scalar_lea.vmem %s14, 128
        %v7685 = vld [vmem:[%s7684] sm:$0xff]
        %v7686 = vld [vmem:[%s7684 + $0x8] sm:$0xff]
        %v7687 = vld [vmem:[%s7684 + $0x10] sm:$0xff]
        %v7688 = vld [vmem:[%s7684 + $0x18] sm:$0xff]
        %v7689 = vld [vmem:[%s7684 + $0x20] sm:$0xff]
        %v7690 = vld [vmem:[%s7684 + $0x28] sm:$0xff]
        %v7691 = vld [vmem:[%s7684 + $0x30] sm:$0xff]
        %v7692 = vld [vmem:[%s7684 + $0x38] sm:$0xff]
        %v7693 = vld [vmem:[%s7684 + $0x40] sm:$0xff]
        %v7694 = vld [vmem:[%s7684 + $0x48] sm:$0xff]
        %v7695 = vld [vmem:[%s7684 + $0x50] sm:$0xff]
        %v7696 = vld [vmem:[%s7684 + $0x58] sm:$0xff]
        %v7697 = vld [vmem:[%s7684 + $0x60] sm:$0xff]
        %v7698 = vld [vmem:[%s7684 + $0x68] sm:$0xff]
        %v7699 = vld [vmem:[%s7684 + $0x70] sm:$0xff]
        %v7700 = vld [vmem:[%s7684 + $0x78] sm:$0xff]
        %7701 = vmatprep.subr.mxu0 0.0
        %7702 = vmatpush1.msra.mxu0 %v7700
        %7703 = vmatprep.subr.mxu0 0.0
        %7704 = vmatpush1.msra.mxu0 %v7699
        %7705 = vmatprep.subr.mxu0 0.0
        %7706 = vmatpush1.msra.mxu0 %v7698
        %7707 = vmatprep.subr.mxu0 0.0
        %7708 = vmatpush1.msra.mxu0 %v7697
        %7709 = vmatprep.subr.mxu0 0.0
        %7710 = vmatpush1.msra.mxu0 %v7696
        %7711 = vmatprep.subr.mxu0 0.0
        %7712 = vmatpush1.msra.mxu0 %v7695
        %7713 = vmatprep.subr.mxu0 0.0
        %7714 = vmatpush1.msra.mxu0 %v7694
        %7715 = vmatprep.subr.mxu0 0.0
        %7716 = vmatpush1.msra.mxu0 %v7693
        %7717 = vmatprep.subr.mxu0 0.0
        %7718 = vmatpush1.msra.mxu0 %v7692
        %7719 = vmatprep.subr.mxu0 0.0
        %7720 = vmatpush1.msra.mxu0 %v7691
        %7721 = vmatprep.subr.mxu0 0.0
        %7722 = vmatpush1.msra.mxu0 %v7690
        %7723 = vmatprep.subr.mxu0 0.0
        %7724 = vmatpush1.msra.mxu0 %v7689
        %7725 = vmatprep.subr.mxu0 0.0
        %7726 = vmatpush1.msra.mxu0 %v7688
        %7727 = vmatprep.subr.mxu0 0.0
        %7728 = vmatpush1.msra.mxu0 %v7687
        %7729 = vmatprep.subr.mxu0 0.0
        %7730 = vmatpush1.msra.mxu0 %v7686
        %7731 = vmatprep.subr.mxu0 0.0
        %7732 = vmatpush1.msra.mxu0 %v7685
        %7733 = vmatprep.subr.mxu0 0.0
        %7734 = vmatpush2.msra.mxu0 0.0
        %7735 = vmatprep.subr.mxu0 0.0
        %7736 = vmatpush2.msra.mxu0 0.0
        %7737 = vmatprep.subr.mxu0 0.0
        %7738 = vmatpush2.msra.mxu0 0.0
        %7739 = vmatprep.subr.mxu0 0.0
        %7740 = vmatpush2.msra.mxu0 0.0
        %7741 = vmatprep.subr.mxu0 0.0
        %7742 = vmatpush2.msra.mxu0 0.0
        %7743 = vmatprep.subr.mxu0 0.0
        %7744 = vmatpush2.msra.mxu0 0.0
        %7745 = vmatprep.subr.mxu0 0.0
        %7746 = vmatpush2.msra.mxu0 0.0
        %7747 = vmatprep.subr.mxu0 0.0
        %7748 = vmatpush2.msra.mxu0 0.0
        %7749 = vmatprep.subr.mxu0 0.0
        %7750 = vmatpush2.msra.mxu0 0.0
        %7751 = vmatprep.subr.mxu0 0.0
        %7752 = vmatpush2.msra.mxu0 0.0
        %7753 = vmatprep.subr.mxu0 0.0
        %7754 = vmatpush2.msra.mxu0 0.0
        %7755 = vmatprep.subr.mxu0 0.0
        %7756 = vmatpush2.msra.mxu0 0.0
        %7757 = vmatprep.subr.mxu0 0.0
        %7758 = vmatpush2.msra.mxu0 0.0
        %7759 = vmatprep.subr.mxu0 0.0
        %7760 = vmatpush2.msra.mxu0 0.0
        %7761 = vmatprep.subr.mxu0 0.0
        %7762 = vmatpush2.msra.mxu0 0.0
        %7763 = vmatprep.subr.mxu0 0.0
        %7764 = vmatpush2.msra.mxu0 0.0
        %7765 = vmatprep.mubr.f32.mxu0 0.0
        %7766 = vmatmul.mubr.f32.gmra.mxu0 %v7667
        %v7767 = vpop.f32.mrf.mxu0
        %v7768 = vadd.f32 0.0, %v7767
        %v7769 = vpop.f32.mrf.mxu0
        %7770 = vdwg.mxu0
        %7771 = vmatprep.subr.mxu0 0.0
        %7772 = vmatpush1.msra.mxu0 %v7683
        %7773 = vmatprep.subr.mxu0 0.0
        %7774 = vmatpush1.msra.mxu0 %v7682
        %7775 = vmatprep.subr.mxu0 0.0
        %7776 = vmatpush1.msra.mxu0 %v7681
        %7777 = vmatprep.subr.mxu0 0.0
        %7778 = vmatpush1.msra.mxu0 %v7680
        %7779 = vmatprep.subr.mxu0 0.0
        %7780 = vmatpush1.msra.mxu0 %v7679
        %7781 = vmatprep.subr.mxu0 0.0
        %7782 = vmatpush1.msra.mxu0 %v7678
        %7783 = vmatprep.subr.mxu0 0.0
        %7784 = vmatpush1.msra.mxu0 %v7677
        %7785 = vmatprep.subr.mxu0 0.0
        %7786 = vmatpush1.msra.mxu0 %v7676
        %7787 = vmatprep.subr.mxu0 0.0
        %7788 = vmatpush1.msra.mxu0 %v7675
        %7789 = vmatprep.subr.mxu0 0.0
        %7790 = vmatpush1.msra.mxu0 %v7674
        %7791 = vmatprep.subr.mxu0 0.0
        %7792 = vmatpush1.msra.mxu0 %v7673
        %7793 = vmatprep.subr.mxu0 0.0
        %7794 = vmatpush1.msra.mxu0 %v7672
        %7795 = vmatprep.subr.mxu0 0.0
        %7796 = vmatpush1.msra.mxu0 %v7671
        %7797 = vmatprep.subr.mxu0 0.0
        %7798 = vmatpush1.msra.mxu0 %v7670
        %7799 = vmatprep.subr.mxu0 0.0
        %7800 = vmatpush1.msra.mxu0 %v7669
        %7801 = vmatprep.subr.mxu0 0.0
        %7802 = vmatpush1.msra.mxu0 %v7668
        %7803 = vmatprep.subr.mxu0 0.0
        %7804 = vmatpush2.msra.mxu0 0.0
        %7805 = vmatprep.subr.mxu0 0.0
        %7806 = vmatpush2.msra.mxu0 0.0
        %7807 = vmatprep.subr.mxu0 0.0
        %7808 = vmatpush2.msra.mxu0 0.0
        %7809 = vmatprep.subr.mxu0 0.0
        %7810 = vmatpush2.msra.mxu0 0.0
        %7811 = vmatprep.subr.mxu0 0.0
        %7812 = vmatpush2.msra.mxu0 0.0
        %7813 = vmatprep.subr.mxu0 0.0
        %7814 = vmatpush2.msra.mxu0 0.0
        %7815 = vmatprep.subr.mxu0 0.0
        %7816 = vmatpush2.msra.mxu0 0.0
        %7817 = vmatprep.subr.mxu0 0.0
        %7818 = vmatpush2.msra.mxu0 0.0
        %7819 = vmatprep.subr.mxu0 0.0
        %7820 = vmatpush2.msra.mxu0 0.0
        %7821 = vmatprep.subr.mxu0 0.0
        %7822 = vmatpush2.msra.mxu0 0.0
        %7823 = vmatprep.subr.mxu0 0.0
        %7824 = vmatpush2.msra.mxu0 0.0
        %7825 = vmatprep.subr.mxu0 0.0
        %7826 = vmatpush2.msra.mxu0 0.0
        %7827 = vmatprep.subr.mxu0 0.0
        %7828 = vmatpush2.msra.mxu0 0.0
        %7829 = vmatprep.subr.mxu0 0.0
        %7830 = vmatpush2.msra.mxu0 0.0
        %7831 = vmatprep.subr.mxu0 0.0
        %7832 = vmatpush2.msra.mxu0 0.0
        %7833 = vmatprep.subr.mxu0 0.0
        %7834 = vmatpush2.msra.mxu0 0.0
        %7835 = vmatprep.mubr.f32.mxu0 0.0
        %7836 = vmatmul.mubr.f32.gmra.mxu0 %v7230
        %v7837 = vpop.f32.mrf.mxu0
        %v7838 = vadd.f32 %v7768, %v7837
        %v7839 = vpop.f32.mrf.mxu0
        %7840 = vdwg.mxu0
        %v7841 = vld [vmem:[%s15] sm:$0x1]
        %v7842 = vadd.f32 %v7838, %v7841
        %v7843 = vxor.u32 %v7842, 2147483648
        %v7844 = vmul.f32 %v7843, 1.442695
        %v7845 = vpow.pop %v7844
        %v7846 = vadd.f32 %v7845, 1.0
        %v7847 = vrcp.pop %v7846
        %v7848 = vmul.f32 1.0, %v7847
        %7849 = vst [vmem:[%s551] sm:$0x1] %v7848
        %s7850 = sand.u32 %s384, 1
        %s7851 = scalar_lea.sflag [#allocation8], %s7850
        %s7852 = sand.u32 %s384, 1
        %s7853 = smul.addr %s7852, 4
        %s7854 = scalar_lea.vmem [#allocation7], %s7853
        %s7855 = sand.u32 %s410, 1
        %s7856 = scalar_lea.sflag [#allocation10], %s7855
        %s7857 = sand.u32 %s410, 1
        %s7858 = scalar_lea.vmem [#allocation9], %s7857
        // Predicated region
        $region85: #{rcnn_backbone_forward.1} parent=83 // pred_check
          %p7859 = pneg %p394
        $region86: #{rcnn_backbone_forward.1} parent=83 // pred_check_branch
          %7861 = sbr.rel (%p7859) target = $region88
        $region87: #{rcnn_backbone_forward.1} parent=83 // pred_region
          %s7863 = ssub.s32 64, 64
          %7864 = vsyncadd %s7851, %s7863
          %s7865 = smul.addr %s35, 64
          %s7866 = scalar_lea.hbm %s16, %s7865
          %s7868 = sshll.u32 %s7854, 4
          %s7869 = int_to_ptr.vmem [resolvable:$true] %s7868
          %7871 = dma.vmem_to_hbm [thread:$0]  %s7869, 64, %s7866, %s7851
        $region88: #{rcnn_backbone_forward.1} parent=83 // pred_fallthru
          _
        // Predicated region
        $region89: #{rcnn_backbone_forward.1} parent=83 // pred_check
          %p7872 = pneg %p420
        $region90: #{rcnn_backbone_forward.1} parent=83 // pred_check_branch
          %7874 = sbr.rel (%p7872) target = $region92
        $region91: #{rcnn_backbone_forward.1} parent=83 // pred_region
          %s7876 = ssub.s32 16, 16
          %7877 = vsyncadd %s7856, %s7876
          %s7878 = smul.addr %s35, 16
          %s7879 = scalar_lea.hbm %s17, %s7878
          %s7881 = sshll.u32 %s7858, 4
          %s7882 = int_to_ptr.vmem [resolvable:$true] %s7881
          %7884 = dma.vmem_to_hbm [thread:$0]  %s7882, 16, %s7879, %s7856
        $region92: #{rcnn_backbone_forward.1} parent=83 // pred_fallthru
          _
      $region84: #{rcnn_backbone_forward.1} parent=5 // pred_fallthru
        _
      %p7885 = scmp.le.s32.totalorder 2, %s30
      // Predicated region
      $region93: #{rcnn_backbone_forward.1} parent=5 // pred_check
        %p7886 = pneg %p7885
      $region94: #{rcnn_backbone_forward.1} parent=5 // pred_check_branch
        %7888 = sbr.rel (%p7886) target = $region96
      $region95: #{rcnn_backbone_forward.1} parent=5 // pred_region
        %s7889 = ssub.s32 %s30, 2
        // Predicated region
        $region97: #{rcnn_backbone_forward.1} parent=95 // pred_check
          %p7890 = pneg %p400
        $region98: #{rcnn_backbone_forward.1} parent=95 // pred_check_branch
          %7892 = sbr.rel (%p7890) target = $region100
        $region99: #{rcnn_backbone_forward.1} parent=95 // pred_region
          %s7893 = sand.u32 %s385, 1
          %s7894 = scalar_lea.sflag [#allocation8], %s7893
          %s7895 = sand.u32 %s385, 1
          %s7896 = smul.addr %s7895, 4
          %s7897 = scalar_lea.vmem [#allocation7], %s7896
          %7898 = dma.done %s7894, 64
        $region100: #{rcnn_backbone_forward.1} parent=95 // pred_fallthru
          _
        // Predicated region
        $region101: #{rcnn_backbone_forward.1} parent=95 // pred_check
          %p7899 = pneg %p426
        $region102: #{rcnn_backbone_forward.1} parent=95 // pred_check_branch
          %7901 = sbr.rel (%p7899) target = $region104
        $region103: #{rcnn_backbone_forward.1} parent=95 // pred_region
          %s7902 = sand.u32 %s411, 1
          %s7903 = scalar_lea.sflag [#allocation10], %s7902
          %s7904 = sand.u32 %s411, 1
          %s7905 = scalar_lea.vmem [#allocation9], %s7904
          %7906 = dma.done %s7903, 16
        $region104: #{rcnn_backbone_forward.1} parent=95 // pred_fallthru
          _
      $region96: #{rcnn_backbone_forward.1} parent=5 // pred_fallthru
        _
    $region6: #{rcnn_backbone_forward.1} parent=1 // loop_footer
      %s34 = sadd.s32 1, %s30
    $region7: #{rcnn_backbone_forward.1} parent=1 // loop_footer_branch
      %29 = sbr.rel target = $region3
    $region8: #{rcnn_backbone_forward.1} parent=1 // loop_exit
      _
    %7907 = vsyncpa [#allocation8], 1
    %s7908 = scalar_lea.sflag [#allocation8], 1
    %7909 = vsyncpa %s7908, 1
    %7910 = vsyncpa [#allocation10], 1
    %s7911 = scalar_lea.sflag [#allocation10], 1
    %7912 = vsyncpa %s7911, 1

</llo_original>
